<compile_context>
chip_gen: v7x
topology: tpu7x:2x2x1
jax: 0.10.0
libtpu: 0.0.40
codegen_flags: <defaults>
</compile_context>

<pallas_src>
import functools
import math

import jax
import jax.numpy as jnp
from jax import lax
from jax.experimental import pallas as pl
from jax.experimental.pallas import tpu as pltpu

# ----- "globals" of the original repo, picked small & consistent -------------
IMAGE_CHANNELS = 3
EXTRA_CHANNELS = 1
IMAGE_HEIGHT = 36
IMAGE_WIDTH = 36
OUTPUT_NUM = 6
QNET_ENABLED = True          # True => no trailing softmax (DQN-style head)
NEG_SLOPE = 0.01             # nn.LeakyReLU default negative_slope

# conv architecture constants (match the PyTorch module)
KH1, KW1, SH1, SW1, C1 = 8, 8, 4, 4, 30
KH2, KW2, SH2, SW2, C2 = 4, 4, 2, 2, 35
KH3, KW3, SH3, SW3, C3 = 3, 3, 1, 1, 40
FC_HIDDEN = 512
LANES = 128                  # channel padding target (MXU/vreg lane width)


# =============================== Pallas kernel ===============================
def _whg_fused_kernel(p_ref, w1_ref, b1_ref, w2_ref, b2_ref, w3_ref, b3_ref,
                      wf1_ref, bf1_ref, wf2_ref, bf2_ref,
                      o_ref, x2_ref, *,
                      bb, h1, w1, kh2, kw2, sh2, sw2, apply_softmax, n_out):
    """Whole WHGModel forward for one block of `bb` samples, all in VMEM.

    p_ref  : (h1*w1, bb, Cin*KH1*KW1) bf16  conv1 im2col rows (pos-major)
    w*_ref : padded bf16 weight matrices, b*_ref : f32 (1, N) biases
    o_ref  : (bb, 128) f32 (first n_out lanes valid)
    x2_ref : (npos2*bb, kh2*kw2*128) bf16 VMEM scratch = conv2 im2col buffer
    """
    def leaky(v):
        return jnp.maximum(v, NEG_SLOPE * v)   # identical to LeakyReLU for slope<1

    npos1 = h1 * w1
    k1 = p_ref.shape[2]
    h2 = (h1 - kh2) // sh2 + 1
    w2 = (w1 - kw2) // sw2 + 1
    npos2 = h2 * w2

    # ---------------- conv1: one big lane-dense matmul ----------------------
    # (npos1, bb, k1) -> (npos1*bb, k1): bb is a multiple of 16 so this reshape
    # is a free re-tiling (no data movement).  Row = pos1*bb + b.
    p = p_ref[...].reshape(npos1 * bb, k1)
    a1 = jnp.dot(p, w1_ref[...], preferred_element_type=jnp.float32)
    a1 = leaky(a1 + b1_ref[...]).astype(jnp.bfloat16)        # (npos1*bb, 128) bf16

    # ---------------- conv2: build im2col scratch, ONE K=2048 matmul --------
    # x2[p2*bb + b, (ki*kw2+kj)*128 + c] = a1[pos1*bb + b, c]; 144 aligned copies.
    for ki in range(kh2):
        for kj in range(kw2):
            off = ki * kw2 + kj
            for oh in range(h2):
                for ow in range(w2):
                    pos1 = (sh2 * oh + ki) * w1 + (sw2 * ow + kj)
                    p2 = oh * w2 + ow
                    x2_ref[p2 * bb:(p2 + 1) * bb,
                           off * LANES:(off + 1) * LANES] = \
                        a1[pos1 * bb:(pos1 + 1) * bb, :]

    y2 = jnp.dot(x2_ref[...], w2_ref[...], preferred_element_type=jnp.float32)
    y2 = leaky(y2 + b2_ref[...]).astype(jnp.bfloat16)         # (npos2*bb, 128) bf16

    # ---------------- conv3: kernel covers the full h2 x w2 map -> dense ----
    # Lane-concat of 9 aligned (bb,128) blocks is free (multiples of 128 lanes).
    x3 = jnp.concatenate([y2[pp * bb:(pp + 1) * bb, :] for pp in range(npos2)],
                         axis=-1)                             # (bb, npos2*128)
    a3 = jnp.dot(x3, w3_ref[...], preferred_element_type=jnp.float32)
    a3 = leaky(a3 + b3_ref[...]).astype(jnp.bfloat16)         # (bb, 128)
    # conv3 output is 1x1 spatial, so lanes 0..C3-1 == the PyTorch flatten.

    # ---------------- fc1 (NoisyLinear) + LeakyReLU --------------------------
    hfc = jnp.dot(a3, wf1_ref[...], preferred_element_type=jnp.float32)
    hfc = leaky(hfc + bf1_ref[...]).astype(jnp.bfloat16)      # (bb, 512)

    # ---------------- fc2 (NoisyLinear) --------------------------------------
    y = jnp.dot(hfc, wf2_ref[...], preferred_element_type=jnp.float32)
    y = y + bf2_ref[...]                                      # (bb, 128) f32

    if apply_softmax:   # only traced when QNET_ENABLED is False
        lane = lax.broadcasted_iota(jnp.int32, y.shape, 1)
        valid = lane < n_out
        ym = jnp.where(valid, y, -jnp.inf)
        m = jnp.max(ym, axis=-1, keepdims=True)
        e = jnp.where(valid, jnp.exp(ym - m), 0.0)
        y = e * pl.reciprocal(jnp.sum(e, axis=-1, keepdims=True), approx=True)

    o_ref[...] = y


# ============================ parameter construction =========================
def conv_params(key, out_ch, in_ch, kh, kw):
    k1, k2 = jax.random.split(key)
    fan_in = in_ch * kh * kw
    bound = 1.0 / math.sqrt(fan_in)
    w = jax.random.uniform(k1, (out_ch, in_ch, kh, kw), jnp.float32, -bound, bound)
    b = jax.random.uniform(k2, (out_ch,), jnp.float32, -bound, bound)
    return w, b


def noisy_linear_params(key, in_f, out_f):
    # NoisyLinear (factorised Gaussian noise) with noise sampled once here so the
    # layer becomes a deterministic affine map:
    #   W = W_mu + W_sigma * f(eps_out) f(eps_in)^T ,  b = b_mu + b_sigma * f(eps_out)
    # TODO(synk): original NoisyLinear resamples eps each forward; here eps is fixed.
    k1, k2, k3, k4 = jax.random.split(key, 4)
    mu_range = 1.0 / math.sqrt(in_f)
    w_mu = jax.random.uniform(k1, (out_f, in_f), jnp.float32, -mu_range, mu_range)
    b_mu = jax.random.uniform(k2, (out_f,), jnp.float32, -mu_range, mu_range)
    sigma_init = 0.5 / math.sqrt(in_f)
    w_sigma = jnp.full((out_f, in_f), sigma_init, jnp.float32)
    b_sigma = jnp.full((out_f,), sigma_init, jnp.float32)

    def f(e):
        return jnp.sign(e) * jnp.sqrt(jnp.abs(e))

    eps_in = f(jax.random.normal(k3, (in_f,), jnp.float32))
    eps_out = f(jax.random.normal(k4, (out_f,), jnp.float32))
    w = w_mu + w_sigma * jnp.outer(eps_out, eps_in)
    b = b_mu + b_sigma * eps_out
    return w.T, b                                # (in_f, out_f), (out_f,)


def make_whg_params(key):
    in_ch = IMAGE_CHANNELS + EXTRA_CHANNELS
    ks = jax.random.split(key, 5)
    c1_w, c1_b = conv_params(ks[0], C1, in_ch, KH1, KW1)
    c2_w, c2_b = conv_params(ks[1], C2, C1, KH2, KW2)
    c3_w, c3_b = conv_params(ks[2], C3, C2, KH3, KW3)

    # flat_size_after_conv(IMAGE_HEIGHT, IMAGE_WIDTH)
    h, w = IMAGE_HEIGHT, IMAGE_WIDTH
    for k, s in (((KH1, KW1), (SH1, SW1)), ((KH2, KW2), (SH2, SW2)), ((KH3, KW3), (SH3, SW3))):
        h = (h - (k[0] - 1) - 1) // s[0] + 1
        w = (w - (k[1] - 1) - 1) // s[1] + 1
    fc_input_size = h * w * C3

    fc1_w, fc1_b = noisy_linear_params(ks[3], fc_input_size, FC_HIDDEN)
    fc2_w, fc2_b = noisy_linear_params(ks[4], FC_HIDDEN, OUTPUT_NUM)
    return dict(
        c1_w=c1_w, c1_b=c1_b, c2_w=c2_w, c2_b=c2_b, c3_w=c3_w, c3_b=c3_b,
        fc1_w=fc1_w, fc1_b=fc1_b, fc2_w=fc2_w, fc2_b=fc2_b,
        fc_input_size=fc_input_size,
    )


def pack_whg_params(raw):
    """One-time host-side packing: channels padded to 128 lanes, bf16 weights."""
    def pad_to(a, shape):
        out = jnp.zeros(shape, jnp.float32)
        return out.at[tuple(slice(0, s) for s in a.shape)].set(a)

    # conv1: (OC, C, KH, KW) -> (C*KH*KW, 128); row order matches
    # conv_general_dilated_patches feature order == PyTorch flatten (c, kh, kw).
    c1 = raw["c1_w"]
    oc1 = c1.shape[0]
    k1 = c1.shape[1] * c1.shape[2] * c1.shape[3]
    w1 = pad_to(c1.reshape(oc1, k1).T, (k1, LANES)).astype(jnp.bfloat16)
    b1 = pad_to(raw["c1_b"].reshape(1, -1), (1, LANES))

    # conv2: one 128x128 block per kernel offset, stacked -> (KH2*KW2*128, 128)
    c2 = raw["c2_w"]
    blk2 = jnp.transpose(c2, (2, 3, 1, 0)).reshape(KH2 * KW2, C1, C2)
    w2 = pad_to(blk2, (KH2 * KW2, LANES, LANES)).reshape(KH2 * KW2 * LANES, LANES)
    w2 = w2.astype(jnp.bfloat16)
    b2 = pad_to(raw["c2_b"].reshape(1, -1), (1, LANES))

    # conv3: kernel covers the whole 3x3 conv2 map -> dense (9*128, 128)
    c3 = raw["c3_w"]
    blk3 = jnp.transpose(c3, (2, 3, 1, 0)).reshape(KH3 * KW3, C2, C3)
    w3 = pad_to(blk3, (KH3 * KW3, LANES, LANES)).reshape(KH3 * KW3 * LANES, LANES)
    w3 = w3.astype(jnp.bfloat16)
    b3 = pad_to(raw["c3_b"].reshape(1, -1), (1, LANES))

    # fc1: (40, 512) -> (128, 512); fc2: (512, 6) -> (512, 128)
    wf1 = pad_to(raw["fc1_w"], (LANES, FC_HIDDEN)).astype(jnp.bfloat16)
    bf1 = raw["fc1_b"].reshape(1, FC_HIDDEN).astype(jnp.float32)
    wf2 = pad_to(raw["fc2_w"], (FC_HIDDEN, LANES)).astype(jnp.bfloat16)
    bf2 = pad_to(raw["fc2_b"].reshape(1, -1), (1, LANES))

    return dict(w1=w1, b1=b1, w2=w2, b2=b2, w3=w3, b3=b3,
                wf1=wf1, bf1=bf1, wf2=wf2, bf2=bf2)


# ================================ forward pass ===============================
def whg_forward(x, packed, *, qnet_enabled=QNET_ENABLED, block_batch=64):
    """x: (N, C_in, H, W) f32 (NCHW, like the PyTorch module) -> (N, OUTPUT_NUM).

    block_batch: samples per grid step (multiple of 16).  On v7x keep
    N/block_batch >= 2 so the "parallel" grid axis can shard over both TCs.
    """
    assert block_batch % 16 == 0
    n = x.shape[0]
    # Clamp the batch block for tiny batches (stays a multiple of 16 so bf16
    # (16,128) sublane tiles remain aligned everywhere).
    bb = int(min(block_batch, max(16, 16 * (-(-n // 16)))))
    n_pad = -(-n // bb) * bb
    if n_pad != n:
        x = jnp.concatenate(
            [x, jnp.zeros((n_pad - n,) + x.shape[1:], x.dtype)], axis=0)
    x = x.astype(jnp.bfloat16)        # bf16 MXU operands; halves patch DMA volume

    # conv1 im2col in ONE XLA op, emitted directly in (pos_h, pos_w, sample, k)
    # order ("HWNC") -> no host-side transpose / extra HBM pass.  Feature order
    # is (c, kh, kw) == PyTorch weight flatten.
    patches = lax.conv_general_dilated_patches(
        x, filter_shape=(KH1, KW1), window_strides=(SH1, SW1), padding="VALID",
        dimension_numbers=("NCHW", "OIHW", "HWNC"))
    h1, w1, _, k1 = patches.shape
    npos1 = h1 * w1
    p = patches.reshape(npos1, n_pad, k1)        # free merge of leading dims
    nblk = n_pad // bb

    h2 = (h1 - KH2) // SH2 + 1
    w2 = (w1 - KW2) // SW2 + 1
    npos2 = h2 * w2
    # conv3 must consume the full conv2 map (so NCHW flatten == the 40 channels).
    # TODO(synk): only holds for 36x36 inputs; other sizes need a real conv3 loop.
    assert (h2, w2) == (KH3, KW3)

    kernel = functools.partial(
        _whg_fused_kernel, bb=bb, h1=h1, w1=w1,
        kh2=KH2, kw2=KW2, sh2=SH2, sw2=SW2,
        apply_softmax=not qnet_enabled, n_out=OUTPUT_NUM)

    per_sample_flops = 2 * (npos1 * k1 * LANES
                            + npos2 * (KH2 * KW2 * LANES) * LANES
                            + (npos2 * LANES) * LANES
                            + LANES * FC_HIDDEN
                            + FC_HIDDEN * LANES)
    flops = per_sample_flops * n_pad
    transcendentals = (n_pad * LANES) if not qnet_enabled else 0
    bytes_accessed = (int(p.size) * p.dtype.itemsize
                      + sum(int(v.size) * v.dtype.itemsize for v in packed.values())
                      + n_pad * LANES * 4)

    const = lambda i: (0, 0)
    out = pl.pallas_call(
        kernel,
        out_shape=jax.ShapeDtypeStruct((n_pad, LANES), jnp.float32),
        grid_spec=pltpu.PrefetchScalarGridSpec(
            num_scalar_prefetch=0,
            grid=(nblk,),
            in_specs=[
                pl.BlockSpec((npos1, bb, k1), lambda i: (0, i, 0)),  # conv1 patches
                pl.BlockSpec(packed["w1"].shape, const),
                pl.BlockSpec(packed["b1"].shape, const),
                pl.BlockSpec(packed["w2"].shape, const),
                pl.BlockSpec(packed["b2"].shape, const),
                pl.BlockSpec(packed["w3"].shape, const),
                pl.BlockSpec(packed["b3"].shape, const),
                pl.BlockSpec(packed["wf1"].shape, const),
                pl.BlockSpec(packed["bf1"].shape, const),
                pl.BlockSpec(packed["wf2"].shape, const),
                pl.BlockSpec(packed["bf2"].shape, const),
            ],
            out_specs=pl.BlockSpec((bb, LANES), lambda i: (i, 0)),
            scratch_shapes=[
                # conv2 im2col buffer (bf16) -> single K = kh2*kw2*128 matmul
                pltpu.VMEM((npos2 * bb, KH2 * KW2 * LANES), jnp.bfloat16),
            ],
        ),
        compiler_params=pltpu.CompilerParams(
            dimension_semantics=("parallel",),
            vmem_limit_bytes=48 * 1024 * 1024),
        cost_estimate=pl.CostEstimate(
            flops=flops, transcendentals=transcendentals,
            bytes_accessed=bytes_accessed),
    )(p, packed["w1"], packed["b1"], packed["w2"], packed["b2"],
      packed["w3"], packed["b3"], packed["wf1"], packed["bf1"],
      packed["wf2"], packed["bf2"])

    return out[:n, :OUTPUT_NUM]


# ====================== pure-JAX f32 reference (for checking) ================
def whg_reference(x, raw, qnet_enabled=QNET_ENABLED):
    def leaky(v):
        return jnp.where(v >= 0.0, v, NEG_SLOPE * v)

    dn = ("NCHW", "OIHW", "NCHW")
    y = lax.conv_general_dilated(x, raw["c1_w"], (SH1, SW1), "VALID",
                                 dimension_numbers=dn)
    y = leaky(y + raw["c1_b"][None, :, None, None])
    y = lax.conv_general_dilated(y, raw["c2_w"], (SH2, SW2), "VALID",
                                 dimension_numbers=dn)
    y = leaky(y + raw["c2_b"][None, :, None, None])
    y = lax.conv_general_dilated(y, raw["c3_w"], (SH3, SW3), "VALID",
                                 dimension_numbers=dn)
    y = leaky(y + raw["c3_b"][None, :, None, None])
    y = y.reshape(y.shape[0], -1)
    y = leaky(y @ raw["fc1_w"] + raw["fc1_b"])
    y = y @ raw["fc2_w"] + raw["fc2_b"]
    if not qnet_enabled:
        y = jax.nn.softmax(y, axis=-1)
    return y


# ==================================== main ===================================
if __name__ == "__main__":
    key = jax.random.PRNGKey(0)
    k_params, k_x = jax.random.split(key)

    raw = make_whg_params(k_params)
    packed = pack_whg_params(raw)      # one-time host-side padding / bf16 packing

    x = jax.random.normal(
        k_x,
        (2, IMAGE_CHANNELS + EXTRA_CHANNELS, IMAGE_HEIGHT, IMAGE_WIDTH),
        jnp.float32,
    )

    fwd = jax.jit(lambda xx, pp: whg_forward(xx, pp))
    out = fwd(x, packed)
    jax.block_until_ready(out)

    ref = whg_reference(x, raw)

    assert out.shape == (2, OUTPUT_NUM), out.shape
    assert bool(jnp.all(jnp.isfinite(out)))
    # bf16 MXU operands with f32 accumulation -> loose tolerance vs f32 reference.
    assert bool(jnp.allclose(out, ref, atol=7e-2, rtol=7e-2))
    print("KERNEL_OK")
</pallas_src>

<mosaic_0001>
module attributes {stable_mosaic.version = 11 : i64} {
  func.func @_whg_fused_kernel(%arg0: i32, %arg1: memref<64x16x256xbf16, #tpu.memory_space<vmem>>, %arg2: memref<256x128xbf16, #tpu.memory_space<vmem>>, %arg3: memref<1x128xf32, #tpu.memory_space<vmem>>, %arg4: memref<2048x128xbf16, #tpu.memory_space<vmem>>, %arg5: memref<1x128xf32, #tpu.memory_space<vmem>>, %arg6: memref<1152x128xbf16, #tpu.memory_space<vmem>>, %arg7: memref<1x128xf32, #tpu.memory_space<vmem>>, %arg8: memref<128x512xbf16, #tpu.memory_space<vmem>>, %arg9: memref<1x512xf32, #tpu.memory_space<vmem>>, %arg10: memref<512x128xbf16, #tpu.memory_space<vmem>>, %arg11: memref<1x128xf32, #tpu.memory_space<vmem>>, %arg12: memref<16x128xf32, #tpu.memory_space<vmem>>, %arg13: memref<144x2048xbf16, #tpu.memory_space<vmem>>) attributes {dimension_semantics = [#tpu.dimension_semantics<parallel>], iteration_bounds = array<i64: 1>, scalar_prefetch = 0 : i64, scratch_operands = 1 : i64, tpu.core_type = #tpu.core_type<tc>, window_params = [{transform_indices = @transform_0, window_bounds = array<i64: 64, 16, 256>}, {pipeline_mode = #tpu.pipeline_mode<synchronous>, transform_indices = @transform_1, window_bounds = array<i64: 256, 128>}, {pipeline_mode = #tpu.pipeline_mode<synchronous>, transform_indices = @transform_2, window_bounds = array<i64: 1, 128>}, {pipeline_mode = #tpu.pipeline_mode<synchronous>, transform_indices = @transform_3, window_bounds = array<i64: 2048, 128>}, {pipeline_mode = #tpu.pipeline_mode<synchronous>, transform_indices = @transform_4, window_bounds = array<i64: 1, 128>}, {pipeline_mode = #tpu.pipeline_mode<synchronous>, transform_indices = @transform_5, window_bounds = array<i64: 1152, 128>}, {pipeline_mode = #tpu.pipeline_mode<synchronous>, transform_indices = @transform_6, window_bounds = array<i64: 1, 128>}, {pipeline_mode = #tpu.pipeline_mode<synchronous>, transform_indices = @transform_7, window_bounds = array<i64: 128, 512>}, {pipeline_mode = #tpu.pipeline_mode<synchronous>, transform_indices = @transform_8, window_bounds = array<i64: 1, 512>}, {pipeline_mode = #tpu.pipeline_mode<synchronous>, transform_indices = @transform_9, window_bounds = array<i64: 512, 128>}, {pipeline_mode = #tpu.pipeline_mode<synchronous>, transform_indices = @transform_10, window_bounds = array<i64: 1, 128>}, {transform_indices = @transform_11, window_bounds = array<i64: 16, 128>}]} {
    %c0 = arith.constant 0 : index
    %c0_0 = arith.constant 0 : index
    %c0_1 = arith.constant 0 : index
    %0 = vector.load %arg1[%c0, %c0_0, %c0_1] : memref<64x16x256xbf16, #tpu.memory_space<vmem>>, vector<64x16x256xbf16>
    %1 = vector.shape_cast %0 : vector<64x16x256xbf16> to vector<1024x256xbf16>
    %c0_2 = arith.constant 0 : index
    %c0_3 = arith.constant 0 : index
    %2 = vector.load %arg2[%c0_2, %c0_3] : memref<256x128xbf16, #tpu.memory_space<vmem>>, vector<256x128xbf16>
    %cst = arith.constant dense<0.000000e+00> : vector<1024x128xf32>
    %3 = tpu.matmul %1, %2, %cst {dimension_numbers = #tpu.dot_dimension_numbers<[1], [0], [0], [1], [0, 0, 1, 1], [], []>} : vector<1024x256xbf16>, vector<256x128xbf16>, vector<1024x128xf32> -> vector<1024x128xf32>
    %c0_4 = arith.constant 0 : index
    %c0_5 = arith.constant 0 : index
    %4 = vector.load %arg3[%c0_4, %c0_5] : memref<1x128xf32, #tpu.memory_space<vmem>>, vector<1x128xf32>
    %5 = vector.broadcast %4 : vector<1x128xf32> to vector<1024x128xf32>
    %6 = arith.addf %3, %5 : vector<1024x128xf32>
    %cst_6 = arith.constant 0.00999999977 : f32
    %7 = vector.broadcast %cst_6 : f32 to vector<1024x128xf32>
    %8 = arith.mulf %7, %6 : vector<1024x128xf32>
    %9 = arith.maximumf %6, %8 : vector<1024x128xf32>
    %10 = arith.truncf %9 : vector<1024x128xf32> to vector<1024x128xbf16>
    %11 = vector.extract_strided_slice %10 {offsets = [0, 0], sizes = [16, 128], strides = [1, 1]} : vector<1024x128xbf16> to vector<16x128xbf16>
    %c0_7 = arith.constant 0 : index
    %c0_8 = arith.constant 0 : index
    %12 = vector.load %arg13[%c0_7, %c0_8] : memref<144x2048xbf16, #tpu.memory_space<vmem>>, vector<16x128xbf16>
    tpu.vector_store %arg13[%c0_7, %c0_8], %11 {strides = array<i32>} : memref<144x2048xbf16, #tpu.memory_space<vmem>>, vector<16x128xbf16>,
    %13 = vector.extract_strided_slice %10 {offsets = [32, 0], sizes = [16, 128], strides = [1, 1]} : vector<1024x128xbf16> to vector<16x128xbf16>
    %c16 = arith.constant 16 : index
    %c0_9 = arith.constant 0 : index
    %14 = vector.load %arg13[%c16, %c0_9] : memref<144x2048xbf16, #tpu.memory_space<vmem>>, vector<16x128xbf16>
    tpu.vector_store %arg13[%c16, %c0_9], %13 {strides = array<i32>} : memref<144x2048xbf16, #tpu.memory_space<vmem>>, vector<16x128xbf16>,
    %15 = vector.extract_strided_slice %10 {offsets = [64, 0], sizes = [16, 128], strides = [1, 1]} : vector<1024x128xbf16> to vector<16x128xbf16>
    %c32 = arith.constant 32 : index
    %c0_10 = arith.constant 0 : index
    %16 = vector.load %arg13[%c32, %c0_10] : memref<144x2048xbf16, #tpu.memory_space<vmem>>, vector<16x128xbf16>
    tpu.vector_store %arg13[%c32, %c0_10], %15 {strides = array<i32>} : memref<144x2048xbf16, #tpu.memory_space<vmem>>, vector<16x128xbf16>,
    %17 = vector.extract_strided_slice %10 {offsets = [256, 0], sizes = [16, 128], strides = [1, 1]} : vector<1024x128xbf16> to vector<16x128xbf16>
    %c48 = arith.constant 48 : index
    %c0_11 = arith.constant 0 : index
    %18 = vector.load %arg13[%c48, %c0_11] : memref<144x2048xbf16, #tpu.memory_space<vmem>>, vector<16x128xbf16>
    tpu.vector_store %arg13[%c48, %c0_11], %17 {strides = array<i32>} : memref<144x2048xbf16, #tpu.memory_space<vmem>>, vector<16x128xbf16>,
    %19 = vector.extract_strided_slice %10 {offsets = [288, 0], sizes = [16, 128], strides = [1, 1]} : vector<1024x128xbf16> to vector<16x128xbf16>
    %c64 = arith.constant 64 : index
    %c0_12 = arith.constant 0 : index
    %20 = vector.load %arg13[%c64, %c0_12] : memref<144x2048xbf16, #tpu.memory_space<vmem>>, vector<16x128xbf16>
    tpu.vector_store %arg13[%c64, %c0_12], %19 {strides = array<i32>} : memref<144x2048xbf16, #tpu.memory_space<vmem>>, vector<16x128xbf16>,
    %21 = vector.extract_strided_slice %10 {offsets = [320, 0], sizes = [16, 128], strides = [1, 1]} : vector<1024x128xbf16> to vector<16x128xbf16>
    %c80 = arith.constant 80 : index
    %c0_13 = arith.constant 0 : index
    %22 = vector.load %arg13[%c80, %c0_13] : memref<144x2048xbf16, #tpu.memory_space<vmem>>, vector<16x128xbf16>
    tpu.vector_store %arg13[%c80, %c0_13], %21 {strides = array<i32>} : memref<144x2048xbf16, #tpu.memory_space<vmem>>, vector<16x128xbf16>,
    %23 = vector.extract_strided_slice %10 {offsets = [512, 0], sizes = [16, 128], strides = [1, 1]} : vector<1024x128xbf16> to vector<16x128xbf16>
    %c96 = arith.constant 96 : index
    %c0_14 = arith.constant 0 : index
    %24 = vector.load %arg13[%c96, %c0_14] : memref<144x2048xbf16, #tpu.memory_space<vmem>>, vector<16x128xbf16>
    tpu.vector_store %arg13[%c96, %c0_14], %23 {strides = array<i32>} : memref<144x2048xbf16, #tpu.memory_space<vmem>>, vector<16x128xbf16>,
    %25 = vector.extract_strided_slice %10 {offsets = [544, 0], sizes = [16, 128], strides = [1, 1]} : vector<1024x128xbf16> to vector<16x128xbf16>
    %c112 = arith.constant 112 : index
    %c0_15 = arith.constant 0 : index
    %26 = vector.load %arg13[%c112, %c0_15] : memref<144x2048xbf16, #tpu.memory_space<vmem>>, vector<16x128xbf16>
    tpu.vector_store %arg13[%c112, %c0_15], %25 {strides = array<i32>} : memref<144x2048xbf16, #tpu.memory_space<vmem>>, vector<16x128xbf16>,
    %27 = vector.extract_strided_slice %10 {offsets = [576, 0], sizes = [16, 128], strides = [1, 1]} : vector<1024x128xbf16> to vector<16x128xbf16>
    %c128 = arith.constant 128 : index
    %c0_16 = arith.constant 0 : index
    %28 = vector.load %arg13[%c128, %c0_16] : memref<144x2048xbf16, #tpu.memory_space<vmem>>, vector<16x128xbf16>
    tpu.vector_store %arg13[%c128, %c0_16], %27 {strides = array<i32>} : memref<144x2048xbf16, #tpu.memory_space<vmem>>, vector<16x128xbf16>,
    %29 = vector.extract_strided_slice %10 {offsets = [16, 0], sizes = [16, 128], strides = [1, 1]} : vector<1024x128xbf16> to vector<16x128xbf16>
    %c0_17 = arith.constant 0 : index
    %c128_18 = arith.constant 128 : index
    %30 = vector.load %arg13[%c0_17, %c128_18] : memref<144x2048xbf16, #tpu.memory_space<vmem>>, vector<16x128xbf16>
    tpu.vector_store %arg13[%c0_17, %c128_18], %29 {strides = array<i32>} : memref<144x2048xbf16, #tpu.memory_space<vmem>>, vector<16x128xbf16>,
    %31 = vector.extract_strided_slice %10 {offsets = [48, 0], sizes = [16, 128], strides = [1, 1]} : vector<1024x128xbf16> to vector<16x128xbf16>
    %c16_19 = arith.constant 16 : index
    %c128_20 = arith.constant 128 : index
    %32 = vector.load %arg13[%c16_19, %c128_20] : memref<144x2048xbf16, #tpu.memory_space<vmem>>, vector<16x128xbf16>
    tpu.vector_store %arg13[%c16_19, %c128_20], %31 {strides = array<i32>} : memref<144x2048xbf16, #tpu.memory_space<vmem>>, vector<16x128xbf16>,
    %33 = vector.extract_strided_slice %10 {offsets = [80, 0], sizes = [16, 128], strides = [1, 1]} : vector<1024x128xbf16> to vector<16x128xbf16>
    %c32_21 = arith.constant 32 : index
    %c128_22 = arith.constant 128 : index
    %34 = vector.load %arg13[%c32_21, %c128_22] : memref<144x2048xbf16, #tpu.memory_space<vmem>>, vector<16x128xbf16>
    tpu.vector_store %arg13[%c32_21, %c128_22], %33 {strides = array<i32>} : memref<144x2048xbf16, #tpu.memory_space<vmem>>, vector<16x128xbf16>,
    %35 = vector.extract_strided_slice %10 {offsets = [272, 0], sizes = [16, 128], strides = [1, 1]} : vector<1024x128xbf16> to vector<16x128xbf16>
    %c48_23 = arith.constant 48 : index
    %c128_24 = arith.constant 128 : index
    %36 = vector.load %arg13[%c48_23, %c128_24] : memref<144x2048xbf16, #tpu.memory_space<vmem>>, vector<16x128xbf16>
    tpu.vector_store %arg13[%c48_23, %c128_24], %35 {strides = array<i32>} : memref<144x2048xbf16, #tpu.memory_space<vmem>>, vector<16x128xbf16>,
    %37 = vector.extract_strided_slice %10 {offsets = [304, 0], sizes = [16, 128], strides = [1, 1]} : vector<1024x128xbf16> to vector<16x128xbf16>
    %c64_25 = arith.constant 64 : index
    %c128_26 = arith.constant 128 : index
    %38 = vector.load %arg13[%c64_25, %c128_26] : memref<144x2048xbf16, #tpu.memory_space<vmem>>, vector<16x128xbf16>
    tpu.vector_store %arg13[%c64_25, %c128_26], %37 {strides = array<i32>} : memref<144x2048xbf16, #tpu.memory_space<vmem>>, vector<16x128xbf16>,
    %39 = vector.extract_strided_slice %10 {offsets = [336, 0], sizes = [16, 128], strides = [1, 1]} : vector<1024x128xbf16> to vector<16x128xbf16>
    %c80_27 = arith.constant 80 : index
    %c128_28 = arith.constant 128 : index
    %40 = vector.load %arg13[%c80_27, %c128_28] : memref<144x2048xbf16, #tpu.memory_space<vmem>>, vector<16x128xbf16>
    tpu.vector_store %arg13[%c80_27, %c128_28], %39 {strides = array<i32>} : memref<144x2048xbf16, #tpu.memory_space<vmem>>, vector<16x128xbf16>,
    %41 = vector.extract_strided_slice %10 {offsets = [528, 0], sizes = [16, 128], strides = [1, 1]} : vector<1024x128xbf16> to vector<16x128xbf16>
    %c96_29 = arith.constant 96 : index
    %c128_30 = arith.constant 128 : index
    %42 = vector.load %arg13[%c96_29, %c128_30] : memref<144x2048xbf16, #tpu.memory_space<vmem>>, vector<16x128xbf16>
    tpu.vector_store %arg13[%c96_29, %c128_30], %41 {strides = array<i32>} : memref<144x2048xbf16, #tpu.memory_space<vmem>>, vector<16x128xbf16>,
    %43 = vector.extract_strided_slice %10 {offsets = [560, 0], sizes = [16, 128], strides = [1, 1]} : vector<1024x128xbf16> to vector<16x128xbf16>
    %c112_31 = arith.constant 112 : index
    %c128_32 = arith.constant 128 : index
    %44 = vector.load %arg13[%c112_31, %c128_32] : memref<144x2048xbf16, #tpu.memory_space<vmem>>, vector<16x128xbf16>
    tpu.vector_store %arg13[%c112_31, %c128_32], %43 {strides = array<i32>} : memref<144x2048xbf16, #tpu.memory_space<vmem>>, vector<16x128xbf16>,
    %45 = vector.extract_strided_slice %10 {offsets = [592, 0], sizes = [16, 128], strides = [1, 1]} : vector<1024x128xbf16> to vector<16x128xbf16>
    %c128_33 = arith.constant 128 : index
    %c128_34 = arith.constant 128 : index
    %46 = vector.load %arg13[%c128_33, %c128_34] : memref<144x2048xbf16, #tpu.memory_space<vmem>>, vector<16x128xbf16>
    tpu.vector_store %arg13[%c128_33, %c128_34], %45 {strides = array<i32>} : memref<144x2048xbf16, #tpu.memory_space<vmem>>, vector<16x128xbf16>,
    %47 = vector.extract_strided_slice %10 {offsets = [32, 0], sizes = [16, 128], strides = [1, 1]} : vector<1024x128xbf16> to vector<16x128xbf16>
    %c0_35 = arith.constant 0 : index
    %c256 = arith.constant 256 : index
    %48 = vector.load %arg13[%c0_35, %c256] : memref<144x2048xbf16, #tpu.memory_space<vmem>>, vector<16x128xbf16>
    tpu.vector_store %arg13[%c0_35, %c256], %47 {strides = array<i32>} : memref<144x2048xbf16, #tpu.memory_space<vmem>>, vector<16x128xbf16>,
    %49 = vector.extract_strided_slice %10 {offsets = [64, 0], sizes = [16, 128], strides = [1, 1]} : vector<1024x128xbf16> to vector<16x128xbf16>
    %c16_36 = arith.constant 16 : index
    %c256_37 = arith.constant 256 : index
    %50 = vector.load %arg13[%c16_36, %c256_37] : memref<144x2048xbf16, #tpu.memory_space<vmem>>, vector<16x128xbf16>
    tpu.vector_store %arg13[%c16_36, %c256_37], %49 {strides = array<i32>} : memref<144x2048xbf16, #tpu.memory_space<vmem>>, vector<16x128xbf16>,
    %51 = vector.extract_strided_slice %10 {offsets = [96, 0], sizes = [16, 128], strides = [1, 1]} : vector<1024x128xbf16> to vector<16x128xbf16>
    %c32_38 = arith.constant 32 : index
    %c256_39 = arith.constant 256 : index
    %52 = vector.load %arg13[%c32_38, %c256_39] : memref<144x2048xbf16, #tpu.memory_space<vmem>>, vector<16x128xbf16>
    tpu.vector_store %arg13[%c32_38, %c256_39], %51 {strides = array<i32>} : memref<144x2048xbf16, #tpu.memory_space<vmem>>, vector<16x128xbf16>,
    %53 = vector.extract_strided_slice %10 {offsets = [288, 0], sizes = [16, 128], strides = [1, 1]} : vector<1024x128xbf16> to vector<16x128xbf16>
    %c48_40 = arith.constant 48 : index
    %c256_41 = arith.constant 256 : index
    %54 = vector.load %arg13[%c48_40, %c256_41] : memref<144x2048xbf16, #tpu.memory_space<vmem>>, vector<16x128xbf16>
    tpu.vector_store %arg13[%c48_40, %c256_41], %53 {strides = array<i32>} : memref<144x2048xbf16, #tpu.memory_space<vmem>>, vector<16x128xbf16>,
    %55 = vector.extract_strided_slice %10 {offsets = [320, 0], sizes = [16, 128], strides = [1, 1]} : vector<1024x128xbf16> to vector<16x128xbf16>
    %c64_42 = arith.constant 64 : index
    %c256_43 = arith.constant 256 : index
    %56 = vector.load %arg13[%c64_42, %c256_43] : memref<144x2048xbf16, #tpu.memory_space<vmem>>, vector<16x128xbf16>
    tpu.vector_store %arg13[%c64_42, %c256_43], %55 {strides = array<i32>} : memref<144x2048xbf16, #tpu.memory_space<vmem>>, vector<16x128xbf16>,
    %57 = vector.extract_strided_slice %10 {offsets = [352, 0], sizes = [16, 128], strides = [1, 1]} : vector<1024x128xbf16> to vector<16x128xbf16>
    %c80_44 = arith.constant 80 : index
    %c256_45 = arith.constant 256 : index
    %58 = vector.load %arg13[%c80_44, %c256_45] : memref<144x2048xbf16, #tpu.memory_space<vmem>>, vector<16x128xbf16>
    tpu.vector_store %arg13[%c80_44, %c256_45], %57 {strides = array<i32>} : memref<144x2048xbf16, #tpu.memory_space<vmem>>, vector<16x128xbf16>,
    %59 = vector.extract_strided_slice %10 {offsets = [544, 0], sizes = [16, 128], strides = [1, 1]} : vector<1024x128xbf16> to vector<16x128xbf16>
    %c96_46 = arith.constant 96 : index
    %c256_47 = arith.constant 256 : index
    %60 = vector.load %arg13[%c96_46, %c256_47] : memref<144x2048xbf16, #tpu.memory_space<vmem>>, vector<16x128xbf16>
    tpu.vector_store %arg13[%c96_46, %c256_47], %59 {strides = array<i32>} : memref<144x2048xbf16, #tpu.memory_space<vmem>>, vector<16x128xbf16>,
    %61 = vector.extract_strided_slice %10 {offsets = [576, 0], sizes = [16, 128], strides = [1, 1]} : vector<1024x128xbf16> to vector<16x128xbf16>
    %c112_48 = arith.constant 112 : index
    %c256_49 = arith.constant 256 : index
    %62 = vector.load %arg13[%c112_48, %c256_49] : memref<144x2048xbf16, #tpu.memory_space<vmem>>, vector<16x128xbf16>
    tpu.vector_store %arg13[%c112_48, %c256_49], %61 {strides = array<i32>} : memref<144x2048xbf16, #tpu.memory_space<vmem>>, vector<16x128xbf16>,
    %63 = vector.extract_strided_slice %10 {offsets = [608, 0], sizes = [16, 128], strides = [1, 1]} : vector<1024x128xbf16> to vector<16x128xbf16>
    %c128_50 = arith.constant 128 : index
    %c256_51 = arith.constant 256 : index
    %64 = vector.load %arg13[%c128_50, %c256_51] : memref<144x2048xbf16, #tpu.memory_space<vmem>>, vector<16x128xbf16>
    tpu.vector_store %arg13[%c128_50, %c256_51], %63 {strides = array<i32>} : memref<144x2048xbf16, #tpu.memory_space<vmem>>, vector<16x128xbf16>,
    %65 = vector.extract_strided_slice %10 {offsets = [48, 0], sizes = [16, 128], strides = [1, 1]} : vector<1024x128xbf16> to vector<16x128xbf16>
    %c0_52 = arith.constant 0 : index
    %c384 = arith.constant 384 : index
    %66 = vector.load %arg13[%c0_52, %c384] : memref<144x2048xbf16, #tpu.memory_space<vmem>>, vector<16x128xbf16>
    tpu.vector_store %arg13[%c0_52, %c384], %65 {strides = array<i32>} : memref<144x2048xbf16, #tpu.memory_space<vmem>>, vector<16x128xbf16>,
    %67 = vector.extract_strided_slice %10 {offsets = [80, 0], sizes = [16, 128], strides = [1, 1]} : vector<1024x128xbf16> to vector<16x128xbf16>
    %c16_53 = arith.constant 16 : index
    %c384_54 = arith.constant 384 : index
    %68 = vector.load %arg13[%c16_53, %c384_54] : memref<144x2048xbf16, #tpu.memory_space<vmem>>, vector<16x128xbf16>
    tpu.vector_store %arg13[%c16_53, %c384_54], %67 {strides = array<i32>} : memref<144x2048xbf16, #tpu.memory_space<vmem>>, vector<16x128xbf16>,
    %69 = vector.extract_strided_slice %10 {offsets = [112, 0], sizes = [16, 128], strides = [1, 1]} : vector<1024x128xbf16> to vector<16x128xbf16>
    %c32_55 = arith.constant 32 : index
    %c384_56 = arith.constant 384 : index
    %70 = vector.load %arg13[%c32_55, %c384_56] : memref<144x2048xbf16, #tpu.memory_space<vmem>>, vector<16x128xbf16>
    tpu.vector_store %arg13[%c32_55, %c384_56], %69 {strides = array<i32>} : memref<144x2048xbf16, #tpu.memory_space<vmem>>, vector<16x128xbf16>,
    %71 = vector.extract_strided_slice %10 {offsets = [304, 0], sizes = [16, 128], strides = [1, 1]} : vector<1024x128xbf16> to vector<16x128xbf16>
    %c48_57 = arith.constant 48 : index
    %c384_58 = arith.constant 384 : index
    %72 = vector.load %arg13[%c48_57, %c384_58] : memref<144x2048xbf16, #tpu.memory_space<vmem>>, vector<16x128xbf16>
    tpu.vector_store %arg13[%c48_57, %c384_58], %71 {strides = array<i32>} : memref<144x2048xbf16, #tpu.memory_space<vmem>>, vector<16x128xbf16>,
    %73 = vector.extract_strided_slice %10 {offsets = [336, 0], sizes = [16, 128], strides = [1, 1]} : vector<1024x128xbf16> to vector<16x128xbf16>
    %c64_59 = arith.constant 64 : index
    %c384_60 = arith.constant 384 : index
    %74 = vector.load %arg13[%c64_59, %c384_60] : memref<144x2048xbf16, #tpu.memory_space<vmem>>, vector<16x128xbf16>
    tpu.vector_store %arg13[%c64_59, %c384_60], %73 {strides = array<i32>} : memref<144x2048xbf16, #tpu.memory_space<vmem>>, vector<16x128xbf16>,
    %75 = vector.extract_strided_slice %10 {offsets = [368, 0], sizes = [16, 128], strides = [1, 1]} : vector<1024x128xbf16> to vector<16x128xbf16>
    %c80_61 = arith.constant 80 : index
    %c384_62 = arith.constant 384 : index
    %76 = vector.load %arg13[%c80_61, %c384_62] : memref<144x2048xbf16, #tpu.memory_space<vmem>>, vector<16x128xbf16>
    tpu.vector_store %arg13[%c80_61, %c384_62], %75 {strides = array<i32>} : memref<144x2048xbf16, #tpu.memory_space<vmem>>, vector<16x128xbf16>,
    %77 = vector.extract_strided_slice %10 {offsets = [560, 0], sizes = [16, 128], strides = [1, 1]} : vector<1024x128xbf16> to vector<16x128xbf16>
    %c96_63 = arith.constant 96 : index
    %c384_64 = arith.constant 384 : index
    %78 = vector.load %arg13[%c96_63, %c384_64] : memref<144x2048xbf16, #tpu.memory_space<vmem>>, vector<16x128xbf16>
    tpu.vector_store %arg13[%c96_63, %c384_64], %77 {strides = array<i32>} : memref<144x2048xbf16, #tpu.memory_space<vmem>>, vector<16x128xbf16>,
    %79 = vector.extract_strided_slice %10 {offsets = [592, 0], sizes = [16, 128], strides = [1, 1]} : vector<1024x128xbf16> to vector<16x128xbf16>
    %c112_65 = arith.constant 112 : index
    %c384_66 = arith.constant 384 : index
    %80 = vector.load %arg13[%c112_65, %c384_66] : memref<144x2048xbf16, #tpu.memory_space<vmem>>, vector<16x128xbf16>
    tpu.vector_store %arg13[%c112_65, %c384_66], %79 {strides = array<i32>} : memref<144x2048xbf16, #tpu.memory_space<vmem>>, vector<16x128xbf16>,
    %81 = vector.extract_strided_slice %10 {offsets = [624, 0], sizes = [16, 128], strides = [1, 1]} : vector<1024x128xbf16> to vector<16x128xbf16>
    %c128_67 = arith.constant 128 : index
    %c384_68 = arith.constant 384 : index
    %82 = vector.load %arg13[%c128_67, %c384_68] : memref<144x2048xbf16, #tpu.memory_space<vmem>>, vector<16x128xbf16>
    tpu.vector_store %arg13[%c128_67, %c384_68], %81 {strides = array<i32>} : memref<144x2048xbf16, #tpu.memory_space<vmem>>, vector<16x128xbf16>,
    %83 = vector.extract_strided_slice %10 {offsets = [128, 0], sizes = [16, 128], strides = [1, 1]} : vector<1024x128xbf16> to vector<16x128xbf16>
    %c0_69 = arith.constant 0 : index
    %c512 = arith.constant 512 : index
    %84 = vector.load %arg13[%c0_69, %c512] : memref<144x2048xbf16, #tpu.memory_space<vmem>>, vector<16x128xbf16>
    tpu.vector_store %arg13[%c0_69, %c512], %83 {strides = array<i32>} : memref<144x2048xbf16, #tpu.memory_space<vmem>>, vector<16x128xbf16>,
    %85 = vector.extract_strided_slice %10 {offsets = [160, 0], sizes = [16, 128], strides = [1, 1]} : vector<1024x128xbf16> to vector<16x128xbf16>
    %c16_70 = arith.constant 16 : index
    %c512_71 = arith.constant 512 : index
    %86 = vector.load %arg13[%c16_70, %c512_71] : memref<144x2048xbf16, #tpu.memory_space<vmem>>, vector<16x128xbf16>
    tpu.vector_store %arg13[%c16_70, %c512_71], %85 {strides = array<i32>} : memref<144x2048xbf16, #tpu.memory_space<vmem>>, vector<16x128xbf16>,
    %87 = vector.extract_strided_slice %10 {offsets = [192, 0], sizes = [16, 128], strides = [1, 1]} : vector<1024x128xbf16> to vector<16x128xbf16>
    %c32_72 = arith.constant 32 : index
    %c512_73 = arith.constant 512 : index
    %88 = vector.load %arg13[%c32_72, %c512_73] : memref<144x2048xbf16, #tpu.memory_space<vmem>>, vector<16x128xbf16>
    tpu.vector_store %arg13[%c32_72, %c512_73], %87 {strides = array<i32>} : memref<144x2048xbf16, #tpu.memory_space<vmem>>, vector<16x128xbf16>,
    %89 = vector.extract_strided_slice %10 {offsets = [384, 0], sizes = [16, 128], strides = [1, 1]} : vector<1024x128xbf16> to vector<16x128xbf16>
    %c48_74 = arith.constant 48 : index
    %c512_75 = arith.constant 512 : index
    %90 = vector.load %arg13[%c48_74, %c512_75] : memref<144x2048xbf16, #tpu.memory_space<vmem>>, vector<16x128xbf16>
    tpu.vector_store %arg13[%c48_74, %c512_75], %89 {strides = array<i32>} : memref<144x2048xbf16, #tpu.memory_space<vmem>>, vector<16x128xbf16>,
    %91 = vector.extract_strided_slice %10 {offsets = [416, 0], sizes = [16, 128], strides = [1, 1]} : vector<1024x128xbf16> to vector<16x128xbf16>
    %c64_76 = arith.constant 64 : index
    %c512_77 = arith.constant 512 : index
    %92 = vector.load %arg13[%c64_76, %c512_77] : memref<144x2048xbf16, #tpu.memory_space<vmem>>, vector<16x128xbf16>
    tpu.vector_store %arg13[%c64_76, %c512_77], %91 {strides = array<i32>} : memref<144x2048xbf16, #tpu.memory_space<vmem>>, vector<16x128xbf16>,
    %93 = vector.extract_strided_slice %10 {offsets = [448, 0], sizes = [16, 128], strides = [1, 1]} : vector<1024x128xbf16> to vector<16x128xbf16>
    %c80_78 = arith.constant 80 : index
    %c512_79 = arith.constant 512 : index
    %94 = vector.load %arg13[%c80_78, %c512_79] : memref<144x2048xbf16, #tpu.memory_space<vmem>>, vector<16x128xbf16>
    tpu.vector_store %arg13[%c80_78, %c512_79], %93 {strides = array<i32>} : memref<144x2048xbf16, #tpu.memory_space<vmem>>, vector<16x128xbf16>,
    %95 = vector.extract_strided_slice %10 {offsets = [640, 0], sizes = [16, 128], strides = [1, 1]} : vector<1024x128xbf16> to vector<16x128xbf16>
    %c96_80 = arith.constant 96 : index
    %c512_81 = arith.constant 512 : index
    %96 = vector.load %arg13[%c96_80, %c512_81] : memref<144x2048xbf16, #tpu.memory_space<vmem>>, vector<16x128xbf16>
    tpu.vector_store %arg13[%c96_80, %c512_81], %95 {strides = array<i32>} : memref<144x2048xbf16, #tpu.memory_space<vmem>>, vector<16x128xbf16>,
    %97 = vector.extract_strided_slice %10 {offsets = [672, 0], sizes = [16, 128], strides = [1, 1]} : vector<1024x128xbf16> to vector<16x128xbf16>
    %c112_82 = arith.constant 112 : index
    %c512_83 = arith.constant 512 : index
    %98 = vector.load %arg13[%c112_82, %c512_83] : memref<144x2048xbf16, #tpu.memory_space<vmem>>, vector<16x128xbf16>
    tpu.vector_store %arg13[%c112_82, %c512_83], %97 {strides = array<i32>} : memref<144x2048xbf16, #tpu.memory_space<vmem>>, vector<16x128xbf16>,
    %99 = vector.extract_strided_slice %10 {offsets = [704, 0], sizes = [16, 128], strides = [1, 1]} : vector<1024x128xbf16> to vector<16x128xbf16>
    %c128_84 = arith.constant 128 : index
    %c512_85 = arith.constant 512 : index
    %100 = vector.load %arg13[%c128_84, %c512_85] : memref<144x2048xbf16, #tpu.memory_space<vmem>>, vector<16x128xbf16>
    tpu.vector_store %arg13[%c128_84, %c512_85], %99 {strides = array<i32>} : memref<144x2048xbf16, #tpu.memory_space<vmem>>, vector<16x128xbf16>,
    %101 = vector.extract_strided_slice %10 {offsets = [144, 0], sizes = [16, 128], strides = [1, 1]} : vector<1024x128xbf16> to vector<16x128xbf16>
    %c0_86 = arith.constant 0 : index
    %c640 = arith.constant 640 : index
    %102 = vector.load %arg13[%c0_86, %c640] : memref<144x2048xbf16, #tpu.memory_space<vmem>>, vector<16x128xbf16>
    tpu.vector_store %arg13[%c0_86, %c640], %101 {strides = array<i32>} : memref<144x2048xbf16, #tpu.memory_space<vmem>>, vector<16x128xbf16>,
    %103 = vector.extract_strided_slice %10 {offsets = [176, 0], sizes = [16, 128], strides = [1, 1]} : vector<1024x128xbf16> to vector<16x128xbf16>
    %c16_87 = arith.constant 16 : index
    %c640_88 = arith.constant 640 : index
    %104 = vector.load %arg13[%c16_87, %c640_88] : memref<144x2048xbf16, #tpu.memory_space<vmem>>, vector<16x128xbf16>
    tpu.vector_store %arg13[%c16_87, %c640_88], %103 {strides = array<i32>} : memref<144x2048xbf16, #tpu.memory_space<vmem>>, vector<16x128xbf16>,
    %105 = vector.extract_strided_slice %10 {offsets = [208, 0], sizes = [16, 128], strides = [1, 1]} : vector<1024x128xbf16> to vector<16x128xbf16>
    %c32_89 = arith.constant 32 : index
    %c640_90 = arith.constant 640 : index
    %106 = vector.load %arg13[%c32_89, %c640_90] : memref<144x2048xbf16, #tpu.memory_space<vmem>>, vector<16x128xbf16>
    tpu.vector_store %arg13[%c32_89, %c640_90], %105 {strides = array<i32>} : memref<144x2048xbf16, #tpu.memory_space<vmem>>, vector<16x128xbf16>,
    %107 = vector.extract_strided_slice %10 {offsets = [400, 0], sizes = [16, 128], strides = [1, 1]} : vector<1024x128xbf16> to vector<16x128xbf16>
    %c48_91 = arith.constant 48 : index
    %c640_92 = arith.constant 640 : index
    %108 = vector.load %arg13[%c48_91, %c640_92] : memref<144x2048xbf16, #tpu.memory_space<vmem>>, vector<16x128xbf16>
    tpu.vector_store %arg13[%c48_91, %c640_92], %107 {strides = array<i32>} : memref<144x2048xbf16, #tpu.memory_space<vmem>>, vector<16x128xbf16>,
    %109 = vector.extract_strided_slice %10 {offsets = [432, 0], sizes = [16, 128], strides = [1, 1]} : vector<1024x128xbf16> to vector<16x128xbf16>
    %c64_93 = arith.constant 64 : index
    %c640_94 = arith.constant 640 : index
    %110 = vector.load %arg13[%c64_93, %c640_94] : memref<144x2048xbf16, #tpu.memory_space<vmem>>, vector<16x128xbf16>
    tpu.vector_store %arg13[%c64_93, %c640_94], %109 {strides = array<i32>} : memref<144x2048xbf16, #tpu.memory_space<vmem>>, vector<16x128xbf16>,
    %111 = vector.extract_strided_slice %10 {offsets = [464, 0], sizes = [16, 128], strides = [1, 1]} : vector<1024x128xbf16> to vector<16x128xbf16>
    %c80_95 = arith.constant 80 : index
    %c640_96 = arith.constant 640 : index
    %112 = vector.load %arg13[%c80_95, %c640_96] : memref<144x2048xbf16, #tpu.memory_space<vmem>>, vector<16x128xbf16>
    tpu.vector_store %arg13[%c80_95, %c640_96], %111 {strides = array<i32>} : memref<144x2048xbf16, #tpu.memory_space<vmem>>, vector<16x128xbf16>,
    %113 = vector.extract_strided_slice %10 {offsets = [656, 0], sizes = [16, 128], strides = [1, 1]} : vector<1024x128xbf16> to vector<16x128xbf16>
    %c96_97 = arith.constant 96 : index
    %c640_98 = arith.constant 640 : index
    %114 = vector.load %arg13[%c96_97, %c640_98] : memref<144x2048xbf16, #tpu.memory_space<vmem>>, vector<16x128xbf16>
    tpu.vector_store %arg13[%c96_97, %c640_98], %113 {strides = array<i32>} : memref<144x2048xbf16, #tpu.memory_space<vmem>>, vector<16x128xbf16>,
    %115 = vector.extract_strided_slice %10 {offsets = [688, 0], sizes = [16, 128], strides = [1, 1]} : vector<1024x128xbf16> to vector<16x128xbf16>
    %c112_99 = arith.constant 112 : index
    %c640_100 = arith.constant 640 : index
    %116 = vector.load %arg13[%c112_99, %c640_100] : memref<144x2048xbf16, #tpu.memory_space<vmem>>, vector<16x128xbf16>
    tpu.vector_store %arg13[%c112_99, %c640_100], %115 {strides = array<i32>} : memref<144x2048xbf16, #tpu.memory_space<vmem>>, vector<16x128xbf16>,
    %117 = vector.extract_strided_slice %10 {offsets = [720, 0], sizes = [16, 128], strides = [1, 1]} : vector<1024x128xbf16> to vector<16x128xbf16>
    %c128_101 = arith.constant 128 : index
    %c640_102 = arith.constant 640 : index
    %118 = vector.load %arg13[%c128_101, %c640_102] : memref<144x2048xbf16, #tpu.memory_space<vmem>>, vector<16x128xbf16>
    tpu.vector_store %arg13[%c128_101, %c640_102], %117 {strides = array<i32>} : memref<144x2048xbf16, #tpu.memory_space<vmem>>, vector<16x128xbf16>,
    %119 = vector.extract_strided_slice %10 {offsets = [160, 0], sizes = [16, 128], strides = [1, 1]} : vector<1024x128xbf16> to vector<16x128xbf16>
    %c0_103 = arith.constant 0 : index
    %c768 = arith.constant 768 : index
    %120 = vector.load %arg13[%c0_103, %c768] : memref<144x2048xbf16, #tpu.memory_space<vmem>>, vector<16x128xbf16>
    tpu.vector_store %arg13[%c0_103, %c768], %119 {strides = array<i32>} : memref<144x2048xbf16, #tpu.memory_space<vmem>>, vector<16x128xbf16>,
    %121 = vector.extract_strided_slice %10 {offsets = [192, 0], sizes = [16, 128], strides = [1, 1]} : vector<1024x128xbf16> to vector<16x128xbf16>
    %c16_104 = arith.constant 16 : index
    %c768_105 = arith.constant 768 : index
    %122 = vector.load %arg13[%c16_104, %c768_105] : memref<144x2048xbf16, #tpu.memory_space<vmem>>, vector<16x128xbf16>
    tpu.vector_store %arg13[%c16_104, %c768_105], %121 {strides = array<i32>} : memref<144x2048xbf16, #tpu.memory_space<vmem>>, vector<16x128xbf16>,
    %123 = vector.extract_strided_slice %10 {offsets = [224, 0], sizes = [16, 128], strides = [1, 1]} : vector<1024x128xbf16> to vector<16x128xbf16>
    %c32_106 = arith.constant 32 : index
    %c768_107 = arith.constant 768 : index
    %124 = vector.load %arg13[%c32_106, %c768_107] : memref<144x2048xbf16, #tpu.memory_space<vmem>>, vector<16x128xbf16>
    tpu.vector_store %arg13[%c32_106, %c768_107], %123 {strides = array<i32>} : memref<144x2048xbf16, #tpu.memory_space<vmem>>, vector<16x128xbf16>,
    %125 = vector.extract_strided_slice %10 {offsets = [416, 0], sizes = [16, 128], strides = [1, 1]} : vector<1024x128xbf16> to vector<16x128xbf16>
    %c48_108 = arith.constant 48 : index
    %c768_109 = arith.constant 768 : index
    %126 = vector.load %arg13[%c48_108, %c768_109] : memref<144x2048xbf16, #tpu.memory_space<vmem>>, vector<16x128xbf16>
    tpu.vector_store %arg13[%c48_108, %c768_109], %125 {strides = array<i32>} : memref<144x2048xbf16, #tpu.memory_space<vmem>>, vector<16x128xbf16>,
    %127 = vector.extract_strided_slice %10 {offsets = [448, 0], sizes = [16, 128], strides = [1, 1]} : vector<1024x128xbf16> to vector<16x128xbf16>
    %c64_110 = arith.constant 64 : index
    %c768_111 = arith.constant 768 : index
    %128 = vector.load %arg13[%c64_110, %c768_111] : memref<144x2048xbf16, #tpu.memory_space<vmem>>, vector<16x128xbf16>
    tpu.vector_store %arg13[%c64_110, %c768_111], %127 {strides = array<i32>} : memref<144x2048xbf16, #tpu.memory_space<vmem>>, vector<16x128xbf16>,
    %129 = vector.extract_strided_slice %10 {offsets = [480, 0], sizes = [16, 128], strides = [1, 1]} : vector<1024x128xbf16> to vector<16x128xbf16>
    %c80_112 = arith.constant 80 : index
    %c768_113 = arith.constant 768 : index
    %130 = vector.load %arg13[%c80_112, %c768_113] : memref<144x2048xbf16, #tpu.memory_space<vmem>>, vector<16x128xbf16>
    tpu.vector_store %arg13[%c80_112, %c768_113], %129 {strides = array<i32>} : memref<144x2048xbf16, #tpu.memory_space<vmem>>, vector<16x128xbf16>,
    %131 = vector.extract_strided_slice %10 {offsets = [672, 0], sizes = [16, 128], strides = [1, 1]} : vector<1024x128xbf16> to vector<16x128xbf16>
    %c96_114 = arith.constant 96 : index
    %c768_115 = arith.constant 768 : index
    %132 = vector.load %arg13[%c96_114, %c768_115] : memref<144x2048xbf16, #tpu.memory_space<vmem>>, vector<16x128xbf16>
    tpu.vector_store %arg13[%c96_114, %c768_115], %131 {strides = array<i32>} : memref<144x2048xbf16, #tpu.memory_space<vmem>>, vector<16x128xbf16>,
    %133 = vector.extract_strided_slice %10 {offsets = [704, 0], sizes = [16, 128], strides = [1, 1]} : vector<1024x128xbf16> to vector<16x128xbf16>
    %c112_116 = arith.constant 112 : index
    %c768_117 = arith.constant 768 : index
    %134 = vector.load %arg13[%c112_116, %c768_117] : memref<144x2048xbf16, #tpu.memory_space<vmem>>, vector<16x128xbf16>
    tpu.vector_store %arg13[%c112_116, %c768_117], %133 {strides = array<i32>} : memref<144x2048xbf16, #tpu.memory_space<vmem>>, vector<16x128xbf16>,
    %135 = vector.extract_strided_slice %10 {offsets = [736, 0], sizes = [16, 128], strides = [1, 1]} : vector<1024x128xbf16> to vector<16x128xbf16>
    %c128_118 = arith.constant 128 : index
    %c768_119 = arith.constant 768 : index
    %136 = vector.load %arg13[%c128_118, %c768_119] : memref<144x2048xbf16, #tpu.memory_space<vmem>>, vector<16x128xbf16>
    tpu.vector_store %arg13[%c128_118, %c768_119], %135 {strides = array<i32>} : memref<144x2048xbf16, #tpu.memory_space<vmem>>, vector<16x128xbf16>,
    %137 = vector.extract_strided_slice %10 {offsets = [176, 0], sizes = [16, 128], strides = [1, 1]} : vector<1024x128xbf16> to vector<16x128xbf16>
    %c0_120 = arith.constant 0 : index
    %c896 = arith.constant 896 : index
    %138 = vector.load %arg13[%c0_120, %c896] : memref<144x2048xbf16, #tpu.memory_space<vmem>>, vector<16x128xbf16>
    tpu.vector_store %arg13[%c0_120, %c896], %137 {strides = array<i32>} : memref<144x2048xbf16, #tpu.memory_space<vmem>>, vector<16x128xbf16>,
    %139 = vector.extract_strided_slice %10 {offsets = [208, 0], sizes = [16, 128], strides = [1, 1]} : vector<1024x128xbf16> to vector<16x128xbf16>
    %c16_121 = arith.constant 16 : index
    %c896_122 = arith.constant 896 : index
    %140 = vector.load %arg13[%c16_121, %c896_122] : memref<144x2048xbf16, #tpu.memory_space<vmem>>, vector<16x128xbf16>
    tpu.vector_store %arg13[%c16_121, %c896_122], %139 {strides = array<i32>} : memref<144x2048xbf16, #tpu.memory_space<vmem>>, vector<16x128xbf16>,
    %141 = vector.extract_strided_slice %10 {offsets = [240, 0], sizes = [16, 128], strides = [1, 1]} : vector<1024x128xbf16> to vector<16x128xbf16>
    %c32_123 = arith.constant 32 : index
    %c896_124 = arith.constant 896 : index
    %142 = vector.load %arg13[%c32_123, %c896_124] : memref<144x2048xbf16, #tpu.memory_space<vmem>>, vector<16x128xbf16>
    tpu.vector_store %arg13[%c32_123, %c896_124], %141 {strides = array<i32>} : memref<144x2048xbf16, #tpu.memory_space<vmem>>, vector<16x128xbf16>,
    %143 = vector.extract_strided_slice %10 {offsets = [432, 0], sizes = [16, 128], strides = [1, 1]} : vector<1024x128xbf16> to vector<16x128xbf16>
    %c48_125 = arith.constant 48 : index
    %c896_126 = arith.constant 896 : index
    %144 = vector.load %arg13[%c48_125, %c896_126] : memref<144x2048xbf16, #tpu.memory_space<vmem>>, vector<16x128xbf16>
    tpu.vector_store %arg13[%c48_125, %c896_126], %143 {strides = array<i32>} : memref<144x2048xbf16, #tpu.memory_space<vmem>>, vector<16x128xbf16>,
    %145 = vector.extract_strided_slice %10 {offsets = [464, 0], sizes = [16, 128], strides = [1, 1]} : vector<1024x128xbf16> to vector<16x128xbf16>
    %c64_127 = arith.constant 64 : index
    %c896_128 = arith.constant 896 : index
    %146 = vector.load %arg13[%c64_127, %c896_128] : memref<144x2048xbf16, #tpu.memory_space<vmem>>, vector<16x128xbf16>
    tpu.vector_store %arg13[%c64_127, %c896_128], %145 {strides = array<i32>} : memref<144x2048xbf16, #tpu.memory_space<vmem>>, vector<16x128xbf16>,
    %147 = vector.extract_strided_slice %10 {offsets = [496, 0], sizes = [16, 128], strides = [1, 1]} : vector<1024x128xbf16> to vector<16x128xbf16>
    %c80_129 = arith.constant 80 : index
    %c896_130 = arith.constant 896 : index
    %148 = vector.load %arg13[%c80_129, %c896_130] : memref<144x2048xbf16, #tpu.memory_space<vmem>>, vector<16x128xbf16>
    tpu.vector_store %arg13[%c80_129, %c896_130], %147 {strides = array<i32>} : memref<144x2048xbf16, #tpu.memory_space<vmem>>, vector<16x128xbf16>,
    %149 = vector.extract_strided_slice %10 {offsets = [688, 0], sizes = [16, 128], strides = [1, 1]} : vector<1024x128xbf16> to vector<16x128xbf16>
    %c96_131 = arith.constant 96 : index
    %c896_132 = arith.constant 896 : index
    %150 = vector.load %arg13[%c96_131, %c896_132] : memref<144x2048xbf16, #tpu.memory_space<vmem>>, vector<16x128xbf16>
    tpu.vector_store %arg13[%c96_131, %c896_132], %149 {strides = array<i32>} : memref<144x2048xbf16, #tpu.memory_space<vmem>>, vector<16x128xbf16>,
    %151 = vector.extract_strided_slice %10 {offsets = [720, 0], sizes = [16, 128], strides = [1, 1]} : vector<1024x128xbf16> to vector<16x128xbf16>
    %c112_133 = arith.constant 112 : index
    %c896_134 = arith.constant 896 : index
    %152 = vector.load %arg13[%c112_133, %c896_134] : memref<144x2048xbf16, #tpu.memory_space<vmem>>, vector<16x128xbf16>
    tpu.vector_store %arg13[%c112_133, %c896_134], %151 {strides = array<i32>} : memref<144x2048xbf16, #tpu.memory_space<vmem>>, vector<16x128xbf16>,
    %153 = vector.extract_strided_slice %10 {offsets = [752, 0], sizes = [16, 128], strides = [1, 1]} : vector<1024x128xbf16> to vector<16x128xbf16>
    %c128_135 = arith.constant 128 : index
    %c896_136 = arith.constant 896 : index
    %154 = vector.load %arg13[%c128_135, %c896_136] : memref<144x2048xbf16, #tpu.memory_space<vmem>>, vector<16x128xbf16>
    tpu.vector_store %arg13[%c128_135, %c896_136], %153 {strides = array<i32>} : memref<144x2048xbf16, #tpu.memory_space<vmem>>, vector<16x128xbf16>,
    %155 = vector.extract_strided_slice %10 {offsets = [256, 0], sizes = [16, 128], strides = [1, 1]} : vector<1024x128xbf16> to vector<16x128xbf16>
    %c0_137 = arith.constant 0 : index
    %c1024 = arith.constant 1024 : index
    %156 = vector.load %arg13[%c0_137, %c1024] : memref<144x2048xbf16, #tpu.memory_space<vmem>>, vector<16x128xbf16>
    tpu.vector_store %arg13[%c0_137, %c1024], %155 {strides = array<i32>} : memref<144x2048xbf16, #tpu.memory_space<vmem>>, vector<16x128xbf16>,
    %157 = vector.extract_strided_slice %10 {offsets = [288, 0], sizes = [16, 128], strides = [1, 1]} : vector<1024x128xbf16> to vector<16x128xbf16>
    %c16_138 = arith.constant 16 : index
    %c1024_139 = arith.constant 1024 : index
    %158 = vector.load %arg13[%c16_138, %c1024_139] : memref<144x2048xbf16, #tpu.memory_space<vmem>>, vector<16x128xbf16>
    tpu.vector_store %arg13[%c16_138, %c1024_139], %157 {strides = array<i32>} : memref<144x2048xbf16, #tpu.memory_space<vmem>>, vector<16x128xbf16>,
    %159 = vector.extract_strided_slice %10 {offsets = [320, 0], sizes = [16, 128], strides = [1, 1]} : vector<1024x128xbf16> to vector<16x128xbf16>
    %c32_140 = arith.constant 32 : index
    %c1024_141 = arith.constant 1024 : index
    %160 = vector.load %arg13[%c32_140, %c1024_141] : memref<144x2048xbf16, #tpu.memory_space<vmem>>, vector<16x128xbf16>
    tpu.vector_store %arg13[%c32_140, %c1024_141], %159 {strides = array<i32>} : memref<144x2048xbf16, #tpu.memory_space<vmem>>, vector<16x128xbf16>,
    %161 = vector.extract_strided_slice %10 {offsets = [512, 0], sizes = [16, 128], strides = [1, 1]} : vector<1024x128xbf16> to vector<16x128xbf16>
    %c48_142 = arith.constant 48 : index
    %c1024_143 = arith.constant 1024 : index
    %162 = vector.load %arg13[%c48_142, %c1024_143] : memref<144x2048xbf16, #tpu.memory_space<vmem>>, vector<16x128xbf16>
    tpu.vector_store %arg13[%c48_142, %c1024_143], %161 {strides = array<i32>} : memref<144x2048xbf16, #tpu.memory_space<vmem>>, vector<16x128xbf16>,
    %163 = vector.extract_strided_slice %10 {offsets = [544, 0], sizes = [16, 128], strides = [1, 1]} : vector<1024x128xbf16> to vector<16x128xbf16>
    %c64_144 = arith.constant 64 : index
    %c1024_145 = arith.constant 1024 : index
    %164 = vector.load %arg13[%c64_144, %c1024_145] : memref<144x2048xbf16, #tpu.memory_space<vmem>>, vector<16x128xbf16>
    tpu.vector_store %arg13[%c64_144, %c1024_145], %163 {strides = array<i32>} : memref<144x2048xbf16, #tpu.memory_space<vmem>>, vector<16x128xbf16>,
    %165 = vector.extract_strided_slice %10 {offsets = [576, 0], sizes = [16, 128], strides = [1, 1]} : vector<1024x128xbf16> to vector<16x128xbf16>
    %c80_146 = arith.constant 80 : index
    %c1024_147 = arith.constant 1024 : index
    %166 = vector.load %arg13[%c80_146, %c1024_147] : memref<144x2048xbf16, #tpu.memory_space<vmem>>, vector<16x128xbf16>
    tpu.vector_store %arg13[%c80_146, %c1024_147], %165 {strides = array<i32>} : memref<144x2048xbf16, #tpu.memory_space<vmem>>, vector<16x128xbf16>,
    %167 = vector.extract_strided_slice %10 {offsets = [768, 0], sizes = [16, 128], strides = [1, 1]} : vector<1024x128xbf16> to vector<16x128xbf16>
    %c96_148 = arith.constant 96 : index
    %c1024_149 = arith.constant 1024 : index
    %168 = vector.load %arg13[%c96_148, %c1024_149] : memref<144x2048xbf16, #tpu.memory_space<vmem>>, vector<16x128xbf16>
    tpu.vector_store %arg13[%c96_148, %c1024_149], %167 {strides = array<i32>} : memref<144x2048xbf16, #tpu.memory_space<vmem>>, vector<16x128xbf16>,
    %169 = vector.extract_strided_slice %10 {offsets = [800, 0], sizes = [16, 128], strides = [1, 1]} : vector<1024x128xbf16> to vector<16x128xbf16>
    %c112_150 = arith.constant 112 : index
    %c1024_151 = arith.constant 1024 : index
    %170 = vector.load %arg13[%c112_150, %c1024_151] : memref<144x2048xbf16, #tpu.memory_space<vmem>>, vector<16x128xbf16>
    tpu.vector_store %arg13[%c112_150, %c1024_151], %169 {strides = array<i32>} : memref<144x2048xbf16, #tpu.memory_space<vmem>>, vector<16x128xbf16>,
    %171 = vector.extract_strided_slice %10 {offsets = [832, 0], sizes = [16, 128], strides = [1, 1]} : vector<1024x128xbf16> to vector<16x128xbf16>
    %c128_152 = arith.constant 128 : index
    %c1024_153 = arith.constant 1024 : index
    %172 = vector.load %arg13[%c128_152, %c1024_153] : memref<144x2048xbf16, #tpu.memory_space<vmem>>, vector<16x128xbf16>
    tpu.vector_store %arg13[%c128_152, %c1024_153], %171 {strides = array<i32>} : memref<144x2048xbf16, #tpu.memory_space<vmem>>, vector<16x128xbf16>,
    %173 = vector.extract_strided_slice %10 {offsets = [272, 0], sizes = [16, 128], strides = [1, 1]} : vector<1024x128xbf16> to vector<16x128xbf16>
    %c0_154 = arith.constant 0 : index
    %c1152 = arith.constant 1152 : index
    %174 = vector.load %arg13[%c0_154, %c1152] : memref<144x2048xbf16, #tpu.memory_space<vmem>>, vector<16x128xbf16>
    tpu.vector_store %arg13[%c0_154, %c1152], %173 {strides = array<i32>} : memref<144x2048xbf16, #tpu.memory_space<vmem>>, vector<16x128xbf16>,
    %175 = vector.extract_strided_slice %10 {offsets = [304, 0], sizes = [16, 128], strides = [1, 1]} : vector<1024x128xbf16> to vector<16x128xbf16>
    %c16_155 = arith.constant 16 : index
    %c1152_156 = arith.constant 1152 : index
    %176 = vector.load %arg13[%c16_155, %c1152_156] : memref<144x2048xbf16, #tpu.memory_space<vmem>>, vector<16x128xbf16>
    tpu.vector_store %arg13[%c16_155, %c1152_156], %175 {strides = array<i32>} : memref<144x2048xbf16, #tpu.memory_space<vmem>>, vector<16x128xbf16>,
    %177 = vector.extract_strided_slice %10 {offsets = [336, 0], sizes = [16, 128], strides = [1, 1]} : vector<1024x128xbf16> to vector<16x128xbf16>
    %c32_157 = arith.constant 32 : index
    %c1152_158 = arith.constant 1152 : index
    %178 = vector.load %arg13[%c32_157, %c1152_158] : memref<144x2048xbf16, #tpu.memory_space<vmem>>, vector<16x128xbf16>
    tpu.vector_store %arg13[%c32_157, %c1152_158], %177 {strides = array<i32>} : memref<144x2048xbf16, #tpu.memory_space<vmem>>, vector<16x128xbf16>,
    %179 = vector.extract_strided_slice %10 {offsets = [528, 0], sizes = [16, 128], strides = [1, 1]} : vector<1024x128xbf16> to vector<16x128xbf16>
    %c48_159 = arith.constant 48 : index
    %c1152_160 = arith.constant 1152 : index
    %180 = vector.load %arg13[%c48_159, %c1152_160] : memref<144x2048xbf16, #tpu.memory_space<vmem>>, vector<16x128xbf16>
    tpu.vector_store %arg13[%c48_159, %c1152_160], %179 {strides = array<i32>} : memref<144x2048xbf16, #tpu.memory_space<vmem>>, vector<16x128xbf16>,
    %181 = vector.extract_strided_slice %10 {offsets = [560, 0], sizes = [16, 128], strides = [1, 1]} : vector<1024x128xbf16> to vector<16x128xbf16>
    %c64_161 = arith.constant 64 : index
    %c1152_162 = arith.constant 1152 : index
    %182 = vector.load %arg13[%c64_161, %c1152_162] : memref<144x2048xbf16, #tpu.memory_space<vmem>>, vector<16x128xbf16>
    tpu.vector_store %arg13[%c64_161, %c1152_162], %181 {strides = array<i32>} : memref<144x2048xbf16, #tpu.memory_space<vmem>>, vector<16x128xbf16>,
    %183 = vector.extract_strided_slice %10 {offsets = [592, 0], sizes = [16, 128], strides = [1, 1]} : vector<1024x128xbf16> to vector<16x128xbf16>
    %c80_163 = arith.constant 80 : index
    %c1152_164 = arith.constant 1152 : index
    %184 = vector.load %arg13[%c80_163, %c1152_164] : memref<144x2048xbf16, #tpu.memory_space<vmem>>, vector<16x128xbf16>
    tpu.vector_store %arg13[%c80_163, %c1152_164], %183 {strides = array<i32>} : memref<144x2048xbf16, #tpu.memory_space<vmem>>, vector<16x128xbf16>,
    %185 = vector.extract_strided_slice %10 {offsets = [784, 0], sizes = [16, 128], strides = [1, 1]} : vector<1024x128xbf16> to vector<16x128xbf16>
    %c96_165 = arith.constant 96 : index
    %c1152_166 = arith.constant 1152 : index
    %186 = vector.load %arg13[%c96_165, %c1152_166] : memref<144x2048xbf16, #tpu.memory_space<vmem>>, vector<16x128xbf16>
    tpu.vector_store %arg13[%c96_165, %c1152_166], %185 {strides = array<i32>} : memref<144x2048xbf16, #tpu.memory_space<vmem>>, vector<16x128xbf16>,
    %187 = vector.extract_strided_slice %10 {offsets = [816, 0], sizes = [16, 128], strides = [1, 1]} : vector<1024x128xbf16> to vector<16x128xbf16>
    %c112_167 = arith.constant 112 : index
    %c1152_168 = arith.constant 1152 : index
    %188 = vector.load %arg13[%c112_167, %c1152_168] : memref<144x2048xbf16, #tpu.memory_space<vmem>>, vector<16x128xbf16>
    tpu.vector_store %arg13[%c112_167, %c1152_168], %187 {strides = array<i32>} : memref<144x2048xbf16, #tpu.memory_space<vmem>>, vector<16x128xbf16>,
    %189 = vector.extract_strided_slice %10 {offsets = [848, 0], sizes = [16, 128], strides = [1, 1]} : vector<1024x128xbf16> to vector<16x128xbf16>
    %c128_169 = arith.constant 128 : index
    %c1152_170 = arith.constant 1152 : index
    %190 = vector.load %arg13[%c128_169, %c1152_170] : memref<144x2048xbf16, #tpu.memory_space<vmem>>, vector<16x128xbf16>
    tpu.vector_store %arg13[%c128_169, %c1152_170], %189 {strides = array<i32>} : memref<144x2048xbf16, #tpu.memory_space<vmem>>, vector<16x128xbf16>,
    %191 = vector.extract_strided_slice %10 {offsets = [288, 0], sizes = [16, 128], strides = [1, 1]} : vector<1024x128xbf16> to vector<16x128xbf16>
    %c0_171 = arith.constant 0 : index
    %c1280 = arith.constant 1280 : index
    %192 = vector.load %arg13[%c0_171, %c1280] : memref<144x2048xbf16, #tpu.memory_space<vmem>>, vector<16x128xbf16>
    tpu.vector_store %arg13[%c0_171, %c1280], %191 {strides = array<i32>} : memref<144x2048xbf16, #tpu.memory_space<vmem>>, vector<16x128xbf16>,
    %193 = vector.extract_strided_slice %10 {offsets = [320, 0], sizes = [16, 128], strides = [1, 1]} : vector<1024x128xbf16> to vector<16x128xbf16>
    %c16_172 = arith.constant 16 : index
    %c1280_173 = arith.constant 1280 : index
    %194 = vector.load %arg13[%c16_172, %c1280_173] : memref<144x2048xbf16, #tpu.memory_space<vmem>>, vector<16x128xbf16>
    tpu.vector_store %arg13[%c16_172, %c1280_173], %193 {strides = array<i32>} : memref<144x2048xbf16, #tpu.memory_space<vmem>>, vector<16x128xbf16>,
    %195 = vector.extract_strided_slice %10 {offsets = [352, 0], sizes = [16, 128], strides = [1, 1]} : vector<1024x128xbf16> to vector<16x128xbf16>
    %c32_174 = arith.constant 32 : index
    %c1280_175 = arith.constant 1280 : index
    %196 = vector.load %arg13[%c32_174, %c1280_175] : memref<144x2048xbf16, #tpu.memory_space<vmem>>, vector<16x128xbf16>
    tpu.vector_store %arg13[%c32_174, %c1280_175], %195 {strides = array<i32>} : memref<144x2048xbf16, #tpu.memory_space<vmem>>, vector<16x128xbf16>,
    %197 = vector.extract_strided_slice %10 {offsets = [544, 0], sizes = [16, 128], strides = [1, 1]} : vector<1024x128xbf16> to vector<16x128xbf16>
    %c48_176 = arith.constant 48 : index
    %c1280_177 = arith.constant 1280 : index
    %198 = vector.load %arg13[%c48_176, %c1280_177] : memref<144x2048xbf16, #tpu.memory_space<vmem>>, vector<16x128xbf16>
    tpu.vector_store %arg13[%c48_176, %c1280_177], %197 {strides = array<i32>} : memref<144x2048xbf16, #tpu.memory_space<vmem>>, vector<16x128xbf16>,
    %199 = vector.extract_strided_slice %10 {offsets = [576, 0], sizes = [16, 128], strides = [1, 1]} : vector<1024x128xbf16> to vector<16x128xbf16>
    %c64_178 = arith.constant 64 : index
    %c1280_179 = arith.constant 1280 : index
    %200 = vector.load %arg13[%c64_178, %c1280_179] : memref<144x2048xbf16, #tpu.memory_space<vmem>>, vector<16x128xbf16>
    tpu.vector_store %arg13[%c64_178, %c1280_179], %199 {strides = array<i32>} : memref<144x2048xbf16, #tpu.memory_space<vmem>>, vector<16x128xbf16>,
    %201 = vector.extract_strided_slice %10 {offsets = [608, 0], sizes = [16, 128], strides = [1, 1]} : vector<1024x128xbf16> to vector<16x128xbf16>
    %c80_180 = arith.constant 80 : index
    %c1280_181 = arith.constant 1280 : index
    %202 = vector.load %arg13[%c80_180, %c1280_181] : memref<144x2048xbf16, #tpu.memory_space<vmem>>, vector<16x128xbf16>
    tpu.vector_store %arg13[%c80_180, %c1280_181], %201 {strides = array<i32>} : memref<144x2048xbf16, #tpu.memory_space<vmem>>, vector<16x128xbf16>,
    %203 = vector.extract_strided_slice %10 {offsets = [800, 0], sizes = [16, 128], strides = [1, 1]} : vector<1024x128xbf16> to vector<16x128xbf16>
    %c96_182 = arith.constant 96 : index
    %c1280_183 = arith.constant 1280 : index
    %204 = vector.load %arg13[%c96_182, %c1280_183] : memref<144x2048xbf16, #tpu.memory_space<vmem>>, vector<16x128xbf16>
    tpu.vector_store %arg13[%c96_182, %c1280_183], %203 {strides = array<i32>} : memref<144x2048xbf16, #tpu.memory_space<vmem>>, vector<16x128xbf16>,
    %205 = vector.extract_strided_slice %10 {offsets = [832, 0], sizes = [16, 128], strides = [1, 1]} : vector<1024x128xbf16> to vector<16x128xbf16>
    %c112_184 = arith.constant 112 : index
    %c1280_185 = arith.constant 1280 : index
    %206 = vector.load %arg13[%c112_184, %c1280_185] : memref<144x2048xbf16, #tpu.memory_space<vmem>>, vector<16x128xbf16>
    tpu.vector_store %arg13[%c112_184, %c1280_185], %205 {strides = array<i32>} : memref<144x2048xbf16, #tpu.memory_space<vmem>>, vector<16x128xbf16>,
    %207 = vector.extract_strided_slice %10 {offsets = [864, 0], sizes = [16, 128], strides = [1, 1]} : vector<1024x128xbf16> to vector<16x128xbf16>
    %c128_186 = arith.constant 128 : index
    %c1280_187 = arith.constant 1280 : index
    %208 = vector.load %arg13[%c128_186, %c1280_187] : memref<144x2048xbf16, #tpu.memory_space<vmem>>, vector<16x128xbf16>
    tpu.vector_store %arg13[%c128_186, %c1280_187], %207 {strides = array<i32>} : memref<144x2048xbf16, #tpu.memory_space<vmem>>, vector<16x128xbf16>,
    %209 = vector.extract_strided_slice %10 {offsets = [304, 0], sizes = [16, 128], strides = [1, 1]} : vector<1024x128xbf16> to vector<16x128xbf16>
    %c0_188 = arith.constant 0 : index
    %c1408 = arith.constant 1408 : index
    %210 = vector.load %arg13[%c0_188, %c1408] : memref<144x2048xbf16, #tpu.memory_space<vmem>>, vector<16x128xbf16>
    tpu.vector_store %arg13[%c0_188, %c1408], %209 {strides = array<i32>} : memref<144x2048xbf16, #tpu.memory_space<vmem>>, vector<16x128xbf16>,
    %211 = vector.extract_strided_slice %10 {offsets = [336, 0], sizes = [16, 128], strides = [1, 1]} : vector<1024x128xbf16> to vector<16x128xbf16>
    %c16_189 = arith.constant 16 : index
    %c1408_190 = arith.constant 1408 : index
    %212 = vector.load %arg13[%c16_189, %c1408_190] : memref<144x2048xbf16, #tpu.memory_space<vmem>>, vector<16x128xbf16>
    tpu.vector_store %arg13[%c16_189, %c1408_190], %211 {strides = array<i32>} : memref<144x2048xbf16, #tpu.memory_space<vmem>>, vector<16x128xbf16>,
    %213 = vector.extract_strided_slice %10 {offsets = [368, 0], sizes = [16, 128], strides = [1, 1]} : vector<1024x128xbf16> to vector<16x128xbf16>
    %c32_191 = arith.constant 32 : index
    %c1408_192 = arith.constant 1408 : index
    %214 = vector.load %arg13[%c32_191, %c1408_192] : memref<144x2048xbf16, #tpu.memory_space<vmem>>, vector<16x128xbf16>
    tpu.vector_store %arg13[%c32_191, %c1408_192], %213 {strides = array<i32>} : memref<144x2048xbf16, #tpu.memory_space<vmem>>, vector<16x128xbf16>,
    %215 = vector.extract_strided_slice %10 {offsets = [560, 0], sizes = [16, 128], strides = [1, 1]} : vector<1024x128xbf16> to vector<16x128xbf16>
    %c48_193 = arith.constant 48 : index
    %c1408_194 = arith.constant 1408 : index
    %216 = vector.load %arg13[%c48_193, %c1408_194] : memref<144x2048xbf16, #tpu.memory_space<vmem>>, vector<16x128xbf16>
    tpu.vector_store %arg13[%c48_193, %c1408_194], %215 {strides = array<i32>} : memref<144x2048xbf16, #tpu.memory_space<vmem>>, vector<16x128xbf16>,
    %217 = vector.extract_strided_slice %10 {offsets = [592, 0], sizes = [16, 128], strides = [1, 1]} : vector<1024x128xbf16> to vector<16x128xbf16>
    %c64_195 = arith.constant 64 : index
    %c1408_196 = arith.constant 1408 : index
    %218 = vector.load %arg13[%c64_195, %c1408_196] : memref<144x2048xbf16, #tpu.memory_space<vmem>>, vector<16x128xbf16>
    tpu.vector_store %arg13[%c64_195, %c1408_196], %217 {strides = array<i32>} : memref<144x2048xbf16, #tpu.memory_space<vmem>>, vector<16x128xbf16>,
    %219 = vector.extract_strided_slice %10 {offsets = [624, 0], sizes = [16, 128], strides = [1, 1]} : vector<1024x128xbf16> to vector<16x128xbf16>
    %c80_197 = arith.constant 80 : index
    %c1408_198 = arith.constant 1408 : index
    %220 = vector.load %arg13[%c80_197, %c1408_198] : memref<144x2048xbf16, #tpu.memory_space<vmem>>, vector<16x128xbf16>
    tpu.vector_store %arg13[%c80_197, %c1408_198], %219 {strides = array<i32>} : memref<144x2048xbf16, #tpu.memory_space<vmem>>, vector<16x128xbf16>,
    %221 = vector.extract_strided_slice %10 {offsets = [816, 0], sizes = [16, 128], strides = [1, 1]} : vector<1024x128xbf16> to vector<16x128xbf16>
    %c96_199 = arith.constant 96 : index
    %c1408_200 = arith.constant 1408 : index
    %222 = vector.load %arg13[%c96_199, %c1408_200] : memref<144x2048xbf16, #tpu.memory_space<vmem>>, vector<16x128xbf16>
    tpu.vector_store %arg13[%c96_199, %c1408_200], %221 {strides = array<i32>} : memref<144x2048xbf16, #tpu.memory_space<vmem>>, vector<16x128xbf16>,
    %223 = vector.extract_strided_slice %10 {offsets = [848, 0], sizes = [16, 128], strides = [1, 1]} : vector<1024x128xbf16> to vector<16x128xbf16>
    %c112_201 = arith.constant 112 : index
    %c1408_202 = arith.constant 1408 : index
    %224 = vector.load %arg13[%c112_201, %c1408_202] : memref<144x2048xbf16, #tpu.memory_space<vmem>>, vector<16x128xbf16>
    tpu.vector_store %arg13[%c112_201, %c1408_202], %223 {strides = array<i32>} : memref<144x2048xbf16, #tpu.memory_space<vmem>>, vector<16x128xbf16>,
    %225 = vector.extract_strided_slice %10 {offsets = [880, 0], sizes = [16, 128], strides = [1, 1]} : vector<1024x128xbf16> to vector<16x128xbf16>
    %c128_203 = arith.constant 128 : index
    %c1408_204 = arith.constant 1408 : index
    %226 = vector.load %arg13[%c128_203, %c1408_204] : memref<144x2048xbf16, #tpu.memory_space<vmem>>, vector<16x128xbf16>
    tpu.vector_store %arg13[%c128_203, %c1408_204], %225 {strides = array<i32>} : memref<144x2048xbf16, #tpu.memory_space<vmem>>, vector<16x128xbf16>,
    %227 = vector.extract_strided_slice %10 {offsets = [384, 0], sizes = [16, 128], strides = [1, 1]} : vector<1024x128xbf16> to vector<16x128xbf16>
    %c0_205 = arith.constant 0 : index
    %c1536 = arith.constant 1536 : index
    %228 = vector.load %arg13[%c0_205, %c1536] : memref<144x2048xbf16, #tpu.memory_space<vmem>>, vector<16x128xbf16>
    tpu.vector_store %arg13[%c0_205, %c1536], %227 {strides = array<i32>} : memref<144x2048xbf16, #tpu.memory_space<vmem>>, vector<16x128xbf16>,
    %229 = vector.extract_strided_slice %10 {offsets = [416, 0], sizes = [16, 128], strides = [1, 1]} : vector<1024x128xbf16> to vector<16x128xbf16>
    %c16_206 = arith.constant 16 : index
    %c1536_207 = arith.constant 1536 : index
    %230 = vector.load %arg13[%c16_206, %c1536_207] : memref<144x2048xbf16, #tpu.memory_space<vmem>>, vector<16x128xbf16>
    tpu.vector_store %arg13[%c16_206, %c1536_207], %229 {strides = array<i32>} : memref<144x2048xbf16, #tpu.memory_space<vmem>>, vector<16x128xbf16>,
    %231 = vector.extract_strided_slice %10 {offsets = [448, 0], sizes = [16, 128], strides = [1, 1]} : vector<1024x128xbf16> to vector<16x128xbf16>
    %c32_208 = arith.constant 32 : index
    %c1536_209 = arith.constant 1536 : index
    %232 = vector.load %arg13[%c32_208, %c1536_209] : memref<144x2048xbf16, #tpu.memory_space<vmem>>, vector<16x128xbf16>
    tpu.vector_store %arg13[%c32_208, %c1536_209], %231 {strides = array<i32>} : memref<144x2048xbf16, #tpu.memory_space<vmem>>, vector<16x128xbf16>,
    %233 = vector.extract_strided_slice %10 {offsets = [640, 0], sizes = [16, 128], strides = [1, 1]} : vector<1024x128xbf16> to vector<16x128xbf16>
    %c48_210 = arith.constant 48 : index
    %c1536_211 = arith.constant 1536 : index
    %234 = vector.load %arg13[%c48_210, %c1536_211] : memref<144x2048xbf16, #tpu.memory_space<vmem>>, vector<16x128xbf16>
    tpu.vector_store %arg13[%c48_210, %c1536_211], %233 {strides = array<i32>} : memref<144x2048xbf16, #tpu.memory_space<vmem>>, vector<16x128xbf16>,
    %235 = vector.extract_strided_slice %10 {offsets = [672, 0], sizes = [16, 128], strides = [1, 1]} : vector<1024x128xbf16> to vector<16x128xbf16>
    %c64_212 = arith.constant 64 : index
    %c1536_213 = arith.constant 1536 : index
    %236 = vector.load %arg13[%c64_212, %c1536_213] : memref<144x2048xbf16, #tpu.memory_space<vmem>>, vector<16x128xbf16>
    tpu.vector_store %arg13[%c64_212, %c1536_213], %235 {strides = array<i32>} : memref<144x2048xbf16, #tpu.memory_space<vmem>>, vector<16x128xbf16>,
    %237 = vector.extract_strided_slice %10 {offsets = [704, 0], sizes = [16, 128], strides = [1, 1]} : vector<1024x128xbf16> to vector<16x128xbf16>
    %c80_214 = arith.constant 80 : index
    %c1536_215 = arith.constant 1536 : index
    %238 = vector.load %arg13[%c80_214, %c1536_215] : memref<144x2048xbf16, #tpu.memory_space<vmem>>, vector<16x128xbf16>
    tpu.vector_store %arg13[%c80_214, %c1536_215], %237 {strides = array<i32>} : memref<144x2048xbf16, #tpu.memory_space<vmem>>, vector<16x128xbf16>,
    %239 = vector.extract_strided_slice %10 {offsets = [896, 0], sizes = [16, 128], strides = [1, 1]} : vector<1024x128xbf16> to vector<16x128xbf16>
    %c96_216 = arith.constant 96 : index
    %c1536_217 = arith.constant 1536 : index
    %240 = vector.load %arg13[%c96_216, %c1536_217] : memref<144x2048xbf16, #tpu.memory_space<vmem>>, vector<16x128xbf16>
    tpu.vector_store %arg13[%c96_216, %c1536_217], %239 {strides = array<i32>} : memref<144x2048xbf16, #tpu.memory_space<vmem>>, vector<16x128xbf16>,
    %241 = vector.extract_strided_slice %10 {offsets = [928, 0], sizes = [16, 128], strides = [1, 1]} : vector<1024x128xbf16> to vector<16x128xbf16>
    %c112_218 = arith.constant 112 : index
    %c1536_219 = arith.constant 1536 : index
    %242 = vector.load %arg13[%c112_218, %c1536_219] : memref<144x2048xbf16, #tpu.memory_space<vmem>>, vector<16x128xbf16>
    tpu.vector_store %arg13[%c112_218, %c1536_219], %241 {strides = array<i32>} : memref<144x2048xbf16, #tpu.memory_space<vmem>>, vector<16x128xbf16>,
    %243 = vector.extract_strided_slice %10 {offsets = [960, 0], sizes = [16, 128], strides = [1, 1]} : vector<1024x128xbf16> to vector<16x128xbf16>
    %c128_220 = arith.constant 128 : index
    %c1536_221 = arith.constant 1536 : index
    %244 = vector.load %arg13[%c128_220, %c1536_221] : memref<144x2048xbf16, #tpu.memory_space<vmem>>, vector<16x128xbf16>
    tpu.vector_store %arg13[%c128_220, %c1536_221], %243 {strides = array<i32>} : memref<144x2048xbf16, #tpu.memory_space<vmem>>, vector<16x128xbf16>,
    %245 = vector.extract_strided_slice %10 {offsets = [400, 0], sizes = [16, 128], strides = [1, 1]} : vector<1024x128xbf16> to vector<16x128xbf16>
    %c0_222 = arith.constant 0 : index
    %c1664 = arith.constant 1664 : index
    %246 = vector.load %arg13[%c0_222, %c1664] : memref<144x2048xbf16, #tpu.memory_space<vmem>>, vector<16x128xbf16>
    tpu.vector_store %arg13[%c0_222, %c1664], %245 {strides = array<i32>} : memref<144x2048xbf16, #tpu.memory_space<vmem>>, vector<16x128xbf16>,
    %247 = vector.extract_strided_slice %10 {offsets = [432, 0], sizes = [16, 128], strides = [1, 1]} : vector<1024x128xbf16> to vector<16x128xbf16>
    %c16_223 = arith.constant 16 : index
    %c1664_224 = arith.constant 1664 : index
    %248 = vector.load %arg13[%c16_223, %c1664_224] : memref<144x2048xbf16, #tpu.memory_space<vmem>>, vector<16x128xbf16>
    tpu.vector_store %arg13[%c16_223, %c1664_224], %247 {strides = array<i32>} : memref<144x2048xbf16, #tpu.memory_space<vmem>>, vector<16x128xbf16>,
    %249 = vector.extract_strided_slice %10 {offsets = [464, 0], sizes = [16, 128], strides = [1, 1]} : vector<1024x128xbf16> to vector<16x128xbf16>
    %c32_225 = arith.constant 32 : index
    %c1664_226 = arith.constant 1664 : index
    %250 = vector.load %arg13[%c32_225, %c1664_226] : memref<144x2048xbf16, #tpu.memory_space<vmem>>, vector<16x128xbf16>
    tpu.vector_store %arg13[%c32_225, %c1664_226], %249 {strides = array<i32>} : memref<144x2048xbf16, #tpu.memory_space<vmem>>, vector<16x128xbf16>,
    %251 = vector.extract_strided_slice %10 {offsets = [656, 0], sizes = [16, 128], strides = [1, 1]} : vector<1024x128xbf16> to vector<16x128xbf16>
    %c48_227 = arith.constant 48 : index
    %c1664_228 = arith.constant 1664 : index
    %252 = vector.load %arg13[%c48_227, %c1664_228] : memref<144x2048xbf16, #tpu.memory_space<vmem>>, vector<16x128xbf16>
    tpu.vector_store %arg13[%c48_227, %c1664_228], %251 {strides = array<i32>} : memref<144x2048xbf16, #tpu.memory_space<vmem>>, vector<16x128xbf16>,
    %253 = vector.extract_strided_slice %10 {offsets = [688, 0], sizes = [16, 128], strides = [1, 1]} : vector<1024x128xbf16> to vector<16x128xbf16>
    %c64_229 = arith.constant 64 : index
    %c1664_230 = arith.constant 1664 : index
    %254 = vector.load %arg13[%c64_229, %c1664_230] : memref<144x2048xbf16, #tpu.memory_space<vmem>>, vector<16x128xbf16>
    tpu.vector_store %arg13[%c64_229, %c1664_230], %253 {strides = array<i32>} : memref<144x2048xbf16, #tpu.memory_space<vmem>>, vector<16x128xbf16>,
    %255 = vector.extract_strided_slice %10 {offsets = [720, 0], sizes = [16, 128], strides = [1, 1]} : vector<1024x128xbf16> to vector<16x128xbf16>
    %c80_231 = arith.constant 80 : index
    %c1664_232 = arith.constant 1664 : index
    %256 = vector.load %arg13[%c80_231, %c1664_232] : memref<144x2048xbf16, #tpu.memory_space<vmem>>, vector<16x128xbf16>
    tpu.vector_store %arg13[%c80_231, %c1664_232], %255 {strides = array<i32>} : memref<144x2048xbf16, #tpu.memory_space<vmem>>, vector<16x128xbf16>,
    %257 = vector.extract_strided_slice %10 {offsets = [912, 0], sizes = [16, 128], strides = [1, 1]} : vector<1024x128xbf16> to vector<16x128xbf16>
    %c96_233 = arith.constant 96 : index
    %c1664_234 = arith.constant 1664 : index
    %258 = vector.load %arg13[%c96_233, %c1664_234] : memref<144x2048xbf16, #tpu.memory_space<vmem>>, vector<16x128xbf16>
    tpu.vector_store %arg13[%c96_233, %c1664_234], %257 {strides = array<i32>} : memref<144x2048xbf16, #tpu.memory_space<vmem>>, vector<16x128xbf16>,
    %259 = vector.extract_strided_slice %10 {offsets = [944, 0], sizes = [16, 128], strides = [1, 1]} : vector<1024x128xbf16> to vector<16x128xbf16>
    %c112_235 = arith.constant 112 : index
    %c1664_236 = arith.constant 1664 : index
    %260 = vector.load %arg13[%c112_235, %c1664_236] : memref<144x2048xbf16, #tpu.memory_space<vmem>>, vector<16x128xbf16>
    tpu.vector_store %arg13[%c112_235, %c1664_236], %259 {strides = array<i32>} : memref<144x2048xbf16, #tpu.memory_space<vmem>>, vector<16x128xbf16>,
    %261 = vector.extract_strided_slice %10 {offsets = [976, 0], sizes = [16, 128], strides = [1, 1]} : vector<1024x128xbf16> to vector<16x128xbf16>
    %c128_237 = arith.constant 128 : index
    %c1664_238 = arith.constant 1664 : index
    %262 = vector.load %arg13[%c128_237, %c1664_238] : memref<144x2048xbf16, #tpu.memory_space<vmem>>, vector<16x128xbf16>
    tpu.vector_store %arg13[%c128_237, %c1664_238], %261 {strides = array<i32>} : memref<144x2048xbf16, #tpu.memory_space<vmem>>, vector<16x128xbf16>,
    %263 = vector.extract_strided_slice %10 {offsets = [416, 0], sizes = [16, 128], strides = [1, 1]} : vector<1024x128xbf16> to vector<16x128xbf16>
    %c0_239 = arith.constant 0 : index
    %c1792 = arith.constant 1792 : index
    %264 = vector.load %arg13[%c0_239, %c1792] : memref<144x2048xbf16, #tpu.memory_space<vmem>>, vector<16x128xbf16>
    tpu.vector_store %arg13[%c0_239, %c1792], %263 {strides = array<i32>} : memref<144x2048xbf16, #tpu.memory_space<vmem>>, vector<16x128xbf16>,
    %265 = vector.extract_strided_slice %10 {offsets = [448, 0], sizes = [16, 128], strides = [1, 1]} : vector<1024x128xbf16> to vector<16x128xbf16>
    %c16_240 = arith.constant 16 : index
    %c1792_241 = arith.constant 1792 : index
    %266 = vector.load %arg13[%c16_240, %c1792_241] : memref<144x2048xbf16, #tpu.memory_space<vmem>>, vector<16x128xbf16>
    tpu.vector_store %arg13[%c16_240, %c1792_241], %265 {strides = array<i32>} : memref<144x2048xbf16, #tpu.memory_space<vmem>>, vector<16x128xbf16>,
    %267 = vector.extract_strided_slice %10 {offsets = [480, 0], sizes = [16, 128], strides = [1, 1]} : vector<1024x128xbf16> to vector<16x128xbf16>
    %c32_242 = arith.constant 32 : index
    %c1792_243 = arith.constant 1792 : index
    %268 = vector.load %arg13[%c32_242, %c1792_243] : memref<144x2048xbf16, #tpu.memory_space<vmem>>, vector<16x128xbf16>
    tpu.vector_store %arg13[%c32_242, %c1792_243], %267 {strides = array<i32>} : memref<144x2048xbf16, #tpu.memory_space<vmem>>, vector<16x128xbf16>,
    %269 = vector.extract_strided_slice %10 {offsets = [672, 0], sizes = [16, 128], strides = [1, 1]} : vector<1024x128xbf16> to vector<16x128xbf16>
    %c48_244 = arith.constant 48 : index
    %c1792_245 = arith.constant 1792 : index
    %270 = vector.load %arg13[%c48_244, %c1792_245] : memref<144x2048xbf16, #tpu.memory_space<vmem>>, vector<16x128xbf16>
    tpu.vector_store %arg13[%c48_244, %c1792_245], %269 {strides = array<i32>} : memref<144x2048xbf16, #tpu.memory_space<vmem>>, vector<16x128xbf16>,
    %271 = vector.extract_strided_slice %10 {offsets = [704, 0], sizes = [16, 128], strides = [1, 1]} : vector<1024x128xbf16> to vector<16x128xbf16>
    %c64_246 = arith.constant 64 : index
    %c1792_247 = arith.constant 1792 : index
    %272 = vector.load %arg13[%c64_246, %c1792_247] : memref<144x2048xbf16, #tpu.memory_space<vmem>>, vector<16x128xbf16>
    tpu.vector_store %arg13[%c64_246, %c1792_247], %271 {strides = array<i32>} : memref<144x2048xbf16, #tpu.memory_space<vmem>>, vector<16x128xbf16>,
    %273 = vector.extract_strided_slice %10 {offsets = [736, 0], sizes = [16, 128], strides = [1, 1]} : vector<1024x128xbf16> to vector<16x128xbf16>
    %c80_248 = arith.constant 80 : index
    %c1792_249 = arith.constant 1792 : index
    %274 = vector.load %arg13[%c80_248, %c1792_249] : memref<144x2048xbf16, #tpu.memory_space<vmem>>, vector<16x128xbf16>
    tpu.vector_store %arg13[%c80_248, %c1792_249], %273 {strides = array<i32>} : memref<144x2048xbf16, #tpu.memory_space<vmem>>, vector<16x128xbf16>,
    %275 = vector.extract_strided_slice %10 {offsets = [928, 0], sizes = [16, 128], strides = [1, 1]} : vector<1024x128xbf16> to vector<16x128xbf16>
    %c96_250 = arith.constant 96 : index
    %c1792_251 = arith.constant 1792 : index
    %276 = vector.load %arg13[%c96_250, %c1792_251] : memref<144x2048xbf16, #tpu.memory_space<vmem>>, vector<16x128xbf16>
    tpu.vector_store %arg13[%c96_250, %c1792_251], %275 {strides = array<i32>} : memref<144x2048xbf16, #tpu.memory_space<vmem>>, vector<16x128xbf16>,
    %277 = vector.extract_strided_slice %10 {offsets = [960, 0], sizes = [16, 128], strides = [1, 1]} : vector<1024x128xbf16> to vector<16x128xbf16>
    %c112_252 = arith.constant 112 : index
    %c1792_253 = arith.constant 1792 : index
    %278 = vector.load %arg13[%c112_252, %c1792_253] : memref<144x2048xbf16, #tpu.memory_space<vmem>>, vector<16x128xbf16>
    tpu.vector_store %arg13[%c112_252, %c1792_253], %277 {strides = array<i32>} : memref<144x2048xbf16, #tpu.memory_space<vmem>>, vector<16x128xbf16>,
    %279 = vector.extract_strided_slice %10 {offsets = [992, 0], sizes = [16, 128], strides = [1, 1]} : vector<1024x128xbf16> to vector<16x128xbf16>
    %c128_254 = arith.constant 128 : index
    %c1792_255 = arith.constant 1792 : index
    %280 = vector.load %arg13[%c128_254, %c1792_255] : memref<144x2048xbf16, #tpu.memory_space<vmem>>, vector<16x128xbf16>
    tpu.vector_store %arg13[%c128_254, %c1792_255], %279 {strides = array<i32>} : memref<144x2048xbf16, #tpu.memory_space<vmem>>, vector<16x128xbf16>,
    %281 = vector.extract_strided_slice %10 {offsets = [432, 0], sizes = [16, 128], strides = [1, 1]} : vector<1024x128xbf16> to vector<16x128xbf16>
    %c0_256 = arith.constant 0 : index
    %c1920 = arith.constant 1920 : index
    %282 = vector.load %arg13[%c0_256, %c1920] : memref<144x2048xbf16, #tpu.memory_space<vmem>>, vector<16x128xbf16>
    tpu.vector_store %arg13[%c0_256, %c1920], %281 {strides = array<i32>} : memref<144x2048xbf16, #tpu.memory_space<vmem>>, vector<16x128xbf16>,
    %283 = vector.extract_strided_slice %10 {offsets = [464, 0], sizes = [16, 128], strides = [1, 1]} : vector<1024x128xbf16> to vector<16x128xbf16>
    %c16_257 = arith.constant 16 : index
    %c1920_258 = arith.constant 1920 : index
    %284 = vector.load %arg13[%c16_257, %c1920_258] : memref<144x2048xbf16, #tpu.memory_space<vmem>>, vector<16x128xbf16>
    tpu.vector_store %arg13[%c16_257, %c1920_258], %283 {strides = array<i32>} : memref<144x2048xbf16, #tpu.memory_space<vmem>>, vector<16x128xbf16>,
    %285 = vector.extract_strided_slice %10 {offsets = [496, 0], sizes = [16, 128], strides = [1, 1]} : vector<1024x128xbf16> to vector<16x128xbf16>
    %c32_259 = arith.constant 32 : index
    %c1920_260 = arith.constant 1920 : index
    %286 = vector.load %arg13[%c32_259, %c1920_260] : memref<144x2048xbf16, #tpu.memory_space<vmem>>, vector<16x128xbf16>
    tpu.vector_store %arg13[%c32_259, %c1920_260], %285 {strides = array<i32>} : memref<144x2048xbf16, #tpu.memory_space<vmem>>, vector<16x128xbf16>,
    %287 = vector.extract_strided_slice %10 {offsets = [688, 0], sizes = [16, 128], strides = [1, 1]} : vector<1024x128xbf16> to vector<16x128xbf16>
    %c48_261 = arith.constant 48 : index
    %c1920_262 = arith.constant 1920 : index
    %288 = vector.load %arg13[%c48_261, %c1920_262] : memref<144x2048xbf16, #tpu.memory_space<vmem>>, vector<16x128xbf16>
    tpu.vector_store %arg13[%c48_261, %c1920_262], %287 {strides = array<i32>} : memref<144x2048xbf16, #tpu.memory_space<vmem>>, vector<16x128xbf16>,
    %289 = vector.extract_strided_slice %10 {offsets = [720, 0], sizes = [16, 128], strides = [1, 1]} : vector<1024x128xbf16> to vector<16x128xbf16>
    %c64_263 = arith.constant 64 : index
    %c1920_264 = arith.constant 1920 : index
    %290 = vector.load %arg13[%c64_263, %c1920_264] : memref<144x2048xbf16, #tpu.memory_space<vmem>>, vector<16x128xbf16>
    tpu.vector_store %arg13[%c64_263, %c1920_264], %289 {strides = array<i32>} : memref<144x2048xbf16, #tpu.memory_space<vmem>>, vector<16x128xbf16>,
    %291 = vector.extract_strided_slice %10 {offsets = [752, 0], sizes = [16, 128], strides = [1, 1]} : vector<1024x128xbf16> to vector<16x128xbf16>
    %c80_265 = arith.constant 80 : index
    %c1920_266 = arith.constant 1920 : index
    %292 = vector.load %arg13[%c80_265, %c1920_266] : memref<144x2048xbf16, #tpu.memory_space<vmem>>, vector<16x128xbf16>
    tpu.vector_store %arg13[%c80_265, %c1920_266], %291 {strides = array<i32>} : memref<144x2048xbf16, #tpu.memory_space<vmem>>, vector<16x128xbf16>,
    %293 = vector.extract_strided_slice %10 {offsets = [944, 0], sizes = [16, 128], strides = [1, 1]} : vector<1024x128xbf16> to vector<16x128xbf16>
    %c96_267 = arith.constant 96 : index
    %c1920_268 = arith.constant 1920 : index
    %294 = vector.load %arg13[%c96_267, %c1920_268] : memref<144x2048xbf16, #tpu.memory_space<vmem>>, vector<16x128xbf16>
    tpu.vector_store %arg13[%c96_267, %c1920_268], %293 {strides = array<i32>} : memref<144x2048xbf16, #tpu.memory_space<vmem>>, vector<16x128xbf16>,
    %295 = vector.extract_strided_slice %10 {offsets = [976, 0], sizes = [16, 128], strides = [1, 1]} : vector<1024x128xbf16> to vector<16x128xbf16>
    %c112_269 = arith.constant 112 : index
    %c1920_270 = arith.constant 1920 : index
    %296 = vector.load %arg13[%c112_269, %c1920_270] : memref<144x2048xbf16, #tpu.memory_space<vmem>>, vector<16x128xbf16>
    tpu.vector_store %arg13[%c112_269, %c1920_270], %295 {strides = array<i32>} : memref<144x2048xbf16, #tpu.memory_space<vmem>>, vector<16x128xbf16>,
    %297 = vector.extract_strided_slice %10 {offsets = [1008, 0], sizes = [16, 128], strides = [1, 1]} : vector<1024x128xbf16> to vector<16x128xbf16>
    %c128_271 = arith.constant 128 : index
    %c1920_272 = arith.constant 1920 : index
    %298 = vector.load %arg13[%c128_271, %c1920_272] : memref<144x2048xbf16, #tpu.memory_space<vmem>>, vector<16x128xbf16>
    tpu.vector_store %arg13[%c128_271, %c1920_272], %297 {strides = array<i32>} : memref<144x2048xbf16, #tpu.memory_space<vmem>>, vector<16x128xbf16>,
    %c0_273 = arith.constant 0 : index
    %c0_274 = arith.constant 0 : index
    %299 = vector.load %arg13[%c0_273, %c0_274] : memref<144x2048xbf16, #tpu.memory_space<vmem>>, vector<144x2048xbf16>
    %c0_275 = arith.constant 0 : index
    %c0_276 = arith.constant 0 : index
    %300 = vector.load %arg4[%c0_275, %c0_276] : memref<2048x128xbf16, #tpu.memory_space<vmem>>, vector<2048x128xbf16>
    %cst_277 = arith.constant dense<0.000000e+00> : vector<144x128xf32>
    %301 = tpu.matmul %299, %300, %cst_277 {dimension_numbers = #tpu.dot_dimension_numbers<[1], [0], [0], [1], [0, 0, 1, 1], [], []>} : vector<144x2048xbf16>, vector<2048x128xbf16>, vector<144x128xf32> -> vector<144x128xf32>
    %c0_278 = arith.constant 0 : index
    %c0_279 = arith.constant 0 : index
    %302 = vector.load %arg5[%c0_278, %c0_279] : memref<1x128xf32, #tpu.memory_space<vmem>>, vector<1x128xf32>
    %303 = vector.broadcast %302 : vector<1x128xf32> to vector<144x128xf32>
    %304 = arith.addf %301, %303 : vector<144x128xf32>
    %cst_280 = arith.constant 0.00999999977 : f32
    %305 = vector.broadcast %cst_280 : f32 to vector<144x128xf32>
    %306 = arith.mulf %305, %304 : vector<144x128xf32>
    %307 = arith.maximumf %304, %306 : vector<144x128xf32>
    %308 = arith.truncf %307 : vector<144x128xf32> to vector<144x128xbf16>
    %309 = vector.extract_strided_slice %308 {offsets = [0, 0], sizes = [16, 128], strides = [1, 1]} : vector<144x128xbf16> to vector<16x128xbf16>
    %310 = vector.extract_strided_slice %308 {offsets = [16, 0], sizes = [16, 128], strides = [1, 1]} : vector<144x128xbf16> to vector<16x128xbf16>
    %311 = vector.extract_strided_slice %308 {offsets = [32, 0], sizes = [16, 128], strides = [1, 1]} : vector<144x128xbf16> to vector<16x128xbf16>
    %312 = vector.extract_strided_slice %308 {offsets = [48, 0], sizes = [16, 128], strides = [1, 1]} : vector<144x128xbf16> to vector<16x128xbf16>
    %313 = vector.extract_strided_slice %308 {offsets = [64, 0], sizes = [16, 128], strides = [1, 1]} : vector<144x128xbf16> to vector<16x128xbf16>
    %314 = vector.extract_strided_slice %308 {offsets = [80, 0], sizes = [16, 128], strides = [1, 1]} : vector<144x128xbf16> to vector<16x128xbf16>
    %315 = vector.extract_strided_slice %308 {offsets = [96, 0], sizes = [16, 128], strides = [1, 1]} : vector<144x128xbf16> to vector<16x128xbf16>
    %316 = vector.extract_strided_slice %308 {offsets = [112, 0], sizes = [16, 128], strides = [1, 1]} : vector<144x128xbf16> to vector<16x128xbf16>
    %317 = vector.extract_strided_slice %308 {offsets = [128, 0], sizes = [16, 128], strides = [1, 1]} : vector<144x128xbf16> to vector<16x128xbf16>
    %318 = tpu.concatenate %309, %310, %311, %312, %313, %314, %315, %316, %317 in 1 : vector<16x128xbf16>, vector<16x128xbf16>, vector<16x128xbf16>, vector<16x128xbf16>, vector<16x128xbf16>, vector<16x128xbf16>, vector<16x128xbf16>, vector<16x128xbf16>, vector<16x128xbf16> -> vector<16x1152xbf16>
    %c0_281 = arith.constant 0 : index
    %c0_282 = arith.constant 0 : index
    %319 = vector.load %arg6[%c0_281, %c0_282] : memref<1152x128xbf16, #tpu.memory_space<vmem>>, vector<1152x128xbf16>
    %cst_283 = arith.constant dense<0.000000e+00> : vector<16x128xf32>
    %320 = tpu.matmul %318, %319, %cst_283 {dimension_numbers = #tpu.dot_dimension_numbers<[1], [0], [0], [1], [0, 0, 1, 1], [], []>} : vector<16x1152xbf16>, vector<1152x128xbf16>, vector<16x128xf32> -> vector<16x128xf32>
    %c0_284 = arith.constant 0 : index
    %c0_285 = arith.constant 0 : index
    %321 = vector.load %arg7[%c0_284, %c0_285] : memref<1x128xf32, #tpu.memory_space<vmem>>, vector<1x128xf32>
    %322 = vector.broadcast %321 : vector<1x128xf32> to vector<16x128xf32>
    %323 = arith.addf %320, %322 : vector<16x128xf32>
    %cst_286 = arith.constant 0.00999999977 : f32
    %324 = vector.broadcast %cst_286 : f32 to vector<16x128xf32>
    %325 = arith.mulf %324, %323 : vector<16x128xf32>
    %326 = arith.maximumf %323, %325 : vector<16x128xf32>
    %327 = arith.truncf %326 : vector<16x128xf32> to vector<16x128xbf16>
    %c0_287 = arith.constant 0 : index
    %c0_288 = arith.constant 0 : index
    %328 = vector.load %arg8[%c0_287, %c0_288] : memref<128x512xbf16, #tpu.memory_space<vmem>>, vector<128x512xbf16>
    %cst_289 = arith.constant dense<0.000000e+00> : vector<16x512xf32>
    %329 = tpu.matmul %327, %328, %cst_289 {dimension_numbers = #tpu.dot_dimension_numbers<[1], [0], [0], [1], [0, 0, 1, 1], [], []>} : vector<16x128xbf16>, vector<128x512xbf16>, vector<16x512xf32> -> vector<16x512xf32>
    %c0_290 = arith.constant 0 : index
    %c0_291 = arith.constant 0 : index
    %330 = vector.load %arg9[%c0_290, %c0_291] : memref<1x512xf32, #tpu.memory_space<vmem>>, vector<1x512xf32>
    %331 = vector.broadcast %330 : vector<1x512xf32> to vector<16x512xf32>
    %332 = arith.addf %329, %331 : vector<16x512xf32>
    %cst_292 = arith.constant 0.00999999977 : f32
    %333 = vector.broadcast %cst_292 : f32 to vector<16x512xf32>
    %334 = arith.mulf %333, %332 : vector<16x512xf32>
    %335 = arith.maximumf %332, %334 : vector<16x512xf32>
    %336 = arith.truncf %335 : vector<16x512xf32> to vector<16x512xbf16>
    %c0_293 = arith.constant 0 : index
    %c0_294 = arith.constant 0 : index
    %337 = vector.load %arg10[%c0_293, %c0_294] : memref<512x128xbf16, #tpu.memory_space<vmem>>, vector<512x128xbf16>
    %cst_295 = arith.constant dense<0.000000e+00> : vector<16x128xf32>
    %338 = tpu.matmul %336, %337, %cst_295 {dimension_numbers = #tpu.dot_dimension_numbers<[1], [0], [0], [1], [0, 0, 1, 1], [], []>} : vector<16x512xbf16>, vector<512x128xbf16>, vector<16x128xf32> -> vector<16x128xf32>
    %c0_296 = arith.constant 0 : index
    %c0_297 = arith.constant 0 : index
    %339 = vector.load %arg11[%c0_296, %c0_297] : memref<1x128xf32, #tpu.memory_space<vmem>>, vector<1x128xf32>
    %340 = vector.broadcast %339 : vector<1x128xf32> to vector<16x128xf32>
    %341 = arith.addf %338, %340 : vector<16x128xf32>
    %c0_298 = arith.constant 0 : index
    %c0_299 = arith.constant 0 : index
    %342 = vector.load %arg12[%c0_298, %c0_299] : memref<16x128xf32, #tpu.memory_space<vmem>>, vector<16x128xf32>
    tpu.vector_store %arg12[%c0_298, %c0_299], %341 {strides = array<i32>} : memref<16x128xf32, #tpu.memory_space<vmem>>, vector<16x128xf32>,
    return
  }
  func.func @transform_0(%arg0: i32) -> (i32, i32, i32) {
    %c0_i32 = arith.constant 0 : i32
    %c0_i32_0 = arith.constant 0 : i32
    %c0_i32_1 = arith.constant 0 : i32
    return %c0_i32, %arg0, %c0_i32_0 : i32, i32, i32
  }
  func.func @transform_1(%arg0: i32) -> (i32, i32) {
    %c0_i32 = arith.constant 0 : i32
    %c0_i32_0 = arith.constant 0 : i32
    %c0_i32_1 = arith.constant 0 : i32
    return %c0_i32, %c0_i32_0 : i32, i32
  }
  func.func @transform_2(%arg0: i32) -> (i32, i32) {
    %c0_i32 = arith.constant 0 : i32
    %c0_i32_0 = arith.constant 0 : i32
    %c0_i32_1 = arith.constant 0 : i32
    return %c0_i32, %c0_i32_0 : i32, i32
  }
  func.func @transform_3(%arg0: i32) -> (i32, i32) {
    %c0_i32 = arith.constant 0 : i32
    %c0_i32_0 = arith.constant 0 : i32
    %c0_i32_1 = arith.constant 0 : i32
    return %c0_i32, %c0_i32_0 : i32, i32
  }
  func.func @transform_4(%arg0: i32) -> (i32, i32) {
    %c0_i32 = arith.constant 0 : i32
    %c0_i32_0 = arith.constant 0 : i32
    %c0_i32_1 = arith.constant 0 : i32
    return %c0_i32, %c0_i32_0 : i32, i32
  }
  func.func @transform_5(%arg0: i32) -> (i32, i32) {
    %c0_i32 = arith.constant 0 : i32
    %c0_i32_0 = arith.constant 0 : i32
    %c0_i32_1 = arith.constant 0 : i32
    return %c0_i32, %c0_i32_0 : i32, i32
  }
  func.func @transform_6(%arg0: i32) -> (i32, i32) {
    %c0_i32 = arith.constant 0 : i32
    %c0_i32_0 = arith.constant 0 : i32
    %c0_i32_1 = arith.constant 0 : i32
    return %c0_i32, %c0_i32_0 : i32, i32
  }
  func.func @transform_7(%arg0: i32) -> (i32, i32) {
    %c0_i32 = arith.constant 0 : i32
    %c0_i32_0 = arith.constant 0 : i32
    %c0_i32_1 = arith.constant 0 : i32
    return %c0_i32, %c0_i32_0 : i32, i32
  }
  func.func @transform_8(%arg0: i32) -> (i32, i32) {
    %c0_i32 = arith.constant 0 : i32
    %c0_i32_0 = arith.constant 0 : i32
    %c0_i32_1 = arith.constant 0 : i32
    return %c0_i32, %c0_i32_0 : i32, i32
  }
  func.func @transform_9(%arg0: i32) -> (i32, i32) {
    %c0_i32 = arith.constant 0 : i32
    %c0_i32_0 = arith.constant 0 : i32
    %c0_i32_1 = arith.constant 0 : i32
    return %c0_i32, %c0_i32_0 : i32, i32
  }
  func.func @transform_10(%arg0: i32) -> (i32, i32) {
    %c0_i32 = arith.constant 0 : i32
    %c0_i32_0 = arith.constant 0 : i32
    %c0_i32_1 = arith.constant 0 : i32
    return %c0_i32, %c0_i32_0 : i32, i32
  }
  func.func @transform_11(%arg0: i32) -> (i32, i32) {
    %c0_i32 = arith.constant 0 : i32
    %c0_i32_0 = arith.constant 0 : i32
    return %arg0, %c0_i32 : i32, i32
  }
}

</mosaic_0001>

<llo_original>
// kernel: _lambda_.1
$region0: #{_lambda_.1}
  #allocation0 [shape = 'u32[]', space=smem, size = 0x4, offset = 0x4, fixed_abs, tag = 'smem constant byte address 0x4 - core index']
  #allocation1 [shape = 'u32[144,128]{1,0:T(1,128)}', space=vmem, size = 0x12000, scoped, tag = 'internal scratch']
  #allocation2 [shape = 'bf16[144,2048]{1,0:T(16,128)(2,1)}', space=vmem, size = 0x90000, scoped, tag = 'scratch operand']
  %s0 = inlined_call_operand.vmem [shape: bf16[64,16,256], index: 0, kind: input, shape index: {}]
  %s1 = inlined_call_operand.vmem [shape: bf16[256,128], index: 1, kind: input, shape index: {}]
  %s2 = inlined_call_operand.vmem [shape: f32[1,128], index: 2, kind: input, shape index: {}]
  %s3 = inlined_call_operand.vmem [shape: bf16[2048,128], index: 3, kind: input, shape index: {}]
  %s4 = inlined_call_operand.vmem [shape: f32[1,128], index: 4, kind: input, shape index: {}]
  %s5 = inlined_call_operand.vmem [shape: bf16[1152,128], index: 5, kind: input, shape index: {}]
  %s6 = inlined_call_operand.vmem [shape: f32[1,128], index: 6, kind: input, shape index: {}]
  %s7 = inlined_call_operand.vmem [shape: bf16[128,512], index: 7, kind: input, shape index: {}]
  %s8 = inlined_call_operand.vmem [shape: f32[1,512], index: 8, kind: input, shape index: {}]
  %s9 = inlined_call_operand.vmem [shape: bf16[512,128], index: 9, kind: input, shape index: {}]
  %s10 = inlined_call_operand.vmem [shape: f32[1,128], index: 10, kind: input, shape index: {}]
  %s11 = inlined_call_operand.vmem [shape: f32[16,128], index: 11, kind: output, shape index: {}]
  %s12 = sld [smem:[#allocation0]]
  $region54: #{_lambda_.1} parent=0
    _
  %s14 = ssub.s32 1, %s12
  %s15 = scalar_select 0, %s14, %s12
  // Predicated region
  $region2: #{_lambda_.1} parent=0 // pred_check
    _
  $region3: #{_lambda_.1} parent=0 // pred_check_branch
    %17 = sbr.rel (0) target = $region5
  $region4: #{_lambda_.1} parent=0 // pred_region
    _
  $region5: #{_lambda_.1} parent=0 // pred_fallthru
    _
  // Predicated region
  $region6: #{_lambda_.1} parent=0 // pred_check
    _
  $region7: #{_lambda_.1} parent=0 // pred_check_branch
    %19 = sbr.rel (0) target = $region9
  $region8: #{_lambda_.1} parent=0 // pred_region
    _
  $region9: #{_lambda_.1} parent=0 // pred_fallthru
    _
  // Predicated region
  $region10: #{_lambda_.1} parent=0 // pred_check
    _
  $region11: #{_lambda_.1} parent=0 // pred_check_branch
    %21 = sbr.rel (0) target = $region13
  $region12: #{_lambda_.1} parent=0 // pred_region
    _
  $region13: #{_lambda_.1} parent=0 // pred_fallthru
    _
  // Predicated region
  $region14: #{_lambda_.1} parent=0 // pred_check
    _
  $region15: #{_lambda_.1} parent=0 // pred_check_branch
    %23 = sbr.rel (0) target = $region17
  $region16: #{_lambda_.1} parent=0 // pred_region
    _
  $region17: #{_lambda_.1} parent=0 // pred_fallthru
    _
  // Predicated region
  $region18: #{_lambda_.1} parent=0 // pred_check
    _
  $region19: #{_lambda_.1} parent=0 // pred_check_branch
    %25 = sbr.rel (0) target = $region21
  $region20: #{_lambda_.1} parent=0 // pred_region
    _
  $region21: #{_lambda_.1} parent=0 // pred_fallthru
    _
  // Predicated region
  $region22: #{_lambda_.1} parent=0 // pred_check
    _
  $region23: #{_lambda_.1} parent=0 // pred_check_branch
    %27 = sbr.rel (0) target = $region25
  $region24: #{_lambda_.1} parent=0 // pred_region
    _
  $region25: #{_lambda_.1} parent=0 // pred_fallthru
    _
  // Predicated region
  $region26: #{_lambda_.1} parent=0 // pred_check
    _
  $region27: #{_lambda_.1} parent=0 // pred_check_branch
    %29 = sbr.rel (0) target = $region29
  $region28: #{_lambda_.1} parent=0 // pred_region
    _
  $region29: #{_lambda_.1} parent=0 // pred_fallthru
    _
  // Predicated region
  $region30: #{_lambda_.1} parent=0 // pred_check
    _
  $region31: #{_lambda_.1} parent=0 // pred_check_branch
    %31 = sbr.rel (0) target = $region33
  $region32: #{_lambda_.1} parent=0 // pred_region
    _
  $region33: #{_lambda_.1} parent=0 // pred_fallthru
    _
  // Predicated region
  $region34: #{_lambda_.1} parent=0 // pred_check
    _
  $region35: #{_lambda_.1} parent=0 // pred_check_branch
    %33 = sbr.rel (0) target = $region37
  $region36: #{_lambda_.1} parent=0 // pred_region
    _
  $region37: #{_lambda_.1} parent=0 // pred_fallthru
    _
  // Predicated region
  $region38: #{_lambda_.1} parent=0 // pred_check
    _
  $region39: #{_lambda_.1} parent=0 // pred_check_branch
    %35 = sbr.rel (0) target = $region41
  $region40: #{_lambda_.1} parent=0 // pred_region
    _
  $region41: #{_lambda_.1} parent=0 // pred_fallthru
    _
  // Predicated region
  $region42: #{_lambda_.1} parent=0 // pred_check
    _
  $region43: #{_lambda_.1} parent=0 // pred_check_branch
    %37 = sbr.rel (0) target = $region45
  $region44: #{_lambda_.1} parent=0 // pred_region
    _
  $region45: #{_lambda_.1} parent=0 // pred_fallthru
    _
  %v39 = vld [vmem:[%s0] sm:$0xff]
  %v40 = vld [vmem:[%s0 + $0x8] sm:$0xff]
  %v41 = vld [vmem:[%s0 + $0x10] sm:$0xff]
  %v42 = vld [vmem:[%s0 + $0x18] sm:$0xff]
  %v43 = vld [vmem:[%s0 + $0x20] sm:$0xff]
  %v44 = vld [vmem:[%s0 + $0x28] sm:$0xff]
  %v45 = vld [vmem:[%s0 + $0x30] sm:$0xff]
  %v46 = vld [vmem:[%s0 + $0x38] sm:$0xff]
  %v47 = vld [vmem:[%s0 + $0x40] sm:$0xff]
  %v48 = vld [vmem:[%s0 + $0x48] sm:$0xff]
  %v49 = vld [vmem:[%s0 + $0x50] sm:$0xff]
  %v50 = vld [vmem:[%s0 + $0x58] sm:$0xff]
  %v51 = vld [vmem:[%s0 + $0x60] sm:$0xff]
  %v52 = vld [vmem:[%s0 + $0x68] sm:$0xff]
  %v53 = vld [vmem:[%s0 + $0x70] sm:$0xff]
  %v54 = vld [vmem:[%s0 + $0x78] sm:$0xff]
  %v55 = vld [vmem:[%s0 + $0x80] sm:$0xff]
  %v56 = vld [vmem:[%s0 + $0x88] sm:$0xff]
  %v57 = vld [vmem:[%s0 + $0x90] sm:$0xff]
  %v58 = vld [vmem:[%s0 + $0x98] sm:$0xff]
  %v59 = vld [vmem:[%s0 + $0xa0] sm:$0xff]
  %v60 = vld [vmem:[%s0 + $0xa8] sm:$0xff]
  %v61 = vld [vmem:[%s0 + $0xb0] sm:$0xff]
  %v62 = vld [vmem:[%s0 + $0xb8] sm:$0xff]
  %v63 = vld [vmem:[%s0 + $0xc0] sm:$0xff]
  %v64 = vld [vmem:[%s0 + $0xc8] sm:$0xff]
  %v65 = vld [vmem:[%s0 + $0xd0] sm:$0xff]
  %v66 = vld [vmem:[%s0 + $0xd8] sm:$0xff]
  %v67 = vld [vmem:[%s0 + $0xe0] sm:$0xff]
  %v68 = vld [vmem:[%s0 + $0xe8] sm:$0xff]
  %v69 = vld [vmem:[%s0 + $0xf0] sm:$0xff]
  %v70 = vld [vmem:[%s0 + $0xf8] sm:$0xff]
  %v71 = vld [vmem:[%s0 + $0x100] sm:$0xff]
  %v72 = vld [vmem:[%s0 + $0x108] sm:$0xff]
  %v73 = vld [vmem:[%s0 + $0x110] sm:$0xff]
  %v74 = vld [vmem:[%s0 + $0x118] sm:$0xff]
  %v75 = vld [vmem:[%s0 + $0x120] sm:$0xff]
  %v76 = vld [vmem:[%s0 + $0x128] sm:$0xff]
  %v77 = vld [vmem:[%s0 + $0x130] sm:$0xff]
  %v78 = vld [vmem:[%s0 + $0x138] sm:$0xff]
  %v79 = vld [vmem:[%s0 + $0x140] sm:$0xff]
  %v80 = vld [vmem:[%s0 + $0x148] sm:$0xff]
  %v81 = vld [vmem:[%s0 + $0x150] sm:$0xff]
  %v82 = vld [vmem:[%s0 + $0x158] sm:$0xff]
  %v83 = vld [vmem:[%s0 + $0x160] sm:$0xff]
  %v84 = vld [vmem:[%s0 + $0x168] sm:$0xff]
  %v85 = vld [vmem:[%s0 + $0x170] sm:$0xff]
  %v86 = vld [vmem:[%s0 + $0x178] sm:$0xff]
  %v87 = vld [vmem:[%s0 + $0x180] sm:$0xff]
  %v88 = vld [vmem:[%s0 + $0x188] sm:$0xff]
  %v89 = vld [vmem:[%s0 + $0x190] sm:$0xff]
  %v90 = vld [vmem:[%s0 + $0x198] sm:$0xff]
  %v91 = vld [vmem:[%s0 + $0x1a0] sm:$0xff]
  %v92 = vld [vmem:[%s0 + $0x1a8] sm:$0xff]
  %v93 = vld [vmem:[%s0 + $0x1b0] sm:$0xff]
  %v94 = vld [vmem:[%s0 + $0x1b8] sm:$0xff]
  %v95 = vld [vmem:[%s0 + $0x1c0] sm:$0xff]
  %v96 = vld [vmem:[%s0 + $0x1c8] sm:$0xff]
  %v97 = vld [vmem:[%s0 + $0x1d0] sm:$0xff]
  %v98 = vld [vmem:[%s0 + $0x1d8] sm:$0xff]
  %v99 = vld [vmem:[%s0 + $0x1e0] sm:$0xff]
  %v100 = vld [vmem:[%s0 + $0x1e8] sm:$0xff]
  %v101 = vld [vmem:[%s0 + $0x1f0] sm:$0xff]
  %v102 = vld [vmem:[%s0 + $0x1f8] sm:$0xff]
  %v103 = vld [vmem:[%s0 + $0x200] sm:$0xff]
  %v104 = vld [vmem:[%s0 + $0x208] sm:$0xff]
  %v105 = vld [vmem:[%s0 + $0x210] sm:$0xff]
  %v106 = vld [vmem:[%s0 + $0x218] sm:$0xff]
  %v107 = vld [vmem:[%s0 + $0x220] sm:$0xff]
  %v108 = vld [vmem:[%s0 + $0x228] sm:$0xff]
  %v109 = vld [vmem:[%s0 + $0x230] sm:$0xff]
  %v110 = vld [vmem:[%s0 + $0x238] sm:$0xff]
  %v111 = vld [vmem:[%s0 + $0x240] sm:$0xff]
  %v112 = vld [vmem:[%s0 + $0x248] sm:$0xff]
  %v113 = vld [vmem:[%s0 + $0x250] sm:$0xff]
  %v114 = vld [vmem:[%s0 + $0x258] sm:$0xff]
  %v115 = vld [vmem:[%s0 + $0x260] sm:$0xff]
  %v116 = vld [vmem:[%s0 + $0x268] sm:$0xff]
  %v117 = vld [vmem:[%s0 + $0x270] sm:$0xff]
  %v118 = vld [vmem:[%s0 + $0x278] sm:$0xff]
  %v119 = vld [vmem:[%s0 + $0x280] sm:$0xff]
  %v120 = vld [vmem:[%s0 + $0x288] sm:$0xff]
  %v121 = vld [vmem:[%s0 + $0x290] sm:$0xff]
  %v122 = vld [vmem:[%s0 + $0x298] sm:$0xff]
  %v123 = vld [vmem:[%s0 + $0x2a0] sm:$0xff]
  %v124 = vld [vmem:[%s0 + $0x2a8] sm:$0xff]
  %v125 = vld [vmem:[%s0 + $0x2b0] sm:$0xff]
  %v126 = vld [vmem:[%s0 + $0x2b8] sm:$0xff]
  %v127 = vld [vmem:[%s0 + $0x2c0] sm:$0xff]
  %v128 = vld [vmem:[%s0 + $0x2c8] sm:$0xff]
  %v129 = vld [vmem:[%s0 + $0x2d0] sm:$0xff]
  %v130 = vld [vmem:[%s0 + $0x2d8] sm:$0xff]
  %v131 = vld [vmem:[%s0 + $0x2e0] sm:$0xff]
  %v132 = vld [vmem:[%s0 + $0x2e8] sm:$0xff]
  %v133 = vld [vmem:[%s0 + $0x2f0] sm:$0xff]
  %v134 = vld [vmem:[%s0 + $0x2f8] sm:$0xff]
  %v135 = vld [vmem:[%s0 + $0x300] sm:$0xff]
  %v136 = vld [vmem:[%s0 + $0x308] sm:$0xff]
  %v137 = vld [vmem:[%s0 + $0x310] sm:$0xff]
  %v138 = vld [vmem:[%s0 + $0x318] sm:$0xff]
  %v139 = vld [vmem:[%s0 + $0x320] sm:$0xff]
  %v140 = vld [vmem:[%s0 + $0x328] sm:$0xff]
  %v141 = vld [vmem:[%s0 + $0x330] sm:$0xff]
  %v142 = vld [vmem:[%s0 + $0x338] sm:$0xff]
  %v143 = vld [vmem:[%s0 + $0x340] sm:$0xff]
  %v144 = vld [vmem:[%s0 + $0x348] sm:$0xff]
  %v145 = vld [vmem:[%s0 + $0x350] sm:$0xff]
  %v146 = vld [vmem:[%s0 + $0x358] sm:$0xff]
  %v147 = vld [vmem:[%s0 + $0x360] sm:$0xff]
  %v148 = vld [vmem:[%s0 + $0x368] sm:$0xff]
  %v149 = vld [vmem:[%s0 + $0x370] sm:$0xff]
  %v150 = vld [vmem:[%s0 + $0x378] sm:$0xff]
  %v151 = vld [vmem:[%s0 + $0x380] sm:$0xff]
  %v152 = vld [vmem:[%s0 + $0x388] sm:$0xff]
  %v153 = vld [vmem:[%s0 + $0x390] sm:$0xff]
  %v154 = vld [vmem:[%s0 + $0x398] sm:$0xff]
  %v155 = vld [vmem:[%s0 + $0x3a0] sm:$0xff]
  %v156 = vld [vmem:[%s0 + $0x3a8] sm:$0xff]
  %v157 = vld [vmem:[%s0 + $0x3b0] sm:$0xff]
  %v158 = vld [vmem:[%s0 + $0x3b8] sm:$0xff]
  %v159 = vld [vmem:[%s0 + $0x3c0] sm:$0xff]
  %v160 = vld [vmem:[%s0 + $0x3c8] sm:$0xff]
  %v161 = vld [vmem:[%s0 + $0x3d0] sm:$0xff]
  %v162 = vld [vmem:[%s0 + $0x3d8] sm:$0xff]
  %v163 = vld [vmem:[%s0 + $0x3e0] sm:$0xff]
  %v164 = vld [vmem:[%s0 + $0x3e8] sm:$0xff]
  %v165 = vld [vmem:[%s0 + $0x3f0] sm:$0xff]
  %v166 = vld [vmem:[%s0 + $0x3f8] sm:$0xff]
  %v167 = vld [vmem:[%s1] sm:$0xf]
  %v168 = vld [vmem:[%s1 + $0x4] sm:$0xf]
  %v169 = vld [vmem:[%s1 + $0x8] sm:$0xf]
  %v170 = vld [vmem:[%s1 + $0xc] sm:$0xf]
  %v171 = vld [vmem:[%s1 + $0x10] sm:$0xf]
  %v172 = vld [vmem:[%s1 + $0x14] sm:$0xf]
  %v173 = vld [vmem:[%s1 + $0x18] sm:$0xf]
  %v174 = vld [vmem:[%s1 + $0x1c] sm:$0xf]
  %v175 = vld [vmem:[%s1 + $0x20] sm:$0xf]
  %v176 = vld [vmem:[%s1 + $0x24] sm:$0xf]
  %v177 = vld [vmem:[%s1 + $0x28] sm:$0xf]
  %v178 = vld [vmem:[%s1 + $0x2c] sm:$0xf]
  %v179 = vld [vmem:[%s1 + $0x30] sm:$0xf]
  %v180 = vld [vmem:[%s1 + $0x34] sm:$0xf]
  %v181 = vld [vmem:[%s1 + $0x38] sm:$0xf]
  %v182 = vld [vmem:[%s1 + $0x3c] sm:$0xf]
  %v183 = vld [vmem:[%s1 + $0x40] sm:$0xf]
  %v184 = vld [vmem:[%s1 + $0x44] sm:$0xf]
  %v185 = vld [vmem:[%s1 + $0x48] sm:$0xf]
  %v186 = vld [vmem:[%s1 + $0x4c] sm:$0xf]
  %v187 = vld [vmem:[%s1 + $0x50] sm:$0xf]
  %v188 = vld [vmem:[%s1 + $0x54] sm:$0xf]
  %v189 = vld [vmem:[%s1 + $0x58] sm:$0xf]
  %v190 = vld [vmem:[%s1 + $0x5c] sm:$0xf]
  %v191 = vld [vmem:[%s1 + $0x60] sm:$0xf]
  %v192 = vld [vmem:[%s1 + $0x64] sm:$0xf]
  %v193 = vld [vmem:[%s1 + $0x68] sm:$0xf]
  %v194 = vld [vmem:[%s1 + $0x6c] sm:$0xf]
  %v195 = vld [vmem:[%s1 + $0x70] sm:$0xf]
  %v196 = vld [vmem:[%s1 + $0x74] sm:$0xf]
  %v197 = vld [vmem:[%s1 + $0x78] sm:$0xf]
  %v198 = vld [vmem:[%s1 + $0x7c] sm:$0xf]
  %v199 = vld [vmem:[%s2] sm:$0x1]
  %v201 = vlaneseq
  %v202 = vshrl.u32 %v201, 7
  %v203 = vsub.s32 0, %v202
  %v204 = vrot.slane %v199, %v203
  %v334 = vunpack.c.l.b16 %v39
  %v335 = vunpack.c.h.b16 %v39
  %v336 = vunpack.c.l.b16 %v40
  %v337 = vunpack.c.h.b16 %v40
  %v338 = vunpack.c.l.b16 %v41
  %v339 = vunpack.c.h.b16 %v41
  %v340 = vunpack.c.l.b16 %v42
  %v341 = vunpack.c.h.b16 %v42
  %v342 = vunpack.c.l.b16 %v43
  %v343 = vunpack.c.h.b16 %v43
  %v344 = vunpack.c.l.b16 %v44
  %v345 = vunpack.c.h.b16 %v44
  %v346 = vunpack.c.l.b16 %v45
  %v347 = vunpack.c.h.b16 %v45
  %v348 = vunpack.c.l.b16 %v46
  %v349 = vunpack.c.h.b16 %v46
  %v350 = vunpack.c.l.b16 %v47
  %v351 = vunpack.c.h.b16 %v47
  %v352 = vunpack.c.l.b16 %v48
  %v353 = vunpack.c.h.b16 %v48
  %v354 = vunpack.c.l.b16 %v49
  %v355 = vunpack.c.h.b16 %v49
  %v356 = vunpack.c.l.b16 %v50
  %v357 = vunpack.c.h.b16 %v50
  %v358 = vunpack.c.l.b16 %v51
  %v359 = vunpack.c.h.b16 %v51
  %v360 = vunpack.c.l.b16 %v52
  %v361 = vunpack.c.h.b16 %v52
  %v362 = vunpack.c.l.b16 %v53
  %v363 = vunpack.c.h.b16 %v53
  %v364 = vunpack.c.l.b16 %v54
  %v365 = vunpack.c.h.b16 %v54
  %v366 = vunpack.c.l.b16 %v55
  %v367 = vunpack.c.h.b16 %v55
  %v368 = vunpack.c.l.b16 %v56
  %v369 = vunpack.c.h.b16 %v56
  %v370 = vunpack.c.l.b16 %v57
  %v371 = vunpack.c.h.b16 %v57
  %v372 = vunpack.c.l.b16 %v58
  %v373 = vunpack.c.h.b16 %v58
  %v374 = vunpack.c.l.b16 %v59
  %v375 = vunpack.c.h.b16 %v59
  %v376 = vunpack.c.l.b16 %v60
  %v377 = vunpack.c.h.b16 %v60
  %v378 = vunpack.c.l.b16 %v61
  %v379 = vunpack.c.h.b16 %v61
  %v380 = vunpack.c.l.b16 %v62
  %v381 = vunpack.c.h.b16 %v62
  %v382 = vunpack.c.l.b16 %v63
  %v383 = vunpack.c.h.b16 %v63
  %v384 = vunpack.c.l.b16 %v64
  %v385 = vunpack.c.h.b16 %v64
  %v386 = vunpack.c.l.b16 %v65
  %v387 = vunpack.c.h.b16 %v65
  %v388 = vunpack.c.l.b16 %v66
  %v389 = vunpack.c.h.b16 %v66
  %v390 = vunpack.c.l.b16 %v67
  %v391 = vunpack.c.h.b16 %v67
  %v392 = vunpack.c.l.b16 %v68
  %v393 = vunpack.c.h.b16 %v68
  %v394 = vunpack.c.l.b16 %v69
  %v395 = vunpack.c.h.b16 %v69
  %v396 = vunpack.c.l.b16 %v70
  %v397 = vunpack.c.h.b16 %v70
  %v398 = vunpack.c.l.b16 %v71
  %v399 = vunpack.c.h.b16 %v71
  %v400 = vunpack.c.l.b16 %v72
  %v401 = vunpack.c.h.b16 %v72
  %v402 = vunpack.c.l.b16 %v73
  %v403 = vunpack.c.h.b16 %v73
  %v404 = vunpack.c.l.b16 %v74
  %v405 = vunpack.c.h.b16 %v74
  %v406 = vunpack.c.l.b16 %v75
  %v407 = vunpack.c.h.b16 %v75
  %v408 = vunpack.c.l.b16 %v76
  %v409 = vunpack.c.h.b16 %v76
  %v410 = vunpack.c.l.b16 %v77
  %v411 = vunpack.c.h.b16 %v77
  %v412 = vunpack.c.l.b16 %v78
  %v413 = vunpack.c.h.b16 %v78
  %v414 = vunpack.c.l.b16 %v79
  %v415 = vunpack.c.h.b16 %v79
  %v416 = vunpack.c.l.b16 %v80
  %v417 = vunpack.c.h.b16 %v80
  %v418 = vunpack.c.l.b16 %v81
  %v419 = vunpack.c.h.b16 %v81
  %v420 = vunpack.c.l.b16 %v82
  %v421 = vunpack.c.h.b16 %v82
  %v422 = vunpack.c.l.b16 %v83
  %v423 = vunpack.c.h.b16 %v83
  %v424 = vunpack.c.l.b16 %v84
  %v425 = vunpack.c.h.b16 %v84
  %v426 = vunpack.c.l.b16 %v85
  %v427 = vunpack.c.h.b16 %v85
  %v428 = vunpack.c.l.b16 %v86
  %v429 = vunpack.c.h.b16 %v86
  %v430 = vunpack.c.l.b16 %v87
  %v431 = vunpack.c.h.b16 %v87
  %v432 = vunpack.c.l.b16 %v88
  %v433 = vunpack.c.h.b16 %v88
  %v434 = vunpack.c.l.b16 %v89
  %v435 = vunpack.c.h.b16 %v89
  %v436 = vunpack.c.l.b16 %v90
  %v437 = vunpack.c.h.b16 %v90
  %v438 = vunpack.c.l.b16 %v91
  %v439 = vunpack.c.h.b16 %v91
  %v440 = vunpack.c.l.b16 %v92
  %v441 = vunpack.c.h.b16 %v92
  %v442 = vunpack.c.l.b16 %v93
  %v443 = vunpack.c.h.b16 %v93
  %v444 = vunpack.c.l.b16 %v94
  %v445 = vunpack.c.h.b16 %v94
  %v446 = vunpack.c.l.b16 %v95
  %v447 = vunpack.c.h.b16 %v95
  %v448 = vunpack.c.l.b16 %v96
  %v449 = vunpack.c.h.b16 %v96
  %v450 = vunpack.c.l.b16 %v97
  %v451 = vunpack.c.h.b16 %v97
  %v452 = vunpack.c.l.b16 %v98
  %v453 = vunpack.c.h.b16 %v98
  %v454 = vunpack.c.l.b16 %v99
  %v455 = vunpack.c.h.b16 %v99
  %v456 = vunpack.c.l.b16 %v100
  %v457 = vunpack.c.h.b16 %v100
  %v458 = vunpack.c.l.b16 %v101
  %v459 = vunpack.c.h.b16 %v101
  %v460 = vunpack.c.l.b16 %v102
  %v461 = vunpack.c.h.b16 %v102
  %v462 = vunpack.c.l.b16 %v103
  %v463 = vunpack.c.h.b16 %v103
  %v464 = vunpack.c.l.b16 %v104
  %v465 = vunpack.c.h.b16 %v104
  %v466 = vunpack.c.l.b16 %v105
  %v467 = vunpack.c.h.b16 %v105
  %v468 = vunpack.c.l.b16 %v106
  %v469 = vunpack.c.h.b16 %v106
  %v470 = vunpack.c.l.b16 %v107
  %v471 = vunpack.c.h.b16 %v107
  %v472 = vunpack.c.l.b16 %v108
  %v473 = vunpack.c.h.b16 %v108
  %v474 = vunpack.c.l.b16 %v109
  %v475 = vunpack.c.h.b16 %v109
  %v476 = vunpack.c.l.b16 %v110
  %v477 = vunpack.c.h.b16 %v110
  %v478 = vunpack.c.l.b16 %v111
  %v479 = vunpack.c.h.b16 %v111
  %v480 = vunpack.c.l.b16 %v112
  %v481 = vunpack.c.h.b16 %v112
  %v482 = vunpack.c.l.b16 %v113
  %v483 = vunpack.c.h.b16 %v113
  %v484 = vunpack.c.l.b16 %v114
  %v485 = vunpack.c.h.b16 %v114
  %v486 = vunpack.c.l.b16 %v115
  %v487 = vunpack.c.h.b16 %v115
  %v488 = vunpack.c.l.b16 %v116
  %v489 = vunpack.c.h.b16 %v116
  %v490 = vunpack.c.l.b16 %v117
  %v491 = vunpack.c.h.b16 %v117
  %v492 = vunpack.c.l.b16 %v118
  %v493 = vunpack.c.h.b16 %v118
  %v494 = vunpack.c.l.b16 %v119
  %v495 = vunpack.c.h.b16 %v119
  %v496 = vunpack.c.l.b16 %v120
  %v497 = vunpack.c.h.b16 %v120
  %v498 = vunpack.c.l.b16 %v121
  %v499 = vunpack.c.h.b16 %v121
  %v500 = vunpack.c.l.b16 %v122
  %v501 = vunpack.c.h.b16 %v122
  %v502 = vunpack.c.l.b16 %v123
  %v503 = vunpack.c.h.b16 %v123
  %v504 = vunpack.c.l.b16 %v124
  %v505 = vunpack.c.h.b16 %v124
  %v506 = vunpack.c.l.b16 %v125
  %v507 = vunpack.c.h.b16 %v125
  %v508 = vunpack.c.l.b16 %v126
  %v509 = vunpack.c.h.b16 %v126
  %v510 = vunpack.c.l.b16 %v127
  %v511 = vunpack.c.h.b16 %v127
  %v512 = vunpack.c.l.b16 %v128
  %v513 = vunpack.c.h.b16 %v128
  %v514 = vunpack.c.l.b16 %v129
  %v515 = vunpack.c.h.b16 %v129
  %v516 = vunpack.c.l.b16 %v130
  %v517 = vunpack.c.h.b16 %v130
  %v518 = vunpack.c.l.b16 %v131
  %v519 = vunpack.c.h.b16 %v131
  %v520 = vunpack.c.l.b16 %v132
  %v521 = vunpack.c.h.b16 %v132
  %v522 = vunpack.c.l.b16 %v133
  %v523 = vunpack.c.h.b16 %v133
  %v524 = vunpack.c.l.b16 %v134
  %v525 = vunpack.c.h.b16 %v134
  %v526 = vunpack.c.l.b16 %v135
  %v527 = vunpack.c.h.b16 %v135
  %v528 = vunpack.c.l.b16 %v136
  %v529 = vunpack.c.h.b16 %v136
  %v530 = vunpack.c.l.b16 %v137
  %v531 = vunpack.c.h.b16 %v137
  %v532 = vunpack.c.l.b16 %v138
  %v533 = vunpack.c.h.b16 %v138
  %v534 = vunpack.c.l.b16 %v139
  %v535 = vunpack.c.h.b16 %v139
  %v536 = vunpack.c.l.b16 %v140
  %v537 = vunpack.c.h.b16 %v140
  %v538 = vunpack.c.l.b16 %v141
  %v539 = vunpack.c.h.b16 %v141
  %v540 = vunpack.c.l.b16 %v142
  %v541 = vunpack.c.h.b16 %v142
  %v542 = vunpack.c.l.b16 %v143
  %v543 = vunpack.c.h.b16 %v143
  %v544 = vunpack.c.l.b16 %v144
  %v545 = vunpack.c.h.b16 %v144
  %v546 = vunpack.c.l.b16 %v145
  %v547 = vunpack.c.h.b16 %v145
  %v548 = vunpack.c.l.b16 %v146
  %v549 = vunpack.c.h.b16 %v146
  %v550 = vunpack.c.l.b16 %v147
  %v551 = vunpack.c.h.b16 %v147
  %v552 = vunpack.c.l.b16 %v148
  %v553 = vunpack.c.h.b16 %v148
  %v554 = vunpack.c.l.b16 %v149
  %v555 = vunpack.c.h.b16 %v149
  %v556 = vunpack.c.l.b16 %v150
  %v557 = vunpack.c.h.b16 %v150
  %v558 = vunpack.c.l.b16 %v151
  %v559 = vunpack.c.h.b16 %v151
  %v560 = vunpack.c.l.b16 %v152
  %v561 = vunpack.c.h.b16 %v152
  %v562 = vunpack.c.l.b16 %v153
  %v563 = vunpack.c.h.b16 %v153
  %v564 = vunpack.c.l.b16 %v154
  %v565 = vunpack.c.h.b16 %v154
  %v566 = vunpack.c.l.b16 %v155
  %v567 = vunpack.c.h.b16 %v155
  %v568 = vunpack.c.l.b16 %v156
  %v569 = vunpack.c.h.b16 %v156
  %v570 = vunpack.c.l.b16 %v157
  %v571 = vunpack.c.h.b16 %v157
  %v572 = vunpack.c.l.b16 %v158
  %v573 = vunpack.c.h.b16 %v158
  %v574 = vunpack.c.l.b16 %v159
  %v575 = vunpack.c.h.b16 %v159
  %v576 = vunpack.c.l.b16 %v160
  %v577 = vunpack.c.h.b16 %v160
  %v578 = vunpack.c.l.b16 %v161
  %v579 = vunpack.c.h.b16 %v161
  %v580 = vunpack.c.l.b16 %v162
  %v581 = vunpack.c.h.b16 %v162
  %v582 = vunpack.c.l.b16 %v163
  %v583 = vunpack.c.h.b16 %v163
  %v584 = vunpack.c.l.b16 %v164
  %v585 = vunpack.c.h.b16 %v164
  %v586 = vunpack.c.l.b16 %v165
  %v587 = vunpack.c.h.b16 %v165
  %v588 = vunpack.c.l.b16 %v166
  %v589 = vunpack.c.h.b16 %v166
  %v590 = vpack.c.b16 %v336, %v334
  %v591 = vpack.c.b16 %v337, %v335
  %v592 = vpack.c.b16 %v340, %v338
  %v593 = vpack.c.b16 %v341, %v339
  %v594 = vpack.c.b16 %v344, %v342
  %v595 = vpack.c.b16 %v345, %v343
  %v596 = vpack.c.b16 %v348, %v346
  %v597 = vpack.c.b16 %v349, %v347
  %v598 = vpack.c.b16 %v352, %v350
  %v599 = vpack.c.b16 %v353, %v351
  %v600 = vpack.c.b16 %v356, %v354
  %v601 = vpack.c.b16 %v357, %v355
  %v602 = vpack.c.b16 %v360, %v358
  %v603 = vpack.c.b16 %v361, %v359
  %v604 = vpack.c.b16 %v364, %v362
  %v605 = vpack.c.b16 %v365, %v363
  %v606 = vpack.c.b16 %v368, %v366
  %v607 = vpack.c.b16 %v369, %v367
  %v608 = vpack.c.b16 %v372, %v370
  %v609 = vpack.c.b16 %v373, %v371
  %v610 = vpack.c.b16 %v376, %v374
  %v611 = vpack.c.b16 %v377, %v375
  %v612 = vpack.c.b16 %v380, %v378
  %v613 = vpack.c.b16 %v381, %v379
  %v614 = vpack.c.b16 %v384, %v382
  %v615 = vpack.c.b16 %v385, %v383
  %v616 = vpack.c.b16 %v388, %v386
  %v617 = vpack.c.b16 %v389, %v387
  %v618 = vpack.c.b16 %v392, %v390
  %v619 = vpack.c.b16 %v393, %v391
  %v620 = vpack.c.b16 %v396, %v394
  %v621 = vpack.c.b16 %v397, %v395
  %v622 = vpack.c.b16 %v400, %v398
  %v623 = vpack.c.b16 %v401, %v399
  %v624 = vpack.c.b16 %v404, %v402
  %v625 = vpack.c.b16 %v405, %v403
  %v626 = vpack.c.b16 %v408, %v406
  %v627 = vpack.c.b16 %v409, %v407
  %v628 = vpack.c.b16 %v412, %v410
  %v629 = vpack.c.b16 %v413, %v411
  %v630 = vpack.c.b16 %v416, %v414
  %v631 = vpack.c.b16 %v417, %v415
  %v632 = vpack.c.b16 %v420, %v418
  %v633 = vpack.c.b16 %v421, %v419
  %v634 = vpack.c.b16 %v424, %v422
  %v635 = vpack.c.b16 %v425, %v423
  %v636 = vpack.c.b16 %v428, %v426
  %v637 = vpack.c.b16 %v429, %v427
  %v638 = vpack.c.b16 %v432, %v430
  %v639 = vpack.c.b16 %v433, %v431
  %v640 = vpack.c.b16 %v436, %v434
  %v641 = vpack.c.b16 %v437, %v435
  %v642 = vpack.c.b16 %v440, %v438
  %v643 = vpack.c.b16 %v441, %v439
  %v644 = vpack.c.b16 %v444, %v442
  %v645 = vpack.c.b16 %v445, %v443
  %v646 = vpack.c.b16 %v448, %v446
  %v647 = vpack.c.b16 %v449, %v447
  %v648 = vpack.c.b16 %v452, %v450
  %v649 = vpack.c.b16 %v453, %v451
  %v650 = vpack.c.b16 %v456, %v454
  %v651 = vpack.c.b16 %v457, %v455
  %v652 = vpack.c.b16 %v460, %v458
  %v653 = vpack.c.b16 %v461, %v459
  %v654 = vpack.c.b16 %v464, %v462
  %v655 = vpack.c.b16 %v465, %v463
  %v656 = vpack.c.b16 %v468, %v466
  %v657 = vpack.c.b16 %v469, %v467
  %v658 = vpack.c.b16 %v472, %v470
  %v659 = vpack.c.b16 %v473, %v471
  %v660 = vpack.c.b16 %v476, %v474
  %v661 = vpack.c.b16 %v477, %v475
  %v662 = vpack.c.b16 %v480, %v478
  %v663 = vpack.c.b16 %v481, %v479
  %v664 = vpack.c.b16 %v484, %v482
  %v665 = vpack.c.b16 %v485, %v483
  %v666 = vpack.c.b16 %v488, %v486
  %v667 = vpack.c.b16 %v489, %v487
  %v668 = vpack.c.b16 %v492, %v490
  %v669 = vpack.c.b16 %v493, %v491
  %v670 = vpack.c.b16 %v496, %v494
  %v671 = vpack.c.b16 %v497, %v495
  %v672 = vpack.c.b16 %v500, %v498
  %v673 = vpack.c.b16 %v501, %v499
  %v674 = vpack.c.b16 %v504, %v502
  %v675 = vpack.c.b16 %v505, %v503
  %v676 = vpack.c.b16 %v508, %v506
  %v677 = vpack.c.b16 %v509, %v507
  %v678 = vpack.c.b16 %v512, %v510
  %v679 = vpack.c.b16 %v513, %v511
  %v680 = vpack.c.b16 %v516, %v514
  %v681 = vpack.c.b16 %v517, %v515
  %v682 = vpack.c.b16 %v520, %v518
  %v683 = vpack.c.b16 %v521, %v519
  %v684 = vpack.c.b16 %v524, %v522
  %v685 = vpack.c.b16 %v525, %v523
  %v686 = vpack.c.b16 %v528, %v526
  %v687 = vpack.c.b16 %v529, %v527
  %v688 = vpack.c.b16 %v532, %v530
  %v689 = vpack.c.b16 %v533, %v531
  %v690 = vpack.c.b16 %v536, %v534
  %v691 = vpack.c.b16 %v537, %v535
  %v692 = vpack.c.b16 %v540, %v538
  %v693 = vpack.c.b16 %v541, %v539
  %v694 = vpack.c.b16 %v544, %v542
  %v695 = vpack.c.b16 %v545, %v543
  %v696 = vpack.c.b16 %v548, %v546
  %v697 = vpack.c.b16 %v549, %v547
  %v698 = vpack.c.b16 %v552, %v550
  %v699 = vpack.c.b16 %v553, %v551
  %v700 = vpack.c.b16 %v556, %v554
  %v701 = vpack.c.b16 %v557, %v555
  %v702 = vpack.c.b16 %v560, %v558
  %v703 = vpack.c.b16 %v561, %v559
  %v704 = vpack.c.b16 %v564, %v562
  %v705 = vpack.c.b16 %v565, %v563
  %v706 = vpack.c.b16 %v568, %v566
  %v707 = vpack.c.b16 %v569, %v567
  %v708 = vpack.c.b16 %v572, %v570
  %v709 = vpack.c.b16 %v573, %v571
  %v710 = vpack.c.b16 %v576, %v574
  %v711 = vpack.c.b16 %v577, %v575
  %v712 = vpack.c.b16 %v580, %v578
  %v713 = vpack.c.b16 %v581, %v579
  %v714 = vpack.c.b16 %v584, %v582
  %v715 = vpack.c.b16 %v585, %v583
  %v716 = vpack.c.b16 %v588, %v586
  %v717 = vpack.c.b16 %v589, %v587
  %v878 = vunpack.c.l.b16 %v167
  %v879 = vunpack.c.l.b16 %v168
  %v880 = vunpack.c.l.b16 %v169
  %v881 = vunpack.c.l.b16 %v170
  %v882 = vunpack.c.l.b16 %v171
  %v883 = vunpack.c.l.b16 %v172
  %v884 = vunpack.c.l.b16 %v173
  %v885 = vunpack.c.l.b16 %v174
  %v886 = vunpack.c.l.b16 %v175
  %v887 = vunpack.c.l.b16 %v176
  %v888 = vunpack.c.l.b16 %v177
  %v889 = vunpack.c.l.b16 %v178
  %v890 = vunpack.c.l.b16 %v179
  %v891 = vunpack.c.l.b16 %v180
  %v892 = vunpack.c.l.b16 %v181
  %v893 = vunpack.c.l.b16 %v182
  %v894 = vunpack.c.l.b16 %v183
  %v895 = vunpack.c.l.b16 %v184
  %v896 = vunpack.c.l.b16 %v185
  %v897 = vunpack.c.l.b16 %v186
  %v898 = vunpack.c.l.b16 %v187
  %v899 = vunpack.c.l.b16 %v188
  %v900 = vunpack.c.l.b16 %v189
  %v901 = vunpack.c.l.b16 %v190
  %v902 = vunpack.c.l.b16 %v191
  %v903 = vunpack.c.l.b16 %v192
  %v904 = vunpack.c.l.b16 %v193
  %v905 = vunpack.c.l.b16 %v194
  %v906 = vunpack.c.l.b16 %v195
  %v907 = vunpack.c.l.b16 %v196
  %v908 = vunpack.c.l.b16 %v197
  %v909 = vunpack.c.l.b16 %v198
  %v910 = vpack.c.b16 %v879, %v878
  %v911 = vpack.c.b16 %v881, %v880
  %v912 = vpack.c.b16 %v883, %v882
  %v913 = vpack.c.b16 %v885, %v884
  %v914 = vpack.c.b16 %v887, %v886
  %v915 = vpack.c.b16 %v889, %v888
  %v916 = vpack.c.b16 %v891, %v890
  %v917 = vpack.c.b16 %v893, %v892
  %v918 = vpack.c.b16 %v895, %v894
  %v919 = vpack.c.b16 %v897, %v896
  %v920 = vpack.c.b16 %v899, %v898
  %v921 = vpack.c.b16 %v901, %v900
  %v922 = vpack.c.b16 %v903, %v902
  %v923 = vpack.c.b16 %v905, %v904
  %v924 = vpack.c.b16 %v907, %v906
  %v925 = vpack.c.b16 %v909, %v908
  %942 = vmatprep.subr.bf16.mxu0 0
  %943 = vmatpush1.bf16.msra.mxu0 %v910
  %944 = vmatprep.subr.bf16.mxu0 0
  %945 = vmatpush1.bf16.msra.mxu0 %v911
  %946 = vmatprep.subr.bf16.mxu0 0
  %947 = vmatpush1.bf16.msra.mxu0 %v912
  %948 = vmatprep.subr.bf16.mxu0 0
  %949 = vmatpush1.bf16.msra.mxu0 %v913
  %950 = vmatprep.subr.bf16.mxu0 0
  %951 = vmatpush1.bf16.msra.mxu0 %v914
  %952 = vmatprep.subr.bf16.mxu0 0
  %953 = vmatpush1.bf16.msra.mxu0 %v915
  %954 = vmatprep.subr.bf16.mxu0 0
  %955 = vmatpush1.bf16.msra.mxu0 %v916
  %956 = vmatprep.subr.bf16.mxu0 0
  %957 = vmatpush1.bf16.msra.mxu0 %v917
  %958 = vmatprep.subr.bf16.mxu0 0
  %959 = vmatpush1.bf16.msra.mxu0 %v918
  %960 = vmatprep.subr.bf16.mxu0 0
  %961 = vmatpush1.bf16.msra.mxu0 %v919
  %962 = vmatprep.subr.bf16.mxu0 0
  %963 = vmatpush1.bf16.msra.mxu0 %v920
  %964 = vmatprep.subr.bf16.mxu0 0
  %965 = vmatpush1.bf16.msra.mxu0 %v921
  %966 = vmatprep.subr.bf16.mxu0 0
  %967 = vmatpush1.bf16.msra.mxu0 %v922
  %968 = vmatprep.subr.bf16.mxu0 0
  %969 = vmatpush1.bf16.msra.mxu0 %v923
  %970 = vmatprep.subr.bf16.mxu0 0
  %971 = vmatpush1.bf16.msra.mxu0 %v924
  %972 = vmatprep.subr.bf16.mxu0 0
  %973 = vmatpush1.bf16.msra.mxu0 %v925
  %974 = vmatprep.mubr.bf16.mxu0 %v591
  %975 = vmatmul.mubr.bf16.gmra.mrb[0].mxu0 %v590
  %v976 = vpop.f32.mrb[0].mxu0
  %v977 = vadd.f32 %v204, %v976
  %v978 = vpop.f32.mrb[0].mxu0
  %v979 = vpop.f32.mrb[0].mxu0
  %v980 = vadd.f32 %v204, %v979
  %v981 = vpop.f32.mrb[0].mxu0
  %982 = vmatprep.mubr.bf16.mxu0 %v593
  %983 = vmatmul.mubr.bf16.gmra.mrb[0].mxu0 %v592
  %v984 = vpop.f32.mrb[0].mxu0
  %v985 = vadd.f32 %v204, %v984
  %v986 = vpop.f32.mrb[0].mxu0
  %v987 = vpop.f32.mrb[0].mxu0
  %v988 = vadd.f32 %v204, %v987
  %v989 = vpop.f32.mrb[0].mxu0
  %990 = vmatprep.mubr.bf16.mxu0 %v595
  %991 = vmatmul.mubr.bf16.gmra.mrb[0].mxu0 %v594
  %v992 = vpop.f32.mrb[0].mxu0
  %v993 = vadd.f32 %v204, %v992
  %v994 = vpop.f32.mrb[0].mxu0
  %v995 = vpop.f32.mrb[0].mxu0
  %v996 = vadd.f32 %v204, %v995
  %v997 = vpop.f32.mrb[0].mxu0
  %998 = vmatprep.mubr.bf16.mxu0 %v597
  %999 = vmatmul.mubr.bf16.gmra.mrb[0].mxu0 %v596
  %v1000 = vpop.f32.mrb[0].mxu0
  %v1001 = vadd.f32 %v204, %v1000
  %v1002 = vpop.f32.mrb[0].mxu0
  %v1003 = vpop.f32.mrb[0].mxu0
  %v1004 = vadd.f32 %v204, %v1003
  %v1005 = vpop.f32.mrb[0].mxu0
  %1006 = vmatprep.mubr.bf16.mxu0 %v599
  %1007 = vmatmul.mubr.bf16.gmra.mrb[0].mxu0 %v598
  %v1008 = vpop.f32.mrb[0].mxu0
  %v1009 = vadd.f32 %v204, %v1008
  %v1010 = vpop.f32.mrb[0].mxu0
  %v1011 = vpop.f32.mrb[0].mxu0
  %v1012 = vadd.f32 %v204, %v1011
  %v1013 = vpop.f32.mrb[0].mxu0
  %1014 = vmatprep.mubr.bf16.mxu0 %v601
  %1015 = vmatmul.mubr.bf16.gmra.mrb[0].mxu0 %v600
  %v1016 = vpop.f32.mrb[0].mxu0
  %v1017 = vadd.f32 %v204, %v1016
  %v1018 = vpop.f32.mrb[0].mxu0
  %v1019 = vpop.f32.mrb[0].mxu0
  %v1020 = vadd.f32 %v204, %v1019
  %v1021 = vpop.f32.mrb[0].mxu0
  %1022 = vmatprep.mubr.bf16.mxu0 %v603
  %1023 = vmatmul.mubr.bf16.gmra.mrb[0].mxu0 %v602
  %v1024 = vpop.f32.mrb[0].mxu0
  %v1025 = vadd.f32 %v204, %v1024
  %v1026 = vpop.f32.mrb[0].mxu0
  %v1027 = vpop.f32.mrb[0].mxu0
  %v1028 = vadd.f32 %v204, %v1027
  %v1029 = vpop.f32.mrb[0].mxu0
  %1030 = vmatprep.mubr.bf16.mxu0 %v605
  %1031 = vmatmul.mubr.bf16.gmra.mrb[0].mxu0 %v604
  %v1032 = vpop.f32.mrb[0].mxu0
  %v1033 = vadd.f32 %v204, %v1032
  %v1034 = vpop.f32.mrb[0].mxu0
  %v1035 = vpop.f32.mrb[0].mxu0
  %v1036 = vadd.f32 %v204, %v1035
  %v1037 = vpop.f32.mrb[0].mxu0
  %1038 = vmatprep.mubr.bf16.mxu0 %v607
  %1039 = vmatmul.mubr.bf16.gmra.mrb[0].mxu0 %v606
  %v1040 = vpop.f32.mrb[0].mxu0
  %v1041 = vadd.f32 %v204, %v1040
  %v1042 = vpop.f32.mrb[0].mxu0
  %v1043 = vpop.f32.mrb[0].mxu0
  %v1044 = vadd.f32 %v204, %v1043
  %v1045 = vpop.f32.mrb[0].mxu0
  %1046 = vmatprep.mubr.bf16.mxu0 %v609
  %1047 = vmatmul.mubr.bf16.gmra.mrb[0].mxu0 %v608
  %v1048 = vpop.f32.mrb[0].mxu0
  %v1049 = vadd.f32 %v204, %v1048
  %v1050 = vpop.f32.mrb[0].mxu0
  %v1051 = vpop.f32.mrb[0].mxu0
  %v1052 = vadd.f32 %v204, %v1051
  %v1053 = vpop.f32.mrb[0].mxu0
  %1054 = vmatprep.mubr.bf16.mxu0 %v611
  %1055 = vmatmul.mubr.bf16.gmra.mrb[0].mxu0 %v610
  %v1056 = vpop.f32.mrb[0].mxu0
  %v1057 = vadd.f32 %v204, %v1056
  %v1058 = vpop.f32.mrb[0].mxu0
  %v1059 = vpop.f32.mrb[0].mxu0
  %v1060 = vadd.f32 %v204, %v1059
  %v1061 = vpop.f32.mrb[0].mxu0
  %1062 = vmatprep.mubr.bf16.mxu0 %v613
  %1063 = vmatmul.mubr.bf16.gmra.mrb[0].mxu0 %v612
  %v1064 = vpop.f32.mrb[0].mxu0
  %v1065 = vadd.f32 %v204, %v1064
  %v1066 = vpop.f32.mrb[0].mxu0
  %v1067 = vpop.f32.mrb[0].mxu0
  %v1068 = vadd.f32 %v204, %v1067
  %v1069 = vpop.f32.mrb[0].mxu0
  %1070 = vmatprep.mubr.bf16.mxu0 %v615
  %1071 = vmatmul.mubr.bf16.gmra.mrb[0].mxu0 %v614
  %v1072 = vpop.f32.mrb[0].mxu0
  %v1073 = vadd.f32 %v204, %v1072
  %v1074 = vpop.f32.mrb[0].mxu0
  %v1075 = vpop.f32.mrb[0].mxu0
  %v1076 = vadd.f32 %v204, %v1075
  %v1077 = vpop.f32.mrb[0].mxu0
  %1078 = vmatprep.mubr.bf16.mxu0 %v617
  %1079 = vmatmul.mubr.bf16.gmra.mrb[0].mxu0 %v616
  %v1080 = vpop.f32.mrb[0].mxu0
  %v1081 = vadd.f32 %v204, %v1080
  %v1082 = vpop.f32.mrb[0].mxu0
  %v1083 = vpop.f32.mrb[0].mxu0
  %v1084 = vadd.f32 %v204, %v1083
  %v1085 = vpop.f32.mrb[0].mxu0
  %1086 = vmatprep.mubr.bf16.mxu0 %v619
  %1087 = vmatmul.mubr.bf16.gmra.mrb[0].mxu0 %v618
  %v1088 = vpop.f32.mrb[0].mxu0
  %v1089 = vadd.f32 %v204, %v1088
  %v1090 = vpop.f32.mrb[0].mxu0
  %v1091 = vpop.f32.mrb[0].mxu0
  %v1092 = vadd.f32 %v204, %v1091
  %v1093 = vpop.f32.mrb[0].mxu0
  %1094 = vmatprep.mubr.bf16.mxu0 %v621
  %1095 = vmatmul.mubr.bf16.gmra.mrb[0].mxu0 %v620
  %v1096 = vpop.f32.mrb[0].mxu0
  %v1097 = vadd.f32 %v204, %v1096
  %v1098 = vpop.f32.mrb[0].mxu0
  %v1099 = vpop.f32.mrb[0].mxu0
  %v1100 = vadd.f32 %v204, %v1099
  %v1101 = vpop.f32.mrb[0].mxu0
  %1102 = vmatprep.mubr.bf16.mxu0 %v623
  %1103 = vmatmul.mubr.bf16.gmra.mrb[0].mxu0 %v622
  %v1104 = vpop.f32.mrb[0].mxu0
  %v1105 = vadd.f32 %v204, %v1104
  %v1106 = vpop.f32.mrb[0].mxu0
  %v1107 = vpop.f32.mrb[0].mxu0
  %v1108 = vadd.f32 %v204, %v1107
  %v1109 = vpop.f32.mrb[0].mxu0
  %1110 = vmatprep.mubr.bf16.mxu0 %v625
  %1111 = vmatmul.mubr.bf16.gmra.mrb[0].mxu0 %v624
  %v1112 = vpop.f32.mrb[0].mxu0
  %v1113 = vadd.f32 %v204, %v1112
  %v1114 = vpop.f32.mrb[0].mxu0
  %v1115 = vpop.f32.mrb[0].mxu0
  %v1116 = vadd.f32 %v204, %v1115
  %v1117 = vpop.f32.mrb[0].mxu0
  %1118 = vmatprep.mubr.bf16.mxu0 %v627
  %1119 = vmatmul.mubr.bf16.gmra.mrb[0].mxu0 %v626
  %v1120 = vpop.f32.mrb[0].mxu0
  %v1121 = vadd.f32 %v204, %v1120
  %v1122 = vpop.f32.mrb[0].mxu0
  %v1123 = vpop.f32.mrb[0].mxu0
  %v1124 = vadd.f32 %v204, %v1123
  %v1125 = vpop.f32.mrb[0].mxu0
  %1126 = vmatprep.mubr.bf16.mxu0 %v629
  %1127 = vmatmul.mubr.bf16.gmra.mrb[0].mxu0 %v628
  %v1128 = vpop.f32.mrb[0].mxu0
  %v1129 = vadd.f32 %v204, %v1128
  %v1130 = vpop.f32.mrb[0].mxu0
  %v1131 = vpop.f32.mrb[0].mxu0
  %v1132 = vadd.f32 %v204, %v1131
  %v1133 = vpop.f32.mrb[0].mxu0
  %1134 = vmatprep.mubr.bf16.mxu0 %v631
  %1135 = vmatmul.mubr.bf16.gmra.mrb[0].mxu0 %v630
  %v1136 = vpop.f32.mrb[0].mxu0
  %v1137 = vadd.f32 %v204, %v1136
  %v1138 = vpop.f32.mrb[0].mxu0
  %v1139 = vpop.f32.mrb[0].mxu0
  %v1140 = vadd.f32 %v204, %v1139
  %v1141 = vpop.f32.mrb[0].mxu0
  %1142 = vmatprep.mubr.bf16.mxu0 %v633
  %1143 = vmatmul.mubr.bf16.gmra.mrb[0].mxu0 %v632
  %v1144 = vpop.f32.mrb[0].mxu0
  %v1145 = vadd.f32 %v204, %v1144
  %v1146 = vpop.f32.mrb[0].mxu0
  %v1147 = vpop.f32.mrb[0].mxu0
  %v1148 = vadd.f32 %v204, %v1147
  %v1149 = vpop.f32.mrb[0].mxu0
  %1150 = vmatprep.mubr.bf16.mxu0 %v635
  %1151 = vmatmul.mubr.bf16.gmra.mrb[0].mxu0 %v634
  %v1152 = vpop.f32.mrb[0].mxu0
  %v1153 = vadd.f32 %v204, %v1152
  %v1154 = vpop.f32.mrb[0].mxu0
  %v1155 = vpop.f32.mrb[0].mxu0
  %v1156 = vadd.f32 %v204, %v1155
  %v1157 = vpop.f32.mrb[0].mxu0
  %1158 = vmatprep.mubr.bf16.mxu0 %v637
  %1159 = vmatmul.mubr.bf16.gmra.mrb[0].mxu0 %v636
  %v1160 = vpop.f32.mrb[0].mxu0
  %v1161 = vadd.f32 %v204, %v1160
  %v1162 = vpop.f32.mrb[0].mxu0
  %v1163 = vpop.f32.mrb[0].mxu0
  %v1164 = vadd.f32 %v204, %v1163
  %v1165 = vpop.f32.mrb[0].mxu0
  %1166 = vmatprep.mubr.bf16.mxu0 %v639
  %1167 = vmatmul.mubr.bf16.gmra.mrb[0].mxu0 %v638
  %v1168 = vpop.f32.mrb[0].mxu0
  %v1169 = vadd.f32 %v204, %v1168
  %v1170 = vpop.f32.mrb[0].mxu0
  %v1171 = vpop.f32.mrb[0].mxu0
  %v1172 = vadd.f32 %v204, %v1171
  %v1173 = vpop.f32.mrb[0].mxu0
  %1174 = vmatprep.mubr.bf16.mxu0 %v641
  %1175 = vmatmul.mubr.bf16.gmra.mrb[0].mxu0 %v640
  %v1176 = vpop.f32.mrb[0].mxu0
  %v1177 = vadd.f32 %v204, %v1176
  %v1178 = vpop.f32.mrb[0].mxu0
  %v1179 = vpop.f32.mrb[0].mxu0
  %v1180 = vadd.f32 %v204, %v1179
  %v1181 = vpop.f32.mrb[0].mxu0
  %1182 = vmatprep.mubr.bf16.mxu0 %v643
  %1183 = vmatmul.mubr.bf16.gmra.mrb[0].mxu0 %v642
  %v1184 = vpop.f32.mrb[0].mxu0
  %v1185 = vadd.f32 %v204, %v1184
  %v1186 = vpop.f32.mrb[0].mxu0
  %v1187 = vpop.f32.mrb[0].mxu0
  %v1188 = vadd.f32 %v204, %v1187
  %v1189 = vpop.f32.mrb[0].mxu0
  %1190 = vmatprep.mubr.bf16.mxu0 %v645
  %1191 = vmatmul.mubr.bf16.gmra.mrb[0].mxu0 %v644
  %v1192 = vpop.f32.mrb[0].mxu0
  %v1193 = vadd.f32 %v204, %v1192
  %v1194 = vpop.f32.mrb[0].mxu0
  %v1195 = vpop.f32.mrb[0].mxu0
  %v1196 = vadd.f32 %v204, %v1195
  %v1197 = vpop.f32.mrb[0].mxu0
  %1198 = vmatprep.mubr.bf16.mxu0 %v647
  %1199 = vmatmul.mubr.bf16.gmra.mrb[0].mxu0 %v646
  %v1200 = vpop.f32.mrb[0].mxu0
  %v1201 = vadd.f32 %v204, %v1200
  %v1202 = vpop.f32.mrb[0].mxu0
  %v1203 = vpop.f32.mrb[0].mxu0
  %v1204 = vadd.f32 %v204, %v1203
  %v1205 = vpop.f32.mrb[0].mxu0
  %1206 = vmatprep.mubr.bf16.mxu0 %v649
  %1207 = vmatmul.mubr.bf16.gmra.mrb[0].mxu0 %v648
  %v1208 = vpop.f32.mrb[0].mxu0
  %v1209 = vadd.f32 %v204, %v1208
  %v1210 = vpop.f32.mrb[0].mxu0
  %v1211 = vpop.f32.mrb[0].mxu0
  %v1212 = vadd.f32 %v204, %v1211
  %v1213 = vpop.f32.mrb[0].mxu0
  %1214 = vmatprep.mubr.bf16.mxu0 %v651
  %1215 = vmatmul.mubr.bf16.gmra.mrb[0].mxu0 %v650
  %v1216 = vpop.f32.mrb[0].mxu0
  %v1217 = vadd.f32 %v204, %v1216
  %v1218 = vpop.f32.mrb[0].mxu0
  %v1219 = vpop.f32.mrb[0].mxu0
  %v1220 = vadd.f32 %v204, %v1219
  %v1221 = vpop.f32.mrb[0].mxu0
  %1222 = vmatprep.mubr.bf16.mxu0 %v653
  %1223 = vmatmul.mubr.bf16.gmra.mrb[0].mxu0 %v652
  %v1224 = vpop.f32.mrb[0].mxu0
  %v1225 = vadd.f32 %v204, %v1224
  %v1226 = vpop.f32.mrb[0].mxu0
  %v1227 = vpop.f32.mrb[0].mxu0
  %v1228 = vadd.f32 %v204, %v1227
  %v1229 = vpop.f32.mrb[0].mxu0
  %1230 = vmatprep.mubr.bf16.mxu0 %v655
  %1231 = vmatmul.mubr.bf16.gmra.mrb[0].mxu0 %v654
  %v1232 = vpop.f32.mrb[0].mxu0
  %v1233 = vadd.f32 %v204, %v1232
  %v1234 = vpop.f32.mrb[0].mxu0
  %v1235 = vpop.f32.mrb[0].mxu0
  %v1236 = vadd.f32 %v204, %v1235
  %v1237 = vpop.f32.mrb[0].mxu0
  %1238 = vmatprep.mubr.bf16.mxu0 %v657
  %1239 = vmatmul.mubr.bf16.gmra.mrb[0].mxu0 %v656
  %v1240 = vpop.f32.mrb[0].mxu0
  %v1241 = vadd.f32 %v204, %v1240
  %v1242 = vpop.f32.mrb[0].mxu0
  %v1243 = vpop.f32.mrb[0].mxu0
  %v1244 = vadd.f32 %v204, %v1243
  %v1245 = vpop.f32.mrb[0].mxu0
  %1246 = vmatprep.mubr.bf16.mxu0 %v659
  %1247 = vmatmul.mubr.bf16.gmra.mrb[0].mxu0 %v658
  %v1248 = vpop.f32.mrb[0].mxu0
  %v1249 = vadd.f32 %v204, %v1248
  %v1250 = vpop.f32.mrb[0].mxu0
  %v1251 = vpop.f32.mrb[0].mxu0
  %v1252 = vadd.f32 %v204, %v1251
  %v1253 = vpop.f32.mrb[0].mxu0
  %1254 = vmatprep.mubr.bf16.mxu0 %v661
  %1255 = vmatmul.mubr.bf16.gmra.mrb[0].mxu0 %v660
  %v1256 = vpop.f32.mrb[0].mxu0
  %v1257 = vadd.f32 %v204, %v1256
  %v1258 = vpop.f32.mrb[0].mxu0
  %v1259 = vpop.f32.mrb[0].mxu0
  %v1260 = vadd.f32 %v204, %v1259
  %v1261 = vpop.f32.mrb[0].mxu0
  %1262 = vmatprep.mubr.bf16.mxu0 %v663
  %1263 = vmatmul.mubr.bf16.gmra.mrb[0].mxu0 %v662
  %v1264 = vpop.f32.mrb[0].mxu0
  %v1265 = vadd.f32 %v204, %v1264
  %v1266 = vpop.f32.mrb[0].mxu0
  %v1267 = vpop.f32.mrb[0].mxu0
  %v1268 = vadd.f32 %v204, %v1267
  %v1269 = vpop.f32.mrb[0].mxu0
  %1270 = vmatprep.mubr.bf16.mxu0 %v665
  %1271 = vmatmul.mubr.bf16.gmra.mrb[0].mxu0 %v664
  %v1272 = vpop.f32.mrb[0].mxu0
  %v1273 = vadd.f32 %v204, %v1272
  %v1274 = vpop.f32.mrb[0].mxu0
  %v1275 = vpop.f32.mrb[0].mxu0
  %v1276 = vadd.f32 %v204, %v1275
  %v1277 = vpop.f32.mrb[0].mxu0
  %1278 = vmatprep.mubr.bf16.mxu0 %v667
  %1279 = vmatmul.mubr.bf16.gmra.mrb[0].mxu0 %v666
  %v1280 = vpop.f32.mrb[0].mxu0
  %v1281 = vadd.f32 %v204, %v1280
  %v1282 = vpop.f32.mrb[0].mxu0
  %v1283 = vpop.f32.mrb[0].mxu0
  %v1284 = vadd.f32 %v204, %v1283
  %v1285 = vpop.f32.mrb[0].mxu0
  %1286 = vmatprep.mubr.bf16.mxu0 %v669
  %1287 = vmatmul.mubr.bf16.gmra.mrb[0].mxu0 %v668
  %v1288 = vpop.f32.mrb[0].mxu0
  %v1289 = vadd.f32 %v204, %v1288
  %v1290 = vpop.f32.mrb[0].mxu0
  %v1291 = vpop.f32.mrb[0].mxu0
  %v1292 = vadd.f32 %v204, %v1291
  %v1293 = vpop.f32.mrb[0].mxu0
  %1294 = vmatprep.mubr.bf16.mxu0 %v671
  %1295 = vmatmul.mubr.bf16.gmra.mrb[0].mxu0 %v670
  %v1296 = vpop.f32.mrb[0].mxu0
  %v1297 = vadd.f32 %v204, %v1296
  %v1298 = vpop.f32.mrb[0].mxu0
  %v1299 = vpop.f32.mrb[0].mxu0
  %v1300 = vadd.f32 %v204, %v1299
  %v1301 = vpop.f32.mrb[0].mxu0
  %1302 = vmatprep.mubr.bf16.mxu0 %v673
  %1303 = vmatmul.mubr.bf16.gmra.mrb[0].mxu0 %v672
  %v1304 = vpop.f32.mrb[0].mxu0
  %v1305 = vadd.f32 %v204, %v1304
  %v1306 = vpop.f32.mrb[0].mxu0
  %v1307 = vpop.f32.mrb[0].mxu0
  %v1308 = vadd.f32 %v204, %v1307
  %v1309 = vpop.f32.mrb[0].mxu0
  %1310 = vmatprep.mubr.bf16.mxu0 %v675
  %1311 = vmatmul.mubr.bf16.gmra.mrb[0].mxu0 %v674
  %v1312 = vpop.f32.mrb[0].mxu0
  %v1313 = vadd.f32 %v204, %v1312
  %v1314 = vpop.f32.mrb[0].mxu0
  %v1315 = vpop.f32.mrb[0].mxu0
  %v1316 = vadd.f32 %v204, %v1315
  %v1317 = vpop.f32.mrb[0].mxu0
  %1318 = vmatprep.mubr.bf16.mxu0 %v677
  %1319 = vmatmul.mubr.bf16.gmra.mrb[0].mxu0 %v676
  %v1320 = vpop.f32.mrb[0].mxu0
  %v1321 = vadd.f32 %v204, %v1320
  %v1322 = vpop.f32.mrb[0].mxu0
  %v1323 = vpop.f32.mrb[0].mxu0
  %v1324 = vadd.f32 %v204, %v1323
  %v1325 = vpop.f32.mrb[0].mxu0
  %1326 = vmatprep.mubr.bf16.mxu0 %v679
  %1327 = vmatmul.mubr.bf16.gmra.mrb[0].mxu0 %v678
  %v1328 = vpop.f32.mrb[0].mxu0
  %v1329 = vadd.f32 %v204, %v1328
  %v1330 = vpop.f32.mrb[0].mxu0
  %v1331 = vpop.f32.mrb[0].mxu0
  %v1332 = vadd.f32 %v204, %v1331
  %v1333 = vpop.f32.mrb[0].mxu0
  %1334 = vmatprep.mubr.bf16.mxu0 %v681
  %1335 = vmatmul.mubr.bf16.gmra.mrb[0].mxu0 %v680
  %v1336 = vpop.f32.mrb[0].mxu0
  %v1337 = vadd.f32 %v204, %v1336
  %v1338 = vpop.f32.mrb[0].mxu0
  %v1339 = vpop.f32.mrb[0].mxu0
  %v1340 = vadd.f32 %v204, %v1339
  %v1341 = vpop.f32.mrb[0].mxu0
  %1342 = vmatprep.mubr.bf16.mxu0 %v683
  %1343 = vmatmul.mubr.bf16.gmra.mrb[0].mxu0 %v682
  %v1344 = vpop.f32.mrb[0].mxu0
  %v1345 = vadd.f32 %v204, %v1344
  %v1346 = vpop.f32.mrb[0].mxu0
  %v1347 = vpop.f32.mrb[0].mxu0
  %v1348 = vadd.f32 %v204, %v1347
  %v1349 = vpop.f32.mrb[0].mxu0
  %1350 = vmatprep.mubr.bf16.mxu0 %v685
  %1351 = vmatmul.mubr.bf16.gmra.mrb[0].mxu0 %v684
  %v1352 = vpop.f32.mrb[0].mxu0
  %v1353 = vadd.f32 %v204, %v1352
  %v1354 = vpop.f32.mrb[0].mxu0
  %v1355 = vpop.f32.mrb[0].mxu0
  %v1356 = vadd.f32 %v204, %v1355
  %v1357 = vpop.f32.mrb[0].mxu0
  %1358 = vmatprep.mubr.bf16.mxu0 %v687
  %1359 = vmatmul.mubr.bf16.gmra.mrb[0].mxu0 %v686
  %v1360 = vpop.f32.mrb[0].mxu0
  %v1361 = vadd.f32 %v204, %v1360
  %v1362 = vpop.f32.mrb[0].mxu0
  %v1363 = vpop.f32.mrb[0].mxu0
  %v1364 = vadd.f32 %v204, %v1363
  %v1365 = vpop.f32.mrb[0].mxu0
  %1366 = vmatprep.mubr.bf16.mxu0 %v689
  %1367 = vmatmul.mubr.bf16.gmra.mrb[0].mxu0 %v688
  %v1368 = vpop.f32.mrb[0].mxu0
  %v1369 = vadd.f32 %v204, %v1368
  %v1370 = vpop.f32.mrb[0].mxu0
  %v1371 = vpop.f32.mrb[0].mxu0
  %v1372 = vadd.f32 %v204, %v1371
  %v1373 = vpop.f32.mrb[0].mxu0
  %1374 = vmatprep.mubr.bf16.mxu0 %v691
  %1375 = vmatmul.mubr.bf16.gmra.mrb[0].mxu0 %v690
  %v1376 = vpop.f32.mrb[0].mxu0
  %v1377 = vadd.f32 %v204, %v1376
  %v1378 = vpop.f32.mrb[0].mxu0
  %v1379 = vpop.f32.mrb[0].mxu0
  %v1380 = vadd.f32 %v204, %v1379
  %v1381 = vpop.f32.mrb[0].mxu0
  %1382 = vmatprep.mubr.bf16.mxu0 %v693
  %1383 = vmatmul.mubr.bf16.gmra.mrb[0].mxu0 %v692
  %v1384 = vpop.f32.mrb[0].mxu0
  %v1385 = vadd.f32 %v204, %v1384
  %v1386 = vpop.f32.mrb[0].mxu0
  %v1387 = vpop.f32.mrb[0].mxu0
  %v1388 = vadd.f32 %v204, %v1387
  %v1389 = vpop.f32.mrb[0].mxu0
  %1390 = vmatprep.mubr.bf16.mxu0 %v695
  %1391 = vmatmul.mubr.bf16.gmra.mrb[0].mxu0 %v694
  %v1392 = vpop.f32.mrb[0].mxu0
  %v1393 = vadd.f32 %v204, %v1392
  %v1394 = vpop.f32.mrb[0].mxu0
  %v1395 = vpop.f32.mrb[0].mxu0
  %v1396 = vadd.f32 %v204, %v1395
  %v1397 = vpop.f32.mrb[0].mxu0
  %1398 = vmatprep.mubr.bf16.mxu0 %v697
  %1399 = vmatmul.mubr.bf16.gmra.mrb[0].mxu0 %v696
  %v1400 = vpop.f32.mrb[0].mxu0
  %v1401 = vadd.f32 %v204, %v1400
  %v1402 = vpop.f32.mrb[0].mxu0
  %v1403 = vpop.f32.mrb[0].mxu0
  %v1404 = vadd.f32 %v204, %v1403
  %v1405 = vpop.f32.mrb[0].mxu0
  %1406 = vmatprep.mubr.bf16.mxu0 %v699
  %1407 = vmatmul.mubr.bf16.gmra.mrb[0].mxu0 %v698
  %v1408 = vpop.f32.mrb[0].mxu0
  %v1409 = vadd.f32 %v204, %v1408
  %v1410 = vpop.f32.mrb[0].mxu0
  %v1411 = vpop.f32.mrb[0].mxu0
  %v1412 = vadd.f32 %v204, %v1411
  %v1413 = vpop.f32.mrb[0].mxu0
  %1414 = vmatprep.mubr.bf16.mxu0 %v701
  %1415 = vmatmul.mubr.bf16.gmra.mrb[0].mxu0 %v700
  %v1416 = vpop.f32.mrb[0].mxu0
  %v1417 = vadd.f32 %v204, %v1416
  %v1418 = vpop.f32.mrb[0].mxu0
  %v1419 = vpop.f32.mrb[0].mxu0
  %v1420 = vadd.f32 %v204, %v1419
  %v1421 = vpop.f32.mrb[0].mxu0
  %1422 = vmatprep.mubr.bf16.mxu0 %v703
  %1423 = vmatmul.mubr.bf16.gmra.mrb[0].mxu0 %v702
  %v1424 = vpop.f32.mrb[0].mxu0
  %v1425 = vadd.f32 %v204, %v1424
  %v1426 = vpop.f32.mrb[0].mxu0
  %v1427 = vpop.f32.mrb[0].mxu0
  %v1428 = vadd.f32 %v204, %v1427
  %v1429 = vpop.f32.mrb[0].mxu0
  %1430 = vmatprep.mubr.bf16.mxu0 %v705
  %1431 = vmatmul.mubr.bf16.gmra.mrb[0].mxu0 %v704
  %v1432 = vpop.f32.mrb[0].mxu0
  %v1433 = vadd.f32 %v204, %v1432
  %v1434 = vpop.f32.mrb[0].mxu0
  %v1435 = vpop.f32.mrb[0].mxu0
  %v1436 = vadd.f32 %v204, %v1435
  %v1437 = vpop.f32.mrb[0].mxu0
  %1438 = vmatprep.mubr.bf16.mxu0 %v707
  %1439 = vmatmul.mubr.bf16.gmra.mrb[0].mxu0 %v706
  %v1440 = vpop.f32.mrb[0].mxu0
  %v1441 = vadd.f32 %v204, %v1440
  %v1442 = vpop.f32.mrb[0].mxu0
  %v1443 = vpop.f32.mrb[0].mxu0
  %v1444 = vadd.f32 %v204, %v1443
  %v1445 = vpop.f32.mrb[0].mxu0
  %1446 = vmatprep.mubr.bf16.mxu0 %v709
  %1447 = vmatmul.mubr.bf16.gmra.mrb[0].mxu0 %v708
  %v1448 = vpop.f32.mrb[0].mxu0
  %v1449 = vadd.f32 %v204, %v1448
  %v1450 = vpop.f32.mrb[0].mxu0
  %v1451 = vpop.f32.mrb[0].mxu0
  %v1452 = vadd.f32 %v204, %v1451
  %v1453 = vpop.f32.mrb[0].mxu0
  %1454 = vmatprep.mubr.bf16.mxu0 %v711
  %1455 = vmatmul.mubr.bf16.gmra.mrb[0].mxu0 %v710
  %v1456 = vpop.f32.mrb[0].mxu0
  %v1457 = vadd.f32 %v204, %v1456
  %v1458 = vpop.f32.mrb[0].mxu0
  %v1459 = vpop.f32.mrb[0].mxu0
  %v1460 = vadd.f32 %v204, %v1459
  %v1461 = vpop.f32.mrb[0].mxu0
  %1462 = vmatprep.mubr.bf16.mxu0 %v713
  %1463 = vmatmul.mubr.bf16.gmra.mrb[0].mxu0 %v712
  %v1464 = vpop.f32.mrb[0].mxu0
  %v1465 = vadd.f32 %v204, %v1464
  %v1466 = vpop.f32.mrb[0].mxu0
  %v1467 = vpop.f32.mrb[0].mxu0
  %v1468 = vadd.f32 %v204, %v1467
  %v1469 = vpop.f32.mrb[0].mxu0
  %1470 = vmatprep.mubr.bf16.mxu0 %v715
  %1471 = vmatmul.mubr.bf16.gmra.mrb[0].mxu0 %v714
  %v1472 = vpop.f32.mrb[0].mxu0
  %v1473 = vadd.f32 %v204, %v1472
  %v1474 = vpop.f32.mrb[0].mxu0
  %v1475 = vpop.f32.mrb[0].mxu0
  %v1476 = vadd.f32 %v204, %v1475
  %v1477 = vpop.f32.mrb[0].mxu0
  %1478 = vmatprep.mubr.bf16.mxu0 %v717
  %1479 = vmatmul.mubr.bf16.gmra.mrb[0].mxu0 %v716
  %v1480 = vpop.f32.mrb[0].mxu0
  %v1481 = vadd.f32 %v204, %v1480
  %v1482 = vpop.f32.mrb[0].mxu0
  %v1483 = vpop.f32.mrb[0].mxu0
  %v1484 = vadd.f32 %v204, %v1483
  %v1485 = vpop.f32.mrb[0].mxu0
  %1486 = vdwg.mxu0
  %v1487 = vmul.f32 %v977, 0.01
  %v1488 = vmul.f32 %v980, 0.01
  %v1489 = vmul.f32 %v985, 0.01
  %v1490 = vmul.f32 %v988, 0.01
  %v1491 = vmul.f32 %v993, 0.01
  %v1492 = vmul.f32 %v996, 0.01
  %v1493 = vmul.f32 %v1001, 0.01
  %v1494 = vmul.f32 %v1004, 0.01
  %v1495 = vmul.f32 %v1009, 0.01
  %v1496 = vmul.f32 %v1012, 0.01
  %v1497 = vmul.f32 %v1017, 0.01
  %v1498 = vmul.f32 %v1020, 0.01
  %v1499 = vmul.f32 %v1025, 0.01
  %v1500 = vmul.f32 %v1028, 0.01
  %v1501 = vmul.f32 %v1033, 0.01
  %v1502 = vmul.f32 %v1036, 0.01
  %v1503 = vmul.f32 %v1041, 0.01
  %v1504 = vmul.f32 %v1044, 0.01
  %v1505 = vmul.f32 %v1049, 0.01
  %v1506 = vmul.f32 %v1052, 0.01
  %v1507 = vmul.f32 %v1057, 0.01
  %v1508 = vmul.f32 %v1060, 0.01
  %v1509 = vmul.f32 %v1065, 0.01
  %v1510 = vmul.f32 %v1068, 0.01
  %v1511 = vmul.f32 %v1073, 0.01
  %v1512 = vmul.f32 %v1076, 0.01
  %v1513 = vmul.f32 %v1081, 0.01
  %v1514 = vmul.f32 %v1084, 0.01
  %v1515 = vmul.f32 %v1089, 0.01
  %v1516 = vmul.f32 %v1092, 0.01
  %v1517 = vmul.f32 %v1097, 0.01
  %v1518 = vmul.f32 %v1100, 0.01
  %v1519 = vmul.f32 %v1105, 0.01
  %v1520 = vmul.f32 %v1108, 0.01
  %v1521 = vmul.f32 %v1113, 0.01
  %v1522 = vmul.f32 %v1116, 0.01
  %v1523 = vmul.f32 %v1121, 0.01
  %v1524 = vmul.f32 %v1124, 0.01
  %v1525 = vmul.f32 %v1129, 0.01
  %v1526 = vmul.f32 %v1132, 0.01
  %v1527 = vmul.f32 %v1137, 0.01
  %v1528 = vmul.f32 %v1140, 0.01
  %v1529 = vmul.f32 %v1145, 0.01
  %v1530 = vmul.f32 %v1148, 0.01
  %v1531 = vmul.f32 %v1153, 0.01
  %v1532 = vmul.f32 %v1156, 0.01
  %v1533 = vmul.f32 %v1161, 0.01
  %v1534 = vmul.f32 %v1164, 0.01
  %v1535 = vmul.f32 %v1169, 0.01
  %v1536 = vmul.f32 %v1172, 0.01
  %v1537 = vmul.f32 %v1177, 0.01
  %v1538 = vmul.f32 %v1180, 0.01
  %v1539 = vmul.f32 %v1185, 0.01
  %v1540 = vmul.f32 %v1188, 0.01
  %v1541 = vmul.f32 %v1193, 0.01
  %v1542 = vmul.f32 %v1196, 0.01
  %v1543 = vmul.f32 %v1201, 0.01
  %v1544 = vmul.f32 %v1204, 0.01
  %v1545 = vmul.f32 %v1209, 0.01
  %v1546 = vmul.f32 %v1212, 0.01
  %v1547 = vmul.f32 %v1217, 0.01
  %v1548 = vmul.f32 %v1220, 0.01
  %v1549 = vmul.f32 %v1225, 0.01
  %v1550 = vmul.f32 %v1228, 0.01
  %v1551 = vmul.f32 %v1233, 0.01
  %v1552 = vmul.f32 %v1236, 0.01
  %v1553 = vmul.f32 %v1241, 0.01
  %v1554 = vmul.f32 %v1244, 0.01
  %v1555 = vmul.f32 %v1249, 0.01
  %v1556 = vmul.f32 %v1252, 0.01
  %v1557 = vmul.f32 %v1257, 0.01
  %v1558 = vmul.f32 %v1260, 0.01
  %v1559 = vmul.f32 %v1265, 0.01
  %v1560 = vmul.f32 %v1268, 0.01
  %v1561 = vmul.f32 %v1273, 0.01
  %v1562 = vmul.f32 %v1276, 0.01
  %v1563 = vmul.f32 %v1281, 0.01
  %v1564 = vmul.f32 %v1284, 0.01
  %v1565 = vmul.f32 %v1289, 0.01
  %v1566 = vmul.f32 %v1292, 0.01
  %v1567 = vmul.f32 %v1297, 0.01
  %v1568 = vmul.f32 %v1300, 0.01
  %v1569 = vmul.f32 %v1305, 0.01
  %v1570 = vmul.f32 %v1308, 0.01
  %v1571 = vmul.f32 %v1313, 0.01
  %v1572 = vmul.f32 %v1316, 0.01
  %v1573 = vmul.f32 %v1321, 0.01
  %v1574 = vmul.f32 %v1324, 0.01
  %v1575 = vmul.f32 %v1329, 0.01
  %v1576 = vmul.f32 %v1332, 0.01
  %v1577 = vmul.f32 %v1337, 0.01
  %v1578 = vmul.f32 %v1340, 0.01
  %v1579 = vmul.f32 %v1345, 0.01
  %v1580 = vmul.f32 %v1348, 0.01
  %v1581 = vmul.f32 %v1353, 0.01
  %v1582 = vmul.f32 %v1356, 0.01
  %v1583 = vmul.f32 %v1361, 0.01
  %v1584 = vmul.f32 %v1364, 0.01
  %v1585 = vmul.f32 %v1369, 0.01
  %v1586 = vmul.f32 %v1372, 0.01
  %v1587 = vmul.f32 %v1377, 0.01
  %v1588 = vmul.f32 %v1380, 0.01
  %v1589 = vmul.f32 %v1385, 0.01
  %v1590 = vmul.f32 %v1388, 0.01
  %v1591 = vmul.f32 %v1393, 0.01
  %v1592 = vmul.f32 %v1396, 0.01
  %v1593 = vmul.f32 %v1401, 0.01
  %v1594 = vmul.f32 %v1404, 0.01
  %v1595 = vmul.f32 %v1409, 0.01
  %v1596 = vmul.f32 %v1412, 0.01
  %v1597 = vmul.f32 %v1417, 0.01
  %v1598 = vmul.f32 %v1420, 0.01
  %v1599 = vmul.f32 %v1425, 0.01
  %v1600 = vmul.f32 %v1428, 0.01
  %v1601 = vmul.f32 %v1433, 0.01
  %v1602 = vmul.f32 %v1436, 0.01
  %v1603 = vmul.f32 %v1441, 0.01
  %v1604 = vmul.f32 %v1444, 0.01
  %v1605 = vmul.f32 %v1449, 0.01
  %v1606 = vmul.f32 %v1452, 0.01
  %v1607 = vmul.f32 %v1457, 0.01
  %v1608 = vmul.f32 %v1460, 0.01
  %v1609 = vmul.f32 %v1465, 0.01
  %v1610 = vmul.f32 %v1468, 0.01
  %v1611 = vmul.f32 %v1473, 0.01
  %v1612 = vmul.f32 %v1476, 0.01
  %v1613 = vmul.f32 %v1481, 0.01
  %v1614 = vmul.f32 %v1484, 0.01
  %v1615 = vmax.f32 %v977, %v1487
  %v1616 = vmax.f32 %v980, %v1488
  %v1617 = vmax.f32 %v985, %v1489
  %v1618 = vmax.f32 %v988, %v1490
  %v1619 = vmax.f32 %v993, %v1491
  %v1620 = vmax.f32 %v996, %v1492
  %v1621 = vmax.f32 %v1001, %v1493
  %v1622 = vmax.f32 %v1004, %v1494
  %v1623 = vmax.f32 %v1009, %v1495
  %v1624 = vmax.f32 %v1012, %v1496
  %v1625 = vmax.f32 %v1017, %v1497
  %v1626 = vmax.f32 %v1020, %v1498
  %v1627 = vmax.f32 %v1025, %v1499
  %v1628 = vmax.f32 %v1028, %v1500
  %v1629 = vmax.f32 %v1033, %v1501
  %v1630 = vmax.f32 %v1036, %v1502
  %v1631 = vmax.f32 %v1041, %v1503
  %v1632 = vmax.f32 %v1044, %v1504
  %v1633 = vmax.f32 %v1049, %v1505
  %v1634 = vmax.f32 %v1052, %v1506
  %v1635 = vmax.f32 %v1057, %v1507
  %v1636 = vmax.f32 %v1060, %v1508
  %v1637 = vmax.f32 %v1065, %v1509
  %v1638 = vmax.f32 %v1068, %v1510
  %v1639 = vmax.f32 %v1073, %v1511
  %v1640 = vmax.f32 %v1076, %v1512
  %v1641 = vmax.f32 %v1081, %v1513
  %v1642 = vmax.f32 %v1084, %v1514
  %v1643 = vmax.f32 %v1089, %v1515
  %v1644 = vmax.f32 %v1092, %v1516
  %v1645 = vmax.f32 %v1097, %v1517
  %v1646 = vmax.f32 %v1100, %v1518
  %v1647 = vmax.f32 %v1105, %v1519
  %v1648 = vmax.f32 %v1108, %v1520
  %v1649 = vmax.f32 %v1113, %v1521
  %v1650 = vmax.f32 %v1116, %v1522
  %v1651 = vmax.f32 %v1121, %v1523
  %v1652 = vmax.f32 %v1124, %v1524
  %v1653 = vmax.f32 %v1129, %v1525
  %v1654 = vmax.f32 %v1132, %v1526
  %v1655 = vmax.f32 %v1137, %v1527
  %v1656 = vmax.f32 %v1140, %v1528
  %v1657 = vmax.f32 %v1145, %v1529
  %v1658 = vmax.f32 %v1148, %v1530
  %v1659 = vmax.f32 %v1153, %v1531
  %v1660 = vmax.f32 %v1156, %v1532
  %v1661 = vmax.f32 %v1161, %v1533
  %v1662 = vmax.f32 %v1164, %v1534
  %v1663 = vmax.f32 %v1169, %v1535
  %v1664 = vmax.f32 %v1172, %v1536
  %v1665 = vmax.f32 %v1177, %v1537
  %v1666 = vmax.f32 %v1180, %v1538
  %v1667 = vmax.f32 %v1185, %v1539
  %v1668 = vmax.f32 %v1188, %v1540
  %v1669 = vmax.f32 %v1193, %v1541
  %v1670 = vmax.f32 %v1196, %v1542
  %v1671 = vmax.f32 %v1201, %v1543
  %v1672 = vmax.f32 %v1204, %v1544
  %v1673 = vmax.f32 %v1209, %v1545
  %v1674 = vmax.f32 %v1212, %v1546
  %v1675 = vmax.f32 %v1217, %v1547
  %v1676 = vmax.f32 %v1220, %v1548
  %v1677 = vmax.f32 %v1225, %v1549
  %v1678 = vmax.f32 %v1228, %v1550
  %v1679 = vmax.f32 %v1233, %v1551
  %v1680 = vmax.f32 %v1236, %v1552
  %v1681 = vmax.f32 %v1241, %v1553
  %v1682 = vmax.f32 %v1244, %v1554
  %v1683 = vmax.f32 %v1249, %v1555
  %v1684 = vmax.f32 %v1252, %v1556
  %v1685 = vmax.f32 %v1257, %v1557
  %v1686 = vmax.f32 %v1260, %v1558
  %v1687 = vmax.f32 %v1265, %v1559
  %v1688 = vmax.f32 %v1268, %v1560
  %v1689 = vmax.f32 %v1273, %v1561
  %v1690 = vmax.f32 %v1276, %v1562
  %v1691 = vmax.f32 %v1281, %v1563
  %v1692 = vmax.f32 %v1284, %v1564
  %v1693 = vmax.f32 %v1289, %v1565
  %v1694 = vmax.f32 %v1292, %v1566
  %v1695 = vmax.f32 %v1297, %v1567
  %v1696 = vmax.f32 %v1300, %v1568
  %v1697 = vmax.f32 %v1305, %v1569
  %v1698 = vmax.f32 %v1308, %v1570
  %v1699 = vmax.f32 %v1313, %v1571
  %v1700 = vmax.f32 %v1316, %v1572
  %v1701 = vmax.f32 %v1321, %v1573
  %v1702 = vmax.f32 %v1324, %v1574
  %v1703 = vmax.f32 %v1329, %v1575
  %v1704 = vmax.f32 %v1332, %v1576
  %v1705 = vmax.f32 %v1337, %v1577
  %v1706 = vmax.f32 %v1340, %v1578
  %v1707 = vmax.f32 %v1345, %v1579
  %v1708 = vmax.f32 %v1348, %v1580
  %v1709 = vmax.f32 %v1353, %v1581
  %v1710 = vmax.f32 %v1356, %v1582
  %v1711 = vmax.f32 %v1361, %v1583
  %v1712 = vmax.f32 %v1364, %v1584
  %v1713 = vmax.f32 %v1369, %v1585
  %v1714 = vmax.f32 %v1372, %v1586
  %v1715 = vmax.f32 %v1377, %v1587
  %v1716 = vmax.f32 %v1380, %v1588
  %v1717 = vmax.f32 %v1385, %v1589
  %v1718 = vmax.f32 %v1388, %v1590
  %v1719 = vmax.f32 %v1393, %v1591
  %v1720 = vmax.f32 %v1396, %v1592
  %v1721 = vmax.f32 %v1401, %v1593
  %v1722 = vmax.f32 %v1404, %v1594
  %v1723 = vmax.f32 %v1409, %v1595
  %v1724 = vmax.f32 %v1412, %v1596
  %v1725 = vmax.f32 %v1417, %v1597
  %v1726 = vmax.f32 %v1420, %v1598
  %v1727 = vmax.f32 %v1425, %v1599
  %v1728 = vmax.f32 %v1428, %v1600
  %v1729 = vmax.f32 %v1433, %v1601
  %v1730 = vmax.f32 %v1436, %v1602
  %v1731 = vmax.f32 %v1441, %v1603
  %v1732 = vmax.f32 %v1444, %v1604
  %v1733 = vmax.f32 %v1449, %v1605
  %v1734 = vmax.f32 %v1452, %v1606
  %v1735 = vmax.f32 %v1457, %v1607
  %v1736 = vmax.f32 %v1460, %v1608
  %v1737 = vmax.f32 %v1465, %v1609
  %v1738 = vmax.f32 %v1468, %v1610
  %v1739 = vmax.f32 %v1473, %v1611
  %v1740 = vmax.f32 %v1476, %v1612
  %v1741 = vmax.f32 %v1481, %v1613
  %v1742 = vmax.f32 %v1484, %v1614
  %v1743 = vpack.c.bf16 %v1616, %v1615
  %v1744 = vpack.c.bf16 %v1618, %v1617
  %v1745 = vpack.c.bf16 %v1620, %v1619
  %v1746 = vpack.c.bf16 %v1622, %v1621
  %v1747 = vpack.c.bf16 %v1624, %v1623
  %v1748 = vpack.c.bf16 %v1626, %v1625
  %v1749 = vpack.c.bf16 %v1628, %v1627
  %v1750 = vpack.c.bf16 %v1630, %v1629
  %v1751 = vpack.c.bf16 %v1632, %v1631
  %v1752 = vpack.c.bf16 %v1634, %v1633
  %v1753 = vpack.c.bf16 %v1636, %v1635
  %v1754 = vpack.c.bf16 %v1638, %v1637
  %v1755 = vpack.c.bf16 %v1640, %v1639
  %v1756 = vpack.c.bf16 %v1642, %v1641
  %v1757 = vpack.c.bf16 %v1644, %v1643
  %v1758 = vpack.c.bf16 %v1646, %v1645
  %v1759 = vpack.c.bf16 %v1648, %v1647
  %v1760 = vpack.c.bf16 %v1650, %v1649
  %v1761 = vpack.c.bf16 %v1652, %v1651
  %v1762 = vpack.c.bf16 %v1654, %v1653
  %v1763 = vpack.c.bf16 %v1656, %v1655
  %v1764 = vpack.c.bf16 %v1658, %v1657
  %v1765 = vpack.c.bf16 %v1660, %v1659
  %v1766 = vpack.c.bf16 %v1662, %v1661
  %v1767 = vpack.c.bf16 %v1664, %v1663
  %v1768 = vpack.c.bf16 %v1666, %v1665
  %v1769 = vpack.c.bf16 %v1668, %v1667
  %v1770 = vpack.c.bf16 %v1670, %v1669
  %v1771 = vpack.c.bf16 %v1672, %v1671
  %v1772 = vpack.c.bf16 %v1674, %v1673
  %v1773 = vpack.c.bf16 %v1676, %v1675
  %v1774 = vpack.c.bf16 %v1678, %v1677
  %v1775 = vpack.c.bf16 %v1680, %v1679
  %v1776 = vpack.c.bf16 %v1682, %v1681
  %v1777 = vpack.c.bf16 %v1684, %v1683
  %v1778 = vpack.c.bf16 %v1686, %v1685
  %v1779 = vpack.c.bf16 %v1688, %v1687
  %v1780 = vpack.c.bf16 %v1690, %v1689
  %v1781 = vpack.c.bf16 %v1692, %v1691
  %v1782 = vpack.c.bf16 %v1694, %v1693
  %v1783 = vpack.c.bf16 %v1696, %v1695
  %v1784 = vpack.c.bf16 %v1698, %v1697
  %v1785 = vpack.c.bf16 %v1700, %v1699
  %v1786 = vpack.c.bf16 %v1702, %v1701
  %v1787 = vpack.c.bf16 %v1704, %v1703
  %v1788 = vpack.c.bf16 %v1706, %v1705
  %v1789 = vpack.c.bf16 %v1708, %v1707
  %v1790 = vpack.c.bf16 %v1710, %v1709
  %v1791 = vpack.c.bf16 %v1712, %v1711
  %v1792 = vpack.c.bf16 %v1714, %v1713
  %v1793 = vpack.c.bf16 %v1716, %v1715
  %v1794 = vpack.c.bf16 %v1718, %v1717
  %v1795 = vpack.c.bf16 %v1720, %v1719
  %v1796 = vpack.c.bf16 %v1722, %v1721
  %v1797 = vpack.c.bf16 %v1724, %v1723
  %v1798 = vpack.c.bf16 %v1726, %v1725
  %v1799 = vpack.c.bf16 %v1728, %v1727
  %v1800 = vpack.c.bf16 %v1730, %v1729
  %v1801 = vpack.c.bf16 %v1732, %v1731
  %v1802 = vpack.c.bf16 %v1734, %v1733
  %v1803 = vpack.c.bf16 %v1736, %v1735
  %v1804 = vpack.c.bf16 %v1738, %v1737
  %v1805 = vpack.c.bf16 %v1740, %v1739
  %v1806 = vpack.c.bf16 %v1742, %v1741
  %1807 = vst [vmem:[#allocation2] sm:$0xff] %v1743
  %1808 = vst [vmem:[#allocation2 + $0x80] sm:$0xff] %v1745
  %1809 = vst [vmem:[#allocation2 + $0x100] sm:$0xff] %v1747
  %1810 = vst [vmem:[#allocation2 + $0x180] sm:$0xff] %v1759
  %1811 = vst [vmem:[#allocation2 + $0x200] sm:$0xff] %v1761
  %1812 = vst [vmem:[#allocation2 + $0x280] sm:$0xff] %v1763
  %1813 = vst [vmem:[#allocation2 + $0x300] sm:$0xff] %v1775
  %1814 = vst [vmem:[#allocation2 + $0x380] sm:$0xff] %v1777
  %1815 = vst [vmem:[#allocation2 + $0x400] sm:$0xff] %v1779
  %1816 = vst [vmem:[#allocation2 + $0x8] sm:$0xff] %v1744
  %1817 = vst [vmem:[#allocation2 + $0x88] sm:$0xff] %v1746
  %1818 = vst [vmem:[#allocation2 + $0x108] sm:$0xff] %v1748
  %1819 = vst [vmem:[#allocation2 + $0x188] sm:$0xff] %v1760
  %1820 = vst [vmem:[#allocation2 + $0x208] sm:$0xff] %v1762
  %1821 = vst [vmem:[#allocation2 + $0x288] sm:$0xff] %v1764
  %1822 = vst [vmem:[#allocation2 + $0x308] sm:$0xff] %v1776
  %1823 = vst [vmem:[#allocation2 + $0x388] sm:$0xff] %v1778
  %1824 = vst [vmem:[#allocation2 + $0x408] sm:$0xff] %v1780
  %1825 = vst [vmem:[#allocation2 + $0x10] sm:$0xff] %v1745
  %1826 = vst [vmem:[#allocation2 + $0x90] sm:$0xff] %v1747
  %1827 = vst [vmem:[#allocation2 + $0x110] sm:$0xff] %v1749
  %1828 = vst [vmem:[#allocation2 + $0x190] sm:$0xff] %v1761
  %1829 = vst [vmem:[#allocation2 + $0x210] sm:$0xff] %v1763
  %1830 = vst [vmem:[#allocation2 + $0x290] sm:$0xff] %v1765
  %1831 = vst [vmem:[#allocation2 + $0x310] sm:$0xff] %v1777
  %1832 = vst [vmem:[#allocation2 + $0x390] sm:$0xff] %v1779
  %1833 = vst [vmem:[#allocation2 + $0x410] sm:$0xff] %v1781
  %1834 = vst [vmem:[#allocation2 + $0x18] sm:$0xff] %v1746
  %1835 = vst [vmem:[#allocation2 + $0x98] sm:$0xff] %v1748
  %1836 = vst [vmem:[#allocation2 + $0x118] sm:$0xff] %v1750
  %1837 = vst [vmem:[#allocation2 + $0x198] sm:$0xff] %v1762
  %1838 = vst [vmem:[#allocation2 + $0x218] sm:$0xff] %v1764
  %1839 = vst [vmem:[#allocation2 + $0x298] sm:$0xff] %v1766
  %1840 = vst [vmem:[#allocation2 + $0x318] sm:$0xff] %v1778
  %1841 = vst [vmem:[#allocation2 + $0x398] sm:$0xff] %v1780
  %1842 = vst [vmem:[#allocation2 + $0x418] sm:$0xff] %v1782
  %1843 = vst [vmem:[#allocation2 + $0x20] sm:$0xff] %v1751
  %1844 = vst [vmem:[#allocation2 + $0xa0] sm:$0xff] %v1753
  %1845 = vst [vmem:[#allocation2 + $0x120] sm:$0xff] %v1755
  %1846 = vst [vmem:[#allocation2 + $0x1a0] sm:$0xff] %v1767
  %1847 = vst [vmem:[#allocation2 + $0x220] sm:$0xff] %v1769
  %1848 = vst [vmem:[#allocation2 + $0x2a0] sm:$0xff] %v1771
  %1849 = vst [vmem:[#allocation2 + $0x320] sm:$0xff] %v1783
  %1850 = vst [vmem:[#allocation2 + $0x3a0] sm:$0xff] %v1785
  %1851 = vst [vmem:[#allocation2 + $0x420] sm:$0xff] %v1787
  %1852 = vst [vmem:[#allocation2 + $0x28] sm:$0xff] %v1752
  %1853 = vst [vmem:[#allocation2 + $0xa8] sm:$0xff] %v1754
  %1854 = vst [vmem:[#allocation2 + $0x128] sm:$0xff] %v1756
  %1855 = vst [vmem:[#allocation2 + $0x1a8] sm:$0xff] %v1768
  %1856 = vst [vmem:[#allocation2 + $0x228] sm:$0xff] %v1770
  %1857 = vst [vmem:[#allocation2 + $0x2a8] sm:$0xff] %v1772
  %1858 = vst [vmem:[#allocation2 + $0x328] sm:$0xff] %v1784
  %1859 = vst [vmem:[#allocation2 + $0x3a8] sm:$0xff] %v1786
  %1860 = vst [vmem:[#allocation2 + $0x428] sm:$0xff] %v1788
  %1861 = vst [vmem:[#allocation2 + $0x30] sm:$0xff] %v1753
  %1862 = vst [vmem:[#allocation2 + $0xb0] sm:$0xff] %v1755
  %1863 = vst [vmem:[#allocation2 + $0x130] sm:$0xff] %v1757
  %1864 = vst [vmem:[#allocation2 + $0x1b0] sm:$0xff] %v1769
  %1865 = vst [vmem:[#allocation2 + $0x230] sm:$0xff] %v1771
  %1866 = vst [vmem:[#allocation2 + $0x2b0] sm:$0xff] %v1773
  %1867 = vst [vmem:[#allocation2 + $0x330] sm:$0xff] %v1785
  %1868 = vst [vmem:[#allocation2 + $0x3b0] sm:$0xff] %v1787
  %1869 = vst [vmem:[#allocation2 + $0x430] sm:$0xff] %v1789
  %1870 = vst [vmem:[#allocation2 + $0x38] sm:$0xff] %v1754
  %1871 = vst [vmem:[#allocation2 + $0xb8] sm:$0xff] %v1756
  %1872 = vst [vmem:[#allocation2 + $0x138] sm:$0xff] %v1758
  %1873 = vst [vmem:[#allocation2 + $0x1b8] sm:$0xff] %v1770
  %1874 = vst [vmem:[#allocation2 + $0x238] sm:$0xff] %v1772
  %1875 = vst [vmem:[#allocation2 + $0x2b8] sm:$0xff] %v1774
  %1876 = vst [vmem:[#allocation2 + $0x338] sm:$0xff] %v1786
  %1877 = vst [vmem:[#allocation2 + $0x3b8] sm:$0xff] %v1788
  %1878 = vst [vmem:[#allocation2 + $0x438] sm:$0xff] %v1790
  %1879 = vst [vmem:[#allocation2 + $0x40] sm:$0xff] %v1759
  %1880 = vst [vmem:[#allocation2 + $0xc0] sm:$0xff] %v1761
  %1881 = vst [vmem:[#allocation2 + $0x140] sm:$0xff] %v1763
  %1882 = vst [vmem:[#allocation2 + $0x1c0] sm:$0xff] %v1775
  %1883 = vst [vmem:[#allocation2 + $0x240] sm:$0xff] %v1777
  %1884 = vst [vmem:[#allocation2 + $0x2c0] sm:$0xff] %v1779
  %1885 = vst [vmem:[#allocation2 + $0x340] sm:$0xff] %v1791
  %1886 = vst [vmem:[#allocation2 + $0x3c0] sm:$0xff] %v1793
  %1887 = vst [vmem:[#allocation2 + $0x440] sm:$0xff] %v1795
  %1888 = vst [vmem:[#allocation2 + $0x48] sm:$0xff] %v1760
  %1889 = vst [vmem:[#allocation2 + $0xc8] sm:$0xff] %v1762
  %1890 = vst [vmem:[#allocation2 + $0x148] sm:$0xff] %v1764
  %1891 = vst [vmem:[#allocation2 + $0x1c8] sm:$0xff] %v1776
  %1892 = vst [vmem:[#allocation2 + $0x248] sm:$0xff] %v1778
  %1893 = vst [vmem:[#allocation2 + $0x2c8] sm:$0xff] %v1780
  %1894 = vst [vmem:[#allocation2 + $0x348] sm:$0xff] %v1792
  %1895 = vst [vmem:[#allocation2 + $0x3c8] sm:$0xff] %v1794
  %1896 = vst [vmem:[#allocation2 + $0x448] sm:$0xff] %v1796
  %1897 = vst [vmem:[#allocation2 + $0x50] sm:$0xff] %v1761
  %1898 = vst [vmem:[#allocation2 + $0xd0] sm:$0xff] %v1763
  %1899 = vst [vmem:[#allocation2 + $0x150] sm:$0xff] %v1765
  %1900 = vst [vmem:[#allocation2 + $0x1d0] sm:$0xff] %v1777
  %1901 = vst [vmem:[#allocation2 + $0x250] sm:$0xff] %v1779
  %1902 = vst [vmem:[#allocation2 + $0x2d0] sm:$0xff] %v1781
  %1903 = vst [vmem:[#allocation2 + $0x350] sm:$0xff] %v1793
  %1904 = vst [vmem:[#allocation2 + $0x3d0] sm:$0xff] %v1795
  %1905 = vst [vmem:[#allocation2 + $0x450] sm:$0xff] %v1797
  %1906 = vst [vmem:[#allocation2 + $0x58] sm:$0xff] %v1762
  %1907 = vst [vmem:[#allocation2 + $0xd8] sm:$0xff] %v1764
  %1908 = vst [vmem:[#allocation2 + $0x158] sm:$0xff] %v1766
  %1909 = vst [vmem:[#allocation2 + $0x1d8] sm:$0xff] %v1778
  %1910 = vst [vmem:[#allocation2 + $0x258] sm:$0xff] %v1780
  %1911 = vst [vmem:[#allocation2 + $0x2d8] sm:$0xff] %v1782
  %1912 = vst [vmem:[#allocation2 + $0x358] sm:$0xff] %v1794
  %1913 = vst [vmem:[#allocation2 + $0x3d8] sm:$0xff] %v1796
  %1914 = vst [vmem:[#allocation2 + $0x458] sm:$0xff] %v1798
  %1915 = vst [vmem:[#allocation2 + $0x60] sm:$0xff] %v1767
  %1916 = vst [vmem:[#allocation2 + $0xe0] sm:$0xff] %v1769
  %1917 = vst [vmem:[#allocation2 + $0x160] sm:$0xff] %v1771
  %1918 = vst [vmem:[#allocation2 + $0x1e0] sm:$0xff] %v1783
  %1919 = vst [vmem:[#allocation2 + $0x260] sm:$0xff] %v1785
  %1920 = vst [vmem:[#allocation2 + $0x2e0] sm:$0xff] %v1787
  %1921 = vst [vmem:[#allocation2 + $0x360] sm:$0xff] %v1799
  %1922 = vst [vmem:[#allocation2 + $0x3e0] sm:$0xff] %v1801
  %1923 = vst [vmem:[#allocation2 + $0x460] sm:$0xff] %v1803
  %1924 = vst [vmem:[#allocation2 + $0x68] sm:$0xff] %v1768
  %1925 = vst [vmem:[#allocation2 + $0xe8] sm:$0xff] %v1770
  %1926 = vst [vmem:[#allocation2 + $0x168] sm:$0xff] %v1772
  %1927 = vst [vmem:[#allocation2 + $0x1e8] sm:$0xff] %v1784
  %1928 = vst [vmem:[#allocation2 + $0x268] sm:$0xff] %v1786
  %1929 = vst [vmem:[#allocation2 + $0x2e8] sm:$0xff] %v1788
  %1930 = vst [vmem:[#allocation2 + $0x368] sm:$0xff] %v1800
  %1931 = vst [vmem:[#allocation2 + $0x3e8] sm:$0xff] %v1802
  %1932 = vst [vmem:[#allocation2 + $0x468] sm:$0xff] %v1804
  %1933 = vst [vmem:[#allocation2 + $0x70] sm:$0xff] %v1769
  %1934 = vst [vmem:[#allocation2 + $0xf0] sm:$0xff] %v1771
  %1935 = vst [vmem:[#allocation2 + $0x170] sm:$0xff] %v1773
  %1936 = vst [vmem:[#allocation2 + $0x1f0] sm:$0xff] %v1785
  %1937 = vst [vmem:[#allocation2 + $0x270] sm:$0xff] %v1787
  %1938 = vst [vmem:[#allocation2 + $0x2f0] sm:$0xff] %v1789
  %1939 = vst [vmem:[#allocation2 + $0x370] sm:$0xff] %v1801
  %1940 = vst [vmem:[#allocation2 + $0x3f0] sm:$0xff] %v1803
  %1941 = vst [vmem:[#allocation2 + $0x470] sm:$0xff] %v1805
  %1942 = vst [vmem:[#allocation2 + $0x78] sm:$0xff] %v1770
  %1943 = vst [vmem:[#allocation2 + $0xf8] sm:$0xff] %v1772
  %1944 = vst [vmem:[#allocation2 + $0x178] sm:$0xff] %v1774
  %1945 = vst [vmem:[#allocation2 + $0x1f8] sm:$0xff] %v1786
  %1946 = vst [vmem:[#allocation2 + $0x278] sm:$0xff] %v1788
  %1947 = vst [vmem:[#allocation2 + $0x2f8] sm:$0xff] %v1790
  %1948 = vst [vmem:[#allocation2 + $0x378] sm:$0xff] %v1802
  %1949 = vst [vmem:[#allocation2 + $0x3f8] sm:$0xff] %v1804
  %1950 = vst [vmem:[#allocation2 + $0x478] sm:$0xff] %v1806
  %v1951 = vld [vmem:[#allocation2] sm:$0xff]
  %v1952 = vld [vmem:[#allocation2 + $0x8] sm:$0xff]
  %v1953 = vld [vmem:[#allocation2 + $0x10] sm:$0xff]
  %v1954 = vld [vmem:[#allocation2 + $0x18] sm:$0xff]
  %v1955 = vld [vmem:[#allocation2 + $0x20] sm:$0xff]
  %v1956 = vld [vmem:[#allocation2 + $0x28] sm:$0xff]
  %v1957 = vld [vmem:[#allocation2 + $0x30] sm:$0xff]
  %v1958 = vld [vmem:[#allocation2 + $0x38] sm:$0xff]
  %v1959 = vld [vmem:[#allocation2 + $0x40] sm:$0xff]
  %v1960 = vld [vmem:[#allocation2 + $0x48] sm:$0xff]
  %v1961 = vld [vmem:[#allocation2 + $0x50] sm:$0xff]
  %v1962 = vld [vmem:[#allocation2 + $0x58] sm:$0xff]
  %v1963 = vld [vmem:[#allocation2 + $0x60] sm:$0xff]
  %v1964 = vld [vmem:[#allocation2 + $0x68] sm:$0xff]
  %v1965 = vld [vmem:[#allocation2 + $0x70] sm:$0xff]
  %v1966 = vld [vmem:[#allocation2 + $0x78] sm:$0xff]
  %v1967 = vld [vmem:[#allocation2 + $0x80] sm:$0xff]
  %v1968 = vld [vmem:[#allocation2 + $0x88] sm:$0xff]
  %v1969 = vld [vmem:[#allocation2 + $0x90] sm:$0xff]
  %v1970 = vld [vmem:[#allocation2 + $0x98] sm:$0xff]
  %v1971 = vld [vmem:[#allocation2 + $0xa0] sm:$0xff]
  %v1972 = vld [vmem:[#allocation2 + $0xa8] sm:$0xff]
  %v1973 = vld [vmem:[#allocation2 + $0xb0] sm:$0xff]
  %v1974 = vld [vmem:[#allocation2 + $0xb8] sm:$0xff]
  %v1975 = vld [vmem:[#allocation2 + $0xc0] sm:$0xff]
  %v1976 = vld [vmem:[#allocation2 + $0xc8] sm:$0xff]
  %v1977 = vld [vmem:[#allocation2 + $0xd0] sm:$0xff]
  %v1978 = vld [vmem:[#allocation2 + $0xd8] sm:$0xff]
  %v1979 = vld [vmem:[#allocation2 + $0xe0] sm:$0xff]
  %v1980 = vld [vmem:[#allocation2 + $0xe8] sm:$0xff]
  %v1981 = vld [vmem:[#allocation2 + $0xf0] sm:$0xff]
  %v1982 = vld [vmem:[#allocation2 + $0xf8] sm:$0xff]
  %v1983 = vld [vmem:[#allocation2 + $0x100] sm:$0xff]
  %v1984 = vld [vmem:[#allocation2 + $0x108] sm:$0xff]
  %v1985 = vld [vmem:[#allocation2 + $0x110] sm:$0xff]
  %v1986 = vld [vmem:[#allocation2 + $0x118] sm:$0xff]
  %v1987 = vld [vmem:[#allocation2 + $0x120] sm:$0xff]
  %v1988 = vld [vmem:[#allocation2 + $0x128] sm:$0xff]
  %v1989 = vld [vmem:[#allocation2 + $0x130] sm:$0xff]
  %v1990 = vld [vmem:[#allocation2 + $0x138] sm:$0xff]
  %v1991 = vld [vmem:[#allocation2 + $0x140] sm:$0xff]
  %v1992 = vld [vmem:[#allocation2 + $0x148] sm:$0xff]
  %v1993 = vld [vmem:[#allocation2 + $0x150] sm:$0xff]
  %v1994 = vld [vmem:[#allocation2 + $0x158] sm:$0xff]
  %v1995 = vld [vmem:[#allocation2 + $0x160] sm:$0xff]
  %v1996 = vld [vmem:[#allocation2 + $0x168] sm:$0xff]
  %v1997 = vld [vmem:[#allocation2 + $0x170] sm:$0xff]
  %v1998 = vld [vmem:[#allocation2 + $0x178] sm:$0xff]
  %v1999 = vld [vmem:[#allocation2 + $0x180] sm:$0xff]
  %v2000 = vld [vmem:[#allocation2 + $0x188] sm:$0xff]
  %v2001 = vld [vmem:[#allocation2 + $0x190] sm:$0xff]
  %v2002 = vld [vmem:[#allocation2 + $0x198] sm:$0xff]
  %v2003 = vld [vmem:[#allocation2 + $0x1a0] sm:$0xff]
  %v2004 = vld [vmem:[#allocation2 + $0x1a8] sm:$0xff]
  %v2005 = vld [vmem:[#allocation2 + $0x1b0] sm:$0xff]
  %v2006 = vld [vmem:[#allocation2 + $0x1b8] sm:$0xff]
  %v2007 = vld [vmem:[#allocation2 + $0x1c0] sm:$0xff]
  %v2008 = vld [vmem:[#allocation2 + $0x1c8] sm:$0xff]
  %v2009 = vld [vmem:[#allocation2 + $0x1d0] sm:$0xff]
  %v2010 = vld [vmem:[#allocation2 + $0x1d8] sm:$0xff]
  %v2011 = vld [vmem:[#allocation2 + $0x1e0] sm:$0xff]
  %v2012 = vld [vmem:[#allocation2 + $0x1e8] sm:$0xff]
  %v2013 = vld [vmem:[#allocation2 + $0x1f0] sm:$0xff]
  %v2014 = vld [vmem:[#allocation2 + $0x1f8] sm:$0xff]
  %v2015 = vld [vmem:[#allocation2 + $0x200] sm:$0xff]
  %v2016 = vld [vmem:[#allocation2 + $0x208] sm:$0xff]
  %v2017 = vld [vmem:[#allocation2 + $0x210] sm:$0xff]
  %v2018 = vld [vmem:[#allocation2 + $0x218] sm:$0xff]
  %v2019 = vld [vmem:[#allocation2 + $0x220] sm:$0xff]
  %v2020 = vld [vmem:[#allocation2 + $0x228] sm:$0xff]
  %v2021 = vld [vmem:[#allocation2 + $0x230] sm:$0xff]
  %v2022 = vld [vmem:[#allocation2 + $0x238] sm:$0xff]
  %v2023 = vld [vmem:[#allocation2 + $0x240] sm:$0xff]
  %v2024 = vld [vmem:[#allocation2 + $0x248] sm:$0xff]
  %v2025 = vld [vmem:[#allocation2 + $0x250] sm:$0xff]
  %v2026 = vld [vmem:[#allocation2 + $0x258] sm:$0xff]
  %v2027 = vld [vmem:[#allocation2 + $0x260] sm:$0xff]
  %v2028 = vld [vmem:[#allocation2 + $0x268] sm:$0xff]
  %v2029 = vld [vmem:[#allocation2 + $0x270] sm:$0xff]
  %v2030 = vld [vmem:[#allocation2 + $0x278] sm:$0xff]
  %v2031 = vld [vmem:[#allocation2 + $0x280] sm:$0xff]
  %v2032 = vld [vmem:[#allocation2 + $0x288] sm:$0xff]
  %v2033 = vld [vmem:[#allocation2 + $0x290] sm:$0xff]
  %v2034 = vld [vmem:[#allocation2 + $0x298] sm:$0xff]
  %v2035 = vld [vmem:[#allocation2 + $0x2a0] sm:$0xff]
  %v2036 = vld [vmem:[#allocation2 + $0x2a8] sm:$0xff]
  %v2037 = vld [vmem:[#allocation2 + $0x2b0] sm:$0xff]
  %v2038 = vld [vmem:[#allocation2 + $0x2b8] sm:$0xff]
  %v2039 = vld [vmem:[#allocation2 + $0x2c0] sm:$0xff]
  %v2040 = vld [vmem:[#allocation2 + $0x2c8] sm:$0xff]
  %v2041 = vld [vmem:[#allocation2 + $0x2d0] sm:$0xff]
  %v2042 = vld [vmem:[#allocation2 + $0x2d8] sm:$0xff]
  %v2043 = vld [vmem:[#allocation2 + $0x2e0] sm:$0xff]
  %v2044 = vld [vmem:[#allocation2 + $0x2e8] sm:$0xff]
  %v2045 = vld [vmem:[#allocation2 + $0x2f0] sm:$0xff]
  %v2046 = vld [vmem:[#allocation2 + $0x2f8] sm:$0xff]
  %v2047 = vld [vmem:[#allocation2 + $0x300] sm:$0xff]
  %v2048 = vld [vmem:[#allocation2 + $0x308] sm:$0xff]
  %v2049 = vld [vmem:[#allocation2 + $0x310] sm:$0xff]
  %v2050 = vld [vmem:[#allocation2 + $0x318] sm:$0xff]
  %v2051 = vld [vmem:[#allocation2 + $0x320] sm:$0xff]
  %v2052 = vld [vmem:[#allocation2 + $0x328] sm:$0xff]
  %v2053 = vld [vmem:[#allocation2 + $0x330] sm:$0xff]
  %v2054 = vld [vmem:[#allocation2 + $0x338] sm:$0xff]
  %v2055 = vld [vmem:[#allocation2 + $0x340] sm:$0xff]
  %v2056 = vld [vmem:[#allocation2 + $0x348] sm:$0xff]
  %v2057 = vld [vmem:[#allocation2 + $0x350] sm:$0xff]
  %v2058 = vld [vmem:[#allocation2 + $0x358] sm:$0xff]
  %v2059 = vld [vmem:[#allocation2 + $0x360] sm:$0xff]
  %v2060 = vld [vmem:[#allocation2 + $0x368] sm:$0xff]
  %v2061 = vld [vmem:[#allocation2 + $0x370] sm:$0xff]
  %v2062 = vld [vmem:[#allocation2 + $0x378] sm:$0xff]
  %v2063 = vld [vmem:[#allocation2 + $0x380] sm:$0xff]
  %v2064 = vld [vmem:[#allocation2 + $0x388] sm:$0xff]
  %v2065 = vld [vmem:[#allocation2 + $0x390] sm:$0xff]
  %v2066 = vld [vmem:[#allocation2 + $0x398] sm:$0xff]
  %v2067 = vld [vmem:[#allocation2 + $0x3a0] sm:$0xff]
  %v2068 = vld [vmem:[#allocation2 + $0x3a8] sm:$0xff]
  %v2069 = vld [vmem:[#allocation2 + $0x3b0] sm:$0xff]
  %v2070 = vld [vmem:[#allocation2 + $0x3b8] sm:$0xff]
  %v2071 = vld [vmem:[#allocation2 + $0x3c0] sm:$0xff]
  %v2072 = vld [vmem:[#allocation2 + $0x3c8] sm:$0xff]
  %v2073 = vld [vmem:[#allocation2 + $0x3d0] sm:$0xff]
  %v2074 = vld [vmem:[#allocation2 + $0x3d8] sm:$0xff]
  %v2075 = vld [vmem:[#allocation2 + $0x3e0] sm:$0xff]
  %v2076 = vld [vmem:[#allocation2 + $0x3e8] sm:$0xff]
  %v2077 = vld [vmem:[#allocation2 + $0x3f0] sm:$0xff]
  %v2078 = vld [vmem:[#allocation2 + $0x3f8] sm:$0xff]
  %v2079 = vld [vmem:[#allocation2 + $0x400] sm:$0xff]
  %v2080 = vld [vmem:[#allocation2 + $0x408] sm:$0xff]
  %v2081 = vld [vmem:[#allocation2 + $0x410] sm:$0xff]
  %v2082 = vld [vmem:[#allocation2 + $0x418] sm:$0xff]
  %v2083 = vld [vmem:[#allocation2 + $0x420] sm:$0xff]
  %v2084 = vld [vmem:[#allocation2 + $0x428] sm:$0xff]
  %v2085 = vld [vmem:[#allocation2 + $0x430] sm:$0xff]
  %v2086 = vld [vmem:[#allocation2 + $0x438] sm:$0xff]
  %v2087 = vld [vmem:[#allocation2 + $0x440] sm:$0xff]
  %v2088 = vld [vmem:[#allocation2 + $0x448] sm:$0xff]
  %v2089 = vld [vmem:[#allocation2 + $0x450] sm:$0xff]
  %v2090 = vld [vmem:[#allocation2 + $0x458] sm:$0xff]
  %v2091 = vld [vmem:[#allocation2 + $0x460] sm:$0xff]
  %v2092 = vld [vmem:[#allocation2 + $0x468] sm:$0xff]
  %v2093 = vld [vmem:[#allocation2 + $0x470] sm:$0xff]
  %v2094 = vld [vmem:[#allocation2 + $0x478] sm:$0xff]
  %v2095 = vld [vmem:[%s3] sm:$0xf]
  %v2096 = vld [vmem:[%s3 + $0x4] sm:$0xf]
  %v2097 = vld [vmem:[%s3 + $0x8] sm:$0xf]
  %v2098 = vld [vmem:[%s3 + $0xc] sm:$0xf]
  %v2099 = vld [vmem:[%s3 + $0x10] sm:$0xf]
  %v2100 = vld [vmem:[%s3 + $0x14] sm:$0xf]
  %v2101 = vld [vmem:[%s3 + $0x18] sm:$0xf]
  %v2102 = vld [vmem:[%s3 + $0x1c] sm:$0xf]
  %v2103 = vld [vmem:[%s3 + $0x20] sm:$0xf]
  %v2104 = vld [vmem:[%s3 + $0x24] sm:$0xf]
  %v2105 = vld [vmem:[%s3 + $0x28] sm:$0xf]
  %v2106 = vld [vmem:[%s3 + $0x2c] sm:$0xf]
  %v2107 = vld [vmem:[%s3 + $0x30] sm:$0xf]
  %v2108 = vld [vmem:[%s3 + $0x34] sm:$0xf]
  %v2109 = vld [vmem:[%s3 + $0x38] sm:$0xf]
  %v2110 = vld [vmem:[%s3 + $0x3c] sm:$0xf]
  %v2111 = vld [vmem:[%s3 + $0x40] sm:$0xf]
  %v2112 = vld [vmem:[%s3 + $0x44] sm:$0xf]
  %v2113 = vld [vmem:[%s3 + $0x48] sm:$0xf]
  %v2114 = vld [vmem:[%s3 + $0x4c] sm:$0xf]
  %v2115 = vld [vmem:[%s3 + $0x50] sm:$0xf]
  %v2116 = vld [vmem:[%s3 + $0x54] sm:$0xf]
  %v2117 = vld [vmem:[%s3 + $0x58] sm:$0xf]
  %v2118 = vld [vmem:[%s3 + $0x5c] sm:$0xf]
  %v2119 = vld [vmem:[%s3 + $0x60] sm:$0xf]
  %v2120 = vld [vmem:[%s3 + $0x64] sm:$0xf]
  %v2121 = vld [vmem:[%s3 + $0x68] sm:$0xf]
  %v2122 = vld [vmem:[%s3 + $0x6c] sm:$0xf]
  %v2123 = vld [vmem:[%s3 + $0x70] sm:$0xf]
  %v2124 = vld [vmem:[%s3 + $0x74] sm:$0xf]
  %v2125 = vld [vmem:[%s3 + $0x78] sm:$0xf]
  %v2126 = vld [vmem:[%s3 + $0x7c] sm:$0xf]
  %v2127 = vld [vmem:[%s3 + $0x80] sm:$0xf]
  %v2128 = vld [vmem:[%s3 + $0x84] sm:$0xf]
  %v2129 = vld [vmem:[%s3 + $0x88] sm:$0xf]
  %v2130 = vld [vmem:[%s3 + $0x8c] sm:$0xf]
  %v2131 = vld [vmem:[%s3 + $0x90] sm:$0xf]
  %v2132 = vld [vmem:[%s3 + $0x94] sm:$0xf]
  %v2133 = vld [vmem:[%s3 + $0x98] sm:$0xf]
  %v2134 = vld [vmem:[%s3 + $0x9c] sm:$0xf]
  %v2135 = vld [vmem:[%s3 + $0xa0] sm:$0xf]
  %v2136 = vld [vmem:[%s3 + $0xa4] sm:$0xf]
  %v2137 = vld [vmem:[%s3 + $0xa8] sm:$0xf]
  %v2138 = vld [vmem:[%s3 + $0xac] sm:$0xf]
  %v2139 = vld [vmem:[%s3 + $0xb0] sm:$0xf]
  %v2140 = vld [vmem:[%s3 + $0xb4] sm:$0xf]
  %v2141 = vld [vmem:[%s3 + $0xb8] sm:$0xf]
  %v2142 = vld [vmem:[%s3 + $0xbc] sm:$0xf]
  %v2143 = vld [vmem:[%s3 + $0xc0] sm:$0xf]
  %v2144 = vld [vmem:[%s3 + $0xc4] sm:$0xf]
  %v2145 = vld [vmem:[%s3 + $0xc8] sm:$0xf]
  %v2146 = vld [vmem:[%s3 + $0xcc] sm:$0xf]
  %v2147 = vld [vmem:[%s3 + $0xd0] sm:$0xf]
  %v2148 = vld [vmem:[%s3 + $0xd4] sm:$0xf]
  %v2149 = vld [vmem:[%s3 + $0xd8] sm:$0xf]
  %v2150 = vld [vmem:[%s3 + $0xdc] sm:$0xf]
  %v2151 = vld [vmem:[%s3 + $0xe0] sm:$0xf]
  %v2152 = vld [vmem:[%s3 + $0xe4] sm:$0xf]
  %v2153 = vld [vmem:[%s3 + $0xe8] sm:$0xf]
  %v2154 = vld [vmem:[%s3 + $0xec] sm:$0xf]
  %v2155 = vld [vmem:[%s3 + $0xf0] sm:$0xf]
  %v2156 = vld [vmem:[%s3 + $0xf4] sm:$0xf]
  %v2157 = vld [vmem:[%s3 + $0xf8] sm:$0xf]
  %v2158 = vld [vmem:[%s3 + $0xfc] sm:$0xf]
  %v2159 = vld [vmem:[%s3 + $0x100] sm:$0xf]
  %v2160 = vld [vmem:[%s3 + $0x104] sm:$0xf]
  %v2161 = vld [vmem:[%s3 + $0x108] sm:$0xf]
  %v2162 = vld [vmem:[%s3 + $0x10c] sm:$0xf]
  %v2163 = vld [vmem:[%s3 + $0x110] sm:$0xf]
  %v2164 = vld [vmem:[%s3 + $0x114] sm:$0xf]
  %v2165 = vld [vmem:[%s3 + $0x118] sm:$0xf]
  %v2166 = vld [vmem:[%s3 + $0x11c] sm:$0xf]
  %v2167 = vld [vmem:[%s3 + $0x120] sm:$0xf]
  %v2168 = vld [vmem:[%s3 + $0x124] sm:$0xf]
  %v2169 = vld [vmem:[%s3 + $0x128] sm:$0xf]
  %v2170 = vld [vmem:[%s3 + $0x12c] sm:$0xf]
  %v2171 = vld [vmem:[%s3 + $0x130] sm:$0xf]
  %v2172 = vld [vmem:[%s3 + $0x134] sm:$0xf]
  %v2173 = vld [vmem:[%s3 + $0x138] sm:$0xf]
  %v2174 = vld [vmem:[%s3 + $0x13c] sm:$0xf]
  %v2175 = vld [vmem:[%s3 + $0x140] sm:$0xf]
  %v2176 = vld [vmem:[%s3 + $0x144] sm:$0xf]
  %v2177 = vld [vmem:[%s3 + $0x148] sm:$0xf]
  %v2178 = vld [vmem:[%s3 + $0x14c] sm:$0xf]
  %v2179 = vld [vmem:[%s3 + $0x150] sm:$0xf]
  %v2180 = vld [vmem:[%s3 + $0x154] sm:$0xf]
  %v2181 = vld [vmem:[%s3 + $0x158] sm:$0xf]
  %v2182 = vld [vmem:[%s3 + $0x15c] sm:$0xf]
  %v2183 = vld [vmem:[%s3 + $0x160] sm:$0xf]
  %v2184 = vld [vmem:[%s3 + $0x164] sm:$0xf]
  %v2185 = vld [vmem:[%s3 + $0x168] sm:$0xf]
  %v2186 = vld [vmem:[%s3 + $0x16c] sm:$0xf]
  %v2187 = vld [vmem:[%s3 + $0x170] sm:$0xf]
  %v2188 = vld [vmem:[%s3 + $0x174] sm:$0xf]
  %v2189 = vld [vmem:[%s3 + $0x178] sm:$0xf]
  %v2190 = vld [vmem:[%s3 + $0x17c] sm:$0xf]
  %v2191 = vld [vmem:[%s3 + $0x180] sm:$0xf]
  %v2192 = vld [vmem:[%s3 + $0x184] sm:$0xf]
  %v2193 = vld [vmem:[%s3 + $0x188] sm:$0xf]
  %v2194 = vld [vmem:[%s3 + $0x18c] sm:$0xf]
  %v2195 = vld [vmem:[%s3 + $0x190] sm:$0xf]
  %v2196 = vld [vmem:[%s3 + $0x194] sm:$0xf]
  %v2197 = vld [vmem:[%s3 + $0x198] sm:$0xf]
  %v2198 = vld [vmem:[%s3 + $0x19c] sm:$0xf]
  %v2199 = vld [vmem:[%s3 + $0x1a0] sm:$0xf]
  %v2200 = vld [vmem:[%s3 + $0x1a4] sm:$0xf]
  %v2201 = vld [vmem:[%s3 + $0x1a8] sm:$0xf]
  %v2202 = vld [vmem:[%s3 + $0x1ac] sm:$0xf]
  %v2203 = vld [vmem:[%s3 + $0x1b0] sm:$0xf]
  %v2204 = vld [vmem:[%s3 + $0x1b4] sm:$0xf]
  %v2205 = vld [vmem:[%s3 + $0x1b8] sm:$0xf]
  %v2206 = vld [vmem:[%s3 + $0x1bc] sm:$0xf]
  %v2207 = vld [vmem:[%s3 + $0x1c0] sm:$0xf]
  %v2208 = vld [vmem:[%s3 + $0x1c4] sm:$0xf]
  %v2209 = vld [vmem:[%s3 + $0x1c8] sm:$0xf]
  %v2210 = vld [vmem:[%s3 + $0x1cc] sm:$0xf]
  %v2211 = vld [vmem:[%s3 + $0x1d0] sm:$0xf]
  %v2212 = vld [vmem:[%s3 + $0x1d4] sm:$0xf]
  %v2213 = vld [vmem:[%s3 + $0x1d8] sm:$0xf]
  %v2214 = vld [vmem:[%s3 + $0x1dc] sm:$0xf]
  %v2215 = vld [vmem:[%s3 + $0x1e0] sm:$0xf]
  %v2216 = vld [vmem:[%s3 + $0x1e4] sm:$0xf]
  %v2217 = vld [vmem:[%s3 + $0x1e8] sm:$0xf]
  %v2218 = vld [vmem:[%s3 + $0x1ec] sm:$0xf]
  %v2219 = vld [vmem:[%s3 + $0x1f0] sm:$0xf]
  %v2220 = vld [vmem:[%s3 + $0x1f4] sm:$0xf]
  %v2221 = vld [vmem:[%s3 + $0x1f8] sm:$0xf]
  %v2222 = vld [vmem:[%s3 + $0x1fc] sm:$0xf]
  %v2223 = vld [vmem:[%s3 + $0x200] sm:$0xf]
  %v2224 = vld [vmem:[%s3 + $0x204] sm:$0xf]
  %v2225 = vld [vmem:[%s3 + $0x208] sm:$0xf]
  %v2226 = vld [vmem:[%s3 + $0x20c] sm:$0xf]
  %v2227 = vld [vmem:[%s3 + $0x210] sm:$0xf]
  %v2228 = vld [vmem:[%s3 + $0x214] sm:$0xf]
  %v2229 = vld [vmem:[%s3 + $0x218] sm:$0xf]
  %v2230 = vld [vmem:[%s3 + $0x21c] sm:$0xf]
  %v2231 = vld [vmem:[%s3 + $0x220] sm:$0xf]
  %v2232 = vld [vmem:[%s3 + $0x224] sm:$0xf]
  %v2233 = vld [vmem:[%s3 + $0x228] sm:$0xf]
  %v2234 = vld [vmem:[%s3 + $0x22c] sm:$0xf]
  %v2235 = vld [vmem:[%s3 + $0x230] sm:$0xf]
  %v2236 = vld [vmem:[%s3 + $0x234] sm:$0xf]
  %v2237 = vld [vmem:[%s3 + $0x238] sm:$0xf]
  %v2238 = vld [vmem:[%s3 + $0x23c] sm:$0xf]
  %v2239 = vld [vmem:[%s3 + $0x240] sm:$0xf]
  %v2240 = vld [vmem:[%s3 + $0x244] sm:$0xf]
  %v2241 = vld [vmem:[%s3 + $0x248] sm:$0xf]
  %v2242 = vld [vmem:[%s3 + $0x24c] sm:$0xf]
  %v2243 = vld [vmem:[%s3 + $0x250] sm:$0xf]
  %v2244 = vld [vmem:[%s3 + $0x254] sm:$0xf]
  %v2245 = vld [vmem:[%s3 + $0x258] sm:$0xf]
  %v2246 = vld [vmem:[%s3 + $0x25c] sm:$0xf]
  %v2247 = vld [vmem:[%s3 + $0x260] sm:$0xf]
  %v2248 = vld [vmem:[%s3 + $0x264] sm:$0xf]
  %v2249 = vld [vmem:[%s3 + $0x268] sm:$0xf]
  %v2250 = vld [vmem:[%s3 + $0x26c] sm:$0xf]
  %v2251 = vld [vmem:[%s3 + $0x270] sm:$0xf]
  %v2252 = vld [vmem:[%s3 + $0x274] sm:$0xf]
  %v2253 = vld [vmem:[%s3 + $0x278] sm:$0xf]
  %v2254 = vld [vmem:[%s3 + $0x27c] sm:$0xf]
  %v2255 = vld [vmem:[%s3 + $0x280] sm:$0xf]
  %v2256 = vld [vmem:[%s3 + $0x284] sm:$0xf]
  %v2257 = vld [vmem:[%s3 + $0x288] sm:$0xf]
  %v2258 = vld [vmem:[%s3 + $0x28c] sm:$0xf]
  %v2259 = vld [vmem:[%s3 + $0x290] sm:$0xf]
  %v2260 = vld [vmem:[%s3 + $0x294] sm:$0xf]
  %v2261 = vld [vmem:[%s3 + $0x298] sm:$0xf]
  %v2262 = vld [vmem:[%s3 + $0x29c] sm:$0xf]
  %v2263 = vld [vmem:[%s3 + $0x2a0] sm:$0xf]
  %v2264 = vld [vmem:[%s3 + $0x2a4] sm:$0xf]
  %v2265 = vld [vmem:[%s3 + $0x2a8] sm:$0xf]
  %v2266 = vld [vmem:[%s3 + $0x2ac] sm:$0xf]
  %v2267 = vld [vmem:[%s3 + $0x2b0] sm:$0xf]
  %v2268 = vld [vmem:[%s3 + $0x2b4] sm:$0xf]
  %v2269 = vld [vmem:[%s3 + $0x2b8] sm:$0xf]
  %v2270 = vld [vmem:[%s3 + $0x2bc] sm:$0xf]
  %v2271 = vld [vmem:[%s3 + $0x2c0] sm:$0xf]
  %v2272 = vld [vmem:[%s3 + $0x2c4] sm:$0xf]
  %v2273 = vld [vmem:[%s3 + $0x2c8] sm:$0xf]
  %v2274 = vld [vmem:[%s3 + $0x2cc] sm:$0xf]
  %v2275 = vld [vmem:[%s3 + $0x2d0] sm:$0xf]
  %v2276 = vld [vmem:[%s3 + $0x2d4] sm:$0xf]
  %v2277 = vld [vmem:[%s3 + $0x2d8] sm:$0xf]
  %v2278 = vld [vmem:[%s3 + $0x2dc] sm:$0xf]
  %v2279 = vld [vmem:[%s3 + $0x2e0] sm:$0xf]
  %v2280 = vld [vmem:[%s3 + $0x2e4] sm:$0xf]
  %v2281 = vld [vmem:[%s3 + $0x2e8] sm:$0xf]
  %v2282 = vld [vmem:[%s3 + $0x2ec] sm:$0xf]
  %v2283 = vld [vmem:[%s3 + $0x2f0] sm:$0xf]
  %v2284 = vld [vmem:[%s3 + $0x2f4] sm:$0xf]
  %v2285 = vld [vmem:[%s3 + $0x2f8] sm:$0xf]
  %v2286 = vld [vmem:[%s3 + $0x2fc] sm:$0xf]
  %v2287 = vld [vmem:[%s3 + $0x300] sm:$0xf]
  %v2288 = vld [vmem:[%s3 + $0x304] sm:$0xf]
  %v2289 = vld [vmem:[%s3 + $0x308] sm:$0xf]
  %v2290 = vld [vmem:[%s3 + $0x30c] sm:$0xf]
  %v2291 = vld [vmem:[%s3 + $0x310] sm:$0xf]
  %v2292 = vld [vmem:[%s3 + $0x314] sm:$0xf]
  %v2293 = vld [vmem:[%s3 + $0x318] sm:$0xf]
  %v2294 = vld [vmem:[%s3 + $0x31c] sm:$0xf]
  %v2295 = vld [vmem:[%s3 + $0x320] sm:$0xf]
  %v2296 = vld [vmem:[%s3 + $0x324] sm:$0xf]
  %v2297 = vld [vmem:[%s3 + $0x328] sm:$0xf]
  %v2298 = vld [vmem:[%s3 + $0x32c] sm:$0xf]
  %v2299 = vld [vmem:[%s3 + $0x330] sm:$0xf]
  %v2300 = vld [vmem:[%s3 + $0x334] sm:$0xf]
  %v2301 = vld [vmem:[%s3 + $0x338] sm:$0xf]
  %v2302 = vld [vmem:[%s3 + $0x33c] sm:$0xf]
  %v2303 = vld [vmem:[%s3 + $0x340] sm:$0xf]
  %v2304 = vld [vmem:[%s3 + $0x344] sm:$0xf]
  %v2305 = vld [vmem:[%s3 + $0x348] sm:$0xf]
  %v2306 = vld [vmem:[%s3 + $0x34c] sm:$0xf]
  %v2307 = vld [vmem:[%s3 + $0x350] sm:$0xf]
  %v2308 = vld [vmem:[%s3 + $0x354] sm:$0xf]
  %v2309 = vld [vmem:[%s3 + $0x358] sm:$0xf]
  %v2310 = vld [vmem:[%s3 + $0x35c] sm:$0xf]
  %v2311 = vld [vmem:[%s3 + $0x360] sm:$0xf]
  %v2312 = vld [vmem:[%s3 + $0x364] sm:$0xf]
  %v2313 = vld [vmem:[%s3 + $0x368] sm:$0xf]
  %v2314 = vld [vmem:[%s3 + $0x36c] sm:$0xf]
  %v2315 = vld [vmem:[%s3 + $0x370] sm:$0xf]
  %v2316 = vld [vmem:[%s3 + $0x374] sm:$0xf]
  %v2317 = vld [vmem:[%s3 + $0x378] sm:$0xf]
  %v2318 = vld [vmem:[%s3 + $0x37c] sm:$0xf]
  %v2319 = vld [vmem:[%s3 + $0x380] sm:$0xf]
  %v2320 = vld [vmem:[%s3 + $0x384] sm:$0xf]
  %v2321 = vld [vmem:[%s3 + $0x388] sm:$0xf]
  %v2322 = vld [vmem:[%s3 + $0x38c] sm:$0xf]
  %v2323 = vld [vmem:[%s3 + $0x390] sm:$0xf]
  %v2324 = vld [vmem:[%s3 + $0x394] sm:$0xf]
  %v2325 = vld [vmem:[%s3 + $0x398] sm:$0xf]
  %v2326 = vld [vmem:[%s3 + $0x39c] sm:$0xf]
  %v2327 = vld [vmem:[%s3 + $0x3a0] sm:$0xf]
  %v2328 = vld [vmem:[%s3 + $0x3a4] sm:$0xf]
  %v2329 = vld [vmem:[%s3 + $0x3a8] sm:$0xf]
  %v2330 = vld [vmem:[%s3 + $0x3ac] sm:$0xf]
  %v2331 = vld [vmem:[%s3 + $0x3b0] sm:$0xf]
  %v2332 = vld [vmem:[%s3 + $0x3b4] sm:$0xf]
  %v2333 = vld [vmem:[%s3 + $0x3b8] sm:$0xf]
  %v2334 = vld [vmem:[%s3 + $0x3bc] sm:$0xf]
  %v2335 = vld [vmem:[%s3 + $0x3c0] sm:$0xf]
  %v2336 = vld [vmem:[%s3 + $0x3c4] sm:$0xf]
  %v2337 = vld [vmem:[%s3 + $0x3c8] sm:$0xf]
  %v2338 = vld [vmem:[%s3 + $0x3cc] sm:$0xf]
  %v2339 = vld [vmem:[%s3 + $0x3d0] sm:$0xf]
  %v2340 = vld [vmem:[%s3 + $0x3d4] sm:$0xf]
  %v2341 = vld [vmem:[%s3 + $0x3d8] sm:$0xf]
  %v2342 = vld [vmem:[%s3 + $0x3dc] sm:$0xf]
  %v2343 = vld [vmem:[%s3 + $0x3e0] sm:$0xf]
  %v2344 = vld [vmem:[%s3 + $0x3e4] sm:$0xf]
  %v2345 = vld [vmem:[%s3 + $0x3e8] sm:$0xf]
  %v2346 = vld [vmem:[%s3 + $0x3ec] sm:$0xf]
  %v2347 = vld [vmem:[%s3 + $0x3f0] sm:$0xf]
  %v2348 = vld [vmem:[%s3 + $0x3f4] sm:$0xf]
  %v2349 = vld [vmem:[%s3 + $0x3f8] sm:$0xf]
  %v2350 = vld [vmem:[%s3 + $0x3fc] sm:$0xf]
  %v2351 = vld [vmem:[%s4] sm:$0x1]
  %v2353 = vlaneseq
  %v2354 = vshrl.u32 %v2353, 7
  %v2355 = vsub.s32 0, %v2354
  %v2356 = vrot.slane %v2351, %v2355
  %v2614 = vunpack.c.l.b16 %v2095
  %v2615 = vunpack.c.l.b16 %v2096
  %v2616 = vunpack.c.l.b16 %v2097
  %v2617 = vunpack.c.l.b16 %v2098
  %v2618 = vunpack.c.l.b16 %v2099
  %v2619 = vunpack.c.l.b16 %v2100
  %v2620 = vunpack.c.l.b16 %v2101
  %v2621 = vunpack.c.l.b16 %v2102
  %v2622 = vunpack.c.l.b16 %v2103
  %v2623 = vunpack.c.l.b16 %v2104
  %v2624 = vunpack.c.l.b16 %v2105
  %v2625 = vunpack.c.l.b16 %v2106
  %v2626 = vunpack.c.l.b16 %v2107
  %v2627 = vunpack.c.l.b16 %v2108
  %v2628 = vunpack.c.l.b16 %v2109
  %v2629 = vunpack.c.l.b16 %v2110
  %v2630 = vunpack.c.l.b16 %v2111
  %v2631 = vunpack.c.l.b16 %v2112
  %v2632 = vunpack.c.l.b16 %v2113
  %v2633 = vunpack.c.l.b16 %v2114
  %v2634 = vunpack.c.l.b16 %v2115
  %v2635 = vunpack.c.l.b16 %v2116
  %v2636 = vunpack.c.l.b16 %v2117
  %v2637 = vunpack.c.l.b16 %v2118
  %v2638 = vunpack.c.l.b16 %v2119
  %v2639 = vunpack.c.l.b16 %v2120
  %v2640 = vunpack.c.l.b16 %v2121
  %v2641 = vunpack.c.l.b16 %v2122
  %v2642 = vunpack.c.l.b16 %v2123
  %v2643 = vunpack.c.l.b16 %v2124
  %v2644 = vunpack.c.l.b16 %v2125
  %v2645 = vunpack.c.l.b16 %v2126
  %v2646 = vunpack.c.l.b16 %v2127
  %v2647 = vunpack.c.l.b16 %v2128
  %v2648 = vunpack.c.l.b16 %v2129
  %v2649 = vunpack.c.l.b16 %v2130
  %v2650 = vunpack.c.l.b16 %v2131
  %v2651 = vunpack.c.l.b16 %v2132
  %v2652 = vunpack.c.l.b16 %v2133
  %v2653 = vunpack.c.l.b16 %v2134
  %v2654 = vunpack.c.l.b16 %v2135
  %v2655 = vunpack.c.l.b16 %v2136
  %v2656 = vunpack.c.l.b16 %v2137
  %v2657 = vunpack.c.l.b16 %v2138
  %v2658 = vunpack.c.l.b16 %v2139
  %v2659 = vunpack.c.l.b16 %v2140
  %v2660 = vunpack.c.l.b16 %v2141
  %v2661 = vunpack.c.l.b16 %v2142
  %v2662 = vunpack.c.l.b16 %v2143
  %v2663 = vunpack.c.l.b16 %v2144
  %v2664 = vunpack.c.l.b16 %v2145
  %v2665 = vunpack.c.l.b16 %v2146
  %v2666 = vunpack.c.l.b16 %v2147
  %v2667 = vunpack.c.l.b16 %v2148
  %v2668 = vunpack.c.l.b16 %v2149
  %v2669 = vunpack.c.l.b16 %v2150
  %v2670 = vunpack.c.l.b16 %v2151
  %v2671 = vunpack.c.l.b16 %v2152
  %v2672 = vunpack.c.l.b16 %v2153
  %v2673 = vunpack.c.l.b16 %v2154
  %v2674 = vunpack.c.l.b16 %v2155
  %v2675 = vunpack.c.l.b16 %v2156
  %v2676 = vunpack.c.l.b16 %v2157
  %v2677 = vunpack.c.l.b16 %v2158
  %v2678 = vunpack.c.l.b16 %v2159
  %v2679 = vunpack.c.l.b16 %v2160
  %v2680 = vunpack.c.l.b16 %v2161
  %v2681 = vunpack.c.l.b16 %v2162
  %v2682 = vunpack.c.l.b16 %v2163
  %v2683 = vunpack.c.l.b16 %v2164
  %v2684 = vunpack.c.l.b16 %v2165
  %v2685 = vunpack.c.l.b16 %v2166
  %v2686 = vunpack.c.l.b16 %v2167
  %v2687 = vunpack.c.l.b16 %v2168
  %v2688 = vunpack.c.l.b16 %v2169
  %v2689 = vunpack.c.l.b16 %v2170
  %v2690 = vunpack.c.l.b16 %v2171
  %v2691 = vunpack.c.l.b16 %v2172
  %v2692 = vunpack.c.l.b16 %v2173
  %v2693 = vunpack.c.l.b16 %v2174
  %v2694 = vunpack.c.l.b16 %v2175
  %v2695 = vunpack.c.l.b16 %v2176
  %v2696 = vunpack.c.l.b16 %v2177
  %v2697 = vunpack.c.l.b16 %v2178
  %v2698 = vunpack.c.l.b16 %v2179
  %v2699 = vunpack.c.l.b16 %v2180
  %v2700 = vunpack.c.l.b16 %v2181
  %v2701 = vunpack.c.l.b16 %v2182
  %v2702 = vunpack.c.l.b16 %v2183
  %v2703 = vunpack.c.l.b16 %v2184
  %v2704 = vunpack.c.l.b16 %v2185
  %v2705 = vunpack.c.l.b16 %v2186
  %v2706 = vunpack.c.l.b16 %v2187
  %v2707 = vunpack.c.l.b16 %v2188
  %v2708 = vunpack.c.l.b16 %v2189
  %v2709 = vunpack.c.l.b16 %v2190
  %v2710 = vunpack.c.l.b16 %v2191
  %v2711 = vunpack.c.l.b16 %v2192
  %v2712 = vunpack.c.l.b16 %v2193
  %v2713 = vunpack.c.l.b16 %v2194
  %v2714 = vunpack.c.l.b16 %v2195
  %v2715 = vunpack.c.l.b16 %v2196
  %v2716 = vunpack.c.l.b16 %v2197
  %v2717 = vunpack.c.l.b16 %v2198
  %v2718 = vunpack.c.l.b16 %v2199
  %v2719 = vunpack.c.l.b16 %v2200
  %v2720 = vunpack.c.l.b16 %v2201
  %v2721 = vunpack.c.l.b16 %v2202
  %v2722 = vunpack.c.l.b16 %v2203
  %v2723 = vunpack.c.l.b16 %v2204
  %v2724 = vunpack.c.l.b16 %v2205
  %v2725 = vunpack.c.l.b16 %v2206
  %v2726 = vunpack.c.l.b16 %v2207
  %v2727 = vunpack.c.l.b16 %v2208
  %v2728 = vunpack.c.l.b16 %v2209
  %v2729 = vunpack.c.l.b16 %v2210
  %v2730 = vunpack.c.l.b16 %v2211
  %v2731 = vunpack.c.l.b16 %v2212
  %v2732 = vunpack.c.l.b16 %v2213
  %v2733 = vunpack.c.l.b16 %v2214
  %v2734 = vunpack.c.l.b16 %v2215
  %v2735 = vunpack.c.l.b16 %v2216
  %v2736 = vunpack.c.l.b16 %v2217
  %v2737 = vunpack.c.l.b16 %v2218
  %v2738 = vunpack.c.l.b16 %v2219
  %v2739 = vunpack.c.l.b16 %v2220
  %v2740 = vunpack.c.l.b16 %v2221
  %v2741 = vunpack.c.l.b16 %v2222
  %v2742 = vunpack.c.l.b16 %v2223
  %v2743 = vunpack.c.l.b16 %v2224
  %v2744 = vunpack.c.l.b16 %v2225
  %v2745 = vunpack.c.l.b16 %v2226
  %v2746 = vunpack.c.l.b16 %v2227
  %v2747 = vunpack.c.l.b16 %v2228
  %v2748 = vunpack.c.l.b16 %v2229
  %v2749 = vunpack.c.l.b16 %v2230
  %v2750 = vunpack.c.l.b16 %v2231
  %v2751 = vunpack.c.l.b16 %v2232
  %v2752 = vunpack.c.l.b16 %v2233
  %v2753 = vunpack.c.l.b16 %v2234
  %v2754 = vunpack.c.l.b16 %v2235
  %v2755 = vunpack.c.l.b16 %v2236
  %v2756 = vunpack.c.l.b16 %v2237
  %v2757 = vunpack.c.l.b16 %v2238
  %v2758 = vunpack.c.l.b16 %v2239
  %v2759 = vunpack.c.l.b16 %v2240
  %v2760 = vunpack.c.l.b16 %v2241
  %v2761 = vunpack.c.l.b16 %v2242
  %v2762 = vunpack.c.l.b16 %v2243
  %v2763 = vunpack.c.l.b16 %v2244
  %v2764 = vunpack.c.l.b16 %v2245
  %v2765 = vunpack.c.l.b16 %v2246
  %v2766 = vunpack.c.l.b16 %v2247
  %v2767 = vunpack.c.l.b16 %v2248
  %v2768 = vunpack.c.l.b16 %v2249
  %v2769 = vunpack.c.l.b16 %v2250
  %v2770 = vunpack.c.l.b16 %v2251
  %v2771 = vunpack.c.l.b16 %v2252
  %v2772 = vunpack.c.l.b16 %v2253
  %v2773 = vunpack.c.l.b16 %v2254
  %v2774 = vunpack.c.l.b16 %v2255
  %v2775 = vunpack.c.l.b16 %v2256
  %v2776 = vunpack.c.l.b16 %v2257
  %v2777 = vunpack.c.l.b16 %v2258
  %v2778 = vunpack.c.l.b16 %v2259
  %v2779 = vunpack.c.l.b16 %v2260
  %v2780 = vunpack.c.l.b16 %v2261
  %v2781 = vunpack.c.l.b16 %v2262
  %v2782 = vunpack.c.l.b16 %v2263
  %v2783 = vunpack.c.l.b16 %v2264
  %v2784 = vunpack.c.l.b16 %v2265
  %v2785 = vunpack.c.l.b16 %v2266
  %v2786 = vunpack.c.l.b16 %v2267
  %v2787 = vunpack.c.l.b16 %v2268
  %v2788 = vunpack.c.l.b16 %v2269
  %v2789 = vunpack.c.l.b16 %v2270
  %v2790 = vunpack.c.l.b16 %v2271
  %v2791 = vunpack.c.l.b16 %v2272
  %v2792 = vunpack.c.l.b16 %v2273
  %v2793 = vunpack.c.l.b16 %v2274
  %v2794 = vunpack.c.l.b16 %v2275
  %v2795 = vunpack.c.l.b16 %v2276
  %v2796 = vunpack.c.l.b16 %v2277
  %v2797 = vunpack.c.l.b16 %v2278
  %v2798 = vunpack.c.l.b16 %v2279
  %v2799 = vunpack.c.l.b16 %v2280
  %v2800 = vunpack.c.l.b16 %v2281
  %v2801 = vunpack.c.l.b16 %v2282
  %v2802 = vunpack.c.l.b16 %v2283
  %v2803 = vunpack.c.l.b16 %v2284
  %v2804 = vunpack.c.l.b16 %v2285
  %v2805 = vunpack.c.l.b16 %v2286
  %v2806 = vunpack.c.l.b16 %v2287
  %v2807 = vunpack.c.l.b16 %v2288
  %v2808 = vunpack.c.l.b16 %v2289
  %v2809 = vunpack.c.l.b16 %v2290
  %v2810 = vunpack.c.l.b16 %v2291
  %v2811 = vunpack.c.l.b16 %v2292
  %v2812 = vunpack.c.l.b16 %v2293
  %v2813 = vunpack.c.l.b16 %v2294
  %v2814 = vunpack.c.l.b16 %v2295
  %v2815 = vunpack.c.l.b16 %v2296
  %v2816 = vunpack.c.l.b16 %v2297
  %v2817 = vunpack.c.l.b16 %v2298
  %v2818 = vunpack.c.l.b16 %v2299
  %v2819 = vunpack.c.l.b16 %v2300
  %v2820 = vunpack.c.l.b16 %v2301
  %v2821 = vunpack.c.l.b16 %v2302
  %v2822 = vunpack.c.l.b16 %v2303
  %v2823 = vunpack.c.l.b16 %v2304
  %v2824 = vunpack.c.l.b16 %v2305
  %v2825 = vunpack.c.l.b16 %v2306
  %v2826 = vunpack.c.l.b16 %v2307
  %v2827 = vunpack.c.l.b16 %v2308
  %v2828 = vunpack.c.l.b16 %v2309
  %v2829 = vunpack.c.l.b16 %v2310
  %v2830 = vunpack.c.l.b16 %v2311
  %v2831 = vunpack.c.l.b16 %v2312
  %v2832 = vunpack.c.l.b16 %v2313
  %v2833 = vunpack.c.l.b16 %v2314
  %v2834 = vunpack.c.l.b16 %v2315
  %v2835 = vunpack.c.l.b16 %v2316
  %v2836 = vunpack.c.l.b16 %v2317
  %v2837 = vunpack.c.l.b16 %v2318
  %v2838 = vunpack.c.l.b16 %v2319
  %v2839 = vunpack.c.l.b16 %v2320
  %v2840 = vunpack.c.l.b16 %v2321
  %v2841 = vunpack.c.l.b16 %v2322
  %v2842 = vunpack.c.l.b16 %v2323
  %v2843 = vunpack.c.l.b16 %v2324
  %v2844 = vunpack.c.l.b16 %v2325
  %v2845 = vunpack.c.l.b16 %v2326
  %v2846 = vunpack.c.l.b16 %v2327
  %v2847 = vunpack.c.l.b16 %v2328
  %v2848 = vunpack.c.l.b16 %v2329
  %v2849 = vunpack.c.l.b16 %v2330
  %v2850 = vunpack.c.l.b16 %v2331
  %v2851 = vunpack.c.l.b16 %v2332
  %v2852 = vunpack.c.l.b16 %v2333
  %v2853 = vunpack.c.l.b16 %v2334
  %v2854 = vunpack.c.l.b16 %v2335
  %v2855 = vunpack.c.l.b16 %v2336
  %v2856 = vunpack.c.l.b16 %v2337
  %v2857 = vunpack.c.l.b16 %v2338
  %v2858 = vunpack.c.l.b16 %v2339
  %v2859 = vunpack.c.l.b16 %v2340
  %v2860 = vunpack.c.l.b16 %v2341
  %v2861 = vunpack.c.l.b16 %v2342
  %v2862 = vunpack.c.l.b16 %v2343
  %v2863 = vunpack.c.l.b16 %v2344
  %v2864 = vunpack.c.l.b16 %v2345
  %v2865 = vunpack.c.l.b16 %v2346
  %v2866 = vunpack.c.l.b16 %v2347
  %v2867 = vunpack.c.l.b16 %v2348
  %v2868 = vunpack.c.l.b16 %v2349
  %v2869 = vunpack.c.l.b16 %v2350
  %v2870 = vpack.c.b16 %v2615, %v2614
  %v2871 = vpack.c.b16 %v2617, %v2616
  %v2872 = vpack.c.b16 %v2619, %v2618
  %v2873 = vpack.c.b16 %v2621, %v2620
  %v2874 = vpack.c.b16 %v2623, %v2622
  %v2875 = vpack.c.b16 %v2625, %v2624
  %v2876 = vpack.c.b16 %v2627, %v2626
  %v2877 = vpack.c.b16 %v2629, %v2628
  %v2878 = vpack.c.b16 %v2631, %v2630
  %v2879 = vpack.c.b16 %v2633, %v2632
  %v2880 = vpack.c.b16 %v2635, %v2634
  %v2881 = vpack.c.b16 %v2637, %v2636
  %v2882 = vpack.c.b16 %v2639, %v2638
  %v2883 = vpack.c.b16 %v2641, %v2640
  %v2884 = vpack.c.b16 %v2643, %v2642
  %v2885 = vpack.c.b16 %v2645, %v2644
  %v2886 = vpack.c.b16 %v2647, %v2646
  %v2887 = vpack.c.b16 %v2649, %v2648
  %v2888 = vpack.c.b16 %v2651, %v2650
  %v2889 = vpack.c.b16 %v2653, %v2652
  %v2890 = vpack.c.b16 %v2655, %v2654
  %v2891 = vpack.c.b16 %v2657, %v2656
  %v2892 = vpack.c.b16 %v2659, %v2658
  %v2893 = vpack.c.b16 %v2661, %v2660
  %v2894 = vpack.c.b16 %v2663, %v2662
  %v2895 = vpack.c.b16 %v2665, %v2664
  %v2896 = vpack.c.b16 %v2667, %v2666
  %v2897 = vpack.c.b16 %v2669, %v2668
  %v2898 = vpack.c.b16 %v2671, %v2670
  %v2899 = vpack.c.b16 %v2673, %v2672
  %v2900 = vpack.c.b16 %v2675, %v2674
  %v2901 = vpack.c.b16 %v2677, %v2676
  %v2902 = vpack.c.b16 %v2679, %v2678
  %v2903 = vpack.c.b16 %v2681, %v2680
  %v2904 = vpack.c.b16 %v2683, %v2682
  %v2905 = vpack.c.b16 %v2685, %v2684
  %v2906 = vpack.c.b16 %v2687, %v2686
  %v2907 = vpack.c.b16 %v2689, %v2688
  %v2908 = vpack.c.b16 %v2691, %v2690
  %v2909 = vpack.c.b16 %v2693, %v2692
  %v2910 = vpack.c.b16 %v2695, %v2694
  %v2911 = vpack.c.b16 %v2697, %v2696
  %v2912 = vpack.c.b16 %v2699, %v2698
  %v2913 = vpack.c.b16 %v2701, %v2700
  %v2914 = vpack.c.b16 %v2703, %v2702
  %v2915 = vpack.c.b16 %v2705, %v2704
  %v2916 = vpack.c.b16 %v2707, %v2706
  %v2917 = vpack.c.b16 %v2709, %v2708
  %v2918 = vpack.c.b16 %v2711, %v2710
  %v2919 = vpack.c.b16 %v2713, %v2712
  %v2920 = vpack.c.b16 %v2715, %v2714
  %v2921 = vpack.c.b16 %v2717, %v2716
  %v2922 = vpack.c.b16 %v2719, %v2718
  %v2923 = vpack.c.b16 %v2721, %v2720
  %v2924 = vpack.c.b16 %v2723, %v2722
  %v2925 = vpack.c.b16 %v2725, %v2724
  %v2926 = vpack.c.b16 %v2727, %v2726
  %v2927 = vpack.c.b16 %v2729, %v2728
  %v2928 = vpack.c.b16 %v2731, %v2730
  %v2929 = vpack.c.b16 %v2733, %v2732
  %v2930 = vpack.c.b16 %v2735, %v2734
  %v2931 = vpack.c.b16 %v2737, %v2736
  %v2932 = vpack.c.b16 %v2739, %v2738
  %v2933 = vpack.c.b16 %v2741, %v2740
  %v2934 = vpack.c.b16 %v2743, %v2742
  %v2935 = vpack.c.b16 %v2745, %v2744
  %v2936 = vpack.c.b16 %v2747, %v2746
  %v2937 = vpack.c.b16 %v2749, %v2748
  %v2938 = vpack.c.b16 %v2751, %v2750
  %v2939 = vpack.c.b16 %v2753, %v2752
  %v2940 = vpack.c.b16 %v2755, %v2754
  %v2941 = vpack.c.b16 %v2757, %v2756
  %v2942 = vpack.c.b16 %v2759, %v2758
  %v2943 = vpack.c.b16 %v2761, %v2760
  %v2944 = vpack.c.b16 %v2763, %v2762
  %v2945 = vpack.c.b16 %v2765, %v2764
  %v2946 = vpack.c.b16 %v2767, %v2766
  %v2947 = vpack.c.b16 %v2769, %v2768
  %v2948 = vpack.c.b16 %v2771, %v2770
  %v2949 = vpack.c.b16 %v2773, %v2772
  %v2950 = vpack.c.b16 %v2775, %v2774
  %v2951 = vpack.c.b16 %v2777, %v2776
  %v2952 = vpack.c.b16 %v2779, %v2778
  %v2953 = vpack.c.b16 %v2781, %v2780
  %v2954 = vpack.c.b16 %v2783, %v2782
  %v2955 = vpack.c.b16 %v2785, %v2784
  %v2956 = vpack.c.b16 %v2787, %v2786
  %v2957 = vpack.c.b16 %v2789, %v2788
  %v2958 = vpack.c.b16 %v2791, %v2790
  %v2959 = vpack.c.b16 %v2793, %v2792
  %v2960 = vpack.c.b16 %v2795, %v2794
  %v2961 = vpack.c.b16 %v2797, %v2796
  %v2962 = vpack.c.b16 %v2799, %v2798
  %v2963 = vpack.c.b16 %v2801, %v2800
  %v2964 = vpack.c.b16 %v2803, %v2802
  %v2965 = vpack.c.b16 %v2805, %v2804
  %v2966 = vpack.c.b16 %v2807, %v2806
  %v2967 = vpack.c.b16 %v2809, %v2808
  %v2968 = vpack.c.b16 %v2811, %v2810
  %v2969 = vpack.c.b16 %v2813, %v2812
  %v2970 = vpack.c.b16 %v2815, %v2814
  %v2971 = vpack.c.b16 %v2817, %v2816
  %v2972 = vpack.c.b16 %v2819, %v2818
  %v2973 = vpack.c.b16 %v2821, %v2820
  %v2974 = vpack.c.b16 %v2823, %v2822
  %v2975 = vpack.c.b16 %v2825, %v2824
  %v2976 = vpack.c.b16 %v2827, %v2826
  %v2977 = vpack.c.b16 %v2829, %v2828
  %v2978 = vpack.c.b16 %v2831, %v2830
  %v2979 = vpack.c.b16 %v2833, %v2832
  %v2980 = vpack.c.b16 %v2835, %v2834
  %v2981 = vpack.c.b16 %v2837, %v2836
  %v2982 = vpack.c.b16 %v2839, %v2838
  %v2983 = vpack.c.b16 %v2841, %v2840
  %v2984 = vpack.c.b16 %v2843, %v2842
  %v2985 = vpack.c.b16 %v2845, %v2844
  %v2986 = vpack.c.b16 %v2847, %v2846
  %v2987 = vpack.c.b16 %v2849, %v2848
  %v2988 = vpack.c.b16 %v2851, %v2850
  %v2989 = vpack.c.b16 %v2853, %v2852
  %v2990 = vpack.c.b16 %v2855, %v2854
  %v2991 = vpack.c.b16 %v2857, %v2856
  %v2992 = vpack.c.b16 %v2859, %v2858
  %v2993 = vpack.c.b16 %v2861, %v2860
  %v2994 = vpack.c.b16 %v2863, %v2862
  %v2995 = vpack.c.b16 %v2865, %v2864
  %v2996 = vpack.c.b16 %v2867, %v2866
  %v2997 = vpack.c.b16 %v2869, %v2868
  %3126 = vmatprep.subr.bf16.mxu0 0
  %3127 = vmatpush1.bf16.msra.mxu0 %v2870
  %3128 = vmatprep.subr.bf16.mxu0 0
  %3129 = vmatpush1.bf16.msra.mxu0 %v2871
  %3130 = vmatprep.subr.bf16.mxu0 0
  %3131 = vmatpush1.bf16.msra.mxu0 %v2872
  %3132 = vmatprep.subr.bf16.mxu0 0
  %3133 = vmatpush1.bf16.msra.mxu0 %v2873
  %3134 = vmatprep.subr.bf16.mxu0 0
  %3135 = vmatpush1.bf16.msra.mxu0 %v2874
  %3136 = vmatprep.subr.bf16.mxu0 0
  %3137 = vmatpush1.bf16.msra.mxu0 %v2875
  %3138 = vmatprep.subr.bf16.mxu0 0
  %3139 = vmatpush1.bf16.msra.mxu0 %v2876
  %3140 = vmatprep.subr.bf16.mxu0 0
  %3141 = vmatpush1.bf16.msra.mxu0 %v2877
  %3142 = vmatprep.subr.bf16.mxu0 0
  %3143 = vmatpush1.bf16.msra.mxu0 %v2878
  %3144 = vmatprep.subr.bf16.mxu0 0
  %3145 = vmatpush1.bf16.msra.mxu0 %v2879
  %3146 = vmatprep.subr.bf16.mxu0 0
  %3147 = vmatpush1.bf16.msra.mxu0 %v2880
  %3148 = vmatprep.subr.bf16.mxu0 0
  %3149 = vmatpush1.bf16.msra.mxu0 %v2881
  %3150 = vmatprep.subr.bf16.mxu0 0
  %3151 = vmatpush1.bf16.msra.mxu0 %v2882
  %3152 = vmatprep.subr.bf16.mxu0 0
  %3153 = vmatpush1.bf16.msra.mxu0 %v2883
  %3154 = vmatprep.subr.bf16.mxu0 0
  %3155 = vmatpush1.bf16.msra.mxu0 %v2884
  %3156 = vmatprep.subr.bf16.mxu0 0
  %3157 = vmatpush1.bf16.msra.mxu0 %v2885
  %3158 = vmatprep.mubr.bf16.mxu0 %v1952
  %3159 = vmatmul.mubr.bf16.gmra.mrb[0].mxu0 %v1951
  %v3160 = vpop.f32.mrb[0].mxu0
  %v3161 = vadd.f32 %v2356, %v3160
  %v3162 = vpop.f32.mrb[0].mxu0
  %v3163 = vpop.f32.mrb[0].mxu0
  %v3164 = vadd.f32 %v2356, %v3163
  %v3165 = vpop.f32.mrb[0].mxu0
  %3166 = vmatprep.mubr.bf16.mxu0 %v1968
  %3167 = vmatmul.mubr.bf16.gmra.mrb[0].mxu0 %v1967
  %v3168 = vpop.f32.mrb[0].mxu0
  %v3169 = vadd.f32 %v2356, %v3168
  %v3170 = vpop.f32.mrb[0].mxu0
  %v3171 = vpop.f32.mrb[0].mxu0
  %v3172 = vadd.f32 %v2356, %v3171
  %v3173 = vpop.f32.mrb[0].mxu0
  %3174 = vmatprep.mubr.bf16.mxu0 %v1984
  %3175 = vmatmul.mubr.bf16.gmra.mrb[0].mxu0 %v1983
  %v3176 = vpop.f32.mrb[0].mxu0
  %v3177 = vadd.f32 %v2356, %v3176
  %v3178 = vpop.f32.mrb[0].mxu0
  %v3179 = vpop.f32.mrb[0].mxu0
  %v3180 = vadd.f32 %v2356, %v3179
  %v3181 = vpop.f32.mrb[0].mxu0
  %3182 = vmatprep.mubr.bf16.mxu0 %v2000
  %3183 = vmatmul.mubr.bf16.gmra.mrb[0].mxu0 %v1999
  %v3184 = vpop.f32.mrb[0].mxu0
  %v3185 = vadd.f32 %v2356, %v3184
  %v3186 = vpop.f32.mrb[0].mxu0
  %v3187 = vpop.f32.mrb[0].mxu0
  %v3188 = vadd.f32 %v2356, %v3187
  %v3189 = vpop.f32.mrb[0].mxu0
  %3190 = vmatprep.mubr.bf16.mxu0 %v2016
  %3191 = vmatmul.mubr.bf16.gmra.mrb[0].mxu0 %v2015
  %v3192 = vpop.f32.mrb[0].mxu0
  %v3193 = vadd.f32 %v2356, %v3192
  %v3194 = vpop.f32.mrb[0].mxu0
  %v3195 = vpop.f32.mrb[0].mxu0
  %v3196 = vadd.f32 %v2356, %v3195
  %v3197 = vpop.f32.mrb[0].mxu0
  %3198 = vmatprep.mubr.bf16.mxu0 %v2032
  %3199 = vmatmul.mubr.bf16.gmra.mrb[0].mxu0 %v2031
  %v3200 = vpop.f32.mrb[0].mxu0
  %v3201 = vadd.f32 %v2356, %v3200
  %v3202 = vpop.f32.mrb[0].mxu0
  %v3203 = vpop.f32.mrb[0].mxu0
  %v3204 = vadd.f32 %v2356, %v3203
  %v3205 = vpop.f32.mrb[0].mxu0
  %3206 = vmatprep.mubr.bf16.mxu0 %v2048
  %3207 = vmatmul.mubr.bf16.gmra.mrb[0].mxu0 %v2047
  %v3208 = vpop.f32.mrb[0].mxu0
  %v3209 = vadd.f32 %v2356, %v3208
  %v3210 = vpop.f32.mrb[0].mxu0
  %v3211 = vpop.f32.mrb[0].mxu0
  %v3212 = vadd.f32 %v2356, %v3211
  %v3213 = vpop.f32.mrb[0].mxu0
  %3214 = vmatprep.mubr.bf16.mxu0 %v2064
  %3215 = vmatmul.mubr.bf16.gmra.mrb[0].mxu0 %v2063
  %v3216 = vpop.f32.mrb[0].mxu0
  %v3217 = vadd.f32 %v2356, %v3216
  %v3218 = vpop.f32.mrb[0].mxu0
  %v3219 = vpop.f32.mrb[0].mxu0
  %v3220 = vadd.f32 %v2356, %v3219
  %v3221 = vpop.f32.mrb[0].mxu0
  %3222 = vmatprep.mubr.bf16.mxu0 %v2080
  %3223 = vmatmul.mubr.bf16.gmra.mrb[0].mxu0 %v2079
  %v3224 = vpop.f32.mrb[0].mxu0
  %v3225 = vadd.f32 %v2356, %v3224
  %v3226 = vpop.f32.mrb[0].mxu0
  %v3227 = vpop.f32.mrb[0].mxu0
  %v3228 = vadd.f32 %v2356, %v3227
  %v3229 = vpop.f32.mrb[0].mxu0
  %3230 = vdwg.mxu0
  %3231 = vmatprep.subr.bf16.mxu0 0
  %3232 = vmatpush1.bf16.msra.mxu0 %v2886
  %3233 = vmatprep.subr.bf16.mxu0 0
  %3234 = vmatpush1.bf16.msra.mxu0 %v2887
  %3235 = vmatprep.subr.bf16.mxu0 0
  %3236 = vmatpush1.bf16.msra.mxu0 %v2888
  %3237 = vmatprep.subr.bf16.mxu0 0
  %3238 = vmatpush1.bf16.msra.mxu0 %v2889
  %3239 = vmatprep.subr.bf16.mxu0 0
  %3240 = vmatpush1.bf16.msra.mxu0 %v2890
  %3241 = vmatprep.subr.bf16.mxu0 0
  %3242 = vmatpush1.bf16.msra.mxu0 %v2891
  %3243 = vmatprep.subr.bf16.mxu0 0
  %3244 = vmatpush1.bf16.msra.mxu0 %v2892
  %3245 = vmatprep.subr.bf16.mxu0 0
  %3246 = vmatpush1.bf16.msra.mxu0 %v2893
  %3247 = vmatprep.subr.bf16.mxu0 0
  %3248 = vmatpush1.bf16.msra.mxu0 %v2894
  %3249 = vmatprep.subr.bf16.mxu0 0
  %3250 = vmatpush1.bf16.msra.mxu0 %v2895
  %3251 = vmatprep.subr.bf16.mxu0 0
  %3252 = vmatpush1.bf16.msra.mxu0 %v2896
  %3253 = vmatprep.subr.bf16.mxu0 0
  %3254 = vmatpush1.bf16.msra.mxu0 %v2897
  %3255 = vmatprep.subr.bf16.mxu0 0
  %3256 = vmatpush1.bf16.msra.mxu0 %v2898
  %3257 = vmatprep.subr.bf16.mxu0 0
  %3258 = vmatpush1.bf16.msra.mxu0 %v2899
  %3259 = vmatprep.subr.bf16.mxu0 0
  %3260 = vmatpush1.bf16.msra.mxu0 %v2900
  %3261 = vmatprep.subr.bf16.mxu0 0
  %3262 = vmatpush1.bf16.msra.mxu0 %v2901
  %3263 = vmatprep.mubr.bf16.mxu0 %v1954
  %3264 = vmatmul.mubr.bf16.gmra.mrb[0].mxu0 %v1953
  %v3265 = vpop.f32.mrb[0].mxu0
  %v3266 = vadd.f32 %v3161, %v3265
  %v3267 = vpop.f32.mrb[0].mxu0
  %v3268 = vpop.f32.mrb[0].mxu0
  %v3269 = vadd.f32 %v3164, %v3268
  %v3270 = vpop.f32.mrb[0].mxu0
  %3271 = vmatprep.mubr.bf16.mxu0 %v1970
  %3272 = vmatmul.mubr.bf16.gmra.mrb[0].mxu0 %v1969
  %v3273 = vpop.f32.mrb[0].mxu0
  %v3274 = vadd.f32 %v3169, %v3273
  %v3275 = vpop.f32.mrb[0].mxu0
  %v3276 = vpop.f32.mrb[0].mxu0
  %v3277 = vadd.f32 %v3172, %v3276
  %v3278 = vpop.f32.mrb[0].mxu0
  %3279 = vmatprep.mubr.bf16.mxu0 %v1986
  %3280 = vmatmul.mubr.bf16.gmra.mrb[0].mxu0 %v1985
  %v3281 = vpop.f32.mrb[0].mxu0
  %v3282 = vadd.f32 %v3177, %v3281
  %v3283 = vpop.f32.mrb[0].mxu0
  %v3284 = vpop.f32.mrb[0].mxu0
  %v3285 = vadd.f32 %v3180, %v3284
  %v3286 = vpop.f32.mrb[0].mxu0
  %3287 = vmatprep.mubr.bf16.mxu0 %v2002
  %3288 = vmatmul.mubr.bf16.gmra.mrb[0].mxu0 %v2001
  %v3289 = vpop.f32.mrb[0].mxu0
  %v3290 = vadd.f32 %v3185, %v3289
  %v3291 = vpop.f32.mrb[0].mxu0
  %v3292 = vpop.f32.mrb[0].mxu0
  %v3293 = vadd.f32 %v3188, %v3292
  %v3294 = vpop.f32.mrb[0].mxu0
  %3295 = vmatprep.mubr.bf16.mxu0 %v2018
  %3296 = vmatmul.mubr.bf16.gmra.mrb[0].mxu0 %v2017
  %v3297 = vpop.f32.mrb[0].mxu0
  %v3298 = vadd.f32 %v3193, %v3297
  %v3299 = vpop.f32.mrb[0].mxu0
  %v3300 = vpop.f32.mrb[0].mxu0
  %v3301 = vadd.f32 %v3196, %v3300
  %v3302 = vpop.f32.mrb[0].mxu0
  %3303 = vmatprep.mubr.bf16.mxu0 %v2034
  %3304 = vmatmul.mubr.bf16.gmra.mrb[0].mxu0 %v2033
  %v3305 = vpop.f32.mrb[0].mxu0
  %v3306 = vadd.f32 %v3201, %v3305
  %v3307 = vpop.f32.mrb[0].mxu0
  %v3308 = vpop.f32.mrb[0].mxu0
  %v3309 = vadd.f32 %v3204, %v3308
  %v3310 = vpop.f32.mrb[0].mxu0
  %3311 = vmatprep.mubr.bf16.mxu0 %v2050
  %3312 = vmatmul.mubr.bf16.gmra.mrb[0].mxu0 %v2049
  %v3313 = vpop.f32.mrb[0].mxu0
  %v3314 = vadd.f32 %v3209, %v3313
  %v3315 = vpop.f32.mrb[0].mxu0
  %v3316 = vpop.f32.mrb[0].mxu0
  %v3317 = vadd.f32 %v3212, %v3316
  %v3318 = vpop.f32.mrb[0].mxu0
  %3319 = vmatprep.mubr.bf16.mxu0 %v2066
  %3320 = vmatmul.mubr.bf16.gmra.mrb[0].mxu0 %v2065
  %v3321 = vpop.f32.mrb[0].mxu0
  %v3322 = vadd.f32 %v3217, %v3321
  %v3323 = vpop.f32.mrb[0].mxu0
  %v3324 = vpop.f32.mrb[0].mxu0
  %v3325 = vadd.f32 %v3220, %v3324
  %v3326 = vpop.f32.mrb[0].mxu0
  %3327 = vmatprep.mubr.bf16.mxu0 %v2082
  %3328 = vmatmul.mubr.bf16.gmra.mrb[0].mxu0 %v2081
  %v3329 = vpop.f32.mrb[0].mxu0
  %v3330 = vadd.f32 %v3225, %v3329
  %v3331 = vpop.f32.mrb[0].mxu0
  %v3332 = vpop.f32.mrb[0].mxu0
  %v3333 = vadd.f32 %v3228, %v3332
  %v3334 = vpop.f32.mrb[0].mxu0
  %3335 = vdwg.mxu0
  %3336 = vmatprep.subr.bf16.mxu0 0
  %3337 = vmatpush1.bf16.msra.mxu0 %v2902
  %3338 = vmatprep.subr.bf16.mxu0 0
  %3339 = vmatpush1.bf16.msra.mxu0 %v2903
  %3340 = vmatprep.subr.bf16.mxu0 0
  %3341 = vmatpush1.bf16.msra.mxu0 %v2904
  %3342 = vmatprep.subr.bf16.mxu0 0
  %3343 = vmatpush1.bf16.msra.mxu0 %v2905
  %3344 = vmatprep.subr.bf16.mxu0 0
  %3345 = vmatpush1.bf16.msra.mxu0 %v2906
  %3346 = vmatprep.subr.bf16.mxu0 0
  %3347 = vmatpush1.bf16.msra.mxu0 %v2907
  %3348 = vmatprep.subr.bf16.mxu0 0
  %3349 = vmatpush1.bf16.msra.mxu0 %v2908
  %3350 = vmatprep.subr.bf16.mxu0 0
  %3351 = vmatpush1.bf16.msra.mxu0 %v2909
  %3352 = vmatprep.subr.bf16.mxu0 0
  %3353 = vmatpush1.bf16.msra.mxu0 %v2910
  %3354 = vmatprep.subr.bf16.mxu0 0
  %3355 = vmatpush1.bf16.msra.mxu0 %v2911
  %3356 = vmatprep.subr.bf16.mxu0 0
  %3357 = vmatpush1.bf16.msra.mxu0 %v2912
  %3358 = vmatprep.subr.bf16.mxu0 0
  %3359 = vmatpush1.bf16.msra.mxu0 %v2913
  %3360 = vmatprep.subr.bf16.mxu0 0
  %3361 = vmatpush1.bf16.msra.mxu0 %v2914
  %3362 = vmatprep.subr.bf16.mxu0 0
  %3363 = vmatpush1.bf16.msra.mxu0 %v2915
  %3364 = vmatprep.subr.bf16.mxu0 0
  %3365 = vmatpush1.bf16.msra.mxu0 %v2916
  %3366 = vmatprep.subr.bf16.mxu0 0
  %3367 = vmatpush1.bf16.msra.mxu0 %v2917
  %3368 = vmatprep.mubr.bf16.mxu0 %v1956
  %3369 = vmatmul.mubr.bf16.gmra.mrb[0].mxu0 %v1955
  %v3370 = vpop.f32.mrb[0].mxu0
  %v3371 = vadd.f32 %v3266, %v3370
  %v3372 = vpop.f32.mrb[0].mxu0
  %v3373 = vpop.f32.mrb[0].mxu0
  %v3374 = vadd.f32 %v3269, %v3373
  %v3375 = vpop.f32.mrb[0].mxu0
  %3376 = vmatprep.mubr.bf16.mxu0 %v1972
  %3377 = vmatmul.mubr.bf16.gmra.mrb[0].mxu0 %v1971
  %v3378 = vpop.f32.mrb[0].mxu0
  %v3379 = vadd.f32 %v3274, %v3378
  %v3380 = vpop.f32.mrb[0].mxu0
  %v3381 = vpop.f32.mrb[0].mxu0
  %v3382 = vadd.f32 %v3277, %v3381
  %v3383 = vpop.f32.mrb[0].mxu0
  %3384 = vmatprep.mubr.bf16.mxu0 %v1988
  %3385 = vmatmul.mubr.bf16.gmra.mrb[0].mxu0 %v1987
  %v3386 = vpop.f32.mrb[0].mxu0
  %v3387 = vadd.f32 %v3282, %v3386
  %v3388 = vpop.f32.mrb[0].mxu0
  %v3389 = vpop.f32.mrb[0].mxu0
  %v3390 = vadd.f32 %v3285, %v3389
  %v3391 = vpop.f32.mrb[0].mxu0
  %3392 = vmatprep.mubr.bf16.mxu0 %v2004
  %3393 = vmatmul.mubr.bf16.gmra.mrb[0].mxu0 %v2003
  %v3394 = vpop.f32.mrb[0].mxu0
  %v3395 = vadd.f32 %v3290, %v3394
  %v3396 = vpop.f32.mrb[0].mxu0
  %v3397 = vpop.f32.mrb[0].mxu0
  %v3398 = vadd.f32 %v3293, %v3397
  %v3399 = vpop.f32.mrb[0].mxu0
  %3400 = vmatprep.mubr.bf16.mxu0 %v2020
  %3401 = vmatmul.mubr.bf16.gmra.mrb[0].mxu0 %v2019
  %v3402 = vpop.f32.mrb[0].mxu0
  %v3403 = vadd.f32 %v3298, %v3402
  %v3404 = vpop.f32.mrb[0].mxu0
  %v3405 = vpop.f32.mrb[0].mxu0
  %v3406 = vadd.f32 %v3301, %v3405
  %v3407 = vpop.f32.mrb[0].mxu0
  %3408 = vmatprep.mubr.bf16.mxu0 %v2036
  %3409 = vmatmul.mubr.bf16.gmra.mrb[0].mxu0 %v2035
  %v3410 = vpop.f32.mrb[0].mxu0
  %v3411 = vadd.f32 %v3306, %v3410
  %v3412 = vpop.f32.mrb[0].mxu0
  %v3413 = vpop.f32.mrb[0].mxu0
  %v3414 = vadd.f32 %v3309, %v3413
  %v3415 = vpop.f32.mrb[0].mxu0
  %3416 = vmatprep.mubr.bf16.mxu0 %v2052
  %3417 = vmatmul.mubr.bf16.gmra.mrb[0].mxu0 %v2051
  %v3418 = vpop.f32.mrb[0].mxu0
  %v3419 = vadd.f32 %v3314, %v3418
  %v3420 = vpop.f32.mrb[0].mxu0
  %v3421 = vpop.f32.mrb[0].mxu0
  %v3422 = vadd.f32 %v3317, %v3421
  %v3423 = vpop.f32.mrb[0].mxu0
  %3424 = vmatprep.mubr.bf16.mxu0 %v2068
  %3425 = vmatmul.mubr.bf16.gmra.mrb[0].mxu0 %v2067
  %v3426 = vpop.f32.mrb[0].mxu0
  %v3427 = vadd.f32 %v3322, %v3426
  %v3428 = vpop.f32.mrb[0].mxu0
  %v3429 = vpop.f32.mrb[0].mxu0
  %v3430 = vadd.f32 %v3325, %v3429
  %v3431 = vpop.f32.mrb[0].mxu0
  %3432 = vmatprep.mubr.bf16.mxu0 %v2084
  %3433 = vmatmul.mubr.bf16.gmra.mrb[0].mxu0 %v2083
  %v3434 = vpop.f32.mrb[0].mxu0
  %v3435 = vadd.f32 %v3330, %v3434
  %v3436 = vpop.f32.mrb[0].mxu0
  %v3437 = vpop.f32.mrb[0].mxu0
  %v3438 = vadd.f32 %v3333, %v3437
  %v3439 = vpop.f32.mrb[0].mxu0
  %3440 = vdwg.mxu0
  %3441 = vmatprep.subr.bf16.mxu0 0
  %3442 = vmatpush1.bf16.msra.mxu0 %v2918
  %3443 = vmatprep.subr.bf16.mxu0 0
  %3444 = vmatpush1.bf16.msra.mxu0 %v2919
  %3445 = vmatprep.subr.bf16.mxu0 0
  %3446 = vmatpush1.bf16.msra.mxu0 %v2920
  %3447 = vmatprep.subr.bf16.mxu0 0
  %3448 = vmatpush1.bf16.msra.mxu0 %v2921
  %3449 = vmatprep.subr.bf16.mxu0 0
  %3450 = vmatpush1.bf16.msra.mxu0 %v2922
  %3451 = vmatprep.subr.bf16.mxu0 0
  %3452 = vmatpush1.bf16.msra.mxu0 %v2923
  %3453 = vmatprep.subr.bf16.mxu0 0
  %3454 = vmatpush1.bf16.msra.mxu0 %v2924
  %3455 = vmatprep.subr.bf16.mxu0 0
  %3456 = vmatpush1.bf16.msra.mxu0 %v2925
  %3457 = vmatprep.subr.bf16.mxu0 0
  %3458 = vmatpush1.bf16.msra.mxu0 %v2926
  %3459 = vmatprep.subr.bf16.mxu0 0
  %3460 = vmatpush1.bf16.msra.mxu0 %v2927
  %3461 = vmatprep.subr.bf16.mxu0 0
  %3462 = vmatpush1.bf16.msra.mxu0 %v2928
  %3463 = vmatprep.subr.bf16.mxu0 0
  %3464 = vmatpush1.bf16.msra.mxu0 %v2929
  %3465 = vmatprep.subr.bf16.mxu0 0
  %3466 = vmatpush1.bf16.msra.mxu0 %v2930
  %3467 = vmatprep.subr.bf16.mxu0 0
  %3468 = vmatpush1.bf16.msra.mxu0 %v2931
  %3469 = vmatprep.subr.bf16.mxu0 0
  %3470 = vmatpush1.bf16.msra.mxu0 %v2932
  %3471 = vmatprep.subr.bf16.mxu0 0
  %3472 = vmatpush1.bf16.msra.mxu0 %v2933
  %3473 = vmatprep.mubr.bf16.mxu0 %v1958
  %3474 = vmatmul.mubr.bf16.gmra.mrb[0].mxu0 %v1957
  %v3475 = vpop.f32.mrb[0].mxu0
  %v3476 = vadd.f32 %v3371, %v3475
  %v3477 = vpop.f32.mrb[0].mxu0
  %v3478 = vpop.f32.mrb[0].mxu0
  %v3479 = vadd.f32 %v3374, %v3478
  %v3480 = vpop.f32.mrb[0].mxu0
  %3481 = vmatprep.mubr.bf16.mxu0 %v1974
  %3482 = vmatmul.mubr.bf16.gmra.mrb[0].mxu0 %v1973
  %v3483 = vpop.f32.mrb[0].mxu0
  %v3484 = vadd.f32 %v3379, %v3483
  %v3485 = vpop.f32.mrb[0].mxu0
  %v3486 = vpop.f32.mrb[0].mxu0
  %v3487 = vadd.f32 %v3382, %v3486
  %v3488 = vpop.f32.mrb[0].mxu0
  %3489 = vmatprep.mubr.bf16.mxu0 %v1990
  %3490 = vmatmul.mubr.bf16.gmra.mrb[0].mxu0 %v1989
  %v3491 = vpop.f32.mrb[0].mxu0
  %v3492 = vadd.f32 %v3387, %v3491
  %v3493 = vpop.f32.mrb[0].mxu0
  %v3494 = vpop.f32.mrb[0].mxu0
  %v3495 = vadd.f32 %v3390, %v3494
  %v3496 = vpop.f32.mrb[0].mxu0
  %3497 = vmatprep.mubr.bf16.mxu0 %v2006
  %3498 = vmatmul.mubr.bf16.gmra.mrb[0].mxu0 %v2005
  %v3499 = vpop.f32.mrb[0].mxu0
  %v3500 = vadd.f32 %v3395, %v3499
  %v3501 = vpop.f32.mrb[0].mxu0
  %v3502 = vpop.f32.mrb[0].mxu0
  %v3503 = vadd.f32 %v3398, %v3502
  %v3504 = vpop.f32.mrb[0].mxu0
  %3505 = vmatprep.mubr.bf16.mxu0 %v2022
  %3506 = vmatmul.mubr.bf16.gmra.mrb[0].mxu0 %v2021
  %v3507 = vpop.f32.mrb[0].mxu0
  %v3508 = vadd.f32 %v3403, %v3507
  %v3509 = vpop.f32.mrb[0].mxu0
  %v3510 = vpop.f32.mrb[0].mxu0
  %v3511 = vadd.f32 %v3406, %v3510
  %v3512 = vpop.f32.mrb[0].mxu0
  %3513 = vmatprep.mubr.bf16.mxu0 %v2038
  %3514 = vmatmul.mubr.bf16.gmra.mrb[0].mxu0 %v2037
  %v3515 = vpop.f32.mrb[0].mxu0
  %v3516 = vadd.f32 %v3411, %v3515
  %v3517 = vpop.f32.mrb[0].mxu0
  %v3518 = vpop.f32.mrb[0].mxu0
  %v3519 = vadd.f32 %v3414, %v3518
  %v3520 = vpop.f32.mrb[0].mxu0
  %3521 = vmatprep.mubr.bf16.mxu0 %v2054
  %3522 = vmatmul.mubr.bf16.gmra.mrb[0].mxu0 %v2053
  %v3523 = vpop.f32.mrb[0].mxu0
  %v3524 = vadd.f32 %v3419, %v3523
  %v3525 = vpop.f32.mrb[0].mxu0
  %v3526 = vpop.f32.mrb[0].mxu0
  %v3527 = vadd.f32 %v3422, %v3526
  %v3528 = vpop.f32.mrb[0].mxu0
  %3529 = vmatprep.mubr.bf16.mxu0 %v2070
  %3530 = vmatmul.mubr.bf16.gmra.mrb[0].mxu0 %v2069
  %v3531 = vpop.f32.mrb[0].mxu0
  %v3532 = vadd.f32 %v3427, %v3531
  %v3533 = vpop.f32.mrb[0].mxu0
  %v3534 = vpop.f32.mrb[0].mxu0
  %v3535 = vadd.f32 %v3430, %v3534
  %v3536 = vpop.f32.mrb[0].mxu0
  %3537 = vmatprep.mubr.bf16.mxu0 %v2086
  %3538 = vmatmul.mubr.bf16.gmra.mrb[0].mxu0 %v2085
  %v3539 = vpop.f32.mrb[0].mxu0
  %v3540 = vadd.f32 %v3435, %v3539
  %v3541 = vpop.f32.mrb[0].mxu0
  %v3542 = vpop.f32.mrb[0].mxu0
  %v3543 = vadd.f32 %v3438, %v3542
  %v3544 = vpop.f32.mrb[0].mxu0
  %3545 = vdwg.mxu0
  %3546 = vmatprep.subr.bf16.mxu0 0
  %3547 = vmatpush1.bf16.msra.mxu0 %v2934
  %3548 = vmatprep.subr.bf16.mxu0 0
  %3549 = vmatpush1.bf16.msra.mxu0 %v2935
  %3550 = vmatprep.subr.bf16.mxu0 0
  %3551 = vmatpush1.bf16.msra.mxu0 %v2936
  %3552 = vmatprep.subr.bf16.mxu0 0
  %3553 = vmatpush1.bf16.msra.mxu0 %v2937
  %3554 = vmatprep.subr.bf16.mxu0 0
  %3555 = vmatpush1.bf16.msra.mxu0 %v2938
  %3556 = vmatprep.subr.bf16.mxu0 0
  %3557 = vmatpush1.bf16.msra.mxu0 %v2939
  %3558 = vmatprep.subr.bf16.mxu0 0
  %3559 = vmatpush1.bf16.msra.mxu0 %v2940
  %3560 = vmatprep.subr.bf16.mxu0 0
  %3561 = vmatpush1.bf16.msra.mxu0 %v2941
  %3562 = vmatprep.subr.bf16.mxu0 0
  %3563 = vmatpush1.bf16.msra.mxu0 %v2942
  %3564 = vmatprep.subr.bf16.mxu0 0
  %3565 = vmatpush1.bf16.msra.mxu0 %v2943
  %3566 = vmatprep.subr.bf16.mxu0 0
  %3567 = vmatpush1.bf16.msra.mxu0 %v2944
  %3568 = vmatprep.subr.bf16.mxu0 0
  %3569 = vmatpush1.bf16.msra.mxu0 %v2945
  %3570 = vmatprep.subr.bf16.mxu0 0
  %3571 = vmatpush1.bf16.msra.mxu0 %v2946
  %3572 = vmatprep.subr.bf16.mxu0 0
  %3573 = vmatpush1.bf16.msra.mxu0 %v2947
  %3574 = vmatprep.subr.bf16.mxu0 0
  %3575 = vmatpush1.bf16.msra.mxu0 %v2948
  %3576 = vmatprep.subr.bf16.mxu0 0
  %3577 = vmatpush1.bf16.msra.mxu0 %v2949
  %3578 = vmatprep.mubr.bf16.mxu0 %v1960
  %3579 = vmatmul.mubr.bf16.gmra.mrb[0].mxu0 %v1959
  %v3580 = vpop.f32.mrb[0].mxu0
  %v3581 = vadd.f32 %v3476, %v3580
  %v3582 = vpop.f32.mrb[0].mxu0
  %v3583 = vpop.f32.mrb[0].mxu0
  %v3584 = vadd.f32 %v3479, %v3583
  %v3585 = vpop.f32.mrb[0].mxu0
  %3586 = vmatprep.mubr.bf16.mxu0 %v1976
  %3587 = vmatmul.mubr.bf16.gmra.mrb[0].mxu0 %v1975
  %v3588 = vpop.f32.mrb[0].mxu0
  %v3589 = vadd.f32 %v3484, %v3588
  %v3590 = vpop.f32.mrb[0].mxu0
  %v3591 = vpop.f32.mrb[0].mxu0
  %v3592 = vadd.f32 %v3487, %v3591
  %v3593 = vpop.f32.mrb[0].mxu0
  %3594 = vmatprep.mubr.bf16.mxu0 %v1992
  %3595 = vmatmul.mubr.bf16.gmra.mrb[0].mxu0 %v1991
  %v3596 = vpop.f32.mrb[0].mxu0
  %v3597 = vadd.f32 %v3492, %v3596
  %v3598 = vpop.f32.mrb[0].mxu0
  %v3599 = vpop.f32.mrb[0].mxu0
  %v3600 = vadd.f32 %v3495, %v3599
  %v3601 = vpop.f32.mrb[0].mxu0
  %3602 = vmatprep.mubr.bf16.mxu0 %v2008
  %3603 = vmatmul.mubr.bf16.gmra.mrb[0].mxu0 %v2007
  %v3604 = vpop.f32.mrb[0].mxu0
  %v3605 = vadd.f32 %v3500, %v3604
  %v3606 = vpop.f32.mrb[0].mxu0
  %v3607 = vpop.f32.mrb[0].mxu0
  %v3608 = vadd.f32 %v3503, %v3607
  %v3609 = vpop.f32.mrb[0].mxu0
  %3610 = vmatprep.mubr.bf16.mxu0 %v2024
  %3611 = vmatmul.mubr.bf16.gmra.mrb[0].mxu0 %v2023
  %v3612 = vpop.f32.mrb[0].mxu0
  %v3613 = vadd.f32 %v3508, %v3612
  %v3614 = vpop.f32.mrb[0].mxu0
  %v3615 = vpop.f32.mrb[0].mxu0
  %v3616 = vadd.f32 %v3511, %v3615
  %v3617 = vpop.f32.mrb[0].mxu0
  %3618 = vmatprep.mubr.bf16.mxu0 %v2040
  %3619 = vmatmul.mubr.bf16.gmra.mrb[0].mxu0 %v2039
  %v3620 = vpop.f32.mrb[0].mxu0
  %v3621 = vadd.f32 %v3516, %v3620
  %v3622 = vpop.f32.mrb[0].mxu0
  %v3623 = vpop.f32.mrb[0].mxu0
  %v3624 = vadd.f32 %v3519, %v3623
  %v3625 = vpop.f32.mrb[0].mxu0
  %3626 = vmatprep.mubr.bf16.mxu0 %v2056
  %3627 = vmatmul.mubr.bf16.gmra.mrb[0].mxu0 %v2055
  %v3628 = vpop.f32.mrb[0].mxu0
  %v3629 = vadd.f32 %v3524, %v3628
  %v3630 = vpop.f32.mrb[0].mxu0
  %v3631 = vpop.f32.mrb[0].mxu0
  %v3632 = vadd.f32 %v3527, %v3631
  %v3633 = vpop.f32.mrb[0].mxu0
  %3634 = vmatprep.mubr.bf16.mxu0 %v2072
  %3635 = vmatmul.mubr.bf16.gmra.mrb[0].mxu0 %v2071
  %v3636 = vpop.f32.mrb[0].mxu0
  %v3637 = vadd.f32 %v3532, %v3636
  %v3638 = vpop.f32.mrb[0].mxu0
  %v3639 = vpop.f32.mrb[0].mxu0
  %v3640 = vadd.f32 %v3535, %v3639
  %v3641 = vpop.f32.mrb[0].mxu0
  %3642 = vmatprep.mubr.bf16.mxu0 %v2088
  %3643 = vmatmul.mubr.bf16.gmra.mrb[0].mxu0 %v2087
  %v3644 = vpop.f32.mrb[0].mxu0
  %v3645 = vadd.f32 %v3540, %v3644
  %v3646 = vpop.f32.mrb[0].mxu0
  %v3647 = vpop.f32.mrb[0].mxu0
  %v3648 = vadd.f32 %v3543, %v3647
  %v3649 = vpop.f32.mrb[0].mxu0
  %3650 = vdwg.mxu0
  %3651 = vmatprep.subr.bf16.mxu0 0
  %3652 = vmatpush1.bf16.msra.mxu0 %v2950
  %3653 = vmatprep.subr.bf16.mxu0 0
  %3654 = vmatpush1.bf16.msra.mxu0 %v2951
  %3655 = vmatprep.subr.bf16.mxu0 0
  %3656 = vmatpush1.bf16.msra.mxu0 %v2952
  %3657 = vmatprep.subr.bf16.mxu0 0
  %3658 = vmatpush1.bf16.msra.mxu0 %v2953
  %3659 = vmatprep.subr.bf16.mxu0 0
  %3660 = vmatpush1.bf16.msra.mxu0 %v2954
  %3661 = vmatprep.subr.bf16.mxu0 0
  %3662 = vmatpush1.bf16.msra.mxu0 %v2955
  %3663 = vmatprep.subr.bf16.mxu0 0
  %3664 = vmatpush1.bf16.msra.mxu0 %v2956
  %3665 = vmatprep.subr.bf16.mxu0 0
  %3666 = vmatpush1.bf16.msra.mxu0 %v2957
  %3667 = vmatprep.subr.bf16.mxu0 0
  %3668 = vmatpush1.bf16.msra.mxu0 %v2958
  %3669 = vmatprep.subr.bf16.mxu0 0
  %3670 = vmatpush1.bf16.msra.mxu0 %v2959
  %3671 = vmatprep.subr.bf16.mxu0 0
  %3672 = vmatpush1.bf16.msra.mxu0 %v2960
  %3673 = vmatprep.subr.bf16.mxu0 0
  %3674 = vmatpush1.bf16.msra.mxu0 %v2961
  %3675 = vmatprep.subr.bf16.mxu0 0
  %3676 = vmatpush1.bf16.msra.mxu0 %v2962
  %3677 = vmatprep.subr.bf16.mxu0 0
  %3678 = vmatpush1.bf16.msra.mxu0 %v2963
  %3679 = vmatprep.subr.bf16.mxu0 0
  %3680 = vmatpush1.bf16.msra.mxu0 %v2964
  %3681 = vmatprep.subr.bf16.mxu0 0
  %3682 = vmatpush1.bf16.msra.mxu0 %v2965
  %3683 = vmatprep.mubr.bf16.mxu0 %v1962
  %3684 = vmatmul.mubr.bf16.gmra.mrb[0].mxu0 %v1961
  %v3685 = vpop.f32.mrb[0].mxu0
  %v3686 = vadd.f32 %v3581, %v3685
  %v3687 = vpop.f32.mrb[0].mxu0
  %v3688 = vpop.f32.mrb[0].mxu0
  %v3689 = vadd.f32 %v3584, %v3688
  %v3690 = vpop.f32.mrb[0].mxu0
  %3691 = vmatprep.mubr.bf16.mxu0 %v1978
  %3692 = vmatmul.mubr.bf16.gmra.mrb[0].mxu0 %v1977
  %v3693 = vpop.f32.mrb[0].mxu0
  %v3694 = vadd.f32 %v3589, %v3693
  %v3695 = vpop.f32.mrb[0].mxu0
  %v3696 = vpop.f32.mrb[0].mxu0
  %v3697 = vadd.f32 %v3592, %v3696
  %v3698 = vpop.f32.mrb[0].mxu0
  %3699 = vmatprep.mubr.bf16.mxu0 %v1994
  %3700 = vmatmul.mubr.bf16.gmra.mrb[0].mxu0 %v1993
  %v3701 = vpop.f32.mrb[0].mxu0
  %v3702 = vadd.f32 %v3597, %v3701
  %v3703 = vpop.f32.mrb[0].mxu0
  %v3704 = vpop.f32.mrb[0].mxu0
  %v3705 = vadd.f32 %v3600, %v3704
  %v3706 = vpop.f32.mrb[0].mxu0
  %3707 = vmatprep.mubr.bf16.mxu0 %v2010
  %3708 = vmatmul.mubr.bf16.gmra.mrb[0].mxu0 %v2009
  %v3709 = vpop.f32.mrb[0].mxu0
  %v3710 = vadd.f32 %v3605, %v3709
  %v3711 = vpop.f32.mrb[0].mxu0
  %v3712 = vpop.f32.mrb[0].mxu0
  %v3713 = vadd.f32 %v3608, %v3712
  %v3714 = vpop.f32.mrb[0].mxu0
  %3715 = vmatprep.mubr.bf16.mxu0 %v2026
  %3716 = vmatmul.mubr.bf16.gmra.mrb[0].mxu0 %v2025
  %v3717 = vpop.f32.mrb[0].mxu0
  %v3718 = vadd.f32 %v3613, %v3717
  %v3719 = vpop.f32.mrb[0].mxu0
  %v3720 = vpop.f32.mrb[0].mxu0
  %v3721 = vadd.f32 %v3616, %v3720
  %v3722 = vpop.f32.mrb[0].mxu0
  %3723 = vmatprep.mubr.bf16.mxu0 %v2042
  %3724 = vmatmul.mubr.bf16.gmra.mrb[0].mxu0 %v2041
  %v3725 = vpop.f32.mrb[0].mxu0
  %v3726 = vadd.f32 %v3621, %v3725
  %v3727 = vpop.f32.mrb[0].mxu0
  %v3728 = vpop.f32.mrb[0].mxu0
  %v3729 = vadd.f32 %v3624, %v3728
  %v3730 = vpop.f32.mrb[0].mxu0
  %3731 = vmatprep.mubr.bf16.mxu0 %v2058
  %3732 = vmatmul.mubr.bf16.gmra.mrb[0].mxu0 %v2057
  %v3733 = vpop.f32.mrb[0].mxu0
  %v3734 = vadd.f32 %v3629, %v3733
  %v3735 = vpop.f32.mrb[0].mxu0
  %v3736 = vpop.f32.mrb[0].mxu0
  %v3737 = vadd.f32 %v3632, %v3736
  %v3738 = vpop.f32.mrb[0].mxu0
  %3739 = vmatprep.mubr.bf16.mxu0 %v2074
  %3740 = vmatmul.mubr.bf16.gmra.mrb[0].mxu0 %v2073
  %v3741 = vpop.f32.mrb[0].mxu0
  %v3742 = vadd.f32 %v3637, %v3741
  %v3743 = vpop.f32.mrb[0].mxu0
  %v3744 = vpop.f32.mrb[0].mxu0
  %v3745 = vadd.f32 %v3640, %v3744
  %v3746 = vpop.f32.mrb[0].mxu0
  %3747 = vmatprep.mubr.bf16.mxu0 %v2090
  %3748 = vmatmul.mubr.bf16.gmra.mrb[0].mxu0 %v2089
  %v3749 = vpop.f32.mrb[0].mxu0
  %v3750 = vadd.f32 %v3645, %v3749
  %v3751 = vpop.f32.mrb[0].mxu0
  %v3752 = vpop.f32.mrb[0].mxu0
  %v3753 = vadd.f32 %v3648, %v3752
  %v3754 = vpop.f32.mrb[0].mxu0
  %3755 = vdwg.mxu0
  %3756 = vmatprep.subr.bf16.mxu0 0
  %3757 = vmatpush1.bf16.msra.mxu0 %v2966
  %3758 = vmatprep.subr.bf16.mxu0 0
  %3759 = vmatpush1.bf16.msra.mxu0 %v2967
  %3760 = vmatprep.subr.bf16.mxu0 0
  %3761 = vmatpush1.bf16.msra.mxu0 %v2968
  %3762 = vmatprep.subr.bf16.mxu0 0
  %3763 = vmatpush1.bf16.msra.mxu0 %v2969
  %3764 = vmatprep.subr.bf16.mxu0 0
  %3765 = vmatpush1.bf16.msra.mxu0 %v2970
  %3766 = vmatprep.subr.bf16.mxu0 0
  %3767 = vmatpush1.bf16.msra.mxu0 %v2971
  %3768 = vmatprep.subr.bf16.mxu0 0
  %3769 = vmatpush1.bf16.msra.mxu0 %v2972
  %3770 = vmatprep.subr.bf16.mxu0 0
  %3771 = vmatpush1.bf16.msra.mxu0 %v2973
  %3772 = vmatprep.subr.bf16.mxu0 0
  %3773 = vmatpush1.bf16.msra.mxu0 %v2974
  %3774 = vmatprep.subr.bf16.mxu0 0
  %3775 = vmatpush1.bf16.msra.mxu0 %v2975
  %3776 = vmatprep.subr.bf16.mxu0 0
  %3777 = vmatpush1.bf16.msra.mxu0 %v2976
  %3778 = vmatprep.subr.bf16.mxu0 0
  %3779 = vmatpush1.bf16.msra.mxu0 %v2977
  %3780 = vmatprep.subr.bf16.mxu0 0
  %3781 = vmatpush1.bf16.msra.mxu0 %v2978
  %3782 = vmatprep.subr.bf16.mxu0 0
  %3783 = vmatpush1.bf16.msra.mxu0 %v2979
  %3784 = vmatprep.subr.bf16.mxu0 0
  %3785 = vmatpush1.bf16.msra.mxu0 %v2980
  %3786 = vmatprep.subr.bf16.mxu0 0
  %3787 = vmatpush1.bf16.msra.mxu0 %v2981
  %3788 = vmatprep.mubr.bf16.mxu0 %v1964
  %3789 = vmatmul.mubr.bf16.gmra.mrb[0].mxu0 %v1963
  %v3790 = vpop.f32.mrb[0].mxu0
  %v3791 = vadd.f32 %v3686, %v3790
  %v3792 = vpop.f32.mrb[0].mxu0
  %v3793 = vpop.f32.mrb[0].mxu0
  %v3794 = vadd.f32 %v3689, %v3793
  %v3795 = vpop.f32.mrb[0].mxu0
  %3796 = vmatprep.mubr.bf16.mxu0 %v1980
  %3797 = vmatmul.mubr.bf16.gmra.mrb[0].mxu0 %v1979
  %v3798 = vpop.f32.mrb[0].mxu0
  %v3799 = vadd.f32 %v3694, %v3798
  %v3800 = vpop.f32.mrb[0].mxu0
  %v3801 = vpop.f32.mrb[0].mxu0
  %v3802 = vadd.f32 %v3697, %v3801
  %v3803 = vpop.f32.mrb[0].mxu0
  %3804 = vmatprep.mubr.bf16.mxu0 %v1996
  %3805 = vmatmul.mubr.bf16.gmra.mrb[0].mxu0 %v1995
  %v3806 = vpop.f32.mrb[0].mxu0
  %v3807 = vadd.f32 %v3702, %v3806
  %v3808 = vpop.f32.mrb[0].mxu0
  %v3809 = vpop.f32.mrb[0].mxu0
  %v3810 = vadd.f32 %v3705, %v3809
  %v3811 = vpop.f32.mrb[0].mxu0
  %3812 = vmatprep.mubr.bf16.mxu0 %v2012
  %3813 = vmatmul.mubr.bf16.gmra.mrb[0].mxu0 %v2011
  %v3814 = vpop.f32.mrb[0].mxu0
  %v3815 = vadd.f32 %v3710, %v3814
  %v3816 = vpop.f32.mrb[0].mxu0
  %v3817 = vpop.f32.mrb[0].mxu0
  %v3818 = vadd.f32 %v3713, %v3817
  %v3819 = vpop.f32.mrb[0].mxu0
  %3820 = vmatprep.mubr.bf16.mxu0 %v2028
  %3821 = vmatmul.mubr.bf16.gmra.mrb[0].mxu0 %v2027
  %v3822 = vpop.f32.mrb[0].mxu0
  %v3823 = vadd.f32 %v3718, %v3822
  %v3824 = vpop.f32.mrb[0].mxu0
  %v3825 = vpop.f32.mrb[0].mxu0
  %v3826 = vadd.f32 %v3721, %v3825
  %v3827 = vpop.f32.mrb[0].mxu0
  %3828 = vmatprep.mubr.bf16.mxu0 %v2044
  %3829 = vmatmul.mubr.bf16.gmra.mrb[0].mxu0 %v2043
  %v3830 = vpop.f32.mrb[0].mxu0
  %v3831 = vadd.f32 %v3726, %v3830
  %v3832 = vpop.f32.mrb[0].mxu0
  %v3833 = vpop.f32.mrb[0].mxu0
  %v3834 = vadd.f32 %v3729, %v3833
  %v3835 = vpop.f32.mrb[0].mxu0
  %3836 = vmatprep.mubr.bf16.mxu0 %v2060
  %3837 = vmatmul.mubr.bf16.gmra.mrb[0].mxu0 %v2059
  %v3838 = vpop.f32.mrb[0].mxu0
  %v3839 = vadd.f32 %v3734, %v3838
  %v3840 = vpop.f32.mrb[0].mxu0
  %v3841 = vpop.f32.mrb[0].mxu0
  %v3842 = vadd.f32 %v3737, %v3841
  %v3843 = vpop.f32.mrb[0].mxu0
  %3844 = vmatprep.mubr.bf16.mxu0 %v2076
  %3845 = vmatmul.mubr.bf16.gmra.mrb[0].mxu0 %v2075
  %v3846 = vpop.f32.mrb[0].mxu0
  %v3847 = vadd.f32 %v3742, %v3846
  %v3848 = vpop.f32.mrb[0].mxu0
  %v3849 = vpop.f32.mrb[0].mxu0
  %v3850 = vadd.f32 %v3745, %v3849
  %v3851 = vpop.f32.mrb[0].mxu0
  %3852 = vmatprep.mubr.bf16.mxu0 %v2092
  %3853 = vmatmul.mubr.bf16.gmra.mrb[0].mxu0 %v2091
  %v3854 = vpop.f32.mrb[0].mxu0
  %v3855 = vadd.f32 %v3750, %v3854
  %v3856 = vpop.f32.mrb[0].mxu0
  %v3857 = vpop.f32.mrb[0].mxu0
  %v3858 = vadd.f32 %v3753, %v3857
  %v3859 = vpop.f32.mrb[0].mxu0
  %3860 = vdwg.mxu0
  %3861 = vmatprep.subr.bf16.mxu0 0
  %3862 = vmatpush1.bf16.msra.mxu0 %v2982
  %3863 = vmatprep.subr.bf16.mxu0 0
  %3864 = vmatpush1.bf16.msra.mxu0 %v2983
  %3865 = vmatprep.subr.bf16.mxu0 0
  %3866 = vmatpush1.bf16.msra.mxu0 %v2984
  %3867 = vmatprep.subr.bf16.mxu0 0
  %3868 = vmatpush1.bf16.msra.mxu0 %v2985
  %3869 = vmatprep.subr.bf16.mxu0 0
  %3870 = vmatpush1.bf16.msra.mxu0 %v2986
  %3871 = vmatprep.subr.bf16.mxu0 0
  %3872 = vmatpush1.bf16.msra.mxu0 %v2987
  %3873 = vmatprep.subr.bf16.mxu0 0
  %3874 = vmatpush1.bf16.msra.mxu0 %v2988
  %3875 = vmatprep.subr.bf16.mxu0 0
  %3876 = vmatpush1.bf16.msra.mxu0 %v2989
  %3877 = vmatprep.subr.bf16.mxu0 0
  %3878 = vmatpush1.bf16.msra.mxu0 %v2990
  %3879 = vmatprep.subr.bf16.mxu0 0
  %3880 = vmatpush1.bf16.msra.mxu0 %v2991
  %3881 = vmatprep.subr.bf16.mxu0 0
  %3882 = vmatpush1.bf16.msra.mxu0 %v2992
  %3883 = vmatprep.subr.bf16.mxu0 0
  %3884 = vmatpush1.bf16.msra.mxu0 %v2993
  %3885 = vmatprep.subr.bf16.mxu0 0
  %3886 = vmatpush1.bf16.msra.mxu0 %v2994
  %3887 = vmatprep.subr.bf16.mxu0 0
  %3888 = vmatpush1.bf16.msra.mxu0 %v2995
  %3889 = vmatprep.subr.bf16.mxu0 0
  %3890 = vmatpush1.bf16.msra.mxu0 %v2996
  %3891 = vmatprep.subr.bf16.mxu0 0
  %3892 = vmatpush1.bf16.msra.mxu0 %v2997
  %3893 = vmatprep.mubr.bf16.mxu0 %v1966
  %3894 = vmatmul.mubr.bf16.gmra.mrb[0].mxu0 %v1965
  %v3895 = vpop.f32.mrb[0].mxu0
  %v3896 = vadd.f32 %v3791, %v3895
  %v3897 = vpop.f32.mrb[0].mxu0
  %v3898 = vpop.f32.mrb[0].mxu0
  %v3899 = vadd.f32 %v3794, %v3898
  %v3900 = vpop.f32.mrb[0].mxu0
  %3901 = vmatprep.mubr.bf16.mxu0 %v1982
  %3902 = vmatmul.mubr.bf16.gmra.mrb[0].mxu0 %v1981
  %v3903 = vpop.f32.mrb[0].mxu0
  %v3904 = vadd.f32 %v3799, %v3903
  %v3905 = vpop.f32.mrb[0].mxu0
  %v3906 = vpop.f32.mrb[0].mxu0
  %v3907 = vadd.f32 %v3802, %v3906
  %v3908 = vpop.f32.mrb[0].mxu0
  %3909 = vmatprep.mubr.bf16.mxu0 %v1998
  %3910 = vmatmul.mubr.bf16.gmra.mrb[0].mxu0 %v1997
  %v3911 = vpop.f32.mrb[0].mxu0
  %v3912 = vadd.f32 %v3807, %v3911
  %v3913 = vpop.f32.mrb[0].mxu0
  %v3914 = vpop.f32.mrb[0].mxu0
  %v3915 = vadd.f32 %v3810, %v3914
  %v3916 = vpop.f32.mrb[0].mxu0
  %3917 = vmatprep.mubr.bf16.mxu0 %v2014
  %3918 = vmatmul.mubr.bf16.gmra.mrb[0].mxu0 %v2013
  %v3919 = vpop.f32.mrb[0].mxu0
  %v3920 = vadd.f32 %v3815, %v3919
  %v3921 = vpop.f32.mrb[0].mxu0
  %v3922 = vpop.f32.mrb[0].mxu0
  %v3923 = vadd.f32 %v3818, %v3922
  %v3924 = vpop.f32.mrb[0].mxu0
  %3925 = vmatprep.mubr.bf16.mxu0 %v2030
  %3926 = vmatmul.mubr.bf16.gmra.mrb[0].mxu0 %v2029
  %v3927 = vpop.f32.mrb[0].mxu0
  %v3928 = vadd.f32 %v3823, %v3927
  %v3929 = vpop.f32.mrb[0].mxu0
  %v3930 = vpop.f32.mrb[0].mxu0
  %v3931 = vadd.f32 %v3826, %v3930
  %v3932 = vpop.f32.mrb[0].mxu0
  %3933 = vmatprep.mubr.bf16.mxu0 %v2046
  %3934 = vmatmul.mubr.bf16.gmra.mrb[0].mxu0 %v2045
  %v3935 = vpop.f32.mrb[0].mxu0
  %v3936 = vadd.f32 %v3831, %v3935
  %v3937 = vpop.f32.mrb[0].mxu0
  %v3938 = vpop.f32.mrb[0].mxu0
  %v3939 = vadd.f32 %v3834, %v3938
  %v3940 = vpop.f32.mrb[0].mxu0
  %3941 = vmatprep.mubr.bf16.mxu0 %v2062
  %3942 = vmatmul.mubr.bf16.gmra.mrb[0].mxu0 %v2061
  %v3943 = vpop.f32.mrb[0].mxu0
  %v3944 = vadd.f32 %v3839, %v3943
  %v3945 = vpop.f32.mrb[0].mxu0
  %v3946 = vpop.f32.mrb[0].mxu0
  %v3947 = vadd.f32 %v3842, %v3946
  %v3948 = vpop.f32.mrb[0].mxu0
  %3949 = vmatprep.mubr.bf16.mxu0 %v2078
  %3950 = vmatmul.mubr.bf16.gmra.mrb[0].mxu0 %v2077
  %v3951 = vpop.f32.mrb[0].mxu0
  %v3952 = vadd.f32 %v3847, %v3951
  %v3953 = vpop.f32.mrb[0].mxu0
  %v3954 = vpop.f32.mrb[0].mxu0
  %v3955 = vadd.f32 %v3850, %v3954
  %v3956 = vpop.f32.mrb[0].mxu0
  %3957 = vmatprep.mubr.bf16.mxu0 %v2094
  %3958 = vmatmul.mubr.bf16.gmra.mrb[0].mxu0 %v2093
  %v3959 = vpop.f32.mrb[0].mxu0
  %v3960 = vadd.f32 %v3855, %v3959
  %v3961 = vpop.f32.mrb[0].mxu0
  %v3962 = vpop.f32.mrb[0].mxu0
  %v3963 = vadd.f32 %v3858, %v3962
  %v3964 = vpop.f32.mrb[0].mxu0
  %3965 = vdwg.mxu0
  %v3966 = vmul.f32 %v3896, 0.01
  %v3967 = vmul.f32 %v3899, 0.01
  %v3968 = vmul.f32 %v3904, 0.01
  %v3969 = vmul.f32 %v3907, 0.01
  %v3970 = vmul.f32 %v3912, 0.01
  %v3971 = vmul.f32 %v3915, 0.01
  %v3972 = vmul.f32 %v3920, 0.01
  %v3973 = vmul.f32 %v3923, 0.01
  %v3974 = vmul.f32 %v3928, 0.01
  %v3975 = vmul.f32 %v3931, 0.01
  %v3976 = vmul.f32 %v3936, 0.01
  %v3977 = vmul.f32 %v3939, 0.01
  %v3978 = vmul.f32 %v3944, 0.01
  %v3979 = vmul.f32 %v3947, 0.01
  %v3980 = vmul.f32 %v3952, 0.01
  %v3981 = vmul.f32 %v3955, 0.01
  %v3982 = vmul.f32 %v3960, 0.01
  %v3983 = vmul.f32 %v3963, 0.01
  %v3984 = vmax.f32 %v3896, %v3966
  %v3985 = vmax.f32 %v3899, %v3967
  %v3986 = vmax.f32 %v3904, %v3968
  %v3987 = vmax.f32 %v3907, %v3969
  %v3988 = vmax.f32 %v3912, %v3970
  %v3989 = vmax.f32 %v3915, %v3971
  %v3990 = vmax.f32 %v3920, %v3972
  %v3991 = vmax.f32 %v3923, %v3973
  %v3992 = vmax.f32 %v3928, %v3974
  %v3993 = vmax.f32 %v3931, %v3975
  %v3994 = vmax.f32 %v3936, %v3976
  %v3995 = vmax.f32 %v3939, %v3977
  %v3996 = vmax.f32 %v3944, %v3978
  %v3997 = vmax.f32 %v3947, %v3979
  %v3998 = vmax.f32 %v3952, %v3980
  %v3999 = vmax.f32 %v3955, %v3981
  %v4000 = vmax.f32 %v3960, %v3982
  %v4001 = vmax.f32 %v3963, %v3983
  %v4002 = vpack.c.bf16 %v3985, %v3984
  %v4003 = vpack.c.bf16 %v3987, %v3986
  %v4004 = vpack.c.bf16 %v3989, %v3988
  %v4005 = vpack.c.bf16 %v3991, %v3990
  %v4006 = vpack.c.bf16 %v3993, %v3992
  %v4007 = vpack.c.bf16 %v3995, %v3994
  %v4008 = vpack.c.bf16 %v3997, %v3996
  %v4009 = vpack.c.bf16 %v3999, %v3998
  %v4010 = vpack.c.bf16 %v4001, %v4000
  %v4011 = vld [vmem:[%s5] sm:$0xf]
  %v4012 = vld [vmem:[%s5 + $0x4] sm:$0xf]
  %v4013 = vld [vmem:[%s5 + $0x8] sm:$0xf]
  %v4014 = vld [vmem:[%s5 + $0xc] sm:$0xf]
  %v4015 = vld [vmem:[%s5 + $0x10] sm:$0xf]
  %v4016 = vld [vmem:[%s5 + $0x14] sm:$0xf]
  %v4017 = vld [vmem:[%s5 + $0x18] sm:$0xf]
  %v4018 = vld [vmem:[%s5 + $0x1c] sm:$0xf]
  %v4019 = vld [vmem:[%s5 + $0x20] sm:$0xf]
  %v4020 = vld [vmem:[%s5 + $0x24] sm:$0xf]
  %v4021 = vld [vmem:[%s5 + $0x28] sm:$0xf]
  %v4022 = vld [vmem:[%s5 + $0x2c] sm:$0xf]
  %v4023 = vld [vmem:[%s5 + $0x30] sm:$0xf]
  %v4024 = vld [vmem:[%s5 + $0x34] sm:$0xf]
  %v4025 = vld [vmem:[%s5 + $0x38] sm:$0xf]
  %v4026 = vld [vmem:[%s5 + $0x3c] sm:$0xf]
  %v4027 = vld [vmem:[%s5 + $0x40] sm:$0xf]
  %v4028 = vld [vmem:[%s5 + $0x44] sm:$0xf]
  %v4029 = vld [vmem:[%s5 + $0x48] sm:$0xf]
  %v4030 = vld [vmem:[%s5 + $0x4c] sm:$0xf]
  %v4031 = vld [vmem:[%s5 + $0x50] sm:$0xf]
  %v4032 = vld [vmem:[%s5 + $0x54] sm:$0xf]
  %v4033 = vld [vmem:[%s5 + $0x58] sm:$0xf]
  %v4034 = vld [vmem:[%s5 + $0x5c] sm:$0xf]
  %v4035 = vld [vmem:[%s5 + $0x60] sm:$0xf]
  %v4036 = vld [vmem:[%s5 + $0x64] sm:$0xf]
  %v4037 = vld [vmem:[%s5 + $0x68] sm:$0xf]
  %v4038 = vld [vmem:[%s5 + $0x6c] sm:$0xf]
  %v4039 = vld [vmem:[%s5 + $0x70] sm:$0xf]
  %v4040 = vld [vmem:[%s5 + $0x74] sm:$0xf]
  %v4041 = vld [vmem:[%s5 + $0x78] sm:$0xf]
  %v4042 = vld [vmem:[%s5 + $0x7c] sm:$0xf]
  %v4043 = vld [vmem:[%s5 + $0x80] sm:$0xf]
  %v4044 = vld [vmem:[%s5 + $0x84] sm:$0xf]
  %v4045 = vld [vmem:[%s5 + $0x88] sm:$0xf]
  %v4046 = vld [vmem:[%s5 + $0x8c] sm:$0xf]
  %v4047 = vld [vmem:[%s5 + $0x90] sm:$0xf]
  %v4048 = vld [vmem:[%s5 + $0x94] sm:$0xf]
  %v4049 = vld [vmem:[%s5 + $0x98] sm:$0xf]
  %v4050 = vld [vmem:[%s5 + $0x9c] sm:$0xf]
  %v4051 = vld [vmem:[%s5 + $0xa0] sm:$0xf]
  %v4052 = vld [vmem:[%s5 + $0xa4] sm:$0xf]
  %v4053 = vld [vmem:[%s5 + $0xa8] sm:$0xf]
  %v4054 = vld [vmem:[%s5 + $0xac] sm:$0xf]
  %v4055 = vld [vmem:[%s5 + $0xb0] sm:$0xf]
  %v4056 = vld [vmem:[%s5 + $0xb4] sm:$0xf]
  %v4057 = vld [vmem:[%s5 + $0xb8] sm:$0xf]
  %v4058 = vld [vmem:[%s5 + $0xbc] sm:$0xf]
  %v4059 = vld [vmem:[%s5 + $0xc0] sm:$0xf]
  %v4060 = vld [vmem:[%s5 + $0xc4] sm:$0xf]
  %v4061 = vld [vmem:[%s5 + $0xc8] sm:$0xf]
  %v4062 = vld [vmem:[%s5 + $0xcc] sm:$0xf]
  %v4063 = vld [vmem:[%s5 + $0xd0] sm:$0xf]
  %v4064 = vld [vmem:[%s5 + $0xd4] sm:$0xf]
  %v4065 = vld [vmem:[%s5 + $0xd8] sm:$0xf]
  %v4066 = vld [vmem:[%s5 + $0xdc] sm:$0xf]
  %v4067 = vld [vmem:[%s5 + $0xe0] sm:$0xf]
  %v4068 = vld [vmem:[%s5 + $0xe4] sm:$0xf]
  %v4069 = vld [vmem:[%s5 + $0xe8] sm:$0xf]
  %v4070 = vld [vmem:[%s5 + $0xec] sm:$0xf]
  %v4071 = vld [vmem:[%s5 + $0xf0] sm:$0xf]
  %v4072 = vld [vmem:[%s5 + $0xf4] sm:$0xf]
  %v4073 = vld [vmem:[%s5 + $0xf8] sm:$0xf]
  %v4074 = vld [vmem:[%s5 + $0xfc] sm:$0xf]
  %v4075 = vld [vmem:[%s5 + $0x100] sm:$0xf]
  %v4076 = vld [vmem:[%s5 + $0x104] sm:$0xf]
  %v4077 = vld [vmem:[%s5 + $0x108] sm:$0xf]
  %v4078 = vld [vmem:[%s5 + $0x10c] sm:$0xf]
  %v4079 = vld [vmem:[%s5 + $0x110] sm:$0xf]
  %v4080 = vld [vmem:[%s5 + $0x114] sm:$0xf]
  %v4081 = vld [vmem:[%s5 + $0x118] sm:$0xf]
  %v4082 = vld [vmem:[%s5 + $0x11c] sm:$0xf]
  %v4083 = vld [vmem:[%s5 + $0x120] sm:$0xf]
  %v4084 = vld [vmem:[%s5 + $0x124] sm:$0xf]
  %v4085 = vld [vmem:[%s5 + $0x128] sm:$0xf]
  %v4086 = vld [vmem:[%s5 + $0x12c] sm:$0xf]
  %v4087 = vld [vmem:[%s5 + $0x130] sm:$0xf]
  %v4088 = vld [vmem:[%s5 + $0x134] sm:$0xf]
  %v4089 = vld [vmem:[%s5 + $0x138] sm:$0xf]
  %v4090 = vld [vmem:[%s5 + $0x13c] sm:$0xf]
  %v4091 = vld [vmem:[%s5 + $0x140] sm:$0xf]
  %v4092 = vld [vmem:[%s5 + $0x144] sm:$0xf]
  %v4093 = vld [vmem:[%s5 + $0x148] sm:$0xf]
  %v4094 = vld [vmem:[%s5 + $0x14c] sm:$0xf]
  %v4095 = vld [vmem:[%s5 + $0x150] sm:$0xf]
  %v4096 = vld [vmem:[%s5 + $0x154] sm:$0xf]
  %v4097 = vld [vmem:[%s5 + $0x158] sm:$0xf]
  %v4098 = vld [vmem:[%s5 + $0x15c] sm:$0xf]
  %v4099 = vld [vmem:[%s5 + $0x160] sm:$0xf]
  %v4100 = vld [vmem:[%s5 + $0x164] sm:$0xf]
  %v4101 = vld [vmem:[%s5 + $0x168] sm:$0xf]
  %v4102 = vld [vmem:[%s5 + $0x16c] sm:$0xf]
  %v4103 = vld [vmem:[%s5 + $0x170] sm:$0xf]
  %v4104 = vld [vmem:[%s5 + $0x174] sm:$0xf]
  %v4105 = vld [vmem:[%s5 + $0x178] sm:$0xf]
  %v4106 = vld [vmem:[%s5 + $0x17c] sm:$0xf]
  %v4107 = vld [vmem:[%s5 + $0x180] sm:$0xf]
  %v4108 = vld [vmem:[%s5 + $0x184] sm:$0xf]
  %v4109 = vld [vmem:[%s5 + $0x188] sm:$0xf]
  %v4110 = vld [vmem:[%s5 + $0x18c] sm:$0xf]
  %v4111 = vld [vmem:[%s5 + $0x190] sm:$0xf]
  %v4112 = vld [vmem:[%s5 + $0x194] sm:$0xf]
  %v4113 = vld [vmem:[%s5 + $0x198] sm:$0xf]
  %v4114 = vld [vmem:[%s5 + $0x19c] sm:$0xf]
  %v4115 = vld [vmem:[%s5 + $0x1a0] sm:$0xf]
  %v4116 = vld [vmem:[%s5 + $0x1a4] sm:$0xf]
  %v4117 = vld [vmem:[%s5 + $0x1a8] sm:$0xf]
  %v4118 = vld [vmem:[%s5 + $0x1ac] sm:$0xf]
  %v4119 = vld [vmem:[%s5 + $0x1b0] sm:$0xf]
  %v4120 = vld [vmem:[%s5 + $0x1b4] sm:$0xf]
  %v4121 = vld [vmem:[%s5 + $0x1b8] sm:$0xf]
  %v4122 = vld [vmem:[%s5 + $0x1bc] sm:$0xf]
  %v4123 = vld [vmem:[%s5 + $0x1c0] sm:$0xf]
  %v4124 = vld [vmem:[%s5 + $0x1c4] sm:$0xf]
  %v4125 = vld [vmem:[%s5 + $0x1c8] sm:$0xf]
  %v4126 = vld [vmem:[%s5 + $0x1cc] sm:$0xf]
  %v4127 = vld [vmem:[%s5 + $0x1d0] sm:$0xf]
  %v4128 = vld [vmem:[%s5 + $0x1d4] sm:$0xf]
  %v4129 = vld [vmem:[%s5 + $0x1d8] sm:$0xf]
  %v4130 = vld [vmem:[%s5 + $0x1dc] sm:$0xf]
  %v4131 = vld [vmem:[%s5 + $0x1e0] sm:$0xf]
  %v4132 = vld [vmem:[%s5 + $0x1e4] sm:$0xf]
  %v4133 = vld [vmem:[%s5 + $0x1e8] sm:$0xf]
  %v4134 = vld [vmem:[%s5 + $0x1ec] sm:$0xf]
  %v4135 = vld [vmem:[%s5 + $0x1f0] sm:$0xf]
  %v4136 = vld [vmem:[%s5 + $0x1f4] sm:$0xf]
  %v4137 = vld [vmem:[%s5 + $0x1f8] sm:$0xf]
  %v4138 = vld [vmem:[%s5 + $0x1fc] sm:$0xf]
  %v4139 = vld [vmem:[%s5 + $0x200] sm:$0xf]
  %v4140 = vld [vmem:[%s5 + $0x204] sm:$0xf]
  %v4141 = vld [vmem:[%s5 + $0x208] sm:$0xf]
  %v4142 = vld [vmem:[%s5 + $0x20c] sm:$0xf]
  %v4143 = vld [vmem:[%s5 + $0x210] sm:$0xf]
  %v4144 = vld [vmem:[%s5 + $0x214] sm:$0xf]
  %v4145 = vld [vmem:[%s5 + $0x218] sm:$0xf]
  %v4146 = vld [vmem:[%s5 + $0x21c] sm:$0xf]
  %v4147 = vld [vmem:[%s5 + $0x220] sm:$0xf]
  %v4148 = vld [vmem:[%s5 + $0x224] sm:$0xf]
  %v4149 = vld [vmem:[%s5 + $0x228] sm:$0xf]
  %v4150 = vld [vmem:[%s5 + $0x22c] sm:$0xf]
  %v4151 = vld [vmem:[%s5 + $0x230] sm:$0xf]
  %v4152 = vld [vmem:[%s5 + $0x234] sm:$0xf]
  %v4153 = vld [vmem:[%s5 + $0x238] sm:$0xf]
  %v4154 = vld [vmem:[%s5 + $0x23c] sm:$0xf]
  %v4155 = vld [vmem:[%s6] sm:$0x1]
  %v4157 = vlaneseq
  %v4158 = vshrl.u32 %v4157, 7
  %v4159 = vsub.s32 0, %v4158
  %v4160 = vrot.slane %v4155, %v4159
  %v4306 = vunpack.c.l.b16 %v4011
  %v4307 = vunpack.c.l.b16 %v4012
  %v4308 = vunpack.c.l.b16 %v4013
  %v4309 = vunpack.c.l.b16 %v4014
  %v4310 = vunpack.c.l.b16 %v4015
  %v4311 = vunpack.c.l.b16 %v4016
  %v4312 = vunpack.c.l.b16 %v4017
  %v4313 = vunpack.c.l.b16 %v4018
  %v4314 = vunpack.c.l.b16 %v4019
  %v4315 = vunpack.c.l.b16 %v4020
  %v4316 = vunpack.c.l.b16 %v4021
  %v4317 = vunpack.c.l.b16 %v4022
  %v4318 = vunpack.c.l.b16 %v4023
  %v4319 = vunpack.c.l.b16 %v4024
  %v4320 = vunpack.c.l.b16 %v4025
  %v4321 = vunpack.c.l.b16 %v4026
  %v4322 = vunpack.c.l.b16 %v4027
  %v4323 = vunpack.c.l.b16 %v4028
  %v4324 = vunpack.c.l.b16 %v4029
  %v4325 = vunpack.c.l.b16 %v4030
  %v4326 = vunpack.c.l.b16 %v4031
  %v4327 = vunpack.c.l.b16 %v4032
  %v4328 = vunpack.c.l.b16 %v4033
  %v4329 = vunpack.c.l.b16 %v4034
  %v4330 = vunpack.c.l.b16 %v4035
  %v4331 = vunpack.c.l.b16 %v4036
  %v4332 = vunpack.c.l.b16 %v4037
  %v4333 = vunpack.c.l.b16 %v4038
  %v4334 = vunpack.c.l.b16 %v4039
  %v4335 = vunpack.c.l.b16 %v4040
  %v4336 = vunpack.c.l.b16 %v4041
  %v4337 = vunpack.c.l.b16 %v4042
  %v4338 = vunpack.c.l.b16 %v4043
  %v4339 = vunpack.c.l.b16 %v4044
  %v4340 = vunpack.c.l.b16 %v4045
  %v4341 = vunpack.c.l.b16 %v4046
  %v4342 = vunpack.c.l.b16 %v4047
  %v4343 = vunpack.c.l.b16 %v4048
  %v4344 = vunpack.c.l.b16 %v4049
  %v4345 = vunpack.c.l.b16 %v4050
  %v4346 = vunpack.c.l.b16 %v4051
  %v4347 = vunpack.c.l.b16 %v4052
  %v4348 = vunpack.c.l.b16 %v4053
  %v4349 = vunpack.c.l.b16 %v4054
  %v4350 = vunpack.c.l.b16 %v4055
  %v4351 = vunpack.c.l.b16 %v4056
  %v4352 = vunpack.c.l.b16 %v4057
  %v4353 = vunpack.c.l.b16 %v4058
  %v4354 = vunpack.c.l.b16 %v4059
  %v4355 = vunpack.c.l.b16 %v4060
  %v4356 = vunpack.c.l.b16 %v4061
  %v4357 = vunpack.c.l.b16 %v4062
  %v4358 = vunpack.c.l.b16 %v4063
  %v4359 = vunpack.c.l.b16 %v4064
  %v4360 = vunpack.c.l.b16 %v4065
  %v4361 = vunpack.c.l.b16 %v4066
  %v4362 = vunpack.c.l.b16 %v4067
  %v4363 = vunpack.c.l.b16 %v4068
  %v4364 = vunpack.c.l.b16 %v4069
  %v4365 = vunpack.c.l.b16 %v4070
  %v4366 = vunpack.c.l.b16 %v4071
  %v4367 = vunpack.c.l.b16 %v4072
  %v4368 = vunpack.c.l.b16 %v4073
  %v4369 = vunpack.c.l.b16 %v4074
  %v4370 = vunpack.c.l.b16 %v4075
  %v4371 = vunpack.c.l.b16 %v4076
  %v4372 = vunpack.c.l.b16 %v4077
  %v4373 = vunpack.c.l.b16 %v4078
  %v4374 = vunpack.c.l.b16 %v4079
  %v4375 = vunpack.c.l.b16 %v4080
  %v4376 = vunpack.c.l.b16 %v4081
  %v4377 = vunpack.c.l.b16 %v4082
  %v4378 = vunpack.c.l.b16 %v4083
  %v4379 = vunpack.c.l.b16 %v4084
  %v4380 = vunpack.c.l.b16 %v4085
  %v4381 = vunpack.c.l.b16 %v4086
  %v4382 = vunpack.c.l.b16 %v4087
  %v4383 = vunpack.c.l.b16 %v4088
  %v4384 = vunpack.c.l.b16 %v4089
  %v4385 = vunpack.c.l.b16 %v4090
  %v4386 = vunpack.c.l.b16 %v4091
  %v4387 = vunpack.c.l.b16 %v4092
  %v4388 = vunpack.c.l.b16 %v4093
  %v4389 = vunpack.c.l.b16 %v4094
  %v4390 = vunpack.c.l.b16 %v4095
  %v4391 = vunpack.c.l.b16 %v4096
  %v4392 = vunpack.c.l.b16 %v4097
  %v4393 = vunpack.c.l.b16 %v4098
  %v4394 = vunpack.c.l.b16 %v4099
  %v4395 = vunpack.c.l.b16 %v4100
  %v4396 = vunpack.c.l.b16 %v4101
  %v4397 = vunpack.c.l.b16 %v4102
  %v4398 = vunpack.c.l.b16 %v4103
  %v4399 = vunpack.c.l.b16 %v4104
  %v4400 = vunpack.c.l.b16 %v4105
  %v4401 = vunpack.c.l.b16 %v4106
  %v4402 = vunpack.c.l.b16 %v4107
  %v4403 = vunpack.c.l.b16 %v4108
  %v4404 = vunpack.c.l.b16 %v4109
  %v4405 = vunpack.c.l.b16 %v4110
  %v4406 = vunpack.c.l.b16 %v4111
  %v4407 = vunpack.c.l.b16 %v4112
  %v4408 = vunpack.c.l.b16 %v4113
  %v4409 = vunpack.c.l.b16 %v4114
  %v4410 = vunpack.c.l.b16 %v4115
  %v4411 = vunpack.c.l.b16 %v4116
  %v4412 = vunpack.c.l.b16 %v4117
  %v4413 = vunpack.c.l.b16 %v4118
  %v4414 = vunpack.c.l.b16 %v4119
  %v4415 = vunpack.c.l.b16 %v4120
  %v4416 = vunpack.c.l.b16 %v4121
  %v4417 = vunpack.c.l.b16 %v4122
  %v4418 = vunpack.c.l.b16 %v4123
  %v4419 = vunpack.c.l.b16 %v4124
  %v4420 = vunpack.c.l.b16 %v4125
  %v4421 = vunpack.c.l.b16 %v4126
  %v4422 = vunpack.c.l.b16 %v4127
  %v4423 = vunpack.c.l.b16 %v4128
  %v4424 = vunpack.c.l.b16 %v4129
  %v4425 = vunpack.c.l.b16 %v4130
  %v4426 = vunpack.c.l.b16 %v4131
  %v4427 = vunpack.c.l.b16 %v4132
  %v4428 = vunpack.c.l.b16 %v4133
  %v4429 = vunpack.c.l.b16 %v4134
  %v4430 = vunpack.c.l.b16 %v4135
  %v4431 = vunpack.c.l.b16 %v4136
  %v4432 = vunpack.c.l.b16 %v4137
  %v4433 = vunpack.c.l.b16 %v4138
  %v4434 = vunpack.c.l.b16 %v4139
  %v4435 = vunpack.c.l.b16 %v4140
  %v4436 = vunpack.c.l.b16 %v4141
  %v4437 = vunpack.c.l.b16 %v4142
  %v4438 = vunpack.c.l.b16 %v4143
  %v4439 = vunpack.c.l.b16 %v4144
  %v4440 = vunpack.c.l.b16 %v4145
  %v4441 = vunpack.c.l.b16 %v4146
  %v4442 = vunpack.c.l.b16 %v4147
  %v4443 = vunpack.c.l.b16 %v4148
  %v4444 = vunpack.c.l.b16 %v4149
  %v4445 = vunpack.c.l.b16 %v4150
  %v4446 = vunpack.c.l.b16 %v4151
  %v4447 = vunpack.c.l.b16 %v4152
  %v4448 = vunpack.c.l.b16 %v4153
  %v4449 = vunpack.c.l.b16 %v4154
  %v4450 = vpack.c.b16 %v4307, %v4306
  %v4451 = vpack.c.b16 %v4309, %v4308
  %v4452 = vpack.c.b16 %v4311, %v4310
  %v4453 = vpack.c.b16 %v4313, %v4312
  %v4454 = vpack.c.b16 %v4315, %v4314
  %v4455 = vpack.c.b16 %v4317, %v4316
  %v4456 = vpack.c.b16 %v4319, %v4318
  %v4457 = vpack.c.b16 %v4321, %v4320
  %v4458 = vpack.c.b16 %v4323, %v4322
  %v4459 = vpack.c.b16 %v4325, %v4324
  %v4460 = vpack.c.b16 %v4327, %v4326
  %v4461 = vpack.c.b16 %v4329, %v4328
  %v4462 = vpack.c.b16 %v4331, %v4330
  %v4463 = vpack.c.b16 %v4333, %v4332
  %v4464 = vpack.c.b16 %v4335, %v4334
  %v4465 = vpack.c.b16 %v4337, %v4336
  %v4466 = vpack.c.b16 %v4339, %v4338
  %v4467 = vpack.c.b16 %v4341, %v4340
  %v4468 = vpack.c.b16 %v4343, %v4342
  %v4469 = vpack.c.b16 %v4345, %v4344
  %v4470 = vpack.c.b16 %v4347, %v4346
  %v4471 = vpack.c.b16 %v4349, %v4348
  %v4472 = vpack.c.b16 %v4351, %v4350
  %v4473 = vpack.c.b16 %v4353, %v4352
  %v4474 = vpack.c.b16 %v4355, %v4354
  %v4475 = vpack.c.b16 %v4357, %v4356
  %v4476 = vpack.c.b16 %v4359, %v4358
  %v4477 = vpack.c.b16 %v4361, %v4360
  %v4478 = vpack.c.b16 %v4363, %v4362
  %v4479 = vpack.c.b16 %v4365, %v4364
  %v4480 = vpack.c.b16 %v4367, %v4366
  %v4481 = vpack.c.b16 %v4369, %v4368
  %v4482 = vpack.c.b16 %v4371, %v4370
  %v4483 = vpack.c.b16 %v4373, %v4372
  %v4484 = vpack.c.b16 %v4375, %v4374
  %v4485 = vpack.c.b16 %v4377, %v4376
  %v4486 = vpack.c.b16 %v4379, %v4378
  %v4487 = vpack.c.b16 %v4381, %v4380
  %v4488 = vpack.c.b16 %v4383, %v4382
  %v4489 = vpack.c.b16 %v4385, %v4384
  %v4490 = vpack.c.b16 %v4387, %v4386
  %v4491 = vpack.c.b16 %v4389, %v4388
  %v4492 = vpack.c.b16 %v4391, %v4390
  %v4493 = vpack.c.b16 %v4393, %v4392
  %v4494 = vpack.c.b16 %v4395, %v4394
  %v4495 = vpack.c.b16 %v4397, %v4396
  %v4496 = vpack.c.b16 %v4399, %v4398
  %v4497 = vpack.c.b16 %v4401, %v4400
  %v4498 = vpack.c.b16 %v4403, %v4402
  %v4499 = vpack.c.b16 %v4405, %v4404
  %v4500 = vpack.c.b16 %v4407, %v4406
  %v4501 = vpack.c.b16 %v4409, %v4408
  %v4502 = vpack.c.b16 %v4411, %v4410
  %v4503 = vpack.c.b16 %v4413, %v4412
  %v4504 = vpack.c.b16 %v4415, %v4414
  %v4505 = vpack.c.b16 %v4417, %v4416
  %v4506 = vpack.c.b16 %v4419, %v4418
  %v4507 = vpack.c.b16 %v4421, %v4420
  %v4508 = vpack.c.b16 %v4423, %v4422
  %v4509 = vpack.c.b16 %v4425, %v4424
  %v4510 = vpack.c.b16 %v4427, %v4426
  %v4511 = vpack.c.b16 %v4429, %v4428
  %v4512 = vpack.c.b16 %v4431, %v4430
  %v4513 = vpack.c.b16 %v4433, %v4432
  %v4514 = vpack.c.b16 %v4435, %v4434
  %v4515 = vpack.c.b16 %v4437, %v4436
  %v4516 = vpack.c.b16 %v4439, %v4438
  %v4517 = vpack.c.b16 %v4441, %v4440
  %v4518 = vpack.c.b16 %v4443, %v4442
  %v4519 = vpack.c.b16 %v4445, %v4444
  %v4520 = vpack.c.b16 %v4447, %v4446
  %v4521 = vpack.c.b16 %v4449, %v4448
  %4594 = vmatprep.subr.bf16.mxu0 0
  %4595 = vmatpush1.bf16.msra.mxu0 %v4450
  %4596 = vmatprep.subr.bf16.mxu0 0
  %4597 = vmatpush1.bf16.msra.mxu0 %v4451
  %4598 = vmatprep.subr.bf16.mxu0 0
  %4599 = vmatpush1.bf16.msra.mxu0 %v4452
  %4600 = vmatprep.subr.bf16.mxu0 0
  %4601 = vmatpush1.bf16.msra.mxu0 %v4453
  %4602 = vmatprep.subr.bf16.mxu0 0
  %4603 = vmatpush1.bf16.msra.mxu0 %v4454
  %4604 = vmatprep.subr.bf16.mxu0 0
  %4605 = vmatpush1.bf16.msra.mxu0 %v4455
  %4606 = vmatprep.subr.bf16.mxu0 0
  %4607 = vmatpush1.bf16.msra.mxu0 %v4456
  %4608 = vmatprep.subr.bf16.mxu0 0
  %4609 = vmatpush1.bf16.msra.mxu0 %v4457
  %4610 = vmatprep.subr.bf16.mxu0 0
  %4611 = vmatpush1.bf16.msra.mxu0 %v4458
  %4612 = vmatprep.subr.bf16.mxu0 0
  %4613 = vmatpush1.bf16.msra.mxu0 %v4459
  %4614 = vmatprep.subr.bf16.mxu0 0
  %4615 = vmatpush1.bf16.msra.mxu0 %v4460
  %4616 = vmatprep.subr.bf16.mxu0 0
  %4617 = vmatpush1.bf16.msra.mxu0 %v4461
  %4618 = vmatprep.subr.bf16.mxu0 0
  %4619 = vmatpush1.bf16.msra.mxu0 %v4462
  %4620 = vmatprep.subr.bf16.mxu0 0
  %4621 = vmatpush1.bf16.msra.mxu0 %v4463
  %4622 = vmatprep.subr.bf16.mxu0 0
  %4623 = vmatpush1.bf16.msra.mxu0 %v4464
  %4624 = vmatprep.subr.bf16.mxu0 0
  %4625 = vmatpush1.bf16.msra.mxu0 %v4465
  %4626 = vmatprep.mubr.bf16.mxu0 %v4003
  %4627 = vmatmul.mubr.bf16.gmra.mrb[0].mxu0 %v4002
  %v4628 = vpop.f32.mrb[0].mxu0
  %v4629 = vadd.f32 %v4160, %v4628
  %v4630 = vpop.f32.mrb[0].mxu0
  %v4631 = vpop.f32.mrb[0].mxu0
  %v4632 = vadd.f32 %v4160, %v4631
  %v4633 = vpop.f32.mrb[0].mxu0
  %4634 = vdwg.mxu0
  %4635 = vmatprep.subr.bf16.mxu0 0
  %4636 = vmatpush1.bf16.msra.mxu0 %v4466
  %4637 = vmatprep.subr.bf16.mxu0 0
  %4638 = vmatpush1.bf16.msra.mxu0 %v4467
  %4639 = vmatprep.subr.bf16.mxu0 0
  %4640 = vmatpush1.bf16.msra.mxu0 %v4468
  %4641 = vmatprep.subr.bf16.mxu0 0
  %4642 = vmatpush1.bf16.msra.mxu0 %v4469
  %4643 = vmatprep.subr.bf16.mxu0 0
  %4644 = vmatpush1.bf16.msra.mxu0 %v4470
  %4645 = vmatprep.subr.bf16.mxu0 0
  %4646 = vmatpush1.bf16.msra.mxu0 %v4471
  %4647 = vmatprep.subr.bf16.mxu0 0
  %4648 = vmatpush1.bf16.msra.mxu0 %v4472
  %4649 = vmatprep.subr.bf16.mxu0 0
  %4650 = vmatpush1.bf16.msra.mxu0 %v4473
  %4651 = vmatprep.subr.bf16.mxu0 0
  %4652 = vmatpush1.bf16.msra.mxu0 %v4474
  %4653 = vmatprep.subr.bf16.mxu0 0
  %4654 = vmatpush1.bf16.msra.mxu0 %v4475
  %4655 = vmatprep.subr.bf16.mxu0 0
  %4656 = vmatpush1.bf16.msra.mxu0 %v4476
  %4657 = vmatprep.subr.bf16.mxu0 0
  %4658 = vmatpush1.bf16.msra.mxu0 %v4477
  %4659 = vmatprep.subr.bf16.mxu0 0
  %4660 = vmatpush1.bf16.msra.mxu0 %v4478
  %4661 = vmatprep.subr.bf16.mxu0 0
  %4662 = vmatpush1.bf16.msra.mxu0 %v4479
  %4663 = vmatprep.subr.bf16.mxu0 0
  %4664 = vmatpush1.bf16.msra.mxu0 %v4480
  %4665 = vmatprep.subr.bf16.mxu0 0
  %4666 = vmatpush1.bf16.msra.mxu0 %v4481
  %4667 = vmatprep.mubr.bf16.mxu0 %v4005
  %4668 = vmatmul.mubr.bf16.gmra.mrb[0].mxu0 %v4004
  %v4669 = vpop.f32.mrb[0].mxu0
  %v4670 = vadd.f32 %v4629, %v4669
  %v4671 = vpop.f32.mrb[0].mxu0
  %v4672 = vpop.f32.mrb[0].mxu0
  %v4673 = vadd.f32 %v4632, %v4672
  %v4674 = vpop.f32.mrb[0].mxu0
  %4675 = vdwg.mxu0
  %4676 = vmatprep.subr.bf16.mxu0 0
  %4677 = vmatpush1.bf16.msra.mxu0 %v4482
  %4678 = vmatprep.subr.bf16.mxu0 0
  %4679 = vmatpush1.bf16.msra.mxu0 %v4483
  %4680 = vmatprep.subr.bf16.mxu0 0
  %4681 = vmatpush1.bf16.msra.mxu0 %v4484
  %4682 = vmatprep.subr.bf16.mxu0 0
  %4683 = vmatpush1.bf16.msra.mxu0 %v4485
  %4684 = vmatprep.subr.bf16.mxu0 0
  %4685 = vmatpush1.bf16.msra.mxu0 %v4486
  %4686 = vmatprep.subr.bf16.mxu0 0
  %4687 = vmatpush1.bf16.msra.mxu0 %v4487
  %4688 = vmatprep.subr.bf16.mxu0 0
  %4689 = vmatpush1.bf16.msra.mxu0 %v4488
  %4690 = vmatprep.subr.bf16.mxu0 0
  %4691 = vmatpush1.bf16.msra.mxu0 %v4489
  %4692 = vmatprep.subr.bf16.mxu0 0
  %4693 = vmatpush1.bf16.msra.mxu0 %v4490
  %4694 = vmatprep.subr.bf16.mxu0 0
  %4695 = vmatpush1.bf16.msra.mxu0 %v4491
  %4696 = vmatprep.subr.bf16.mxu0 0
  %4697 = vmatpush1.bf16.msra.mxu0 %v4492
  %4698 = vmatprep.subr.bf16.mxu0 0
  %4699 = vmatpush1.bf16.msra.mxu0 %v4493
  %4700 = vmatprep.subr.bf16.mxu0 0
  %4701 = vmatpush1.bf16.msra.mxu0 %v4494
  %4702 = vmatprep.subr.bf16.mxu0 0
  %4703 = vmatpush1.bf16.msra.mxu0 %v4495
  %4704 = vmatprep.subr.bf16.mxu0 0
  %4705 = vmatpush1.bf16.msra.mxu0 %v4496
  %4706 = vmatprep.subr.bf16.mxu0 0
  %4707 = vmatpush1.bf16.msra.mxu0 %v4497
  %4708 = vmatprep.mubr.bf16.mxu0 %v4007
  %4709 = vmatmul.mubr.bf16.gmra.mrb[0].mxu0 %v4006
  %v4710 = vpop.f32.mrb[0].mxu0
  %v4711 = vadd.f32 %v4670, %v4710
  %v4712 = vpop.f32.mrb[0].mxu0
  %v4713 = vpop.f32.mrb[0].mxu0
  %v4714 = vadd.f32 %v4673, %v4713
  %v4715 = vpop.f32.mrb[0].mxu0
  %4716 = vdwg.mxu0
  %4717 = vmatprep.subr.bf16.mxu0 0
  %4718 = vmatpush1.bf16.msra.mxu0 %v4498
  %4719 = vmatprep.subr.bf16.mxu0 0
  %4720 = vmatpush1.bf16.msra.mxu0 %v4499
  %4721 = vmatprep.subr.bf16.mxu0 0
  %4722 = vmatpush1.bf16.msra.mxu0 %v4500
  %4723 = vmatprep.subr.bf16.mxu0 0
  %4724 = vmatpush1.bf16.msra.mxu0 %v4501
  %4725 = vmatprep.subr.bf16.mxu0 0
  %4726 = vmatpush1.bf16.msra.mxu0 %v4502
  %4727 = vmatprep.subr.bf16.mxu0 0
  %4728 = vmatpush1.bf16.msra.mxu0 %v4503
  %4729 = vmatprep.subr.bf16.mxu0 0
  %4730 = vmatpush1.bf16.msra.mxu0 %v4504
  %4731 = vmatprep.subr.bf16.mxu0 0
  %4732 = vmatpush1.bf16.msra.mxu0 %v4505
  %4733 = vmatprep.subr.bf16.mxu0 0
  %4734 = vmatpush1.bf16.msra.mxu0 %v4506
  %4735 = vmatprep.subr.bf16.mxu0 0
  %4736 = vmatpush1.bf16.msra.mxu0 %v4507
  %4737 = vmatprep.subr.bf16.mxu0 0
  %4738 = vmatpush1.bf16.msra.mxu0 %v4508
  %4739 = vmatprep.subr.bf16.mxu0 0
  %4740 = vmatpush1.bf16.msra.mxu0 %v4509
  %4741 = vmatprep.subr.bf16.mxu0 0
  %4742 = vmatpush1.bf16.msra.mxu0 %v4510
  %4743 = vmatprep.subr.bf16.mxu0 0
  %4744 = vmatpush1.bf16.msra.mxu0 %v4511
  %4745 = vmatprep.subr.bf16.mxu0 0
  %4746 = vmatpush1.bf16.msra.mxu0 %v4512
  %4747 = vmatprep.subr.bf16.mxu0 0
  %4748 = vmatpush1.bf16.msra.mxu0 %v4513
  %4749 = vmatprep.mubr.bf16.mxu0 %v4009
  %4750 = vmatmul.mubr.bf16.gmra.mrb[0].mxu0 %v4008
  %v4751 = vpop.f32.mrb[0].mxu0
  %v4752 = vadd.f32 %v4711, %v4751
  %v4753 = vpop.f32.mrb[0].mxu0
  %v4754 = vpop.f32.mrb[0].mxu0
  %v4755 = vadd.f32 %v4714, %v4754
  %v4756 = vpop.f32.mrb[0].mxu0
  %4757 = vdwg.mxu0
  %4758 = vmatprep.subr.bf16.mxu0 0
  %4759 = vmatpush1.bf16.msra.mxu0 %v4514
  %4760 = vmatprep.subr.bf16.mxu0 0
  %4761 = vmatpush1.bf16.msra.mxu0 %v4515
  %4762 = vmatprep.subr.bf16.mxu0 0
  %4763 = vmatpush1.bf16.msra.mxu0 %v4516
  %4764 = vmatprep.subr.bf16.mxu0 0
  %4765 = vmatpush1.bf16.msra.mxu0 %v4517
  %4766 = vmatprep.subr.bf16.mxu0 0
  %4767 = vmatpush1.bf16.msra.mxu0 %v4518
  %4768 = vmatprep.subr.bf16.mxu0 0
  %4769 = vmatpush1.bf16.msra.mxu0 %v4519
  %4770 = vmatprep.subr.bf16.mxu0 0
  %4771 = vmatpush1.bf16.msra.mxu0 %v4520
  %4772 = vmatprep.subr.bf16.mxu0 0
  %4773 = vmatpush1.bf16.msra.mxu0 %v4521
  %4774 = vmatprep.subr.bf16.mxu0 0
  %4775 = vmatpush1.bf16.msra.mxu0 0
  %4776 = vmatprep.subr.bf16.mxu0 0
  %4777 = vmatpush1.bf16.msra.mxu0 0
  %4778 = vmatprep.subr.bf16.mxu0 0
  %4779 = vmatpush1.bf16.msra.mxu0 0
  %4780 = vmatprep.subr.bf16.mxu0 0
  %4781 = vmatpush1.bf16.msra.mxu0 0
  %4782 = vmatprep.subr.bf16.mxu0 0
  %4783 = vmatpush1.bf16.msra.mxu0 0
  %4784 = vmatprep.subr.bf16.mxu0 0
  %4785 = vmatpush1.bf16.msra.mxu0 0
  %4786 = vmatprep.subr.bf16.mxu0 0
  %4787 = vmatpush1.bf16.msra.mxu0 0
  %4788 = vmatprep.subr.bf16.mxu0 0
  %4789 = vmatpush1.bf16.msra.mxu0 0
  %4790 = vmatprep.mubr.bf16.mxu0 0
  %4791 = vmatmul.mubr.bf16.gmra.mrb[0].mxu0 %v4010
  %v4792 = vpop.f32.mrb[0].mxu0
  %v4793 = vadd.f32 %v4752, %v4792
  %v4794 = vpop.f32.mrb[0].mxu0
  %v4795 = vpop.f32.mrb[0].mxu0
  %v4796 = vadd.f32 %v4755, %v4795
  %v4797 = vpop.f32.mrb[0].mxu0
  %4798 = vdwg.mxu0
  %v4799 = vmul.f32 %v4793, 0.01
  %v4800 = vmul.f32 %v4796, 0.01
  %v4801 = vmax.f32 %v4793, %v4799
  %v4802 = vmax.f32 %v4796, %v4800
  %v4803 = vpack.c.bf16 %v4802, %v4801
  %v4804 = vld [vmem:[%s7] sm:$0xff]
  %v4805 = vld [vmem:[%s7 + $0x8] sm:$0xff]
  %v4806 = vld [vmem:[%s7 + $0x10] sm:$0xff]
  %v4807 = vld [vmem:[%s7 + $0x18] sm:$0xff]
  %v4808 = vld [vmem:[%s7 + $0x20] sm:$0xff]
  %v4809 = vld [vmem:[%s7 + $0x28] sm:$0xff]
  %v4810 = vld [vmem:[%s7 + $0x30] sm:$0xff]
  %v4811 = vld [vmem:[%s7 + $0x38] sm:$0xff]
  %v4812 = vld [vmem:[%s7 + $0x40] sm:$0xff]
  %v4813 = vld [vmem:[%s7 + $0x48] sm:$0xff]
  %v4814 = vld [vmem:[%s7 + $0x50] sm:$0xff]
  %v4815 = vld [vmem:[%s7 + $0x58] sm:$0xff]
  %v4816 = vld [vmem:[%s7 + $0x60] sm:$0xff]
  %v4817 = vld [vmem:[%s7 + $0x68] sm:$0xff]
  %v4818 = vld [vmem:[%s7 + $0x70] sm:$0xff]
  %v4819 = vld [vmem:[%s7 + $0x78] sm:$0xff]
  %v4820 = vld [vmem:[%s7 + $0x80] sm:$0xff]
  %v4821 = vld [vmem:[%s7 + $0x88] sm:$0xff]
  %v4822 = vld [vmem:[%s7 + $0x90] sm:$0xff]
  %v4823 = vld [vmem:[%s7 + $0x98] sm:$0xff]
  %v4824 = vld [vmem:[%s7 + $0xa0] sm:$0xff]
  %v4825 = vld [vmem:[%s7 + $0xa8] sm:$0xff]
  %v4826 = vld [vmem:[%s7 + $0xb0] sm:$0xff]
  %v4827 = vld [vmem:[%s7 + $0xb8] sm:$0xff]
  %v4828 = vld [vmem:[%s7 + $0xc0] sm:$0xff]
  %v4829 = vld [vmem:[%s7 + $0xc8] sm:$0xff]
  %v4830 = vld [vmem:[%s7 + $0xd0] sm:$0xff]
  %v4831 = vld [vmem:[%s7 + $0xd8] sm:$0xff]
  %v4832 = vld [vmem:[%s7 + $0xe0] sm:$0xff]
  %v4833 = vld [vmem:[%s7 + $0xe8] sm:$0xff]
  %v4834 = vld [vmem:[%s7 + $0xf0] sm:$0xff]
  %v4835 = vld [vmem:[%s7 + $0xf8] sm:$0xff]
  %v4836 = vld [vmem:[%s8] sm:$0xf]
  %v4838 = vlaneseq
  %v4839 = vshrl.u32 %v4838, 7
  %v4840 = vsub.s32 0, %v4839
  %v4841 = vrot.slane %v4836, %v4840
  %v4842 = vlaneseq
  %v4843 = vshrl.u32 %v4842, 7
  %v4844 = vsub.s32 1, %v4843
  %v4845 = vrot.slane %v4836, %v4844
  %v4846 = vlaneseq
  %v4847 = vshrl.u32 %v4846, 7
  %v4848 = vsub.s32 2, %v4847
  %v4849 = vrot.slane %v4836, %v4848
  %v4850 = vlaneseq
  %v4851 = vshrl.u32 %v4850, 7
  %v4852 = vsub.s32 3, %v4851
  %v4853 = vrot.slane %v4836, %v4852
  %v4890 = vunpack.c.l.b16 %v4804
  %v4891 = vunpack.c.h.b16 %v4804
  %v4892 = vunpack.c.l.b16 %v4805
  %v4893 = vunpack.c.h.b16 %v4805
  %v4894 = vunpack.c.l.b16 %v4806
  %v4895 = vunpack.c.h.b16 %v4806
  %v4896 = vunpack.c.l.b16 %v4807
  %v4897 = vunpack.c.h.b16 %v4807
  %v4898 = vunpack.c.l.b16 %v4808
  %v4899 = vunpack.c.h.b16 %v4808
  %v4900 = vunpack.c.l.b16 %v4809
  %v4901 = vunpack.c.h.b16 %v4809
  %v4902 = vunpack.c.l.b16 %v4810
  %v4903 = vunpack.c.h.b16 %v4810
  %v4904 = vunpack.c.l.b16 %v4811
  %v4905 = vunpack.c.h.b16 %v4811
  %v4906 = vunpack.c.l.b16 %v4812
  %v4907 = vunpack.c.h.b16 %v4812
  %v4908 = vunpack.c.l.b16 %v4813
  %v4909 = vunpack.c.h.b16 %v4813
  %v4910 = vunpack.c.l.b16 %v4814
  %v4911 = vunpack.c.h.b16 %v4814
  %v4912 = vunpack.c.l.b16 %v4815
  %v4913 = vunpack.c.h.b16 %v4815
  %v4914 = vunpack.c.l.b16 %v4816
  %v4915 = vunpack.c.h.b16 %v4816
  %v4916 = vunpack.c.l.b16 %v4817
  %v4917 = vunpack.c.h.b16 %v4817
  %v4918 = vunpack.c.l.b16 %v4818
  %v4919 = vunpack.c.h.b16 %v4818
  %v4920 = vunpack.c.l.b16 %v4819
  %v4921 = vunpack.c.h.b16 %v4819
  %v4922 = vunpack.c.l.b16 %v4820
  %v4923 = vunpack.c.h.b16 %v4820
  %v4924 = vunpack.c.l.b16 %v4821
  %v4925 = vunpack.c.h.b16 %v4821
  %v4926 = vunpack.c.l.b16 %v4822
  %v4927 = vunpack.c.h.b16 %v4822
  %v4928 = vunpack.c.l.b16 %v4823
  %v4929 = vunpack.c.h.b16 %v4823
  %v4930 = vunpack.c.l.b16 %v4824
  %v4931 = vunpack.c.h.b16 %v4824
  %v4932 = vunpack.c.l.b16 %v4825
  %v4933 = vunpack.c.h.b16 %v4825
  %v4934 = vunpack.c.l.b16 %v4826
  %v4935 = vunpack.c.h.b16 %v4826
  %v4936 = vunpack.c.l.b16 %v4827
  %v4937 = vunpack.c.h.b16 %v4827
  %v4938 = vunpack.c.l.b16 %v4828
  %v4939 = vunpack.c.h.b16 %v4828
  %v4940 = vunpack.c.l.b16 %v4829
  %v4941 = vunpack.c.h.b16 %v4829
  %v4942 = vunpack.c.l.b16 %v4830
  %v4943 = vunpack.c.h.b16 %v4830
  %v4944 = vunpack.c.l.b16 %v4831
  %v4945 = vunpack.c.h.b16 %v4831
  %v4946 = vunpack.c.l.b16 %v4832
  %v4947 = vunpack.c.h.b16 %v4832
  %v4948 = vunpack.c.l.b16 %v4833
  %v4949 = vunpack.c.h.b16 %v4833
  %v4950 = vunpack.c.l.b16 %v4834
  %v4951 = vunpack.c.h.b16 %v4834
  %v4952 = vunpack.c.l.b16 %v4835
  %v4953 = vunpack.c.h.b16 %v4835
  %v4954 = vpack.c.b16 %v4894, %v4890
  %v4955 = vpack.c.b16 %v4895, %v4891
  %v4956 = vpack.c.b16 %v4896, %v4892
  %v4957 = vpack.c.b16 %v4897, %v4893
  %v4958 = vpack.c.b16 %v4902, %v4898
  %v4959 = vpack.c.b16 %v4903, %v4899
  %v4960 = vpack.c.b16 %v4904, %v4900
  %v4961 = vpack.c.b16 %v4905, %v4901
  %v4962 = vpack.c.b16 %v4910, %v4906
  %v4963 = vpack.c.b16 %v4911, %v4907
  %v4964 = vpack.c.b16 %v4912, %v4908
  %v4965 = vpack.c.b16 %v4913, %v4909
  %v4966 = vpack.c.b16 %v4918, %v4914
  %v4967 = vpack.c.b16 %v4919, %v4915
  %v4968 = vpack.c.b16 %v4920, %v4916
  %v4969 = vpack.c.b16 %v4921, %v4917
  %v4970 = vpack.c.b16 %v4926, %v4922
  %v4971 = vpack.c.b16 %v4927, %v4923
  %v4972 = vpack.c.b16 %v4928, %v4924
  %v4973 = vpack.c.b16 %v4929, %v4925
  %v4974 = vpack.c.b16 %v4934, %v4930
  %v4975 = vpack.c.b16 %v4935, %v4931
  %v4976 = vpack.c.b16 %v4936, %v4932
  %v4977 = vpack.c.b16 %v4937, %v4933
  %v4978 = vpack.c.b16 %v4942, %v4938
  %v4979 = vpack.c.b16 %v4943, %v4939
  %v4980 = vpack.c.b16 %v4944, %v4940
  %v4981 = vpack.c.b16 %v4945, %v4941
  %v4982 = vpack.c.b16 %v4950, %v4946
  %v4983 = vpack.c.b16 %v4951, %v4947
  %v4984 = vpack.c.b16 %v4952, %v4948
  %v4985 = vpack.c.b16 %v4953, %v4949
  %5018 = vmatprep.subr.bf16.mxu0 %v4955
  %5019 = vmatpush1.bf16.msra.mxu0 %v4954
  %5020 = vmatprep.subr.bf16.mxu0 %v4959
  %5021 = vmatpush1.bf16.msra.mxu0 %v4958
  %5022 = vmatprep.subr.bf16.mxu0 %v4963
  %5023 = vmatpush1.bf16.msra.mxu0 %v4962
  %5024 = vmatprep.subr.bf16.mxu0 %v4967
  %5025 = vmatpush1.bf16.msra.mxu0 %v4966
  %5026 = vmatprep.subr.bf16.mxu0 %v4971
  %5027 = vmatpush1.bf16.msra.mxu0 %v4970
  %5028 = vmatprep.subr.bf16.mxu0 %v4975
  %5029 = vmatpush1.bf16.msra.mxu0 %v4974
  %5030 = vmatprep.subr.bf16.mxu0 %v4979
  %5031 = vmatpush1.bf16.msra.mxu0 %v4978
  %5032 = vmatprep.subr.bf16.mxu0 %v4983
  %5033 = vmatpush1.bf16.msra.mxu0 %v4982
  %5034 = vmatprep.subr.bf16.mxu0 0
  %5035 = vmatpush1.bf16.msra.mxu0 0
  %5036 = vmatprep.subr.bf16.mxu0 0
  %5037 = vmatpush1.bf16.msra.mxu0 0
  %5038 = vmatprep.subr.bf16.mxu0 0
  %5039 = vmatpush1.bf16.msra.mxu0 0
  %5040 = vmatprep.subr.bf16.mxu0 0
  %5041 = vmatpush1.bf16.msra.mxu0 0
  %5042 = vmatprep.subr.bf16.mxu0 0
  %5043 = vmatpush1.bf16.msra.mxu0 0
  %5044 = vmatprep.subr.bf16.mxu0 0
  %5045 = vmatpush1.bf16.msra.mxu0 0
  %5046 = vmatprep.subr.bf16.mxu0 0
  %5047 = vmatpush1.bf16.msra.mxu0 0
  %5048 = vmatprep.subr.bf16.mxu0 0
  %5049 = vmatpush1.bf16.msra.mxu0 0
  %5050 = vmatprep.mubr.bf16.mxu0 0
  %5051 = vmatmul.mubr.bf16.gmra.mrb[0].mxu0 %v4803
  %v5052 = vpop.f32.mrb[0].mxu0
  %v5053 = vadd.f32 %v4841, %v5052
  %v5054 = vpop.f32.mrb[0].mxu0
  %v5055 = vadd.f32 %v4845, %v5054
  %v5056 = vpop.f32.mrb[0].mxu0
  %v5057 = vadd.f32 %v4841, %v5056
  %v5058 = vpop.f32.mrb[0].mxu0
  %v5059 = vadd.f32 %v4845, %v5058
  %5060 = vdwg.mxu0
  %5061 = vmatprep.subr.bf16.mxu0 %v4957
  %5062 = vmatpush1.bf16.msra.mxu0 %v4956
  %5063 = vmatprep.subr.bf16.mxu0 %v4961
  %5064 = vmatpush1.bf16.msra.mxu0 %v4960
  %5065 = vmatprep.subr.bf16.mxu0 %v4965
  %5066 = vmatpush1.bf16.msra.mxu0 %v4964
  %5067 = vmatprep.subr.bf16.mxu0 %v4969
  %5068 = vmatpush1.bf16.msra.mxu0 %v4968
  %5069 = vmatprep.subr.bf16.mxu0 %v4973
  %5070 = vmatpush1.bf16.msra.mxu0 %v4972
  %5071 = vmatprep.subr.bf16.mxu0 %v4977
  %5072 = vmatpush1.bf16.msra.mxu0 %v4976
  %5073 = vmatprep.subr.bf16.mxu0 %v4981
  %5074 = vmatpush1.bf16.msra.mxu0 %v4980
  %5075 = vmatprep.subr.bf16.mxu0 %v4985
  %5076 = vmatpush1.bf16.msra.mxu0 %v4984
  %5077 = vmatprep.subr.bf16.mxu0 0
  %5078 = vmatpush1.bf16.msra.mxu0 0
  %5079 = vmatprep.subr.bf16.mxu0 0
  %5080 = vmatpush1.bf16.msra.mxu0 0
  %5081 = vmatprep.subr.bf16.mxu0 0
  %5082 = vmatpush1.bf16.msra.mxu0 0
  %5083 = vmatprep.subr.bf16.mxu0 0
  %5084 = vmatpush1.bf16.msra.mxu0 0
  %5085 = vmatprep.subr.bf16.mxu0 0
  %5086 = vmatpush1.bf16.msra.mxu0 0
  %5087 = vmatprep.subr.bf16.mxu0 0
  %5088 = vmatpush1.bf16.msra.mxu0 0
  %5089 = vmatprep.subr.bf16.mxu0 0
  %5090 = vmatpush1.bf16.msra.mxu0 0
  %5091 = vmatprep.subr.bf16.mxu0 0
  %5092 = vmatpush1.bf16.msra.mxu0 0
  %5093 = vmatprep.mubr.bf16.mxu0 0
  %5094 = vmatmul.mubr.bf16.gmra.mrb[0].mxu0 %v4803
  %v5095 = vpop.f32.mrb[0].mxu0
  %v5096 = vadd.f32 %v4849, %v5095
  %v5097 = vpop.f32.mrb[0].mxu0
  %v5098 = vadd.f32 %v4853, %v5097
  %v5099 = vpop.f32.mrb[0].mxu0
  %v5100 = vadd.f32 %v4849, %v5099
  %v5101 = vpop.f32.mrb[0].mxu0
  %v5102 = vadd.f32 %v4853, %v5101
  %5103 = vdwg.mxu0
  %v5104 = vmul.f32 %v5053, 0.01
  %v5105 = vmul.f32 %v5055, 0.01
  %v5106 = vmul.f32 %v5096, 0.01
  %v5107 = vmul.f32 %v5098, 0.01
  %v5108 = vmul.f32 %v5057, 0.01
  %v5109 = vmul.f32 %v5059, 0.01
  %v5110 = vmul.f32 %v5100, 0.01
  %v5111 = vmul.f32 %v5102, 0.01
  %v5112 = vmax.f32 %v5053, %v5104
  %v5113 = vmax.f32 %v5055, %v5105
  %v5114 = vmax.f32 %v5096, %v5106
  %v5115 = vmax.f32 %v5098, %v5107
  %v5116 = vmax.f32 %v5057, %v5108
  %v5117 = vmax.f32 %v5059, %v5109
  %v5118 = vmax.f32 %v5100, %v5110
  %v5119 = vmax.f32 %v5102, %v5111
  %v5120 = vpack.c.bf16 %v5116, %v5112
  %v5121 = vpack.c.bf16 %v5117, %v5113
  %v5122 = vpack.c.bf16 %v5118, %v5114
  %v5123 = vpack.c.bf16 %v5119, %v5115
  %v5124 = vld [vmem:[%s9] sm:$0xf]
  %v5125 = vld [vmem:[%s9 + $0x4] sm:$0xf]
  %v5126 = vld [vmem:[%s9 + $0x8] sm:$0xf]
  %v5127 = vld [vmem:[%s9 + $0xc] sm:$0xf]
  %v5128 = vld [vmem:[%s9 + $0x10] sm:$0xf]
  %v5129 = vld [vmem:[%s9 + $0x14] sm:$0xf]
  %v5130 = vld [vmem:[%s9 + $0x18] sm:$0xf]
  %v5131 = vld [vmem:[%s9 + $0x1c] sm:$0xf]
  %v5132 = vld [vmem:[%s9 + $0x20] sm:$0xf]
  %v5133 = vld [vmem:[%s9 + $0x24] sm:$0xf]
  %v5134 = vld [vmem:[%s9 + $0x28] sm:$0xf]
  %v5135 = vld [vmem:[%s9 + $0x2c] sm:$0xf]
  %v5136 = vld [vmem:[%s9 + $0x30] sm:$0xf]
  %v5137 = vld [vmem:[%s9 + $0x34] sm:$0xf]
  %v5138 = vld [vmem:[%s9 + $0x38] sm:$0xf]
  %v5139 = vld [vmem:[%s9 + $0x3c] sm:$0xf]
  %v5140 = vld [vmem:[%s9 + $0x40] sm:$0xf]
  %v5141 = vld [vmem:[%s9 + $0x44] sm:$0xf]
  %v5142 = vld [vmem:[%s9 + $0x48] sm:$0xf]
  %v5143 = vld [vmem:[%s9 + $0x4c] sm:$0xf]
  %v5144 = vld [vmem:[%s9 + $0x50] sm:$0xf]
  %v5145 = vld [vmem:[%s9 + $0x54] sm:$0xf]
  %v5146 = vld [vmem:[%s9 + $0x58] sm:$0xf]
  %v5147 = vld [vmem:[%s9 + $0x5c] sm:$0xf]
  %v5148 = vld [vmem:[%s9 + $0x60] sm:$0xf]
  %v5149 = vld [vmem:[%s9 + $0x64] sm:$0xf]
  %v5150 = vld [vmem:[%s9 + $0x68] sm:$0xf]
  %v5151 = vld [vmem:[%s9 + $0x6c] sm:$0xf]
  %v5152 = vld [vmem:[%s9 + $0x70] sm:$0xf]
  %v5153 = vld [vmem:[%s9 + $0x74] sm:$0xf]
  %v5154 = vld [vmem:[%s9 + $0x78] sm:$0xf]
  %v5155 = vld [vmem:[%s9 + $0x7c] sm:$0xf]
  %v5156 = vld [vmem:[%s9 + $0x80] sm:$0xf]
  %v5157 = vld [vmem:[%s9 + $0x84] sm:$0xf]
  %v5158 = vld [vmem:[%s9 + $0x88] sm:$0xf]
  %v5159 = vld [vmem:[%s9 + $0x8c] sm:$0xf]
  %v5160 = vld [vmem:[%s9 + $0x90] sm:$0xf]
  %v5161 = vld [vmem:[%s9 + $0x94] sm:$0xf]
  %v5162 = vld [vmem:[%s9 + $0x98] sm:$0xf]
  %v5163 = vld [vmem:[%s9 + $0x9c] sm:$0xf]
  %v5164 = vld [vmem:[%s9 + $0xa0] sm:$0xf]
  %v5165 = vld [vmem:[%s9 + $0xa4] sm:$0xf]
  %v5166 = vld [vmem:[%s9 + $0xa8] sm:$0xf]
  %v5167 = vld [vmem:[%s9 + $0xac] sm:$0xf]
  %v5168 = vld [vmem:[%s9 + $0xb0] sm:$0xf]
  %v5169 = vld [vmem:[%s9 + $0xb4] sm:$0xf]
  %v5170 = vld [vmem:[%s9 + $0xb8] sm:$0xf]
  %v5171 = vld [vmem:[%s9 + $0xbc] sm:$0xf]
  %v5172 = vld [vmem:[%s9 + $0xc0] sm:$0xf]
  %v5173 = vld [vmem:[%s9 + $0xc4] sm:$0xf]
  %v5174 = vld [vmem:[%s9 + $0xc8] sm:$0xf]
  %v5175 = vld [vmem:[%s9 + $0xcc] sm:$0xf]
  %v5176 = vld [vmem:[%s9 + $0xd0] sm:$0xf]
  %v5177 = vld [vmem:[%s9 + $0xd4] sm:$0xf]
  %v5178 = vld [vmem:[%s9 + $0xd8] sm:$0xf]
  %v5179 = vld [vmem:[%s9 + $0xdc] sm:$0xf]
  %v5180 = vld [vmem:[%s9 + $0xe0] sm:$0xf]
  %v5181 = vld [vmem:[%s9 + $0xe4] sm:$0xf]
  %v5182 = vld [vmem:[%s9 + $0xe8] sm:$0xf]
  %v5183 = vld [vmem:[%s9 + $0xec] sm:$0xf]
  %v5184 = vld [vmem:[%s9 + $0xf0] sm:$0xf]
  %v5185 = vld [vmem:[%s9 + $0xf4] sm:$0xf]
  %v5186 = vld [vmem:[%s9 + $0xf8] sm:$0xf]
  %v5187 = vld [vmem:[%s9 + $0xfc] sm:$0xf]
  %v5188 = vld [vmem:[%s10] sm:$0x1]
  %v5190 = vlaneseq
  %v5191 = vshrl.u32 %v5190, 7
  %v5192 = vsub.s32 0, %v5191
  %v5193 = vrot.slane %v5188, %v5192
  %v5259 = vunpack.c.l.b16 %v5124
  %v5260 = vunpack.c.l.b16 %v5125
  %v5261 = vunpack.c.l.b16 %v5126
  %v5262 = vunpack.c.l.b16 %v5127
  %v5263 = vunpack.c.l.b16 %v5128
  %v5264 = vunpack.c.l.b16 %v5129
  %v5265 = vunpack.c.l.b16 %v5130
  %v5266 = vunpack.c.l.b16 %v5131
  %v5267 = vunpack.c.l.b16 %v5132
  %v5268 = vunpack.c.l.b16 %v5133
  %v5269 = vunpack.c.l.b16 %v5134
  %v5270 = vunpack.c.l.b16 %v5135
  %v5271 = vunpack.c.l.b16 %v5136
  %v5272 = vunpack.c.l.b16 %v5137
  %v5273 = vunpack.c.l.b16 %v5138
  %v5274 = vunpack.c.l.b16 %v5139
  %v5275 = vunpack.c.l.b16 %v5140
  %v5276 = vunpack.c.l.b16 %v5141
  %v5277 = vunpack.c.l.b16 %v5142
  %v5278 = vunpack.c.l.b16 %v5143
  %v5279 = vunpack.c.l.b16 %v5144
  %v5280 = vunpack.c.l.b16 %v5145
  %v5281 = vunpack.c.l.b16 %v5146
  %v5282 = vunpack.c.l.b16 %v5147
  %v5283 = vunpack.c.l.b16 %v5148
  %v5284 = vunpack.c.l.b16 %v5149
  %v5285 = vunpack.c.l.b16 %v5150
  %v5286 = vunpack.c.l.b16 %v5151
  %v5287 = vunpack.c.l.b16 %v5152
  %v5288 = vunpack.c.l.b16 %v5153
  %v5289 = vunpack.c.l.b16 %v5154
  %v5290 = vunpack.c.l.b16 %v5155
  %v5291 = vunpack.c.l.b16 %v5156
  %v5292 = vunpack.c.l.b16 %v5157
  %v5293 = vunpack.c.l.b16 %v5158
  %v5294 = vunpack.c.l.b16 %v5159
  %v5295 = vunpack.c.l.b16 %v5160
  %v5296 = vunpack.c.l.b16 %v5161
  %v5297 = vunpack.c.l.b16 %v5162
  %v5298 = vunpack.c.l.b16 %v5163
  %v5299 = vunpack.c.l.b16 %v5164
  %v5300 = vunpack.c.l.b16 %v5165
  %v5301 = vunpack.c.l.b16 %v5166
  %v5302 = vunpack.c.l.b16 %v5167
  %v5303 = vunpack.c.l.b16 %v5168
  %v5304 = vunpack.c.l.b16 %v5169
  %v5305 = vunpack.c.l.b16 %v5170
  %v5306 = vunpack.c.l.b16 %v5171
  %v5307 = vunpack.c.l.b16 %v5172
  %v5308 = vunpack.c.l.b16 %v5173
  %v5309 = vunpack.c.l.b16 %v5174
  %v5310 = vunpack.c.l.b16 %v5175
  %v5311 = vunpack.c.l.b16 %v5176
  %v5312 = vunpack.c.l.b16 %v5177
  %v5313 = vunpack.c.l.b16 %v5178
  %v5314 = vunpack.c.l.b16 %v5179
  %v5315 = vunpack.c.l.b16 %v5180
  %v5316 = vunpack.c.l.b16 %v5181
  %v5317 = vunpack.c.l.b16 %v5182
  %v5318 = vunpack.c.l.b16 %v5183
  %v5319 = vunpack.c.l.b16 %v5184
  %v5320 = vunpack.c.l.b16 %v5185
  %v5321 = vunpack.c.l.b16 %v5186
  %v5322 = vunpack.c.l.b16 %v5187
  %v5323 = vpack.c.b16 %v5260, %v5259
  %v5324 = vpack.c.b16 %v5262, %v5261
  %v5325 = vpack.c.b16 %v5264, %v5263
  %v5326 = vpack.c.b16 %v5266, %v5265
  %v5327 = vpack.c.b16 %v5268, %v5267
  %v5328 = vpack.c.b16 %v5270, %v5269
  %v5329 = vpack.c.b16 %v5272, %v5271
  %v5330 = vpack.c.b16 %v5274, %v5273
  %v5331 = vpack.c.b16 %v5276, %v5275
  %v5332 = vpack.c.b16 %v5278, %v5277
  %v5333 = vpack.c.b16 %v5280, %v5279
  %v5334 = vpack.c.b16 %v5282, %v5281
  %v5335 = vpack.c.b16 %v5284, %v5283
  %v5336 = vpack.c.b16 %v5286, %v5285
  %v5337 = vpack.c.b16 %v5288, %v5287
  %v5338 = vpack.c.b16 %v5290, %v5289
  %v5339 = vpack.c.b16 %v5292, %v5291
  %v5340 = vpack.c.b16 %v5294, %v5293
  %v5341 = vpack.c.b16 %v5296, %v5295
  %v5342 = vpack.c.b16 %v5298, %v5297
  %v5343 = vpack.c.b16 %v5300, %v5299
  %v5344 = vpack.c.b16 %v5302, %v5301
  %v5345 = vpack.c.b16 %v5304, %v5303
  %v5346 = vpack.c.b16 %v5306, %v5305
  %v5347 = vpack.c.b16 %v5308, %v5307
  %v5348 = vpack.c.b16 %v5310, %v5309
  %v5349 = vpack.c.b16 %v5312, %v5311
  %v5350 = vpack.c.b16 %v5314, %v5313
  %v5351 = vpack.c.b16 %v5316, %v5315
  %v5352 = vpack.c.b16 %v5318, %v5317
  %v5353 = vpack.c.b16 %v5320, %v5319
  %v5354 = vpack.c.b16 %v5322, %v5321
  %5387 = vmatprep.subr.bf16.mxu0 0
  %5388 = vmatpush1.bf16.msra.mxu0 %v5323
  %5389 = vmatprep.subr.bf16.mxu0 0
  %5390 = vmatpush1.bf16.msra.mxu0 %v5324
  %5391 = vmatprep.subr.bf16.mxu0 0
  %5392 = vmatpush1.bf16.msra.mxu0 %v5325
  %5393 = vmatprep.subr.bf16.mxu0 0
  %5394 = vmatpush1.bf16.msra.mxu0 %v5326
  %5395 = vmatprep.subr.bf16.mxu0 0
  %5396 = vmatpush1.bf16.msra.mxu0 %v5327
  %5397 = vmatprep.subr.bf16.mxu0 0
  %5398 = vmatpush1.bf16.msra.mxu0 %v5328
  %5399 = vmatprep.subr.bf16.mxu0 0
  %5400 = vmatpush1.bf16.msra.mxu0 %v5329
  %5401 = vmatprep.subr.bf16.mxu0 0
  %5402 = vmatpush1.bf16.msra.mxu0 %v5330
  %5403 = vmatprep.subr.bf16.mxu0 0
  %5404 = vmatpush1.bf16.msra.mxu0 %v5331
  %5405 = vmatprep.subr.bf16.mxu0 0
  %5406 = vmatpush1.bf16.msra.mxu0 %v5332
  %5407 = vmatprep.subr.bf16.mxu0 0
  %5408 = vmatpush1.bf16.msra.mxu0 %v5333
  %5409 = vmatprep.subr.bf16.mxu0 0
  %5410 = vmatpush1.bf16.msra.mxu0 %v5334
  %5411 = vmatprep.subr.bf16.mxu0 0
  %5412 = vmatpush1.bf16.msra.mxu0 %v5335
  %5413 = vmatprep.subr.bf16.mxu0 0
  %5414 = vmatpush1.bf16.msra.mxu0 %v5336
  %5415 = vmatprep.subr.bf16.mxu0 0
  %5416 = vmatpush1.bf16.msra.mxu0 %v5337
  %5417 = vmatprep.subr.bf16.mxu0 0
  %5418 = vmatpush1.bf16.msra.mxu0 %v5338
  %5419 = vmatprep.mubr.bf16.mxu0 %v5121
  %5420 = vmatmul.mubr.bf16.gmra.mrb[0].mxu0 %v5120
  %v5421 = vpop.f32.mrb[0].mxu0
  %v5422 = vadd.f32 %v5193, %v5421
  %v5423 = vpop.f32.mrb[0].mxu0
  %v5424 = vpop.f32.mrb[0].mxu0
  %v5425 = vadd.f32 %v5193, %v5424
  %v5426 = vpop.f32.mrb[0].mxu0
  %5427 = vdwg.mxu0
  %5428 = vmatprep.subr.bf16.mxu0 0
  %5429 = vmatpush1.bf16.msra.mxu0 %v5339
  %5430 = vmatprep.subr.bf16.mxu0 0
  %5431 = vmatpush1.bf16.msra.mxu0 %v5340
  %5432 = vmatprep.subr.bf16.mxu0 0
  %5433 = vmatpush1.bf16.msra.mxu0 %v5341
  %5434 = vmatprep.subr.bf16.mxu0 0
  %5435 = vmatpush1.bf16.msra.mxu0 %v5342
  %5436 = vmatprep.subr.bf16.mxu0 0
  %5437 = vmatpush1.bf16.msra.mxu0 %v5343
  %5438 = vmatprep.subr.bf16.mxu0 0
  %5439 = vmatpush1.bf16.msra.mxu0 %v5344
  %5440 = vmatprep.subr.bf16.mxu0 0
  %5441 = vmatpush1.bf16.msra.mxu0 %v5345
  %5442 = vmatprep.subr.bf16.mxu0 0
  %5443 = vmatpush1.bf16.msra.mxu0 %v5346
  %5444 = vmatprep.subr.bf16.mxu0 0
  %5445 = vmatpush1.bf16.msra.mxu0 %v5347
  %5446 = vmatprep.subr.bf16.mxu0 0
  %5447 = vmatpush1.bf16.msra.mxu0 %v5348
  %5448 = vmatprep.subr.bf16.mxu0 0
  %5449 = vmatpush1.bf16.msra.mxu0 %v5349
  %5450 = vmatprep.subr.bf16.mxu0 0
  %5451 = vmatpush1.bf16.msra.mxu0 %v5350
  %5452 = vmatprep.subr.bf16.mxu0 0
  %5453 = vmatpush1.bf16.msra.mxu0 %v5351
  %5454 = vmatprep.subr.bf16.mxu0 0
  %5455 = vmatpush1.bf16.msra.mxu0 %v5352
  %5456 = vmatprep.subr.bf16.mxu0 0
  %5457 = vmatpush1.bf16.msra.mxu0 %v5353
  %5458 = vmatprep.subr.bf16.mxu0 0
  %5459 = vmatpush1.bf16.msra.mxu0 %v5354
  %5460 = vmatprep.mubr.bf16.mxu0 %v5123
  %5461 = vmatmul.mubr.bf16.gmra.mrb[0].mxu0 %v5122
  %v5462 = vpop.f32.mrb[0].mxu0
  %v5463 = vadd.f32 %v5422, %v5462
  %v5464 = vpop.f32.mrb[0].mxu0
  %v5465 = vpop.f32.mrb[0].mxu0
  %v5466 = vadd.f32 %v5425, %v5465
  %v5467 = vpop.f32.mrb[0].mxu0
  %5468 = vdwg.mxu0
  %5469 = vst [vmem:[%s11] sm:$0xff] %v5463
  %5470 = vst [vmem:[%s11 + $0x8] sm:$0xff] %v5466
  // Predicated region
  $region46: #{_lambda_.1} parent=0 // pred_check
    _
  $region47: #{_lambda_.1} parent=0 // pred_check_branch
    %5472 = sbr.rel (0) target = $region49
  $region48: #{_lambda_.1} parent=0 // pred_region
    _
  $region49: #{_lambda_.1} parent=0 // pred_fallthru
    _
  // Predicated region
  $region50: #{_lambda_.1} parent=0 // pred_check
    _
  $region51: #{_lambda_.1} parent=0 // pred_check_branch
    %5474 = sbr.rel (0) target = $region53
  $region52: #{_lambda_.1} parent=0 // pred_region
    _
  $region53: #{_lambda_.1} parent=0 // pred_fallthru
    _

</llo_original>
